<compile_context>
chip_gen: v7x
topology: tpu7x:2x2x1
jax: 0.10.0
libtpu: 0.0.40
codegen_flags: <defaults>
</compile_context>

<pallas_src>
import jax
import jax.numpy as jnp
from jax.experimental import pallas as pl
from jax.experimental.pallas import tpu as pltpu

COND_SIZ = 8
HIDDEN_SIZ = 512
LATENT_SIZ = 32
N_CLASSES = 29
N_LABELS = 4
SEQ_LEN = 1

EMB_ROWS = 32     # input_embedding rows padded 29 -> 32 (zero rows, never selected)
OUT_PAD = 128     # logits lane dim padded 29 -> 128 for a lane-dense, unmasked store


def decoder_kernel(
    # integer ids (gathers done in-kernel via one-hot matmuls)
    tok_ids_ref,                    # (B, 1)  int32
    lbl_ids2_ref,                   # (2B, 1) int32  row i: label[i], row B+i: label[i]+N_LABELS
    # activations
    h_enc_ref, c_enc_ref,           # (B, 512) f32
    eps_hc_ref,                     # (2B, 32) f32   [eps_h ; eps_c]
    # tables / weights
    emb_ref,                        # (32, 512)  bf16   input embedding (rows >=29 are zero)
    lbl_tab_ref,                    # (8, 8)     f32    [hidden_label_emb ; cell_label_emb]
    w_rep_h_ref, b_rep_h_ref,       # (512, 64) bf16, (1, 64) f32    [mu | log_var]
    w_rep_c_ref, b_rep_c_ref,       # (512, 64) bf16, (1, 64) f32
    w_init_lat_ref, w_init_lbl_ref, b_init_ref,   # (32,512) bf16, (8,512) bf16, (1,512) f32
    w_gates_ref, b_gates_ref,       # (1024, 2048) bf16, (1, 2048) f32   [w_ih ; w_hh], gate order i,f,g,o
    w_out_ref, b_out_ref,           # (512, 128) bf16, (1, 128) f32  (zero-padded past col 29)
    # outputs
    logits_ref, h_out_ref, c_out_ref,
):
    f32 = jnp.float32
    bf16 = jnp.bfloat16
    B = h_enc_ref.shape[0]
    H = HIDDEN_SIZ
    L = LATENT_SIZ

    # --- in-kernel embedding "gathers" as one-hot matmuls (MXU, no XLA gather) ---
    tok_iota = jax.lax.broadcasted_iota(jnp.int32, (B, emb_ref.shape[0]), 1)
    tok_onehot = jnp.where(tok_iota == tok_ids_ref[...], 1.0, 0.0).astype(bf16)
    x_emb = jnp.dot(tok_onehot, emb_ref[...], preferred_element_type=f32)       # (B, 512)

    lbl_iota = jax.lax.broadcasted_iota(jnp.int32, (2 * B, 2 * N_LABELS), 1)
    lbl_onehot = jnp.where(lbl_iota == lbl_ids2_ref[...], 1.0, 0.0)             # f32
    lbl_hc = jnp.dot(lbl_onehot, lbl_tab_ref[...], preferred_element_type=f32)  # (2B, 8)

    # --- reparameterization: [mu | log_var] fused into one matmul per path ---
    rep_h = (jnp.dot(h_enc_ref[...].astype(bf16), w_rep_h_ref[...],
                     preferred_element_type=f32) + b_rep_h_ref[...])            # (B, 64)
    rep_c = (jnp.dot(c_enc_ref[...].astype(bf16), w_rep_c_ref[...],
                     preferred_element_type=f32) + b_rep_c_ref[...])            # (B, 64)
    rep = jnp.concatenate([rep_h, rep_c], axis=0)                               # (2B, 64)
    mu = rep[:, :L]
    log_var = rep[:, L:2 * L]
    lat = mu + jnp.exp(0.5 * log_var) * eps_hc_ref[...]                         # (2B, 32)

    # --- shared init-cond FC, h and c stacked on sublanes (single pass per weight).
    # NOTE: the reference module applies hidden_init_cond_fc to BOTH hidden and cell
    # states (bug in the original, intentionally reproduced). ---
    hc0 = (jnp.dot(lat.astype(bf16), w_init_lat_ref[...], preferred_element_type=f32)
           + jnp.dot(lbl_hc.astype(bf16), w_init_lbl_ref[...], preferred_element_type=f32)
           + b_init_ref[...])                                                   # (2B, 512)
    h0 = hc0[:B, :]
    c0 = hc0[B:, :]

    # --- single LSTM step (SEQ_LEN == 1): fused [x_emb | h0] @ [w_ih ; w_hh] ---
    xh = jnp.concatenate([x_emb, h0], axis=1).astype(bf16)                      # (B, 1024)
    gates = (jnp.dot(xh, w_gates_ref[...], preferred_element_type=f32)
             + b_gates_ref[...])                                                # (B, 2048)
    i_g = jax.nn.sigmoid(gates[:, 0:H])
    f_g = jax.nn.sigmoid(gates[:, H:2 * H])
    g_g = jnp.tanh(gates[:, 2 * H:3 * H])
    o_g = jax.nn.sigmoid(gates[:, 3 * H:4 * H])
    c_new = f_g * c0 + i_g * g_g
    h_new = o_g * jnp.tanh(c_new)

    # --- output projection (padded to 128 lanes -> unmasked store) ---
    logits_ref[...] = (jnp.dot(h_new.astype(bf16), w_out_ref[...],
                               preferred_element_type=f32) + b_out_ref[...])
    h_out_ref[...] = h_new
    c_out_ref[...] = c_new


def prepare_kernel_params(p):
    """Host-side repacking of the module parameters into kernel layout (bf16 weights,
    fused/stacked matrices, lane padding). Pure pre-processing; math is unchanged."""
    bf16 = jnp.bfloat16
    f32 = jnp.float32
    emb_pad = jnp.zeros((EMB_ROWS, HIDDEN_SIZ), f32).at[:N_CLASSES].set(p["input_embedding"])
    w_out_pad = jnp.zeros((HIDDEN_SIZ, OUT_PAD), f32).at[:, :N_CLASSES].set(p["w_out"])
    b_out_pad = jnp.zeros((1, OUT_PAD), f32).at[:, :N_CLASSES].set(p["b_out"])
    return {
        "emb": emb_pad.astype(bf16),
        "lbl_tab": jnp.concatenate(
            [p["hidden_label_embedding"], p["cell_label_embedding"]], axis=0).astype(f32),
        "w_rep_h": jnp.concatenate([p["w_mu_h"], p["w_lv_h"]], axis=1).astype(bf16),
        "b_rep_h": jnp.concatenate([p["b_mu_h"], p["b_lv_h"]], axis=1).astype(f32),
        "w_rep_c": jnp.concatenate([p["w_mu_c"], p["w_lv_c"]], axis=1).astype(bf16),
        "b_rep_c": jnp.concatenate([p["b_mu_c"], p["b_lv_c"]], axis=1).astype(f32),
        "w_init_lat": p["w_init_lat"].astype(bf16),
        "w_init_lbl": p["w_init_lbl"].astype(bf16),
        "b_init": p["b_init"].astype(f32),
        "w_gates": jnp.concatenate([p["w_ih"], p["w_hh"]], axis=0).astype(bf16),  # (1024, 2048)
        "b_gates": p["b_lstm"].astype(f32),
        "w_out": w_out_pad.astype(bf16),
        "b_out": b_out_pad,
    }


def decoder_forward(x_tokens, h_enc, c_enc, labels, eps_h, eps_c, kp):
    """One fused decoder step. All matmul/elementwise math (and the embedding
    gathers, as one-hot matmuls) runs inside a single Pallas kernel."""
    B = x_tokens.shape[0]
    tok_ids = x_tokens.astype(jnp.int32).reshape(B, 1)
    labels_i = labels.astype(jnp.int32)
    lbl_ids2 = jnp.concatenate([labels_i, labels_i + N_LABELS], axis=0).reshape(2 * B, 1)
    eps_hc = jnp.concatenate([eps_h, eps_c], axis=0)  # (2B, 32)

    inputs = (
        tok_ids, lbl_ids2, h_enc, c_enc, eps_hc,
        kp["emb"], kp["lbl_tab"],
        kp["w_rep_h"], kp["b_rep_h"], kp["w_rep_c"], kp["b_rep_c"],
        kp["w_init_lat"], kp["w_init_lbl"], kp["b_init"],
        kp["w_gates"], kp["b_gates"], kp["w_out"], kp["b_out"],
    )

    vmem = pl.BlockSpec(memory_space=pltpu.MemorySpace.VMEM)
    logits_pad, h_new, c_new = pl.pallas_call(
        decoder_kernel,
        out_shape=(
            jax.ShapeDtypeStruct((B, OUT_PAD), jnp.float32),
            jax.ShapeDtypeStruct((B, HIDDEN_SIZ), jnp.float32),
            jax.ShapeDtypeStruct((B, HIDDEN_SIZ), jnp.float32),
        ),
        in_specs=[vmem] * len(inputs),
        out_specs=(vmem, vmem, vmem),
    )(*inputs)

    logits = logits_pad[:, :N_CLASSES]
    # Match PyTorch return shapes: hidden/cell states are (SEQ_LEN, B, HIDDEN).
    return (logits,
            h_new.reshape(SEQ_LEN, B, HIDDEN_SIZ),
            c_new.reshape(SEQ_LEN, B, HIDDEN_SIZ))
    # TODO(synk): if used inside an autoregressive decode loop, add a time grid axis
    # ("arbitrary") with constant-block weight index_maps so weights stay VMEM-resident
    # across steps, and on v7x split the 4H gate columns across the 2 TensorCores.


def decoder_reference(x_tokens, h_enc, c_enc, labels, eps_h, eps_c, params):
    """Pure-JAX f32 reference of the same math, for a sanity check."""
    x_emb = jnp.take(params["input_embedding"], x_tokens, axis=0)
    lbl_h = jnp.take(params["hidden_label_embedding"], labels, axis=0)
    lbl_c = jnp.take(params["cell_label_embedding"], labels, axis=0)

    mu_h = h_enc @ params["w_mu_h"] + params["b_mu_h"]
    lv_h = h_enc @ params["w_lv_h"] + params["b_lv_h"]
    lat_h = mu_h + jnp.exp(0.5 * lv_h) * eps_h
    mu_c = c_enc @ params["w_mu_c"] + params["b_mu_c"]
    lv_c = c_enc @ params["w_lv_c"] + params["b_lv_c"]
    lat_c = mu_c + jnp.exp(0.5 * lv_c) * eps_c

    h0 = lat_h @ params["w_init_lat"] + lbl_h @ params["w_init_lbl"] + params["b_init"]
    c0 = lat_c @ params["w_init_lat"] + lbl_c @ params["w_init_lbl"] + params["b_init"]

    gates = x_emb @ params["w_ih"] + h0 @ params["w_hh"] + params["b_lstm"]
    H = HIDDEN_SIZ
    i_g = jax.nn.sigmoid(gates[:, 0:H])
    f_g = jax.nn.sigmoid(gates[:, H:2 * H])
    g_g = jnp.tanh(gates[:, 2 * H:3 * H])
    o_g = jax.nn.sigmoid(gates[:, 3 * H:4 * H])
    c_new = f_g * c0 + i_g * g_g
    h_new = o_g * jnp.tanh(c_new)
    logits = h_new @ params["w_out"] + params["b_out"]
    return logits, h_new, c_new


def init_params(key):
    ks = jax.random.split(key, 16)
    s = 0.05
    p = {
        "input_embedding": jax.random.normal(ks[0], (N_CLASSES, HIDDEN_SIZ), jnp.float32) * s,
        "hidden_label_embedding": jax.random.normal(ks[1], (N_LABELS, COND_SIZ), jnp.float32) * s,
        "cell_label_embedding": jax.random.normal(ks[2], (N_LABELS, COND_SIZ), jnp.float32) * s,
        "w_mu_h": jax.random.normal(ks[3], (HIDDEN_SIZ, LATENT_SIZ), jnp.float32) * s,
        "b_mu_h": jax.random.normal(ks[4], (1, LATENT_SIZ), jnp.float32) * s,
        "w_lv_h": jax.random.normal(ks[5], (HIDDEN_SIZ, LATENT_SIZ), jnp.float32) * s,
        "b_lv_h": jax.random.normal(ks[6], (1, LATENT_SIZ), jnp.float32) * s,
        "w_mu_c": jax.random.normal(ks[7], (HIDDEN_SIZ, LATENT_SIZ), jnp.float32) * s,
        "b_mu_c": jax.random.normal(ks[8], (1, LATENT_SIZ), jnp.float32) * s,
        "w_lv_c": jax.random.normal(ks[9], (HIDDEN_SIZ, LATENT_SIZ), jnp.float32) * s,
        "b_lv_c": jax.random.normal(ks[10], (1, LATENT_SIZ), jnp.float32) * s,
        # hidden_init_cond_fc: input = [latent(32) | label(8)] -> HIDDEN; stored split.
        "w_init_lat": jax.random.normal(ks[11], (LATENT_SIZ, HIDDEN_SIZ), jnp.float32) * s,
        "w_init_lbl": jax.random.normal(ks[12], (COND_SIZ, HIDDEN_SIZ), jnp.float32) * s,
        "b_init": jax.random.normal(ks[13], (1, HIDDEN_SIZ), jnp.float32) * s,
        # LSTM: gate order i,f,g,o; combined bias (b_ih + b_hh).
        "w_ih": jax.random.normal(ks[14], (HIDDEN_SIZ, 4 * HIDDEN_SIZ), jnp.float32) * s,
        "w_hh": jax.random.normal(ks[15], (HIDDEN_SIZ, 4 * HIDDEN_SIZ), jnp.float32) * s,
    }
    k2 = jax.random.split(jax.random.fold_in(key, 1), 3)
    p["b_lstm"] = jax.random.normal(k2[0], (1, 4 * HIDDEN_SIZ), jnp.float32) * s
    p["w_out"] = jax.random.normal(k2[1], (HIDDEN_SIZ, N_CLASSES), jnp.float32) * s
    p["b_out"] = jax.random.normal(k2[2], (1, N_CLASSES), jnp.float32) * s
    return p


if __name__ == "__main__":
    key = jax.random.PRNGKey(0)
    pkey, dkey = jax.random.split(key)
    params = init_params(pkey)
    kparams = prepare_kernel_params(params)

    B = 8  # batch size (one f32 sublane group)
    dk = jax.random.split(dkey, 6)
    x_tokens = jax.random.randint(dk[0], (B,), 0, N_CLASSES)           # token ids
    labels = jax.random.randint(dk[1], (B,), 0, N_LABELS)              # label ids
    h_enc = jax.random.normal(dk[2], (B, HIDDEN_SIZ), jnp.float32)     # encoder hidden (viewed B,512)
    c_enc = jax.random.normal(dk[3], (B, HIDDEN_SIZ), jnp.float32)     # encoder cell
    # torch.randn_like(mu) epsilon, drawn outside the kernel for determinism.
    eps_h = jax.random.normal(dk[4], (B, LATENT_SIZ), jnp.float32)
    eps_c = jax.random.normal(dk[5], (B, LATENT_SIZ), jnp.float32)

    fwd = jax.jit(decoder_forward)
    logits, h_new, c_new = fwd(x_tokens, h_enc, c_enc, labels, eps_h, eps_c, kparams)
    jax.block_until_ready((logits, h_new, c_new))

    # sanity check against the pure-JAX f32 reference (kernel uses bf16 weights)
    ref_logits, ref_h, ref_c = decoder_reference(x_tokens, h_enc, c_enc, labels, eps_h, eps_c, params)
    assert logits.shape == (B, N_CLASSES)
    assert h_new.shape == (SEQ_LEN, B, HIDDEN_SIZ) and c_new.shape == (SEQ_LEN, B, HIDDEN_SIZ)
    assert jnp.allclose(logits, ref_logits, rtol=2e-2, atol=2e-2)
    assert jnp.allclose(h_new[0], ref_h, rtol=2e-2, atol=2e-2)
    assert jnp.allclose(c_new[0], ref_c, rtol=2e-2, atol=2e-2)

    # TODO(synk): return_kl_loss branch (scalar KL reduction) not implemented; only the
    # label-conditioned, no-KL forward path is fused here.
    print("KERNEL_OK")
</pallas_src>

<mosaic_0001>
module attributes {stable_mosaic.version = 11 : i64} {
  func.func @decoder_kernel(%arg0: memref<8x1xi32, #tpu.memory_space<vmem>>, %arg1: memref<16x1xi32, #tpu.memory_space<vmem>>, %arg2: memref<8x512xf32, #tpu.memory_space<vmem>>, %arg3: memref<8x512xf32, #tpu.memory_space<vmem>>, %arg4: memref<16x32xf32, #tpu.memory_space<vmem>>, %arg5: memref<32x512xbf16, #tpu.memory_space<vmem>>, %arg6: memref<8x8xf32, #tpu.memory_space<vmem>>, %arg7: memref<512x64xbf16, #tpu.memory_space<vmem>>, %arg8: memref<1x64xf32, #tpu.memory_space<vmem>>, %arg9: memref<512x64xbf16, #tpu.memory_space<vmem>>, %arg10: memref<1x64xf32, #tpu.memory_space<vmem>>, %arg11: memref<32x512xbf16, #tpu.memory_space<vmem>>, %arg12: memref<8x512xbf16, #tpu.memory_space<vmem>>, %arg13: memref<1x512xf32, #tpu.memory_space<vmem>>, %arg14: memref<1024x2048xbf16, #tpu.memory_space<vmem>>, %arg15: memref<1x2048xf32, #tpu.memory_space<vmem>>, %arg16: memref<512x128xbf16, #tpu.memory_space<vmem>>, %arg17: memref<1x128xf32, #tpu.memory_space<vmem>>, %arg18: memref<8x128xf32, #tpu.memory_space<vmem>>, %arg19: memref<8x512xf32, #tpu.memory_space<vmem>>, %arg20: memref<8x512xf32, #tpu.memory_space<vmem>>) attributes {dimension_semantics = [], scalar_prefetch = 0 : i64, scratch_operands = 0 : i64, tpu.core_type = #tpu.core_type<tc>} {
    %0 = tpu.iota {dimensions = array<i32: 1>} : vector<8x32xi32>
    %c0 = arith.constant 0 : index
    %c0_0 = arith.constant 0 : index
    %1 = vector.load %arg0[%c0, %c0_0] : memref<8x1xi32, #tpu.memory_space<vmem>>, vector<8x1xi32>
    %2 = vector.broadcast %1 : vector<8x1xi32> to vector<8x32xi32>
    %3 = arith.cmpi eq, %0, %2 : vector<8x32xi32>
    %cst = arith.constant 1.000000e+00 : f32
    %cst_1 = arith.constant 0.000000e+00 : f32
    %4 = vector.broadcast %cst : f32 to vector<8x32xf32>
    %5 = vector.broadcast %cst_1 : f32 to vector<8x32xf32>
    %6 = arith.select %3, %4, %5 : vector<8x32xi1>, vector<8x32xf32>
    %7 = arith.truncf %6 : vector<8x32xf32> to vector<8x32xbf16>
    %c0_2 = arith.constant 0 : index
    %c0_3 = arith.constant 0 : index
    %8 = vector.load %arg5[%c0_2, %c0_3] : memref<32x512xbf16, #tpu.memory_space<vmem>>, vector<32x512xbf16>
    %cst_4 = arith.constant dense<0.000000e+00> : vector<8x512xf32>
    %9 = tpu.matmul %7, %8, %cst_4 {dimension_numbers = #tpu.dot_dimension_numbers<[1], [0], [0], [1], [0, 0, 1, 1], [], []>} : vector<8x32xbf16>, vector<32x512xbf16>, vector<8x512xf32> -> vector<8x512xf32>
    %10 = tpu.iota {dimensions = array<i32: 1>} : vector<16x8xi32>
    %c0_5 = arith.constant 0 : index
    %c0_6 = arith.constant 0 : index
    %11 = vector.load %arg1[%c0_5, %c0_6] : memref<16x1xi32, #tpu.memory_space<vmem>>, vector<16x1xi32>
    %12 = vector.broadcast %11 : vector<16x1xi32> to vector<16x8xi32>
    %13 = arith.cmpi eq, %10, %12 : vector<16x8xi32>
    %cst_7 = arith.constant 1.000000e+00 : f32
    %cst_8 = arith.constant 0.000000e+00 : f32
    %14 = vector.broadcast %cst_7 : f32 to vector<16x8xf32>
    %15 = vector.broadcast %cst_8 : f32 to vector<16x8xf32>
    %16 = arith.select %13, %14, %15 : vector<16x8xi1>, vector<16x8xf32>
    %c0_9 = arith.constant 0 : index
    %c0_10 = arith.constant 0 : index
    %17 = vector.load %arg6[%c0_9, %c0_10] : memref<8x8xf32, #tpu.memory_space<vmem>>, vector<8x8xf32>
    %cst_11 = arith.constant dense<0.000000e+00> : vector<16x8xf32>
    %18 = tpu.matmul %16, %17, %cst_11 {dimension_numbers = #tpu.dot_dimension_numbers<[1], [0], [0], [1], [0, 0, 1, 1], [], []>} : vector<16x8xf32>, vector<8x8xf32>, vector<16x8xf32> -> vector<16x8xf32>
    %c0_12 = arith.constant 0 : index
    %c0_13 = arith.constant 0 : index
    %19 = vector.load %arg2[%c0_12, %c0_13] : memref<8x512xf32, #tpu.memory_space<vmem>>, vector<8x512xf32>
    %20 = arith.truncf %19 : vector<8x512xf32> to vector<8x512xbf16>
    %c0_14 = arith.constant 0 : index
    %c0_15 = arith.constant 0 : index
    %21 = vector.load %arg7[%c0_14, %c0_15] : memref<512x64xbf16, #tpu.memory_space<vmem>>, vector<512x64xbf16>
    %cst_16 = arith.constant dense<0.000000e+00> : vector<8x64xf32>
    %22 = tpu.matmul %20, %21, %cst_16 {dimension_numbers = #tpu.dot_dimension_numbers<[1], [0], [0], [1], [0, 0, 1, 1], [], []>} : vector<8x512xbf16>, vector<512x64xbf16>, vector<8x64xf32> -> vector<8x64xf32>
    %c0_17 = arith.constant 0 : index
    %c0_18 = arith.constant 0 : index
    %23 = vector.load %arg8[%c0_17, %c0_18] : memref<1x64xf32, #tpu.memory_space<vmem>>, vector<1x64xf32>
    %24 = vector.broadcast %23 : vector<1x64xf32> to vector<8x64xf32>
    %25 = arith.addf %22, %24 : vector<8x64xf32>
    %c0_19 = arith.constant 0 : index
    %c0_20 = arith.constant 0 : index
    %26 = vector.load %arg3[%c0_19, %c0_20] : memref<8x512xf32, #tpu.memory_space<vmem>>, vector<8x512xf32>
    %27 = arith.truncf %26 : vector<8x512xf32> to vector<8x512xbf16>
    %c0_21 = arith.constant 0 : index
    %c0_22 = arith.constant 0 : index
    %28 = vector.load %arg9[%c0_21, %c0_22] : memref<512x64xbf16, #tpu.memory_space<vmem>>, vector<512x64xbf16>
    %cst_23 = arith.constant dense<0.000000e+00> : vector<8x64xf32>
    %29 = tpu.matmul %27, %28, %cst_23 {dimension_numbers = #tpu.dot_dimension_numbers<[1], [0], [0], [1], [0, 0, 1, 1], [], []>} : vector<8x512xbf16>, vector<512x64xbf16>, vector<8x64xf32> -> vector<8x64xf32>
    %c0_24 = arith.constant 0 : index
    %c0_25 = arith.constant 0 : index
    %30 = vector.load %arg10[%c0_24, %c0_25] : memref<1x64xf32, #tpu.memory_space<vmem>>, vector<1x64xf32>
    %31 = vector.broadcast %30 : vector<1x64xf32> to vector<8x64xf32>
    %32 = arith.addf %29, %31 : vector<8x64xf32>
    %33 = tpu.concatenate %25, %32 in 0 : vector<8x64xf32>, vector<8x64xf32> -> vector<16x64xf32>
    %34 = vector.extract_strided_slice %33 {offsets = [0, 0], sizes = [16, 32], strides = [1, 1]} : vector<16x64xf32> to vector<16x32xf32>
    %35 = vector.extract_strided_slice %33 {offsets = [0, 32], sizes = [16, 32], strides = [1, 1]} : vector<16x64xf32> to vector<16x32xf32>
    %cst_26 = arith.constant 5.000000e-01 : f32
    %36 = vector.broadcast %cst_26 : f32 to vector<16x32xf32>
    %37 = arith.mulf %36, %35 : vector<16x32xf32>
    %38 = math.exp %37 : vector<16x32xf32>
    %c0_27 = arith.constant 0 : index
    %c0_28 = arith.constant 0 : index
    %39 = vector.load %arg4[%c0_27, %c0_28] : memref<16x32xf32, #tpu.memory_space<vmem>>, vector<16x32xf32>
    %40 = arith.mulf %38, %39 : vector<16x32xf32>
    %41 = arith.addf %34, %40 : vector<16x32xf32>
    %42 = arith.truncf %41 : vector<16x32xf32> to vector<16x32xbf16>
    %c0_29 = arith.constant 0 : index
    %c0_30 = arith.constant 0 : index
    %43 = vector.load %arg11[%c0_29, %c0_30] : memref<32x512xbf16, #tpu.memory_space<vmem>>, vector<32x512xbf16>
    %cst_31 = arith.constant dense<0.000000e+00> : vector<16x512xf32>
    %44 = tpu.matmul %42, %43, %cst_31 {dimension_numbers = #tpu.dot_dimension_numbers<[1], [0], [0], [1], [0, 0, 1, 1], [], []>} : vector<16x32xbf16>, vector<32x512xbf16>, vector<16x512xf32> -> vector<16x512xf32>
    %45 = arith.truncf %18 : vector<16x8xf32> to vector<16x8xbf16>
    %c0_32 = arith.constant 0 : index
    %c0_33 = arith.constant 0 : index
    %46 = vector.load %arg12[%c0_32, %c0_33] : memref<8x512xbf16, #tpu.memory_space<vmem>>, vector<8x512xbf16>
    %cst_34 = arith.constant dense<0.000000e+00> : vector<16x512xf32>
    %47 = tpu.matmul %45, %46, %cst_34 {dimension_numbers = #tpu.dot_dimension_numbers<[1], [0], [0], [1], [0, 0, 1, 1], [], []>} : vector<16x8xbf16>, vector<8x512xbf16>, vector<16x512xf32> -> vector<16x512xf32>
    %48 = arith.addf %44, %47 : vector<16x512xf32>
    %c0_35 = arith.constant 0 : index
    %c0_36 = arith.constant 0 : index
    %49 = vector.load %arg13[%c0_35, %c0_36] : memref<1x512xf32, #tpu.memory_space<vmem>>, vector<1x512xf32>
    %50 = vector.broadcast %49 : vector<1x512xf32> to vector<16x512xf32>
    %51 = arith.addf %48, %50 : vector<16x512xf32>
    %52 = vector.extract_strided_slice %51 {offsets = [0, 0], sizes = [8, 512], strides = [1, 1]} : vector<16x512xf32> to vector<8x512xf32>
    %53 = vector.extract_strided_slice %51 {offsets = [8, 0], sizes = [8, 512], strides = [1, 1]} : vector<16x512xf32> to vector<8x512xf32>
    %54 = tpu.concatenate %9, %52 in 1 : vector<8x512xf32>, vector<8x512xf32> -> vector<8x1024xf32>
    %55 = arith.truncf %54 : vector<8x1024xf32> to vector<8x1024xbf16>
    %c0_37 = arith.constant 0 : index
    %c0_38 = arith.constant 0 : index
    %56 = vector.load %arg14[%c0_37, %c0_38] : memref<1024x2048xbf16, #tpu.memory_space<vmem>>, vector<1024x2048xbf16>
    %cst_39 = arith.constant dense<0.000000e+00> : vector<8x2048xf32>
    %57 = tpu.matmul %55, %56, %cst_39 {dimension_numbers = #tpu.dot_dimension_numbers<[1], [0], [0], [1], [0, 0, 1, 1], [], []>} : vector<8x1024xbf16>, vector<1024x2048xbf16>, vector<8x2048xf32> -> vector<8x2048xf32>
    %c0_40 = arith.constant 0 : index
    %c0_41 = arith.constant 0 : index
    %58 = vector.load %arg15[%c0_40, %c0_41] : memref<1x2048xf32, #tpu.memory_space<vmem>>, vector<1x2048xf32>
    %59 = vector.broadcast %58 : vector<1x2048xf32> to vector<8x2048xf32>
    %60 = arith.addf %57, %59 : vector<8x2048xf32>
    %61 = vector.extract_strided_slice %60 {offsets = [0, 0], sizes = [8, 512], strides = [1, 1]} : vector<8x2048xf32> to vector<8x512xf32>
    %62 = arith.negf %61 : vector<8x512xf32>
    %63 = math.exp %62 : vector<8x512xf32>
    %cst_42 = arith.constant 1.000000e+00 : f32
    %64 = vector.broadcast %cst_42 : f32 to vector<8x512xf32>
    %65 = arith.addf %64, %63 : vector<8x512xf32>
    %66 = arith.divf %64, %65 : vector<8x512xf32>
    %67 = vector.extract_strided_slice %60 {offsets = [0, 512], sizes = [8, 512], strides = [1, 1]} : vector<8x2048xf32> to vector<8x512xf32>
    %68 = arith.negf %67 : vector<8x512xf32>
    %69 = math.exp %68 : vector<8x512xf32>
    %cst_43 = arith.constant 1.000000e+00 : f32
    %70 = vector.broadcast %cst_43 : f32 to vector<8x512xf32>
    %71 = arith.addf %70, %69 : vector<8x512xf32>
    %72 = arith.divf %70, %71 : vector<8x512xf32>
    %73 = vector.extract_strided_slice %60 {offsets = [0, 1024], sizes = [8, 512], strides = [1, 1]} : vector<8x2048xf32> to vector<8x512xf32>
    %74 = math.tanh %73 : vector<8x512xf32>
    %75 = vector.extract_strided_slice %60 {offsets = [0, 1536], sizes = [8, 512], strides = [1, 1]} : vector<8x2048xf32> to vector<8x512xf32>
    %76 = arith.negf %75 : vector<8x512xf32>
    %77 = math.exp %76 : vector<8x512xf32>
    %cst_44 = arith.constant 1.000000e+00 : f32
    %78 = vector.broadcast %cst_44 : f32 to vector<8x512xf32>
    %79 = arith.addf %78, %77 : vector<8x512xf32>
    %80 = arith.divf %78, %79 : vector<8x512xf32>
    %81 = arith.mulf %72, %53 : vector<8x512xf32>
    %82 = arith.mulf %66, %74 : vector<8x512xf32>
    %83 = arith.addf %81, %82 : vector<8x512xf32>
    %84 = math.tanh %83 : vector<8x512xf32>
    %85 = arith.mulf %80, %84 : vector<8x512xf32>
    %86 = arith.truncf %85 : vector<8x512xf32> to vector<8x512xbf16>
    %c0_45 = arith.constant 0 : index
    %c0_46 = arith.constant 0 : index
    %87 = vector.load %arg16[%c0_45, %c0_46] : memref<512x128xbf16, #tpu.memory_space<vmem>>, vector<512x128xbf16>
    %cst_47 = arith.constant dense<0.000000e+00> : vector<8x128xf32>
    %88 = tpu.matmul %86, %87, %cst_47 {dimension_numbers = #tpu.dot_dimension_numbers<[1], [0], [0], [1], [0, 0, 1, 1], [], []>} : vector<8x512xbf16>, vector<512x128xbf16>, vector<8x128xf32> -> vector<8x128xf32>
    %c0_48 = arith.constant 0 : index
    %c0_49 = arith.constant 0 : index
    %89 = vector.load %arg17[%c0_48, %c0_49] : memref<1x128xf32, #tpu.memory_space<vmem>>, vector<1x128xf32>
    %90 = vector.broadcast %89 : vector<1x128xf32> to vector<8x128xf32>
    %91 = arith.addf %88, %90 : vector<8x128xf32>
    %c0_50 = arith.constant 0 : index
    %c0_51 = arith.constant 0 : index
    %92 = vector.load %arg18[%c0_50, %c0_51] : memref<8x128xf32, #tpu.memory_space<vmem>>, vector<8x128xf32>
    tpu.vector_store %arg18[%c0_50, %c0_51], %91 {strides = array<i32>} : memref<8x128xf32, #tpu.memory_space<vmem>>, vector<8x128xf32>,
    %c0_52 = arith.constant 0 : index
    %c0_53 = arith.constant 0 : index
    %93 = vector.load %arg19[%c0_52, %c0_53] : memref<8x512xf32, #tpu.memory_space<vmem>>, vector<8x512xf32>
    tpu.vector_store %arg19[%c0_52, %c0_53], %85 {strides = array<i32>} : memref<8x512xf32, #tpu.memory_space<vmem>>, vector<8x512xf32>,
    %c0_54 = arith.constant 0 : index
    %c0_55 = arith.constant 0 : index
    %94 = vector.load %arg20[%c0_54, %c0_55] : memref<8x512xf32, #tpu.memory_space<vmem>>, vector<8x512xf32>
    tpu.vector_store %arg20[%c0_54, %c0_55], %83 {strides = array<i32>} : memref<8x512xf32, #tpu.memory_space<vmem>>, vector<8x512xf32>,
    return
  }
}

</mosaic_0001>

<llo_original>
// kernel: decoder_forward.1
$region0: #{decoder_forward.1}
  #allocation0 [shape = 'u32[]', space=smem, size = 0x4, offset = 0x4, fixed_abs, tag = 'smem constant byte address 0x4 - core index']
  #allocation1 [shape = 'u32[144,128]{1,0:T(1,128)}', space=vmem, size = 0x12000, scoped, tag = 'internal scratch']
  %s0 = inlined_call_operand.vmem [shape: s32[8,1], index: 0, kind: input, shape index: {}]
  %s1 = inlined_call_operand.vmem [shape: s32[16,1], index: 1, kind: input, shape index: {}]
  %s2 = inlined_call_operand.hbm [shape: f32[8,512], index: 2, kind: input, shape index: {}]
  %s3 = inlined_call_operand.hbm [shape: f32[8,512], index: 3, kind: input, shape index: {}]
  %s4 = inlined_call_operand.vmem [shape: f32[16,32], index: 4, kind: input, shape index: {}]
  %s5 = inlined_call_operand.hbm [shape: bf16[32,512], index: 5, kind: input, shape index: {}]
  %s6 = inlined_call_operand.hbm [shape: f32[8,8], index: 6, kind: input, shape index: {}]
  %s7 = inlined_call_operand.vmem [shape: bf16[512,64], index: 7, kind: input, shape index: {}]
  %s8 = inlined_call_operand.hbm [shape: f32[1,64], index: 8, kind: input, shape index: {}]
  %s9 = inlined_call_operand.vmem [shape: bf16[512,64], index: 9, kind: input, shape index: {}]
  %s10 = inlined_call_operand.hbm [shape: f32[1,64], index: 10, kind: input, shape index: {}]
  %s11 = inlined_call_operand.hbm [shape: bf16[32,512], index: 11, kind: input, shape index: {}]
  %s12 = inlined_call_operand.hbm [shape: bf16[8,512], index: 12, kind: input, shape index: {}]
  %s13 = inlined_call_operand.hbm [shape: f32[1,512], index: 13, kind: input, shape index: {}]
  %s14 = inlined_call_operand.hbm [shape: bf16[1024,2048], index: 14, kind: input, shape index: {}]
  %s15 = inlined_call_operand.hbm [shape: f32[1,2048], index: 15, kind: input, shape index: {}]
  %s16 = inlined_call_operand.hbm [shape: bf16[512,128], index: 16, kind: input, shape index: {}]
  %s17 = inlined_call_operand.hbm [shape: f32[1,128], index: 17, kind: input, shape index: {}]
  %s18 = inlined_call_operand.hbm [shape: f32[8,128], index: 18, kind: output, shape index: {0}]
  %s19 = inlined_call_operand.hbm [shape: f32[8,512], index: 19, kind: output, shape index: {1}]
  %s20 = inlined_call_operand.hbm [shape: f32[8,512], index: 20, kind: output, shape index: {2}]
  %21 = xla_tuple %s18, %s19, %s20
  %s22 = sld [smem:[#allocation0]]
  $region150: #{decoder_forward.1} parent=0
    _
  %s24 = ssub.s32 1, %s22
  %s25 = scalar_select 0, %s24, %s22
  $region1: #{decoder_forward.1} parent=0
    #allocation2 [shape = 'u8[16384]{0}', space=vmem, size = 0x4000, scoped, tag = 'input window, operand 2, single buffered']
    #allocation3 [shape = 's32[1]{0}', space=sflag, size = 0x4, scoped, tag = 'scoped memory for decoder_forward.1']
    #allocation4 [shape = 's32[1]{0}', space=sflag, size = 0x4, scoped, tag = 'scoped memory for decoder_forward.1']
    #allocation5 [shape = 'u8[16384]{0}', space=vmem, size = 0x4000, scoped, tag = 'input window, operand 3, single buffered']
    #allocation6 [shape = 's32[1]{0}', space=sflag, size = 0x4, scoped, tag = 'scoped memory for decoder_forward.1']
    #allocation7 [shape = 'u8[32768]{0}', space=vmem, size = 0x8000, scoped, tag = 'input window, operand 5, single buffered']
    #allocation8 [shape = 'u8[4096]{0}', space=vmem, size = 0x1000, scoped, tag = 'input window, operand 6, single buffered']
    #allocation9 [shape = 's32[1]{0}', space=sflag, size = 0x4, scoped, tag = 'scoped memory for decoder_forward.1']
    #allocation10 [shape = 'u8[512]{0}', space=vmem, size = 0x400, scoped, tag = 'input window, operand 8, single buffered']
    #allocation11 [shape = 'u8[512]{0}', space=vmem, size = 0x400, scoped, tag = 'input window, operand 10, single buffered']
    #allocation12 [shape = 's32[1]{0}', space=sflag, size = 0x4, scoped, tag = 'scoped memory for decoder_forward.1']
    #allocation13 [shape = 'u8[32768]{0}', space=vmem, size = 0x8000, scoped, tag = 'input window, operand 11, single buffered']
    #allocation14 [shape = 'u8[8192]{0}', space=vmem, size = 0x2000, scoped, tag = 'input window, operand 12, single buffered']
    #allocation15 [shape = 's32[1]{0}', space=sflag, size = 0x4, scoped, tag = 'scoped memory for decoder_forward.1']
    #allocation16 [shape = 'u8[2048]{0}', space=vmem, size = 0x800, scoped, tag = 'input window, operand 13, single buffered']
    #allocation17 [shape = 'u8[4194304]{0}', space=vmem, size = 0x400000, scoped, tag = 'input window, operand 14, single buffered']
    #allocation18 [shape = 's32[1]{0}', space=sflag, size = 0x4, scoped, tag = 'scoped memory for decoder_forward.1']
    #allocation19 [shape = 'u8[8192]{0}', space=vmem, size = 0x2000, scoped, tag = 'input window, operand 15, single buffered']
    #allocation20 [shape = 'u8[131072]{0}', space=vmem, size = 0x20000, scoped, tag = 'input window, operand 16, single buffered']
    #allocation21 [shape = 's32[1]{0}', space=sflag, size = 0x4, scoped, tag = 'scoped memory for decoder_forward.1']
    #allocation22 [shape = 'u8[512]{0}', space=vmem, size = 0x400, scoped, tag = 'input window, operand 17, single buffered']
    #allocation23 [shape = 'u8[4096]{0}', space=vmem, size = 0x1000, scoped, tag = 'output window, operand 0, single buffered']
    #allocation24 [shape = 'u8[16384]{0}', space=vmem, size = 0x4000, scoped, tag = 'output window, operand 1, single buffered']
    #allocation25 [shape = 's32[1]{0}', space=sflag, size = 0x4, scoped, tag = 'scoped memory for decoder_forward.1']
    #allocation26 [shape = 'u8[16384]{0}', space=vmem, size = 0x4000, scoped, tag = 'output window, operand 2, single buffered']
    %26 = vsyncpa [#allocation3], 0
    %27 = vsyncpa [#allocation6], 0
    %28 = vsyncpa [#allocation9], 0
    %29 = vsyncpa [#allocation12], 0
    %30 = vsyncpa [#allocation15], 0
    %31 = vsyncpa [#allocation18], 0
    %32 = vsyncpa [#allocation21], 0
    %33 = vsyncpa [#allocation4], 0
    %34 = vsyncpa [#allocation25], 0
    // Predicated region
    $region2: #{decoder_forward.1} parent=1 // pred_check
      _
    $region3: #{decoder_forward.1} parent=1 // pred_check_branch
      %36 = sbr.rel (0) target = $region5
    $region4: #{decoder_forward.1} parent=1 // pred_region
      _
    $region5: #{decoder_forward.1} parent=1 // pred_fallthru
      _
    // Predicated region
    $region6: #{decoder_forward.1} parent=1 // pred_check
      _
    $region7: #{decoder_forward.1} parent=1 // pred_check_branch
      %38 = sbr.rel (0) target = $region9
    $region8: #{decoder_forward.1} parent=1 // pred_region
      _
    $region9: #{decoder_forward.1} parent=1 // pred_fallthru
      _
    // Predicated region
    $region10: #{decoder_forward.1} parent=1 // pred_check
      _
    $region11: #{decoder_forward.1} parent=1 // pred_check_branch
      %40 = sbr.rel (0) target = $region13
    $region12: #{decoder_forward.1} parent=1 // pred_region
      %s42 = ssub.s32 512, 512
      %43 = vsyncadd [#allocation3], %s42
      %s45 = sshll.u32 [#allocation2], 4
      %s46 = int_to_ptr.vmem [resolvable:$true] %s45
      %48 = dma.hbm_to_vmem [thread:$0]  %s2, 512, %s46, [#allocation3]
    $region13: #{decoder_forward.1} parent=1 // pred_fallthru
      _
    // Predicated region
    $region14: #{decoder_forward.1} parent=1 // pred_check
      _
    $region15: #{decoder_forward.1} parent=1 // pred_check_branch
      %50 = sbr.rel (0) target = $region17
    $region16: #{decoder_forward.1} parent=1 // pred_region
      %s52 = ssub.s32 512, 512
      %53 = vsyncadd [#allocation6], %s52
      %s55 = sshll.u32 [#allocation5], 4
      %s56 = int_to_ptr.vmem [resolvable:$true] %s55
      %58 = dma.hbm_to_vmem [thread:$0]  %s3, 512, %s56, [#allocation6]
    $region17: #{decoder_forward.1} parent=1 // pred_fallthru
      _
    // Predicated region
    $region18: #{decoder_forward.1} parent=1 // pred_check
      _
    $region19: #{decoder_forward.1} parent=1 // pred_check_branch
      %60 = sbr.rel (0) target = $region21
    $region20: #{decoder_forward.1} parent=1 // pred_region
      _
    $region21: #{decoder_forward.1} parent=1 // pred_fallthru
      _
    // Predicated region
    $region22: #{decoder_forward.1} parent=1 // pred_check
      _
    $region23: #{decoder_forward.1} parent=1 // pred_check_branch
      %62 = sbr.rel (0) target = $region25
    $region24: #{decoder_forward.1} parent=1 // pred_region
      %s64 = ssub.s32 1024, 1024
      %65 = vsyncadd [#allocation6], %s64
      %s66 = sshll.u32 [#allocation7], 4
      %s67 = int_to_ptr.vmem [resolvable:$true] %s66
      %72 = dma.hbm_to_vmem [thread:$0]  %s5, 1024, %s67, [#allocation6], 256, 256, 16
    $region25: #{decoder_forward.1} parent=1 // pred_fallthru
      _
    // Predicated region
    $region26: #{decoder_forward.1} parent=1 // pred_check
      _
    $region27: #{decoder_forward.1} parent=1 // pred_check_branch
      %74 = sbr.rel (0) target = $region29
    $region28: #{decoder_forward.1} parent=1 // pred_region
      %s76 = ssub.s32 128, 128
      %77 = vsyncadd [#allocation9], %s76
      %s79 = sshll.u32 [#allocation8], 4
      %s80 = int_to_ptr.vmem [resolvable:$true] %s79
      %82 = dma.hbm_to_vmem [thread:$0]  %s6, 128, %s80, [#allocation9]
    $region29: #{decoder_forward.1} parent=1 // pred_fallthru
      _
    // Predicated region
    $region30: #{decoder_forward.1} parent=1 // pred_check
      _
    $region31: #{decoder_forward.1} parent=1 // pred_check_branch
      %84 = sbr.rel (0) target = $region33
    $region32: #{decoder_forward.1} parent=1 // pred_region
      _
    $region33: #{decoder_forward.1} parent=1 // pred_fallthru
      _
    // Predicated region
    $region34: #{decoder_forward.1} parent=1 // pred_check
      _
    $region35: #{decoder_forward.1} parent=1 // pred_check_branch
      %86 = sbr.rel (0) target = $region37
    $region36: #{decoder_forward.1} parent=1 // pred_region
      %s88 = ssub.s32 16, 16
      %89 = vsyncadd [#allocation9], %s88
      %s91 = sshll.u32 [#allocation10], 4
      %s92 = int_to_ptr.vmem [resolvable:$true] %s91
      %94 = dma.hbm_to_vmem [thread:$0]  %s8, 16, %s92, [#allocation9]
    $region37: #{decoder_forward.1} parent=1 // pred_fallthru
      _
    // Predicated region
    $region38: #{decoder_forward.1} parent=1 // pred_check
      _
    $region39: #{decoder_forward.1} parent=1 // pred_check_branch
      %96 = sbr.rel (0) target = $region41
    $region40: #{decoder_forward.1} parent=1 // pred_region
      _
    $region41: #{decoder_forward.1} parent=1 // pred_fallthru
      _
    // Predicated region
    $region42: #{decoder_forward.1} parent=1 // pred_check
      _
    $region43: #{decoder_forward.1} parent=1 // pred_check_branch
      %98 = sbr.rel (0) target = $region45
    $region44: #{decoder_forward.1} parent=1 // pred_region
      %s100 = ssub.s32 16, 16
      %101 = vsyncadd [#allocation12], %s100
      %s103 = sshll.u32 [#allocation11], 4
      %s104 = int_to_ptr.vmem [resolvable:$true] %s103
      %106 = dma.hbm_to_vmem [thread:$0]  %s10, 16, %s104, [#allocation12]
    $region45: #{decoder_forward.1} parent=1 // pred_fallthru
      _
    // Predicated region
    $region46: #{decoder_forward.1} parent=1 // pred_check
      _
    $region47: #{decoder_forward.1} parent=1 // pred_check_branch
      %108 = sbr.rel (0) target = $region49
    $region48: #{decoder_forward.1} parent=1 // pred_region
      %s110 = ssub.s32 1024, 1024
      %111 = vsyncadd [#allocation12], %s110
      %s112 = sshll.u32 [#allocation13], 4
      %s113 = int_to_ptr.vmem [resolvable:$true] %s112
      %118 = dma.hbm_to_vmem [thread:$0]  %s11, 1024, %s113, [#allocation12], 256, 256, 16
    $region49: #{decoder_forward.1} parent=1 // pred_fallthru
      _
    // Predicated region
    $region50: #{decoder_forward.1} parent=1 // pred_check
      _
    $region51: #{decoder_forward.1} parent=1 // pred_check_branch
      %120 = sbr.rel (0) target = $region53
    $region52: #{decoder_forward.1} parent=1 // pred_region
      %s122 = ssub.s32 256, 256
      %123 = vsyncadd [#allocation15], %s122
      %s125 = sshll.u32 [#allocation14], 4
      %s126 = int_to_ptr.vmem [resolvable:$true] %s125
      %128 = dma.hbm_to_vmem [thread:$0]  %s12, 256, %s126, [#allocation15]
    $region53: #{decoder_forward.1} parent=1 // pred_fallthru
      _
    // Predicated region
    $region54: #{decoder_forward.1} parent=1 // pred_check
      _
    $region55: #{decoder_forward.1} parent=1 // pred_check_branch
      %130 = sbr.rel (0) target = $region57
    $region56: #{decoder_forward.1} parent=1 // pred_region
      %s132 = ssub.s32 64, 64
      %133 = vsyncadd [#allocation15], %s132
      %s135 = sshll.u32 [#allocation16], 4
      %s136 = int_to_ptr.vmem [resolvable:$true] %s135
      %138 = dma.hbm_to_vmem [thread:$0]  %s13, 64, %s136, [#allocation15]
    $region57: #{decoder_forward.1} parent=1 // pred_fallthru
      _
    // Predicated region
    $region58: #{decoder_forward.1} parent=1 // pred_check
      _
    $region59: #{decoder_forward.1} parent=1 // pred_check_branch
      %140 = sbr.rel (0) target = $region61
    $region60: #{decoder_forward.1} parent=1 // pred_region
      %s142 = ssub.s32 131072, 131072
      %143 = vsyncadd [#allocation18], %s142
      %s144 = sshll.u32 [#allocation17], 4
      %s145 = int_to_ptr.vmem [resolvable:$true] %s144
      %150 = dma.hbm_to_vmem [thread:$0]  %s14, 131072, %s145, [#allocation18], 1024, 1024, 64
    $region61: #{decoder_forward.1} parent=1 // pred_fallthru
      _
    // Predicated region
    $region62: #{decoder_forward.1} parent=1 // pred_check
      _
    $region63: #{decoder_forward.1} parent=1 // pred_check_branch
      %152 = sbr.rel (0) target = $region65
    $region64: #{decoder_forward.1} parent=1 // pred_region
      %s154 = ssub.s32 256, 256
      %155 = vsyncadd [#allocation18], %s154
      %s157 = sshll.u32 [#allocation19], 4
      %s158 = int_to_ptr.vmem [resolvable:$true] %s157
      %160 = dma.hbm_to_vmem [thread:$0]  %s15, 256, %s158, [#allocation18]
    $region65: #{decoder_forward.1} parent=1 // pred_fallthru
      _
    // Predicated region
    $region66: #{decoder_forward.1} parent=1 // pred_check
      _
    $region67: #{decoder_forward.1} parent=1 // pred_check_branch
      %162 = sbr.rel (0) target = $region69
    $region68: #{decoder_forward.1} parent=1 // pred_region
      %s164 = ssub.s32 4096, 4096
      %165 = vsyncadd [#allocation21], %s164
      %s166 = sshll.u32 [#allocation20], 4
      %s167 = int_to_ptr.vmem [resolvable:$true] %s166
      %172 = dma.hbm_to_vmem [thread:$0]  %s16, 4096, %s167, [#allocation21], 64, 64, 4
    $region69: #{decoder_forward.1} parent=1 // pred_fallthru
      _
    // Predicated region
    $region70: #{decoder_forward.1} parent=1 // pred_check
      _
    $region71: #{decoder_forward.1} parent=1 // pred_check_branch
      %174 = sbr.rel (0) target = $region73
    $region72: #{decoder_forward.1} parent=1 // pred_region
      %s176 = ssub.s32 16, 16
      %177 = vsyncadd [#allocation21], %s176
      %s179 = sshll.u32 [#allocation22], 4
      %s180 = int_to_ptr.vmem [resolvable:$true] %s179
      %182 = dma.hbm_to_vmem [thread:$0]  %s17, 16, %s180, [#allocation21]
    $region73: #{decoder_forward.1} parent=1 // pred_fallthru
      _
    // Predicated region
    $region74: #{decoder_forward.1} parent=1 // pred_check
      _
    $region75: #{decoder_forward.1} parent=1 // pred_check_branch
      %184 = sbr.rel (0) target = $region77
    $region76: #{decoder_forward.1} parent=1 // pred_region
      %185 = dma.done [#allocation3], 512
    $region77: #{decoder_forward.1} parent=1 // pred_fallthru
      _
    // Predicated region
    $region78: #{decoder_forward.1} parent=1 // pred_check
      _
    $region79: #{decoder_forward.1} parent=1 // pred_check_branch
      %187 = sbr.rel (0) target = $region81
    $region80: #{decoder_forward.1} parent=1 // pred_region
      %188 = dma.done [#allocation6], 512
    $region81: #{decoder_forward.1} parent=1 // pred_fallthru
      _
    // Predicated region
    $region82: #{decoder_forward.1} parent=1 // pred_check
      _
    $region83: #{decoder_forward.1} parent=1 // pred_check_branch
      %190 = sbr.rel (0) target = $region85
    $region84: #{decoder_forward.1} parent=1 // pred_region
      %191 = dma.done [#allocation6], 1024
    $region85: #{decoder_forward.1} parent=1 // pred_fallthru
      _
    // Predicated region
    $region86: #{decoder_forward.1} parent=1 // pred_check
      _
    $region87: #{decoder_forward.1} parent=1 // pred_check_branch
      %193 = sbr.rel (0) target = $region89
    $region88: #{decoder_forward.1} parent=1 // pred_region
      %194 = dma.done [#allocation9], 128
    $region89: #{decoder_forward.1} parent=1 // pred_fallthru
      _
    // Predicated region
    $region90: #{decoder_forward.1} parent=1 // pred_check
      _
    $region91: #{decoder_forward.1} parent=1 // pred_check_branch
      %196 = sbr.rel (0) target = $region93
    $region92: #{decoder_forward.1} parent=1 // pred_region
      %197 = dma.done [#allocation9], 16
    $region93: #{decoder_forward.1} parent=1 // pred_fallthru
      _
    // Predicated region
    $region94: #{decoder_forward.1} parent=1 // pred_check
      _
    $region95: #{decoder_forward.1} parent=1 // pred_check_branch
      %199 = sbr.rel (0) target = $region97
    $region96: #{decoder_forward.1} parent=1 // pred_region
      %200 = dma.done [#allocation12], 16
    $region97: #{decoder_forward.1} parent=1 // pred_fallthru
      _
    // Predicated region
    $region98: #{decoder_forward.1} parent=1 // pred_check
      _
    $region99: #{decoder_forward.1} parent=1 // pred_check_branch
      %202 = sbr.rel (0) target = $region101
    $region100: #{decoder_forward.1} parent=1 // pred_region
      %203 = dma.done [#allocation12], 1024
    $region101: #{decoder_forward.1} parent=1 // pred_fallthru
      _
    // Predicated region
    $region102: #{decoder_forward.1} parent=1 // pred_check
      _
    $region103: #{decoder_forward.1} parent=1 // pred_check_branch
      %205 = sbr.rel (0) target = $region105
    $region104: #{decoder_forward.1} parent=1 // pred_region
      %206 = dma.done [#allocation15], 256
    $region105: #{decoder_forward.1} parent=1 // pred_fallthru
      _
    // Predicated region
    $region106: #{decoder_forward.1} parent=1 // pred_check
      _
    $region107: #{decoder_forward.1} parent=1 // pred_check_branch
      %208 = sbr.rel (0) target = $region109
    $region108: #{decoder_forward.1} parent=1 // pred_region
      %209 = dma.done [#allocation15], 64
    $region109: #{decoder_forward.1} parent=1 // pred_fallthru
      _
    // Predicated region
    $region110: #{decoder_forward.1} parent=1 // pred_check
      _
    $region111: #{decoder_forward.1} parent=1 // pred_check_branch
      %211 = sbr.rel (0) target = $region113
    $region112: #{decoder_forward.1} parent=1 // pred_region
      %212 = dma.done [#allocation18], 131072
    $region113: #{decoder_forward.1} parent=1 // pred_fallthru
      _
    // Predicated region
    $region114: #{decoder_forward.1} parent=1 // pred_check
      _
    $region115: #{decoder_forward.1} parent=1 // pred_check_branch
      %214 = sbr.rel (0) target = $region117
    $region116: #{decoder_forward.1} parent=1 // pred_region
      %215 = dma.done [#allocation18], 256
    $region117: #{decoder_forward.1} parent=1 // pred_fallthru
      _
    // Predicated region
    $region118: #{decoder_forward.1} parent=1 // pred_check
      _
    $region119: #{decoder_forward.1} parent=1 // pred_check_branch
      %217 = sbr.rel (0) target = $region121
    $region120: #{decoder_forward.1} parent=1 // pred_region
      %218 = dma.done [#allocation21], 4096
    $region121: #{decoder_forward.1} parent=1 // pred_fallthru
      _
    // Predicated region
    $region122: #{decoder_forward.1} parent=1 // pred_check
      _
    $region123: #{decoder_forward.1} parent=1 // pred_check_branch
      %220 = sbr.rel (0) target = $region125
    $region124: #{decoder_forward.1} parent=1 // pred_region
      %221 = dma.done [#allocation21], 16
    $region125: #{decoder_forward.1} parent=1 // pred_fallthru
      _
    %v223 = vlaneseq
    %v224 = vand.u32 %v223, 127
    %v225 = vld [vmem:[%s0] sm:$0xff]
    %226 = vset.pattern.permute.xlu0 0
    %227 = vperm.xlu0 %226, %v225
    %v228 = vpop.permute.xlu0 %227
    %vm229 = vcmp.eq.s32.totalorder %v224, %v228
    %v230 = vsel %vm229, 1.0, 0.0
    %v231 = vpack.c.bf16 %v230, %v230
    %v232 = vld [vmem:[#allocation7] sm:$0xff]
    %v233 = vld [vmem:[#allocation7 + $0x8] sm:$0xff]
    %v234 = vld [vmem:[#allocation7 + $0x10] sm:$0xff]
    %v235 = vld [vmem:[#allocation7 + $0x18] sm:$0xff]
    %v236 = vld [vmem:[#allocation7 + $0x20] sm:$0xff]
    %v237 = vld [vmem:[#allocation7 + $0x28] sm:$0xff]
    %v238 = vld [vmem:[#allocation7 + $0x30] sm:$0xff]
    %v239 = vld [vmem:[#allocation7 + $0x38] sm:$0xff]
    %v248 = vunpack.c.l.b16 %v232
    %v249 = vunpack.c.h.b16 %v232
    %v250 = vunpack.c.l.b16 %v233
    %v251 = vunpack.c.h.b16 %v233
    %v252 = vunpack.c.l.b16 %v234
    %v253 = vunpack.c.h.b16 %v234
    %v254 = vunpack.c.l.b16 %v235
    %v255 = vunpack.c.h.b16 %v235
    %v256 = vunpack.c.l.b16 %v236
    %v257 = vunpack.c.h.b16 %v236
    %v258 = vunpack.c.l.b16 %v237
    %v259 = vunpack.c.h.b16 %v237
    %v260 = vunpack.c.l.b16 %v238
    %v261 = vunpack.c.h.b16 %v238
    %v262 = vunpack.c.l.b16 %v239
    %v263 = vunpack.c.h.b16 %v239
    %v264 = vpack.c.b16 %v252, %v248
    %v265 = vpack.c.b16 %v253, %v249
    %v266 = vpack.c.b16 %v254, %v250
    %v267 = vpack.c.b16 %v255, %v251
    %v268 = vpack.c.b16 %v260, %v256
    %v269 = vpack.c.b16 %v261, %v257
    %v270 = vpack.c.b16 %v262, %v258
    %v271 = vpack.c.b16 %v263, %v259
    %vm280 = vcmask 261120
    %v282 = vsel %vm280, %v231, 0
    %284 = vmatprep.subr.bf16.mxu0 %v265
    %285 = vmatpush1.bf16.msra.mxu0 %v264
    %286 = vmatprep.subr.bf16.mxu0 %v269
    %287 = vmatpush1.bf16.msra.mxu0 %v268
    %288 = vmatprep.subr.bf16.mxu0 0
    %289 = vmatpush1.bf16.msra.mxu0 0
    %290 = vmatprep.subr.bf16.mxu0 0
    %291 = vmatpush1.bf16.msra.mxu0 0
    %292 = vmatprep.subr.bf16.mxu0 0
    %293 = vmatpush1.bf16.msra.mxu0 0
    %294 = vmatprep.subr.bf16.mxu0 0
    %295 = vmatpush1.bf16.msra.mxu0 0
    %296 = vmatprep.subr.bf16.mxu0 0
    %297 = vmatpush1.bf16.msra.mxu0 0
    %298 = vmatprep.subr.bf16.mxu0 0
    %299 = vmatpush1.bf16.msra.mxu0 0
    %300 = vmatprep.subr.bf16.mxu0 0
    %301 = vmatpush1.bf16.msra.mxu0 0
    %302 = vmatprep.subr.bf16.mxu0 0
    %303 = vmatpush1.bf16.msra.mxu0 0
    %304 = vmatprep.subr.bf16.mxu0 0
    %305 = vmatpush1.bf16.msra.mxu0 0
    %306 = vmatprep.subr.bf16.mxu0 0
    %307 = vmatpush1.bf16.msra.mxu0 0
    %308 = vmatprep.subr.bf16.mxu0 0
    %309 = vmatpush1.bf16.msra.mxu0 0
    %310 = vmatprep.subr.bf16.mxu0 0
    %311 = vmatpush1.bf16.msra.mxu0 0
    %312 = vmatprep.subr.bf16.mxu0 0
    %313 = vmatpush1.bf16.msra.mxu0 0
    %314 = vmatprep.subr.bf16.mxu0 0
    %315 = vmatpush1.bf16.msra.mxu0 0
    %316 = vmatprep.mubr.bf16.mxu0 0
    %317 = vmatmul.mubr.bf16.gmra.mrb[0].mxu0 %v282
    %v318 = vpop.f32.mrb[0].mxu0
    %v319 = vadd.f32 0.0, %v318
    %v320 = vpop.f32.mrb[0].mxu0
    %v321 = vadd.f32 0.0, %v320
    %v322 = vpop.f32.mrb[0].mxu0
    %v323 = vpop.f32.mrb[0].mxu0
    %324 = vdwg.mxu0
    %325 = vmatprep.subr.bf16.mxu0 %v267
    %326 = vmatpush1.bf16.msra.mxu0 %v266
    %327 = vmatprep.subr.bf16.mxu0 %v271
    %328 = vmatpush1.bf16.msra.mxu0 %v270
    %329 = vmatprep.subr.bf16.mxu0 0
    %330 = vmatpush1.bf16.msra.mxu0 0
    %331 = vmatprep.subr.bf16.mxu0 0
    %332 = vmatpush1.bf16.msra.mxu0 0
    %333 = vmatprep.subr.bf16.mxu0 0
    %334 = vmatpush1.bf16.msra.mxu0 0
    %335 = vmatprep.subr.bf16.mxu0 0
    %336 = vmatpush1.bf16.msra.mxu0 0
    %337 = vmatprep.subr.bf16.mxu0 0
    %338 = vmatpush1.bf16.msra.mxu0 0
    %339 = vmatprep.subr.bf16.mxu0 0
    %340 = vmatpush1.bf16.msra.mxu0 0
    %341 = vmatprep.subr.bf16.mxu0 0
    %342 = vmatpush1.bf16.msra.mxu0 0
    %343 = vmatprep.subr.bf16.mxu0 0
    %344 = vmatpush1.bf16.msra.mxu0 0
    %345 = vmatprep.subr.bf16.mxu0 0
    %346 = vmatpush1.bf16.msra.mxu0 0
    %347 = vmatprep.subr.bf16.mxu0 0
    %348 = vmatpush1.bf16.msra.mxu0 0
    %349 = vmatprep.subr.bf16.mxu0 0
    %350 = vmatpush1.bf16.msra.mxu0 0
    %351 = vmatprep.subr.bf16.mxu0 0
    %352 = vmatpush1.bf16.msra.mxu0 0
    %353 = vmatprep.subr.bf16.mxu0 0
    %354 = vmatpush1.bf16.msra.mxu0 0
    %355 = vmatprep.subr.bf16.mxu0 0
    %356 = vmatpush1.bf16.msra.mxu0 0
    %357 = vmatprep.mubr.bf16.mxu0 0
    %358 = vmatmul.mubr.bf16.gmra.mrb[0].mxu0 %v282
    %v359 = vpop.f32.mrb[0].mxu0
    %v360 = vadd.f32 0.0, %v359
    %v361 = vpop.f32.mrb[0].mxu0
    %v362 = vadd.f32 0.0, %v361
    %v363 = vpop.f32.mrb[0].mxu0
    %v364 = vpop.f32.mrb[0].mxu0
    %365 = vdwg.mxu0
    %v366 = vld [vmem:[%s1] sm:$0xff]
    %v367 = vld [vmem:[%s1 + $0x8] sm:$0xff]
    %368 = vset.pattern.permute.xlu0 0
    %369 = vperm.xlu0 %368, %v366
    %v370 = vpop.permute.xlu0 %369
    %371 = vset.pattern.permute.xlu0 0
    %372 = vperm.xlu0 %371, %v367
    %v373 = vpop.permute.xlu0 %372
    %vm374 = vcmp.eq.s32.totalorder %v224, %v370
    %vm375 = vcmp.eq.s32.totalorder %v224, %v373
    %v376 = vsel %vm374, 1.0, 0.0
    %v377 = vsel %vm375, 1.0, 0.0
    %v378 = vld [vmem:[#allocation8] sm:$0xff]
    %vm379 = vcmask 64512
    %v381 = vsel %vm379, %v376, 0
    %v384 = vsel %vm379, %v377, 0
    %386 = vmatprep.subr.mxu0 0.0
    %387 = vmatpush1.msra.mxu0 %v378
    %388 = vmatprep.subr.mxu0 0.0
    %389 = vmatpush1.msra.mxu0 0.0
    %390 = vmatprep.subr.mxu0 0.0
    %391 = vmatpush1.msra.mxu0 0.0
    %392 = vmatprep.subr.mxu0 0.0
    %393 = vmatpush1.msra.mxu0 0.0
    %394 = vmatprep.subr.mxu0 0.0
    %395 = vmatpush1.msra.mxu0 0.0
    %396 = vmatprep.subr.mxu0 0.0
    %397 = vmatpush1.msra.mxu0 0.0
    %398 = vmatprep.subr.mxu0 0.0
    %399 = vmatpush1.msra.mxu0 0.0
    %400 = vmatprep.subr.mxu0 0.0
    %401 = vmatpush1.msra.mxu0 0.0
    %402 = vmatprep.subr.mxu0 0.0
    %403 = vmatpush1.msra.mxu0 0.0
    %404 = vmatprep.subr.mxu0 0.0
    %405 = vmatpush1.msra.mxu0 0.0
    %406 = vmatprep.subr.mxu0 0.0
    %407 = vmatpush1.msra.mxu0 0.0
    %408 = vmatprep.subr.mxu0 0.0
    %409 = vmatpush1.msra.mxu0 0.0
    %410 = vmatprep.subr.mxu0 0.0
    %411 = vmatpush1.msra.mxu0 0.0
    %412 = vmatprep.subr.mxu0 0.0
    %413 = vmatpush1.msra.mxu0 0.0
    %414 = vmatprep.subr.mxu0 0.0
    %415 = vmatpush1.msra.mxu0 0.0
    %416 = vmatprep.subr.mxu0 0.0
    %417 = vmatpush1.msra.mxu0 0.0
    %418 = vmatprep.subr.mxu0 0.0
    %419 = vmatpush1.msra.mxu0 0.0
    %420 = vmatprep.subr.mxu0 0.0
    %421 = vmatpush1.msra.mxu0 0.0
    %422 = vmatprep.subr.mxu0 0.0
    %423 = vmatpush1.msra.mxu0 0.0
    %424 = vmatprep.subr.mxu0 0.0
    %425 = vmatpush1.msra.mxu0 0.0
    %426 = vmatprep.subr.mxu0 0.0
    %427 = vmatpush1.msra.mxu0 0.0
    %428 = vmatprep.subr.mxu0 0.0
    %429 = vmatpush1.msra.mxu0 0.0
    %430 = vmatprep.subr.mxu0 0.0
    %431 = vmatpush1.msra.mxu0 0.0
    %432 = vmatprep.subr.mxu0 0.0
    %433 = vmatpush1.msra.mxu0 0.0
    %434 = vmatprep.subr.mxu0 0.0
    %435 = vmatpush1.msra.mxu0 0.0
    %436 = vmatprep.subr.mxu0 0.0
    %437 = vmatpush1.msra.mxu0 0.0
    %438 = vmatprep.subr.mxu0 0.0
    %439 = vmatpush1.msra.mxu0 0.0
    %440 = vmatprep.subr.mxu0 0.0
    %441 = vmatpush1.msra.mxu0 0.0
    %442 = vmatprep.subr.mxu0 0.0
    %443 = vmatpush1.msra.mxu0 0.0
    %444 = vmatprep.subr.mxu0 0.0
    %445 = vmatpush1.msra.mxu0 0.0
    %446 = vmatprep.subr.mxu0 0.0
    %447 = vmatpush1.msra.mxu0 0.0
    %448 = vmatprep.subr.mxu0 0.0
    %449 = vmatpush1.msra.mxu0 0.0
    %450 = vmatprep.mubr.f32.mxu0 0.0
    %451 = vmatmul.mubr.f32.gmra.mrb[0].mxu0 %v381
    %v452 = vpop.f32.mrb[0].mxu0
    %v453 = vadd.f32 0.0, %v452
    %v454 = vpop.f32.mrb[0].mxu0
    %455 = vmatprep.mubr.f32.mxu0 0.0
    %456 = vmatmul.mubr.f32.gmra.mrb[0].mxu0 %v384
    %v457 = vpop.f32.mrb[0].mxu0
    %v458 = vadd.f32 0.0, %v457
    %v459 = vpop.f32.mrb[0].mxu0
    %460 = vdwg.mxu0
    %v461 = vld [vmem:[#allocation2] sm:$0xff]
    %v462 = vld [vmem:[#allocation2 + $0x8] sm:$0xff]
    %v463 = vld [vmem:[#allocation2 + $0x10] sm:$0xff]
    %v464 = vld [vmem:[#allocation2 + $0x18] sm:$0xff]
    %v465 = vpack.c.bf16 %v461, %v461
    %v466 = vpack.c.bf16 %v462, %v462
    %v467 = vpack.c.bf16 %v463, %v463
    %v468 = vpack.c.bf16 %v464, %v464
    %v469 = vld [vmem:[%s7] sm:$0xf]
    %v470 = vld [vmem:[%s7 + $0x4] sm:$0xf]
    %v471 = vld [vmem:[%s7 + $0x8] sm:$0xf]
    %v472 = vld [vmem:[%s7 + $0xc] sm:$0xf]
    %v473 = vld [vmem:[%s7 + $0x10] sm:$0xf]
    %v474 = vld [vmem:[%s7 + $0x14] sm:$0xf]
    %v475 = vld [vmem:[%s7 + $0x18] sm:$0xf]
    %v476 = vld [vmem:[%s7 + $0x1c] sm:$0xf]
    %v477 = vld [vmem:[%s7 + $0x20] sm:$0xf]
    %v478 = vld [vmem:[%s7 + $0x24] sm:$0xf]
    %v479 = vld [vmem:[%s7 + $0x28] sm:$0xf]
    %v480 = vld [vmem:[%s7 + $0x2c] sm:$0xf]
    %v481 = vld [vmem:[%s7 + $0x30] sm:$0xf]
    %v482 = vld [vmem:[%s7 + $0x34] sm:$0xf]
    %v483 = vld [vmem:[%s7 + $0x38] sm:$0xf]
    %v484 = vld [vmem:[%s7 + $0x3c] sm:$0xf]
    %v485 = vld [vmem:[%s7 + $0x40] sm:$0xf]
    %v486 = vld [vmem:[%s7 + $0x44] sm:$0xf]
    %v487 = vld [vmem:[%s7 + $0x48] sm:$0xf]
    %v488 = vld [vmem:[%s7 + $0x4c] sm:$0xf]
    %v489 = vld [vmem:[%s7 + $0x50] sm:$0xf]
    %v490 = vld [vmem:[%s7 + $0x54] sm:$0xf]
    %v491 = vld [vmem:[%s7 + $0x58] sm:$0xf]
    %v492 = vld [vmem:[%s7 + $0x5c] sm:$0xf]
    %v493 = vld [vmem:[%s7 + $0x60] sm:$0xf]
    %v494 = vld [vmem:[%s7 + $0x64] sm:$0xf]
    %v495 = vld [vmem:[%s7 + $0x68] sm:$0xf]
    %v496 = vld [vmem:[%s7 + $0x6c] sm:$0xf]
    %v497 = vld [vmem:[%s7 + $0x70] sm:$0xf]
    %v498 = vld [vmem:[%s7 + $0x74] sm:$0xf]
    %v499 = vld [vmem:[%s7 + $0x78] sm:$0xf]
    %v500 = vld [vmem:[%s7 + $0x7c] sm:$0xf]
    %v501 = vld [vmem:[%s7 + $0x80] sm:$0xf]
    %v502 = vld [vmem:[%s7 + $0x84] sm:$0xf]
    %v503 = vld [vmem:[%s7 + $0x88] sm:$0xf]
    %v504 = vld [vmem:[%s7 + $0x8c] sm:$0xf]
    %v505 = vld [vmem:[%s7 + $0x90] sm:$0xf]
    %v506 = vld [vmem:[%s7 + $0x94] sm:$0xf]
    %v507 = vld [vmem:[%s7 + $0x98] sm:$0xf]
    %v508 = vld [vmem:[%s7 + $0x9c] sm:$0xf]
    %v509 = vld [vmem:[%s7 + $0xa0] sm:$0xf]
    %v510 = vld [vmem:[%s7 + $0xa4] sm:$0xf]
    %v511 = vld [vmem:[%s7 + $0xa8] sm:$0xf]
    %v512 = vld [vmem:[%s7 + $0xac] sm:$0xf]
    %v513 = vld [vmem:[%s7 + $0xb0] sm:$0xf]
    %v514 = vld [vmem:[%s7 + $0xb4] sm:$0xf]
    %v515 = vld [vmem:[%s7 + $0xb8] sm:$0xf]
    %v516 = vld [vmem:[%s7 + $0xbc] sm:$0xf]
    %v517 = vld [vmem:[%s7 + $0xc0] sm:$0xf]
    %v518 = vld [vmem:[%s7 + $0xc4] sm:$0xf]
    %v519 = vld [vmem:[%s7 + $0xc8] sm:$0xf]
    %v520 = vld [vmem:[%s7 + $0xcc] sm:$0xf]
    %v521 = vld [vmem:[%s7 + $0xd0] sm:$0xf]
    %v522 = vld [vmem:[%s7 + $0xd4] sm:$0xf]
    %v523 = vld [vmem:[%s7 + $0xd8] sm:$0xf]
    %v524 = vld [vmem:[%s7 + $0xdc] sm:$0xf]
    %v525 = vld [vmem:[%s7 + $0xe0] sm:$0xf]
    %v526 = vld [vmem:[%s7 + $0xe4] sm:$0xf]
    %v527 = vld [vmem:[%s7 + $0xe8] sm:$0xf]
    %v528 = vld [vmem:[%s7 + $0xec] sm:$0xf]
    %v529 = vld [vmem:[%s7 + $0xf0] sm:$0xf]
    %v530 = vld [vmem:[%s7 + $0xf4] sm:$0xf]
    %v531 = vld [vmem:[%s7 + $0xf8] sm:$0xf]
    %v532 = vld [vmem:[%s7 + $0xfc] sm:$0xf]
    %v533 = vld [vmem:[#allocation10] sm:$0x1]
    %v535 = vlaneseq
    %v536 = vshrl.u32 %v535, 7
    %v537 = vsub.s32 0, %v536
    %v538 = vrot.slane %v533, %v537
    %v604 = vunpack.c.l.b16 %v469
    %v605 = vunpack.c.l.b16 %v470
    %v606 = vunpack.c.l.b16 %v471
    %v607 = vunpack.c.l.b16 %v472
    %v608 = vunpack.c.l.b16 %v473
    %v609 = vunpack.c.l.b16 %v474
    %v610 = vunpack.c.l.b16 %v475
    %v611 = vunpack.c.l.b16 %v476
    %v612 = vunpack.c.l.b16 %v477
    %v613 = vunpack.c.l.b16 %v478
    %v614 = vunpack.c.l.b16 %v479
    %v615 = vunpack.c.l.b16 %v480
    %v616 = vunpack.c.l.b16 %v481
    %v617 = vunpack.c.l.b16 %v482
    %v618 = vunpack.c.l.b16 %v483
    %v619 = vunpack.c.l.b16 %v484
    %v620 = vunpack.c.l.b16 %v485
    %v621 = vunpack.c.l.b16 %v486
    %v622 = vunpack.c.l.b16 %v487
    %v623 = vunpack.c.l.b16 %v488
    %v624 = vunpack.c.l.b16 %v489
    %v625 = vunpack.c.l.b16 %v490
    %v626 = vunpack.c.l.b16 %v491
    %v627 = vunpack.c.l.b16 %v492
    %v628 = vunpack.c.l.b16 %v493
    %v629 = vunpack.c.l.b16 %v494
    %v630 = vunpack.c.l.b16 %v495
    %v631 = vunpack.c.l.b16 %v496
    %v632 = vunpack.c.l.b16 %v497
    %v633 = vunpack.c.l.b16 %v498
    %v634 = vunpack.c.l.b16 %v499
    %v635 = vunpack.c.l.b16 %v500
    %v636 = vunpack.c.l.b16 %v501
    %v637 = vunpack.c.l.b16 %v502
    %v638 = vunpack.c.l.b16 %v503
    %v639 = vunpack.c.l.b16 %v504
    %v640 = vunpack.c.l.b16 %v505
    %v641 = vunpack.c.l.b16 %v506
    %v642 = vunpack.c.l.b16 %v507
    %v643 = vunpack.c.l.b16 %v508
    %v644 = vunpack.c.l.b16 %v509
    %v645 = vunpack.c.l.b16 %v510
    %v646 = vunpack.c.l.b16 %v511
    %v647 = vunpack.c.l.b16 %v512
    %v648 = vunpack.c.l.b16 %v513
    %v649 = vunpack.c.l.b16 %v514
    %v650 = vunpack.c.l.b16 %v515
    %v651 = vunpack.c.l.b16 %v516
    %v652 = vunpack.c.l.b16 %v517
    %v653 = vunpack.c.l.b16 %v518
    %v654 = vunpack.c.l.b16 %v519
    %v655 = vunpack.c.l.b16 %v520
    %v656 = vunpack.c.l.b16 %v521
    %v657 = vunpack.c.l.b16 %v522
    %v658 = vunpack.c.l.b16 %v523
    %v659 = vunpack.c.l.b16 %v524
    %v660 = vunpack.c.l.b16 %v525
    %v661 = vunpack.c.l.b16 %v526
    %v662 = vunpack.c.l.b16 %v527
    %v663 = vunpack.c.l.b16 %v528
    %v664 = vunpack.c.l.b16 %v529
    %v665 = vunpack.c.l.b16 %v530
    %v666 = vunpack.c.l.b16 %v531
    %v667 = vunpack.c.l.b16 %v532
    %v668 = vpack.c.b16 %v605, %v604
    %v669 = vpack.c.b16 %v607, %v606
    %v670 = vpack.c.b16 %v609, %v608
    %v671 = vpack.c.b16 %v611, %v610
    %v672 = vpack.c.b16 %v613, %v612
    %v673 = vpack.c.b16 %v615, %v614
    %v674 = vpack.c.b16 %v617, %v616
    %v675 = vpack.c.b16 %v619, %v618
    %v676 = vpack.c.b16 %v621, %v620
    %v677 = vpack.c.b16 %v623, %v622
    %v678 = vpack.c.b16 %v625, %v624
    %v679 = vpack.c.b16 %v627, %v626
    %v680 = vpack.c.b16 %v629, %v628
    %v681 = vpack.c.b16 %v631, %v630
    %v682 = vpack.c.b16 %v633, %v632
    %v683 = vpack.c.b16 %v635, %v634
    %v684 = vpack.c.b16 %v637, %v636
    %v685 = vpack.c.b16 %v639, %v638
    %v686 = vpack.c.b16 %v641, %v640
    %v687 = vpack.c.b16 %v643, %v642
    %v688 = vpack.c.b16 %v645, %v644
    %v689 = vpack.c.b16 %v647, %v646
    %v690 = vpack.c.b16 %v649, %v648
    %v691 = vpack.c.b16 %v651, %v650
    %v692 = vpack.c.b16 %v653, %v652
    %v693 = vpack.c.b16 %v655, %v654
    %v694 = vpack.c.b16 %v657, %v656
    %v695 = vpack.c.b16 %v659, %v658
    %v696 = vpack.c.b16 %v661, %v660
    %v697 = vpack.c.b16 %v663, %v662
    %v698 = vpack.c.b16 %v665, %v664
    %v699 = vpack.c.b16 %v667, %v666
    %732 = vmatprep.subr.bf16.mxu0 0
    %733 = vmatpush1.bf16.msra.mxu0 %v668
    %734 = vmatprep.subr.bf16.mxu0 0
    %735 = vmatpush1.bf16.msra.mxu0 %v669
    %736 = vmatprep.subr.bf16.mxu0 0
    %737 = vmatpush1.bf16.msra.mxu0 %v670
    %738 = vmatprep.subr.bf16.mxu0 0
    %739 = vmatpush1.bf16.msra.mxu0 %v671
    %740 = vmatprep.subr.bf16.mxu0 0
    %741 = vmatpush1.bf16.msra.mxu0 %v672
    %742 = vmatprep.subr.bf16.mxu0 0
    %743 = vmatpush1.bf16.msra.mxu0 %v673
    %744 = vmatprep.subr.bf16.mxu0 0
    %745 = vmatpush1.bf16.msra.mxu0 %v674
    %746 = vmatprep.subr.bf16.mxu0 0
    %747 = vmatpush1.bf16.msra.mxu0 %v675
    %748 = vmatprep.subr.bf16.mxu0 0
    %749 = vmatpush1.bf16.msra.mxu0 %v676
    %750 = vmatprep.subr.bf16.mxu0 0
    %751 = vmatpush1.bf16.msra.mxu0 %v677
    %752 = vmatprep.subr.bf16.mxu0 0
    %753 = vmatpush1.bf16.msra.mxu0 %v678
    %754 = vmatprep.subr.bf16.mxu0 0
    %755 = vmatpush1.bf16.msra.mxu0 %v679
    %756 = vmatprep.subr.bf16.mxu0 0
    %757 = vmatpush1.bf16.msra.mxu0 %v680
    %758 = vmatprep.subr.bf16.mxu0 0
    %759 = vmatpush1.bf16.msra.mxu0 %v681
    %760 = vmatprep.subr.bf16.mxu0 0
    %761 = vmatpush1.bf16.msra.mxu0 %v682
    %762 = vmatprep.subr.bf16.mxu0 0
    %763 = vmatpush1.bf16.msra.mxu0 %v683
    %764 = vmatprep.mubr.bf16.mxu0 %v466
    %765 = vmatmul.mubr.bf16.gmra.mrb[0].mxu0 %v465
    %v766 = vpop.f32.mrb[0].mxu0
    %v767 = vadd.f32 %v538, %v766
    %v768 = vpop.f32.mrb[0].mxu0
    %v769 = vpop.f32.mrb[0].mxu0
    %v770 = vpop.f32.mrb[0].mxu0
    %771 = vdwg.mxu0
    %772 = vmatprep.subr.bf16.mxu0 0
    %773 = vmatpush1.bf16.msra.mxu0 %v684
    %774 = vmatprep.subr.bf16.mxu0 0
    %775 = vmatpush1.bf16.msra.mxu0 %v685
    %776 = vmatprep.subr.bf16.mxu0 0
    %777 = vmatpush1.bf16.msra.mxu0 %v686
    %778 = vmatprep.subr.bf16.mxu0 0
    %779 = vmatpush1.bf16.msra.mxu0 %v687
    %780 = vmatprep.subr.bf16.mxu0 0
    %781 = vmatpush1.bf16.msra.mxu0 %v688
    %782 = vmatprep.subr.bf16.mxu0 0
    %783 = vmatpush1.bf16.msra.mxu0 %v689
    %784 = vmatprep.subr.bf16.mxu0 0
    %785 = vmatpush1.bf16.msra.mxu0 %v690
    %786 = vmatprep.subr.bf16.mxu0 0
    %787 = vmatpush1.bf16.msra.mxu0 %v691
    %788 = vmatprep.subr.bf16.mxu0 0
    %789 = vmatpush1.bf16.msra.mxu0 %v692
    %790 = vmatprep.subr.bf16.mxu0 0
    %791 = vmatpush1.bf16.msra.mxu0 %v693
    %792 = vmatprep.subr.bf16.mxu0 0
    %793 = vmatpush1.bf16.msra.mxu0 %v694
    %794 = vmatprep.subr.bf16.mxu0 0
    %795 = vmatpush1.bf16.msra.mxu0 %v695
    %796 = vmatprep.subr.bf16.mxu0 0
    %797 = vmatpush1.bf16.msra.mxu0 %v696
    %798 = vmatprep.subr.bf16.mxu0 0
    %799 = vmatpush1.bf16.msra.mxu0 %v697
    %800 = vmatprep.subr.bf16.mxu0 0
    %801 = vmatpush1.bf16.msra.mxu0 %v698
    %802 = vmatprep.subr.bf16.mxu0 0
    %803 = vmatpush1.bf16.msra.mxu0 %v699
    %804 = vmatprep.mubr.bf16.mxu0 %v468
    %805 = vmatmul.mubr.bf16.gmra.mrb[0].mxu0 %v467
    %v806 = vpop.f32.mrb[0].mxu0
    %v807 = vadd.f32 %v767, %v806
    %v808 = vpop.f32.mrb[0].mxu0
    %v809 = vpop.f32.mrb[0].mxu0
    %v810 = vpop.f32.mrb[0].mxu0
    %811 = vdwg.mxu0
    %v812 = vld [vmem:[#allocation5] sm:$0xff]
    %v813 = vld [vmem:[#allocation5 + $0x8] sm:$0xff]
    %v814 = vld [vmem:[#allocation5 + $0x10] sm:$0xff]
    %v815 = vld [vmem:[#allocation5 + $0x18] sm:$0xff]
    %v816 = vpack.c.bf16 %v812, %v812
    %v817 = vpack.c.bf16 %v813, %v813
    %v818 = vpack.c.bf16 %v814, %v814
    %v819 = vpack.c.bf16 %v815, %v815
    %v820 = vld [vmem:[%s9] sm:$0xf]
    %v821 = vld [vmem:[%s9 + $0x4] sm:$0xf]
    %v822 = vld [vmem:[%s9 + $0x8] sm:$0xf]
    %v823 = vld [vmem:[%s9 + $0xc] sm:$0xf]
    %v824 = vld [vmem:[%s9 + $0x10] sm:$0xf]
    %v825 = vld [vmem:[%s9 + $0x14] sm:$0xf]
    %v826 = vld [vmem:[%s9 + $0x18] sm:$0xf]
    %v827 = vld [vmem:[%s9 + $0x1c] sm:$0xf]
    %v828 = vld [vmem:[%s9 + $0x20] sm:$0xf]
    %v829 = vld [vmem:[%s9 + $0x24] sm:$0xf]
    %v830 = vld [vmem:[%s9 + $0x28] sm:$0xf]
    %v831 = vld [vmem:[%s9 + $0x2c] sm:$0xf]
    %v832 = vld [vmem:[%s9 + $0x30] sm:$0xf]
    %v833 = vld [vmem:[%s9 + $0x34] sm:$0xf]
    %v834 = vld [vmem:[%s9 + $0x38] sm:$0xf]
    %v835 = vld [vmem:[%s9 + $0x3c] sm:$0xf]
    %v836 = vld [vmem:[%s9 + $0x40] sm:$0xf]
    %v837 = vld [vmem:[%s9 + $0x44] sm:$0xf]
    %v838 = vld [vmem:[%s9 + $0x48] sm:$0xf]
    %v839 = vld [vmem:[%s9 + $0x4c] sm:$0xf]
    %v840 = vld [vmem:[%s9 + $0x50] sm:$0xf]
    %v841 = vld [vmem:[%s9 + $0x54] sm:$0xf]
    %v842 = vld [vmem:[%s9 + $0x58] sm:$0xf]
    %v843 = vld [vmem:[%s9 + $0x5c] sm:$0xf]
    %v844 = vld [vmem:[%s9 + $0x60] sm:$0xf]
    %v845 = vld [vmem:[%s9 + $0x64] sm:$0xf]
    %v846 = vld [vmem:[%s9 + $0x68] sm:$0xf]
    %v847 = vld [vmem:[%s9 + $0x6c] sm:$0xf]
    %v848 = vld [vmem:[%s9 + $0x70] sm:$0xf]
    %v849 = vld [vmem:[%s9 + $0x74] sm:$0xf]
    %v850 = vld [vmem:[%s9 + $0x78] sm:$0xf]
    %v851 = vld [vmem:[%s9 + $0x7c] sm:$0xf]
    %v852 = vld [vmem:[%s9 + $0x80] sm:$0xf]
    %v853 = vld [vmem:[%s9 + $0x84] sm:$0xf]
    %v854 = vld [vmem:[%s9 + $0x88] sm:$0xf]
    %v855 = vld [vmem:[%s9 + $0x8c] sm:$0xf]
    %v856 = vld [vmem:[%s9 + $0x90] sm:$0xf]
    %v857 = vld [vmem:[%s9 + $0x94] sm:$0xf]
    %v858 = vld [vmem:[%s9 + $0x98] sm:$0xf]
    %v859 = vld [vmem:[%s9 + $0x9c] sm:$0xf]
    %v860 = vld [vmem:[%s9 + $0xa0] sm:$0xf]
    %v861 = vld [vmem:[%s9 + $0xa4] sm:$0xf]
    %v862 = vld [vmem:[%s9 + $0xa8] sm:$0xf]
    %v863 = vld [vmem:[%s9 + $0xac] sm:$0xf]
    %v864 = vld [vmem:[%s9 + $0xb0] sm:$0xf]
    %v865 = vld [vmem:[%s9 + $0xb4] sm:$0xf]
    %v866 = vld [vmem:[%s9 + $0xb8] sm:$0xf]
    %v867 = vld [vmem:[%s9 + $0xbc] sm:$0xf]
    %v868 = vld [vmem:[%s9 + $0xc0] sm:$0xf]
    %v869 = vld [vmem:[%s9 + $0xc4] sm:$0xf]
    %v870 = vld [vmem:[%s9 + $0xc8] sm:$0xf]
    %v871 = vld [vmem:[%s9 + $0xcc] sm:$0xf]
    %v872 = vld [vmem:[%s9 + $0xd0] sm:$0xf]
    %v873 = vld [vmem:[%s9 + $0xd4] sm:$0xf]
    %v874 = vld [vmem:[%s9 + $0xd8] sm:$0xf]
    %v875 = vld [vmem:[%s9 + $0xdc] sm:$0xf]
    %v876 = vld [vmem:[%s9 + $0xe0] sm:$0xf]
    %v877 = vld [vmem:[%s9 + $0xe4] sm:$0xf]
    %v878 = vld [vmem:[%s9 + $0xe8] sm:$0xf]
    %v879 = vld [vmem:[%s9 + $0xec] sm:$0xf]
    %v880 = vld [vmem:[%s9 + $0xf0] sm:$0xf]
    %v881 = vld [vmem:[%s9 + $0xf4] sm:$0xf]
    %v882 = vld [vmem:[%s9 + $0xf8] sm:$0xf]
    %v883 = vld [vmem:[%s9 + $0xfc] sm:$0xf]
    %v884 = vld [vmem:[#allocation11] sm:$0x1]
    %v886 = vlaneseq
    %v887 = vshrl.u32 %v886, 7
    %v888 = vsub.s32 0, %v887
    %v889 = vrot.slane %v884, %v888
    %v955 = vunpack.c.l.b16 %v820
    %v956 = vunpack.c.l.b16 %v821
    %v957 = vunpack.c.l.b16 %v822
    %v958 = vunpack.c.l.b16 %v823
    %v959 = vunpack.c.l.b16 %v824
    %v960 = vunpack.c.l.b16 %v825
    %v961 = vunpack.c.l.b16 %v826
    %v962 = vunpack.c.l.b16 %v827
    %v963 = vunpack.c.l.b16 %v828
    %v964 = vunpack.c.l.b16 %v829
    %v965 = vunpack.c.l.b16 %v830
    %v966 = vunpack.c.l.b16 %v831
    %v967 = vunpack.c.l.b16 %v832
    %v968 = vunpack.c.l.b16 %v833
    %v969 = vunpack.c.l.b16 %v834
    %v970 = vunpack.c.l.b16 %v835
    %v971 = vunpack.c.l.b16 %v836
    %v972 = vunpack.c.l.b16 %v837
    %v973 = vunpack.c.l.b16 %v838
    %v974 = vunpack.c.l.b16 %v839
    %v975 = vunpack.c.l.b16 %v840
    %v976 = vunpack.c.l.b16 %v841
    %v977 = vunpack.c.l.b16 %v842
    %v978 = vunpack.c.l.b16 %v843
    %v979 = vunpack.c.l.b16 %v844
    %v980 = vunpack.c.l.b16 %v845
    %v981 = vunpack.c.l.b16 %v846
    %v982 = vunpack.c.l.b16 %v847
    %v983 = vunpack.c.l.b16 %v848
    %v984 = vunpack.c.l.b16 %v849
    %v985 = vunpack.c.l.b16 %v850
    %v986 = vunpack.c.l.b16 %v851
    %v987 = vunpack.c.l.b16 %v852
    %v988 = vunpack.c.l.b16 %v853
    %v989 = vunpack.c.l.b16 %v854
    %v990 = vunpack.c.l.b16 %v855
    %v991 = vunpack.c.l.b16 %v856
    %v992 = vunpack.c.l.b16 %v857
    %v993 = vunpack.c.l.b16 %v858
    %v994 = vunpack.c.l.b16 %v859
    %v995 = vunpack.c.l.b16 %v860
    %v996 = vunpack.c.l.b16 %v861
    %v997 = vunpack.c.l.b16 %v862
    %v998 = vunpack.c.l.b16 %v863
    %v999 = vunpack.c.l.b16 %v864
    %v1000 = vunpack.c.l.b16 %v865
    %v1001 = vunpack.c.l.b16 %v866
    %v1002 = vunpack.c.l.b16 %v867
    %v1003 = vunpack.c.l.b16 %v868
    %v1004 = vunpack.c.l.b16 %v869
    %v1005 = vunpack.c.l.b16 %v870
    %v1006 = vunpack.c.l.b16 %v871
    %v1007 = vunpack.c.l.b16 %v872
    %v1008 = vunpack.c.l.b16 %v873
    %v1009 = vunpack.c.l.b16 %v874
    %v1010 = vunpack.c.l.b16 %v875
    %v1011 = vunpack.c.l.b16 %v876
    %v1012 = vunpack.c.l.b16 %v877
    %v1013 = vunpack.c.l.b16 %v878
    %v1014 = vunpack.c.l.b16 %v879
    %v1015 = vunpack.c.l.b16 %v880
    %v1016 = vunpack.c.l.b16 %v881
    %v1017 = vunpack.c.l.b16 %v882
    %v1018 = vunpack.c.l.b16 %v883
    %v1019 = vpack.c.b16 %v956, %v955
    %v1020 = vpack.c.b16 %v958, %v957
    %v1021 = vpack.c.b16 %v960, %v959
    %v1022 = vpack.c.b16 %v962, %v961
    %v1023 = vpack.c.b16 %v964, %v963
    %v1024 = vpack.c.b16 %v966, %v965
    %v1025 = vpack.c.b16 %v968, %v967
    %v1026 = vpack.c.b16 %v970, %v969
    %v1027 = vpack.c.b16 %v972, %v971
    %v1028 = vpack.c.b16 %v974, %v973
    %v1029 = vpack.c.b16 %v976, %v975
    %v1030 = vpack.c.b16 %v978, %v977
    %v1031 = vpack.c.b16 %v980, %v979
    %v1032 = vpack.c.b16 %v982, %v981
    %v1033 = vpack.c.b16 %v984, %v983
    %v1034 = vpack.c.b16 %v986, %v985
    %v1035 = vpack.c.b16 %v988, %v987
    %v1036 = vpack.c.b16 %v990, %v989
    %v1037 = vpack.c.b16 %v992, %v991
    %v1038 = vpack.c.b16 %v994, %v993
    %v1039 = vpack.c.b16 %v996, %v995
    %v1040 = vpack.c.b16 %v998, %v997
    %v1041 = vpack.c.b16 %v1000, %v999
    %v1042 = vpack.c.b16 %v1002, %v1001
    %v1043 = vpack.c.b16 %v1004, %v1003
    %v1044 = vpack.c.b16 %v1006, %v1005
    %v1045 = vpack.c.b16 %v1008, %v1007
    %v1046 = vpack.c.b16 %v1010, %v1009
    %v1047 = vpack.c.b16 %v1012, %v1011
    %v1048 = vpack.c.b16 %v1014, %v1013
    %v1049 = vpack.c.b16 %v1016, %v1015
    %v1050 = vpack.c.b16 %v1018, %v1017
    %1083 = vmatprep.subr.bf16.mxu0 0
    %1084 = vmatpush1.bf16.msra.mxu0 %v1019
    %1085 = vmatprep.subr.bf16.mxu0 0
    %1086 = vmatpush1.bf16.msra.mxu0 %v1020
    %1087 = vmatprep.subr.bf16.mxu0 0
    %1088 = vmatpush1.bf16.msra.mxu0 %v1021
    %1089 = vmatprep.subr.bf16.mxu0 0
    %1090 = vmatpush1.bf16.msra.mxu0 %v1022
    %1091 = vmatprep.subr.bf16.mxu0 0
    %1092 = vmatpush1.bf16.msra.mxu0 %v1023
    %1093 = vmatprep.subr.bf16.mxu0 0
    %1094 = vmatpush1.bf16.msra.mxu0 %v1024
    %1095 = vmatprep.subr.bf16.mxu0 0
    %1096 = vmatpush1.bf16.msra.mxu0 %v1025
    %1097 = vmatprep.subr.bf16.mxu0 0
    %1098 = vmatpush1.bf16.msra.mxu0 %v1026
    %1099 = vmatprep.subr.bf16.mxu0 0
    %1100 = vmatpush1.bf16.msra.mxu0 %v1027
    %1101 = vmatprep.subr.bf16.mxu0 0
    %1102 = vmatpush1.bf16.msra.mxu0 %v1028
    %1103 = vmatprep.subr.bf16.mxu0 0
    %1104 = vmatpush1.bf16.msra.mxu0 %v1029
    %1105 = vmatprep.subr.bf16.mxu0 0
    %1106 = vmatpush1.bf16.msra.mxu0 %v1030
    %1107 = vmatprep.subr.bf16.mxu0 0
    %1108 = vmatpush1.bf16.msra.mxu0 %v1031
    %1109 = vmatprep.subr.bf16.mxu0 0
    %1110 = vmatpush1.bf16.msra.mxu0 %v1032
    %1111 = vmatprep.subr.bf16.mxu0 0
    %1112 = vmatpush1.bf16.msra.mxu0 %v1033
    %1113 = vmatprep.subr.bf16.mxu0 0
    %1114 = vmatpush1.bf16.msra.mxu0 %v1034
    %1115 = vmatprep.mubr.bf16.mxu0 %v817
    %1116 = vmatmul.mubr.bf16.gmra.mrb[0].mxu0 %v816
    %v1117 = vpop.f32.mrb[0].mxu0
    %v1118 = vadd.f32 %v889, %v1117
    %v1119 = vpop.f32.mrb[0].mxu0
    %v1120 = vpop.f32.mrb[0].mxu0
    %v1121 = vpop.f32.mrb[0].mxu0
    %1122 = vdwg.mxu0
    %1123 = vmatprep.subr.bf16.mxu0 0
    %1124 = vmatpush1.bf16.msra.mxu0 %v1035
    %1125 = vmatprep.subr.bf16.mxu0 0
    %1126 = vmatpush1.bf16.msra.mxu0 %v1036
    %1127 = vmatprep.subr.bf16.mxu0 0
    %1128 = vmatpush1.bf16.msra.mxu0 %v1037
    %1129 = vmatprep.subr.bf16.mxu0 0
    %1130 = vmatpush1.bf16.msra.mxu0 %v1038
    %1131 = vmatprep.subr.bf16.mxu0 0
    %1132 = vmatpush1.bf16.msra.mxu0 %v1039
    %1133 = vmatprep.subr.bf16.mxu0 0
    %1134 = vmatpush1.bf16.msra.mxu0 %v1040
    %1135 = vmatprep.subr.bf16.mxu0 0
    %1136 = vmatpush1.bf16.msra.mxu0 %v1041
    %1137 = vmatprep.subr.bf16.mxu0 0
    %1138 = vmatpush1.bf16.msra.mxu0 %v1042
    %1139 = vmatprep.subr.bf16.mxu0 0
    %1140 = vmatpush1.bf16.msra.mxu0 %v1043
    %1141 = vmatprep.subr.bf16.mxu0 0
    %1142 = vmatpush1.bf16.msra.mxu0 %v1044
    %1143 = vmatprep.subr.bf16.mxu0 0
    %1144 = vmatpush1.bf16.msra.mxu0 %v1045
    %1145 = vmatprep.subr.bf16.mxu0 0
    %1146 = vmatpush1.bf16.msra.mxu0 %v1046
    %1147 = vmatprep.subr.bf16.mxu0 0
    %1148 = vmatpush1.bf16.msra.mxu0 %v1047
    %1149 = vmatprep.subr.bf16.mxu0 0
    %1150 = vmatpush1.bf16.msra.mxu0 %v1048
    %1151 = vmatprep.subr.bf16.mxu0 0
    %1152 = vmatpush1.bf16.msra.mxu0 %v1049
    %1153 = vmatprep.subr.bf16.mxu0 0
    %1154 = vmatpush1.bf16.msra.mxu0 %v1050
    %1155 = vmatprep.mubr.bf16.mxu0 %v819
    %1156 = vmatmul.mubr.bf16.gmra.mrb[0].mxu0 %v818
    %v1157 = vpop.f32.mrb[0].mxu0
    %v1158 = vadd.f32 %v1118, %v1157
    %v1159 = vpop.f32.mrb[0].mxu0
    %v1160 = vpop.f32.mrb[0].mxu0
    %v1161 = vpop.f32.mrb[0].mxu0
    %1162 = vdwg.mxu0
    %v1163 = vmul.f32 %v807, 0.5
    %v1164 = vmul.f32 %v1158, 0.5
    %v1165 = vmul.f32 %v1163, 1.442695
    %v1166 = vpow.pop %v1165
    %v1167 = vmul.f32 %v1164, 1.442695
    %v1168 = vpow.pop %v1167
    %v1169 = vld [vmem:[%s4] sm:$0xff]
    %v1170 = vld [vmem:[%s4 + $0x8] sm:$0xff]
    %1173 = vrot.lane.b32.xlu0 %v1169, 32
    %v1174 = vpop.permute.xlu0 %1173
    %1175 = vrot.lane.b32.xlu0 %v1170, 32
    %v1176 = vpop.permute.xlu0 %1175
    %v1179 = vmul.f32 %v1166, %v1174
    %v1180 = vmul.f32 %v1168, %v1176
    %1183 = vrot.lane.b32.xlu0 %v1179, 96
    %v1184 = vpop.permute.xlu0 %1183
    %1185 = vrot.lane.b32.xlu0 %v1180, 96
    %v1186 = vpop.permute.xlu0 %1185
    %v1189 = vadd.f32 %v807, %v1184
    %v1190 = vadd.f32 %v1158, %v1186
    %v1191 = vpack.c.bf16 %v1190, %v1189
    %v1192 = vld [vmem:[#allocation13] sm:$0xff]
    %v1193 = vld [vmem:[#allocation13 + $0x8] sm:$0xff]
    %v1194 = vld [vmem:[#allocation13 + $0x10] sm:$0xff]
    %v1195 = vld [vmem:[#allocation13 + $0x18] sm:$0xff]
    %v1196 = vld [vmem:[#allocation13 + $0x20] sm:$0xff]
    %v1197 = vld [vmem:[#allocation13 + $0x28] sm:$0xff]
    %v1198 = vld [vmem:[#allocation13 + $0x30] sm:$0xff]
    %v1199 = vld [vmem:[#allocation13 + $0x38] sm:$0xff]
    %v1200 = vpack.c.bf16 %v458, %v453
    %v1201 = vld [vmem:[#allocation14] sm:$0xff]
    %v1202 = vld [vmem:[#allocation14 + $0x8] sm:$0xff]
    %v1205 = vunpack.c.l.b16 %v1201
    %v1206 = vunpack.c.h.b16 %v1201
    %v1207 = vunpack.c.l.b16 %v1202
    %v1208 = vunpack.c.h.b16 %v1202
    %v1209 = vpack.c.b16 %v1205, %v1205
    %v1210 = vpack.c.b16 %v1206, %v1206
    %v1211 = vpack.c.b16 %v1207, %v1207
    %v1212 = vpack.c.b16 %v1208, %v1208
    %v1214 = vsel %vm379, %v1200, 0
    %vm1216 = vcmask 1043456
    %v1218 = vsel %vm1216, %v1209, 0
    %v1221 = vsel %vm1216, %v1210, 0
    %v1224 = vsel %vm1216, %v1211, 0
    %v1227 = vsel %vm1216, %v1212, 0
    %1229 = vmatprep.subr.bf16.mxu0 %v1221
    %1230 = vmatpush1.bf16.msra.mxu0 %v1218
    %1231 = vmatprep.subr.bf16.mxu0 0
    %1232 = vmatpush1.bf16.msra.mxu0 0
    %1233 = vmatprep.subr.bf16.mxu0 0
    %1234 = vmatpush1.bf16.msra.mxu0 0
    %1235 = vmatprep.subr.bf16.mxu0 0
    %1236 = vmatpush1.bf16.msra.mxu0 0
    %1237 = vmatprep.subr.bf16.mxu0 0
    %1238 = vmatpush1.bf16.msra.mxu0 0
    %1239 = vmatprep.subr.bf16.mxu0 0
    %1240 = vmatpush1.bf16.msra.mxu0 0
    %1241 = vmatprep.subr.bf16.mxu0 0
    %1242 = vmatpush1.bf16.msra.mxu0 0
    %1243 = vmatprep.subr.bf16.mxu0 0
    %1244 = vmatpush1.bf16.msra.mxu0 0
    %1245 = vmatprep.subr.bf16.mxu0 0
    %1246 = vmatpush1.bf16.msra.mxu0 0
    %1247 = vmatprep.subr.bf16.mxu0 0
    %1248 = vmatpush1.bf16.msra.mxu0 0
    %1249 = vmatprep.subr.bf16.mxu0 0
    %1250 = vmatpush1.bf16.msra.mxu0 0
    %1251 = vmatprep.subr.bf16.mxu0 0
    %1252 = vmatpush1.bf16.msra.mxu0 0
    %1253 = vmatprep.subr.bf16.mxu0 0
    %1254 = vmatpush1.bf16.msra.mxu0 0
    %1255 = vmatprep.subr.bf16.mxu0 0
    %1256 = vmatpush1.bf16.msra.mxu0 0
    %1257 = vmatprep.subr.bf16.mxu0 0
    %1258 = vmatpush1.bf16.msra.mxu0 0
    %1259 = vmatprep.subr.bf16.mxu0 0
    %1260 = vmatpush1.bf16.msra.mxu0 0
    %1261 = vmatprep.mubr.bf16.mxu0 0
    %1262 = vmatmul.mubr.bf16.gmra.mrb[0].mxu0 %v1214
    %v1263 = vpop.f32.mrb[0].mxu0
    %v1264 = vadd.f32 0.0, %v1263
    %v1265 = vpop.f32.mrb[0].mxu0
    %v1266 = vadd.f32 0.0, %v1265
    %v1267 = vpop.f32.mrb[0].mxu0
    %v1268 = vadd.f32 0.0, %v1267
    %v1269 = vpop.f32.mrb[0].mxu0
    %v1270 = vadd.f32 0.0, %v1269
    %1271 = vdwg.mxu0
    %1272 = vmatprep.subr.bf16.mxu0 %v1227
    %1273 = vmatpush1.bf16.msra.mxu0 %v1224
    %1274 = vmatprep.subr.bf16.mxu0 0
    %1275 = vmatpush1.bf16.msra.mxu0 0
    %1276 = vmatprep.subr.bf16.mxu0 0
    %1277 = vmatpush1.bf16.msra.mxu0 0
    %1278 = vmatprep.subr.bf16.mxu0 0
    %1279 = vmatpush1.bf16.msra.mxu0 0
    %1280 = vmatprep.subr.bf16.mxu0 0
    %1281 = vmatpush1.bf16.msra.mxu0 0
    %1282 = vmatprep.subr.bf16.mxu0 0
    %1283 = vmatpush1.bf16.msra.mxu0 0
    %1284 = vmatprep.subr.bf16.mxu0 0
    %1285 = vmatpush1.bf16.msra.mxu0 0
    %1286 = vmatprep.subr.bf16.mxu0 0
    %1287 = vmatpush1.bf16.msra.mxu0 0
    %1288 = vmatprep.subr.bf16.mxu0 0
    %1289 = vmatpush1.bf16.msra.mxu0 0
    %1290 = vmatprep.subr.bf16.mxu0 0
    %1291 = vmatpush1.bf16.msra.mxu0 0
    %1292 = vmatprep.subr.bf16.mxu0 0
    %1293 = vmatpush1.bf16.msra.mxu0 0
    %1294 = vmatprep.subr.bf16.mxu0 0
    %1295 = vmatpush1.bf16.msra.mxu0 0
    %1296 = vmatprep.subr.bf16.mxu0 0
    %1297 = vmatpush1.bf16.msra.mxu0 0
    %1298 = vmatprep.subr.bf16.mxu0 0
    %1299 = vmatpush1.bf16.msra.mxu0 0
    %1300 = vmatprep.subr.bf16.mxu0 0
    %1301 = vmatpush1.bf16.msra.mxu0 0
    %1302 = vmatprep.subr.bf16.mxu0 0
    %1303 = vmatpush1.bf16.msra.mxu0 0
    %1304 = vmatprep.mubr.bf16.mxu0 0
    %1305 = vmatmul.mubr.bf16.gmra.mrb[0].mxu0 %v1214
    %v1306 = vpop.f32.mrb[0].mxu0
    %v1307 = vadd.f32 0.0, %v1306
    %v1308 = vpop.f32.mrb[0].mxu0
    %v1309 = vadd.f32 0.0, %v1308
    %v1310 = vpop.f32.mrb[0].mxu0
    %v1311 = vadd.f32 0.0, %v1310
    %v1312 = vpop.f32.mrb[0].mxu0
    %v1313 = vadd.f32 0.0, %v1312
    %1314 = vdwg.mxu0
    %v1323 = vunpack.c.l.b16 %v1192
    %v1324 = vunpack.c.h.b16 %v1192
    %v1325 = vunpack.c.l.b16 %v1193
    %v1326 = vunpack.c.h.b16 %v1193
    %v1327 = vunpack.c.l.b16 %v1194
    %v1328 = vunpack.c.h.b16 %v1194
    %v1329 = vunpack.c.l.b16 %v1195
    %v1330 = vunpack.c.h.b16 %v1195
    %v1331 = vunpack.c.l.b16 %v1196
    %v1332 = vunpack.c.h.b16 %v1196
    %v1333 = vunpack.c.l.b16 %v1197
    %v1334 = vunpack.c.h.b16 %v1197
    %v1335 = vunpack.c.l.b16 %v1198
    %v1336 = vunpack.c.h.b16 %v1198
    %v1337 = vunpack.c.l.b16 %v1199
    %v1338 = vunpack.c.h.b16 %v1199
    %v1339 = vpack.c.b16 %v1327, %v1323
    %v1340 = vpack.c.b16 %v1328, %v1324
    %v1341 = vpack.c.b16 %v1329, %v1325
    %v1342 = vpack.c.b16 %v1330, %v1326
    %v1343 = vpack.c.b16 %v1335, %v1331
    %v1344 = vpack.c.b16 %v1336, %v1332
    %v1345 = vpack.c.b16 %v1337, %v1333
    %v1346 = vpack.c.b16 %v1338, %v1334
    %v1356 = vsel %vm280, %v1191, 0
    %1358 = vmatprep.subr.bf16.mxu0 %v1340
    %1359 = vmatpush1.bf16.msra.mxu0 %v1339
    %1360 = vmatprep.subr.bf16.mxu0 %v1344
    %1361 = vmatpush1.bf16.msra.mxu0 %v1343
    %1362 = vmatprep.subr.bf16.mxu0 0
    %1363 = vmatpush1.bf16.msra.mxu0 0
    %1364 = vmatprep.subr.bf16.mxu0 0
    %1365 = vmatpush1.bf16.msra.mxu0 0
    %1366 = vmatprep.subr.bf16.mxu0 0
    %1367 = vmatpush1.bf16.msra.mxu0 0
    %1368 = vmatprep.subr.bf16.mxu0 0
    %1369 = vmatpush1.bf16.msra.mxu0 0
    %1370 = vmatprep.subr.bf16.mxu0 0
    %1371 = vmatpush1.bf16.msra.mxu0 0
    %1372 = vmatprep.subr.bf16.mxu0 0
    %1373 = vmatpush1.bf16.msra.mxu0 0
    %1374 = vmatprep.subr.bf16.mxu0 0
    %1375 = vmatpush1.bf16.msra.mxu0 0
    %1376 = vmatprep.subr.bf16.mxu0 0
    %1377 = vmatpush1.bf16.msra.mxu0 0
    %1378 = vmatprep.subr.bf16.mxu0 0
    %1379 = vmatpush1.bf16.msra.mxu0 0
    %1380 = vmatprep.subr.bf16.mxu0 0
    %1381 = vmatpush1.bf16.msra.mxu0 0
    %1382 = vmatprep.subr.bf16.mxu0 0
    %1383 = vmatpush1.bf16.msra.mxu0 0
    %1384 = vmatprep.subr.bf16.mxu0 0
    %1385 = vmatpush1.bf16.msra.mxu0 0
    %1386 = vmatprep.subr.bf16.mxu0 0
    %1387 = vmatpush1.bf16.msra.mxu0 0
    %1388 = vmatprep.subr.bf16.mxu0 0
    %1389 = vmatpush1.bf16.msra.mxu0 0
    %1390 = vmatprep.mubr.bf16.mxu0 0
    %1391 = vmatmul.mubr.bf16.gmra.mrb[0].mxu0 %v1356
    %v1392 = vpop.f32.mrb[0].mxu0
    %v1393 = vadd.f32 %v1264, %v1392
    %v1394 = vpop.f32.mrb[0].mxu0
    %v1395 = vadd.f32 %v1266, %v1394
    %v1396 = vpop.f32.mrb[0].mxu0
    %v1397 = vadd.f32 %v1268, %v1396
    %v1398 = vpop.f32.mrb[0].mxu0
    %v1399 = vadd.f32 %v1270, %v1398
    %1400 = vdwg.mxu0
    %1401 = vmatprep.subr.bf16.mxu0 %v1342
    %1402 = vmatpush1.bf16.msra.mxu0 %v1341
    %1403 = vmatprep.subr.bf16.mxu0 %v1346
    %1404 = vmatpush1.bf16.msra.mxu0 %v1345
    %1405 = vmatprep.subr.bf16.mxu0 0
    %1406 = vmatpush1.bf16.msra.mxu0 0
    %1407 = vmatprep.subr.bf16.mxu0 0
    %1408 = vmatpush1.bf16.msra.mxu0 0
    %1409 = vmatprep.subr.bf16.mxu0 0
    %1410 = vmatpush1.bf16.msra.mxu0 0
    %1411 = vmatprep.subr.bf16.mxu0 0
    %1412 = vmatpush1.bf16.msra.mxu0 0
    %1413 = vmatprep.subr.bf16.mxu0 0
    %1414 = vmatpush1.bf16.msra.mxu0 0
    %1415 = vmatprep.subr.bf16.mxu0 0
    %1416 = vmatpush1.bf16.msra.mxu0 0
    %1417 = vmatprep.subr.bf16.mxu0 0
    %1418 = vmatpush1.bf16.msra.mxu0 0
    %1419 = vmatprep.subr.bf16.mxu0 0
    %1420 = vmatpush1.bf16.msra.mxu0 0
    %1421 = vmatprep.subr.bf16.mxu0 0
    %1422 = vmatpush1.bf16.msra.mxu0 0
    %1423 = vmatprep.subr.bf16.mxu0 0
    %1424 = vmatpush1.bf16.msra.mxu0 0
    %1425 = vmatprep.subr.bf16.mxu0 0
    %1426 = vmatpush1.bf16.msra.mxu0 0
    %1427 = vmatprep.subr.bf16.mxu0 0
    %1428 = vmatpush1.bf16.msra.mxu0 0
    %1429 = vmatprep.subr.bf16.mxu0 0
    %1430 = vmatpush1.bf16.msra.mxu0 0
    %1431 = vmatprep.subr.bf16.mxu0 0
    %1432 = vmatpush1.bf16.msra.mxu0 0
    %1433 = vmatprep.mubr.bf16.mxu0 0
    %1434 = vmatmul.mubr.bf16.gmra.mrb[0].mxu0 %v1356
    %v1435 = vpop.f32.mrb[0].mxu0
    %v1436 = vadd.f32 %v1307, %v1435
    %v1437 = vpop.f32.mrb[0].mxu0
    %v1438 = vadd.f32 %v1309, %v1437
    %v1439 = vpop.f32.mrb[0].mxu0
    %v1440 = vadd.f32 %v1311, %v1439
    %v1441 = vpop.f32.mrb[0].mxu0
    %v1442 = vadd.f32 %v1313, %v1441
    %1443 = vdwg.mxu0
    %v1444 = vld [vmem:[#allocation16] sm:$0xf]
    %v1446 = vlaneseq
    %v1447 = vshrl.u32 %v1446, 7
    %v1448 = vsub.s32 0, %v1447
    %v1449 = vrot.slane %v1444, %v1448
    %v1450 = vlaneseq
    %v1451 = vshrl.u32 %v1450, 7
    %v1452 = vsub.s32 1, %v1451
    %v1453 = vrot.slane %v1444, %v1452
    %v1454 = vlaneseq
    %v1455 = vshrl.u32 %v1454, 7
    %v1456 = vsub.s32 2, %v1455
    %v1457 = vrot.slane %v1444, %v1456
    %v1458 = vlaneseq
    %v1459 = vshrl.u32 %v1458, 7
    %v1460 = vsub.s32 3, %v1459
    %v1461 = vrot.slane %v1444, %v1460
    %v1466 = vadd.f32 %v1393, %v1449
    %v1467 = vadd.f32 %v1395, %v1453
    %v1468 = vadd.f32 %v1436, %v1457
    %v1469 = vadd.f32 %v1438, %v1461
    %v1470 = vadd.f32 %v1397, %v1449
    %v1471 = vadd.f32 %v1399, %v1453
    %v1472 = vadd.f32 %v1440, %v1457
    %v1473 = vadd.f32 %v1442, %v1461
    %v1474 = vpack.c.bf16 %v319, %v319
    %v1475 = vpack.c.bf16 %v321, %v321
    %v1476 = vpack.c.bf16 %v360, %v360
    %v1477 = vpack.c.bf16 %v362, %v362
    %v1478 = vpack.c.bf16 %v1466, %v1466
    %v1479 = vpack.c.bf16 %v1467, %v1467
    %v1480 = vpack.c.bf16 %v1468, %v1468
    %v1481 = vpack.c.bf16 %v1469, %v1469
    %v1482 = vld [vmem:[#allocation17] sm:$0xff]
    %v1483 = vld [vmem:[#allocation17 + $0x8] sm:$0xff]
    %v1484 = vld [vmem:[#allocation17 + $0x10] sm:$0xff]
    %v1485 = vld [vmem:[#allocation17 + $0x18] sm:$0xff]
    %v1486 = vld [vmem:[#allocation17 + $0x20] sm:$0xff]
    %v1487 = vld [vmem:[#allocation17 + $0x28] sm:$0xff]
    %v1488 = vld [vmem:[#allocation17 + $0x30] sm:$0xff]
    %v1489 = vld [vmem:[#allocation17 + $0x38] sm:$0xff]
    %v1490 = vld [vmem:[#allocation17 + $0x40] sm:$0xff]
    %v1491 = vld [vmem:[#allocation17 + $0x48] sm:$0xff]
    %v1492 = vld [vmem:[#allocation17 + $0x50] sm:$0xff]
    %v1493 = vld [vmem:[#allocation17 + $0x58] sm:$0xff]
    %v1494 = vld [vmem:[#allocation17 + $0x60] sm:$0xff]
    %v1495 = vld [vmem:[#allocation17 + $0x68] sm:$0xff]
    %v1496 = vld [vmem:[#allocation17 + $0x70] sm:$0xff]
    %v1497 = vld [vmem:[#allocation17 + $0x78] sm:$0xff]
    %v1498 = vld [vmem:[#allocation17 + $0x80] sm:$0xff]
    %v1499 = vld [vmem:[#allocation17 + $0x88] sm:$0xff]
    %v1500 = vld [vmem:[#allocation17 + $0x90] sm:$0xff]
    %v1501 = vld [vmem:[#allocation17 + $0x98] sm:$0xff]
    %v1502 = vld [vmem:[#allocation17 + $0xa0] sm:$0xff]
    %v1503 = vld [vmem:[#allocation17 + $0xa8] sm:$0xff]
    %v1504 = vld [vmem:[#allocation17 + $0xb0] sm:$0xff]
    %v1505 = vld [vmem:[#allocation17 + $0xb8] sm:$0xff]
    %v1506 = vld [vmem:[#allocation17 + $0xc0] sm:$0xff]
    %v1507 = vld [vmem:[#allocation17 + $0xc8] sm:$0xff]
    %v1508 = vld [vmem:[#allocation17 + $0xd0] sm:$0xff]
    %v1509 = vld [vmem:[#allocation17 + $0xd8] sm:$0xff]
    %v1510 = vld [vmem:[#allocation17 + $0xe0] sm:$0xff]
    %v1511 = vld [vmem:[#allocation17 + $0xe8] sm:$0xff]
    %v1512 = vld [vmem:[#allocation17 + $0xf0] sm:$0xff]
    %v1513 = vld [vmem:[#allocation17 + $0xf8] sm:$0xff]
    %v1514 = vld [vmem:[#allocation17 + $0x100] sm:$0xff]
    %v1515 = vld [vmem:[#allocation17 + $0x108] sm:$0xff]
    %v1516 = vld [vmem:[#allocation17 + $0x110] sm:$0xff]
    %v1517 = vld [vmem:[#allocation17 + $0x118] sm:$0xff]
    %v1518 = vld [vmem:[#allocation17 + $0x120] sm:$0xff]
    %v1519 = vld [vmem:[#allocation17 + $0x128] sm:$0xff]
    %v1520 = vld [vmem:[#allocation17 + $0x130] sm:$0xff]
    %v1521 = vld [vmem:[#allocation17 + $0x138] sm:$0xff]
    %v1522 = vld [vmem:[#allocation17 + $0x140] sm:$0xff]
    %v1523 = vld [vmem:[#allocation17 + $0x148] sm:$0xff]
    %v1524 = vld [vmem:[#allocation17 + $0x150] sm:$0xff]
    %v1525 = vld [vmem:[#allocation17 + $0x158] sm:$0xff]
    %v1526 = vld [vmem:[#allocation17 + $0x160] sm:$0xff]
    %v1527 = vld [vmem:[#allocation17 + $0x168] sm:$0xff]
    %v1528 = vld [vmem:[#allocation17 + $0x170] sm:$0xff]
    %v1529 = vld [vmem:[#allocation17 + $0x178] sm:$0xff]
    %v1530 = vld [vmem:[#allocation17 + $0x180] sm:$0xff]
    %v1531 = vld [vmem:[#allocation17 + $0x188] sm:$0xff]
    %v1532 = vld [vmem:[#allocation17 + $0x190] sm:$0xff]
    %v1533 = vld [vmem:[#allocation17 + $0x198] sm:$0xff]
    %v1534 = vld [vmem:[#allocation17 + $0x1a0] sm:$0xff]
    %v1535 = vld [vmem:[#allocation17 + $0x1a8] sm:$0xff]
    %v1536 = vld [vmem:[#allocation17 + $0x1b0] sm:$0xff]
    %v1537 = vld [vmem:[#allocation17 + $0x1b8] sm:$0xff]
    %v1538 = vld [vmem:[#allocation17 + $0x1c0] sm:$0xff]
    %v1539 = vld [vmem:[#allocation17 + $0x1c8] sm:$0xff]
    %v1540 = vld [vmem:[#allocation17 + $0x1d0] sm:$0xff]
    %v1541 = vld [vmem:[#allocation17 + $0x1d8] sm:$0xff]
    %v1542 = vld [vmem:[#allocation17 + $0x1e0] sm:$0xff]
    %v1543 = vld [vmem:[#allocation17 + $0x1e8] sm:$0xff]
    %v1544 = vld [vmem:[#allocation17 + $0x1f0] sm:$0xff]
    %v1545 = vld [vmem:[#allocation17 + $0x1f8] sm:$0xff]
    %v1546 = vld [vmem:[#allocation17 + $0x200] sm:$0xff]
    %v1547 = vld [vmem:[#allocation17 + $0x208] sm:$0xff]
    %v1548 = vld [vmem:[#allocation17 + $0x210] sm:$0xff]
    %v1549 = vld [vmem:[#allocation17 + $0x218] sm:$0xff]
    %v1550 = vld [vmem:[#allocation17 + $0x220] sm:$0xff]
    %v1551 = vld [vmem:[#allocation17 + $0x228] sm:$0xff]
    %v1552 = vld [vmem:[#allocation17 + $0x230] sm:$0xff]
    %v1553 = vld [vmem:[#allocation17 + $0x238] sm:$0xff]
    %v1554 = vld [vmem:[#allocation17 + $0x240] sm:$0xff]
    %v1555 = vld [vmem:[#allocation17 + $0x248] sm:$0xff]
    %v1556 = vld [vmem:[#allocation17 + $0x250] sm:$0xff]
    %v1557 = vld [vmem:[#allocation17 + $0x258] sm:$0xff]
    %v1558 = vld [vmem:[#allocation17 + $0x260] sm:$0xff]
    %v1559 = vld [vmem:[#allocation17 + $0x268] sm:$0xff]
    %v1560 = vld [vmem:[#allocation17 + $0x270] sm:$0xff]
    %v1561 = vld [vmem:[#allocation17 + $0x278] sm:$0xff]
    %v1562 = vld [vmem:[#allocation17 + $0x280] sm:$0xff]
    %v1563 = vld [vmem:[#allocation17 + $0x288] sm:$0xff]
    %v1564 = vld [vmem:[#allocation17 + $0x290] sm:$0xff]
    %v1565 = vld [vmem:[#allocation17 + $0x298] sm:$0xff]
    %v1566 = vld [vmem:[#allocation17 + $0x2a0] sm:$0xff]
    %v1567 = vld [vmem:[#allocation17 + $0x2a8] sm:$0xff]
    %v1568 = vld [vmem:[#allocation17 + $0x2b0] sm:$0xff]
    %v1569 = vld [vmem:[#allocation17 + $0x2b8] sm:$0xff]
    %v1570 = vld [vmem:[#allocation17 + $0x2c0] sm:$0xff]
    %v1571 = vld [vmem:[#allocation17 + $0x2c8] sm:$0xff]
    %v1572 = vld [vmem:[#allocation17 + $0x2d0] sm:$0xff]
    %v1573 = vld [vmem:[#allocation17 + $0x2d8] sm:$0xff]
    %v1574 = vld [vmem:[#allocation17 + $0x2e0] sm:$0xff]
    %v1575 = vld [vmem:[#allocation17 + $0x2e8] sm:$0xff]
    %v1576 = vld [vmem:[#allocation17 + $0x2f0] sm:$0xff]
    %v1577 = vld [vmem:[#allocation17 + $0x2f8] sm:$0xff]
    %v1578 = vld [vmem:[#allocation17 + $0x300] sm:$0xff]
    %v1579 = vld [vmem:[#allocation17 + $0x308] sm:$0xff]
    %v1580 = vld [vmem:[#allocation17 + $0x310] sm:$0xff]
    %v1581 = vld [vmem:[#allocation17 + $0x318] sm:$0xff]
    %v1582 = vld [vmem:[#allocation17 + $0x320] sm:$0xff]
    %v1583 = vld [vmem:[#allocation17 + $0x328] sm:$0xff]
    %v1584 = vld [vmem:[#allocation17 + $0x330] sm:$0xff]
    %v1585 = vld [vmem:[#allocation17 + $0x338] sm:$0xff]
    %v1586 = vld [vmem:[#allocation17 + $0x340] sm:$0xff]
    %v1587 = vld [vmem:[#allocation17 + $0x348] sm:$0xff]
    %v1588 = vld [vmem:[#allocation17 + $0x350] sm:$0xff]
    %v1589 = vld [vmem:[#allocation17 + $0x358] sm:$0xff]
    %v1590 = vld [vmem:[#allocation17 + $0x360] sm:$0xff]
    %v1591 = vld [vmem:[#allocation17 + $0x368] sm:$0xff]
    %v1592 = vld [vmem:[#allocation17 + $0x370] sm:$0xff]
    %v1593 = vld [vmem:[#allocation17 + $0x378] sm:$0xff]
    %v1594 = vld [vmem:[#allocation17 + $0x380] sm:$0xff]
    %v1595 = vld [vmem:[#allocation17 + $0x388] sm:$0xff]
    %v1596 = vld [vmem:[#allocation17 + $0x390] sm:$0xff]
    %v1597 = vld [vmem:[#allocation17 + $0x398] sm:$0xff]
    %v1598 = vld [vmem:[#allocation17 + $0x3a0] sm:$0xff]
    %v1599 = vld [vmem:[#allocation17 + $0x3a8] sm:$0xff]
    %v1600 = vld [vmem:[#allocation17 + $0x3b0] sm:$0xff]
    %v1601 = vld [vmem:[#allocation17 + $0x3b8] sm:$0xff]
    %v1602 = vld [vmem:[#allocation17 + $0x3c0] sm:$0xff]
    %v1603 = vld [vmem:[#allocation17 + $0x3c8] sm:$0xff]
    %v1604 = vld [vmem:[#allocation17 + $0x3d0] sm:$0xff]
    %v1605 = vld [vmem:[#allocation17 + $0x3d8] sm:$0xff]
    %v1606 = vld [vmem:[#allocation17 + $0x3e0] sm:$0xff]
    %v1607 = vld [vmem:[#allocation17 + $0x3e8] sm:$0xff]
    %v1608 = vld [vmem:[#allocation17 + $0x3f0] sm:$0xff]
    %v1609 = vld [vmem:[#allocation17 + $0x3f8] sm:$0xff]
    %v1610 = vld [vmem:[#allocation17 + $0x400] sm:$0xff]
    %v1611 = vld [vmem:[#allocation17 + $0x408] sm:$0xff]
    %v1612 = vld [vmem:[#allocation17 + $0x410] sm:$0xff]
    %v1613 = vld [vmem:[#allocation17 + $0x418] sm:$0xff]
    %v1614 = vld [vmem:[#allocation17 + $0x420] sm:$0xff]
    %v1615 = vld [vmem:[#allocation17 + $0x428] sm:$0xff]
    %v1616 = vld [vmem:[#allocation17 + $0x430] sm:$0xff]
    %v1617 = vld [vmem:[#allocation17 + $0x438] sm:$0xff]
    %v1618 = vld [vmem:[#allocation17 + $0x440] sm:$0xff]
    %v1619 = vld [vmem:[#allocation17 + $0x448] sm:$0xff]
    %v1620 = vld [vmem:[#allocation17 + $0x450] sm:$0xff]
    %v1621 = vld [vmem:[#allocation17 + $0x458] sm:$0xff]
    %v1622 = vld [vmem:[#allocation17 + $0x460] sm:$0xff]
    %v1623 = vld [vmem:[#allocation17 + $0x468] sm:$0xff]
    %v1624 = vld [vmem:[#allocation17 + $0x470] sm:$0xff]
    %v1625 = vld [vmem:[#allocation17 + $0x478] sm:$0xff]
    %v1626 = vld [vmem:[#allocation17 + $0x480] sm:$0xff]
    %v1627 = vld [vmem:[#allocation17 + $0x488] sm:$0xff]
    %v1628 = vld [vmem:[#allocation17 + $0x490] sm:$0xff]
    %v1629 = vld [vmem:[#allocation17 + $0x498] sm:$0xff]
    %v1630 = vld [vmem:[#allocation17 + $0x4a0] sm:$0xff]
    %v1631 = vld [vmem:[#allocation17 + $0x4a8] sm:$0xff]
    %v1632 = vld [vmem:[#allocation17 + $0x4b0] sm:$0xff]
    %v1633 = vld [vmem:[#allocation17 + $0x4b8] sm:$0xff]
    %v1634 = vld [vmem:[#allocation17 + $0x4c0] sm:$0xff]
    %v1635 = vld [vmem:[#allocation17 + $0x4c8] sm:$0xff]
    %v1636 = vld [vmem:[#allocation17 + $0x4d0] sm:$0xff]
    %v1637 = vld [vmem:[#allocation17 + $0x4d8] sm:$0xff]
    %v1638 = vld [vmem:[#allocation17 + $0x4e0] sm:$0xff]
    %v1639 = vld [vmem:[#allocation17 + $0x4e8] sm:$0xff]
    %v1640 = vld [vmem:[#allocation17 + $0x4f0] sm:$0xff]
    %v1641 = vld [vmem:[#allocation17 + $0x4f8] sm:$0xff]
    %v1642 = vld [vmem:[#allocation17 + $0x500] sm:$0xff]
    %v1643 = vld [vmem:[#allocation17 + $0x508] sm:$0xff]
    %v1644 = vld [vmem:[#allocation17 + $0x510] sm:$0xff]
    %v1645 = vld [vmem:[#allocation17 + $0x518] sm:$0xff]
    %v1646 = vld [vmem:[#allocation17 + $0x520] sm:$0xff]
    %v1647 = vld [vmem:[#allocation17 + $0x528] sm:$0xff]
    %v1648 = vld [vmem:[#allocation17 + $0x530] sm:$0xff]
    %v1649 = vld [vmem:[#allocation17 + $0x538] sm:$0xff]
    %v1650 = vld [vmem:[#allocation17 + $0x540] sm:$0xff]
    %v1651 = vld [vmem:[#allocation17 + $0x548] sm:$0xff]
    %v1652 = vld [vmem:[#allocation17 + $0x550] sm:$0xff]
    %v1653 = vld [vmem:[#allocation17 + $0x558] sm:$0xff]
    %v1654 = vld [vmem:[#allocation17 + $0x560] sm:$0xff]
    %v1655 = vld [vmem:[#allocation17 + $0x568] sm:$0xff]
    %v1656 = vld [vmem:[#allocation17 + $0x570] sm:$0xff]
    %v1657 = vld [vmem:[#allocation17 + $0x578] sm:$0xff]
    %v1658 = vld [vmem:[#allocation17 + $0x580] sm:$0xff]
    %v1659 = vld [vmem:[#allocation17 + $0x588] sm:$0xff]
    %v1660 = vld [vmem:[#allocation17 + $0x590] sm:$0xff]
    %v1661 = vld [vmem:[#allocation17 + $0x598] sm:$0xff]
    %v1662 = vld [vmem:[#allocation17 + $0x5a0] sm:$0xff]
    %v1663 = vld [vmem:[#allocation17 + $0x5a8] sm:$0xff]
    %v1664 = vld [vmem:[#allocation17 + $0x5b0] sm:$0xff]
    %v1665 = vld [vmem:[#allocation17 + $0x5b8] sm:$0xff]
    %v1666 = vld [vmem:[#allocation17 + $0x5c0] sm:$0xff]
    %v1667 = vld [vmem:[#allocation17 + $0x5c8] sm:$0xff]
    %v1668 = vld [vmem:[#allocation17 + $0x5d0] sm:$0xff]
    %v1669 = vld [vmem:[#allocation17 + $0x5d8] sm:$0xff]
    %v1670 = vld [vmem:[#allocation17 + $0x5e0] sm:$0xff]
    %v1671 = vld [vmem:[#allocation17 + $0x5e8] sm:$0xff]
    %v1672 = vld [vmem:[#allocation17 + $0x5f0] sm:$0xff]
    %v1673 = vld [vmem:[#allocation17 + $0x5f8] sm:$0xff]
    %v1674 = vld [vmem:[#allocation17 + $0x600] sm:$0xff]
    %v1675 = vld [vmem:[#allocation17 + $0x608] sm:$0xff]
    %v1676 = vld [vmem:[#allocation17 + $0x610] sm:$0xff]
    %v1677 = vld [vmem:[#allocation17 + $0x618] sm:$0xff]
    %v1678 = vld [vmem:[#allocation17 + $0x620] sm:$0xff]
    %v1679 = vld [vmem:[#allocation17 + $0x628] sm:$0xff]
    %v1680 = vld [vmem:[#allocation17 + $0x630] sm:$0xff]
    %v1681 = vld [vmem:[#allocation17 + $0x638] sm:$0xff]
    %v1682 = vld [vmem:[#allocation17 + $0x640] sm:$0xff]
    %v1683 = vld [vmem:[#allocation17 + $0x648] sm:$0xff]
    %v1684 = vld [vmem:[#allocation17 + $0x650] sm:$0xff]
    %v1685 = vld [vmem:[#allocation17 + $0x658] sm:$0xff]
    %v1686 = vld [vmem:[#allocation17 + $0x660] sm:$0xff]
    %v1687 = vld [vmem:[#allocation17 + $0x668] sm:$0xff]
    %v1688 = vld [vmem:[#allocation17 + $0x670] sm:$0xff]
    %v1689 = vld [vmem:[#allocation17 + $0x678] sm:$0xff]
    %v1690 = vld [vmem:[#allocation17 + $0x680] sm:$0xff]
    %v1691 = vld [vmem:[#allocation17 + $0x688] sm:$0xff]
    %v1692 = vld [vmem:[#allocation17 + $0x690] sm:$0xff]
    %v1693 = vld [vmem:[#allocation17 + $0x698] sm:$0xff]
    %v1694 = vld [vmem:[#allocation17 + $0x6a0] sm:$0xff]
    %v1695 = vld [vmem:[#allocation17 + $0x6a8] sm:$0xff]
    %v1696 = vld [vmem:[#allocation17 + $0x6b0] sm:$0xff]
    %v1697 = vld [vmem:[#allocation17 + $0x6b8] sm:$0xff]
    %v1698 = vld [vmem:[#allocation17 + $0x6c0] sm:$0xff]
    %v1699 = vld [vmem:[#allocation17 + $0x6c8] sm:$0xff]
    %v1700 = vld [vmem:[#allocation17 + $0x6d0] sm:$0xff]
    %v1701 = vld [vmem:[#allocation17 + $0x6d8] sm:$0xff]
    %v1702 = vld [vmem:[#allocation17 + $0x6e0] sm:$0xff]
    %v1703 = vld [vmem:[#allocation17 + $0x6e8] sm:$0xff]
    %v1704 = vld [vmem:[#allocation17 + $0x6f0] sm:$0xff]
    %v1705 = vld [vmem:[#allocation17 + $0x6f8] sm:$0xff]
    %v1706 = vld [vmem:[#allocation17 + $0x700] sm:$0xff]
    %v1707 = vld [vmem:[#allocation17 + $0x708] sm:$0xff]
    %v1708 = vld [vmem:[#allocation17 + $0x710] sm:$0xff]
    %v1709 = vld [vmem:[#allocation17 + $0x718] sm:$0xff]
    %v1710 = vld [vmem:[#allocation17 + $0x720] sm:$0xff]
    %v1711 = vld [vmem:[#allocation17 + $0x728] sm:$0xff]
    %v1712 = vld [vmem:[#allocation17 + $0x730] sm:$0xff]
    %v1713 = vld [vmem:[#allocation17 + $0x738] sm:$0xff]
    %v1714 = vld [vmem:[#allocation17 + $0x740] sm:$0xff]
    %v1715 = vld [vmem:[#allocation17 + $0x748] sm:$0xff]
    %v1716 = vld [vmem:[#allocation17 + $0x750] sm:$0xff]
    %v1717 = vld [vmem:[#allocation17 + $0x758] sm:$0xff]
    %v1718 = vld [vmem:[#allocation17 + $0x760] sm:$0xff]
    %v1719 = vld [vmem:[#allocation17 + $0x768] sm:$0xff]
    %v1720 = vld [vmem:[#allocation17 + $0x770] sm:$0xff]
    %v1721 = vld [vmem:[#allocation17 + $0x778] sm:$0xff]
    %v1722 = vld [vmem:[#allocation17 + $0x780] sm:$0xff]
    %v1723 = vld [vmem:[#allocation17 + $0x788] sm:$0xff]
    %v1724 = vld [vmem:[#allocation17 + $0x790] sm:$0xff]
    %v1725 = vld [vmem:[#allocation17 + $0x798] sm:$0xff]
    %v1726 = vld [vmem:[#allocation17 + $0x7a0] sm:$0xff]
    %v1727 = vld [vmem:[#allocation17 + $0x7a8] sm:$0xff]
    %v1728 = vld [vmem:[#allocation17 + $0x7b0] sm:$0xff]
    %v1729 = vld [vmem:[#allocation17 + $0x7b8] sm:$0xff]
    %v1730 = vld [vmem:[#allocation17 + $0x7c0] sm:$0xff]
    %v1731 = vld [vmem:[#allocation17 + $0x7c8] sm:$0xff]
    %v1732 = vld [vmem:[#allocation17 + $0x7d0] sm:$0xff]
    %v1733 = vld [vmem:[#allocation17 + $0x7d8] sm:$0xff]
    %v1734 = vld [vmem:[#allocation17 + $0x7e0] sm:$0xff]
    %v1735 = vld [vmem:[#allocation17 + $0x7e8] sm:$0xff]
    %v1736 = vld [vmem:[#allocation17 + $0x7f0] sm:$0xff]
    %v1737 = vld [vmem:[#allocation17 + $0x7f8] sm:$0xff]
    %v1738 = vld [vmem:[#allocation17 + $0x800] sm:$0xff]
    %v1739 = vld [vmem:[#allocation17 + $0x808] sm:$0xff]
    %v1740 = vld [vmem:[#allocation17 + $0x810] sm:$0xff]
    %v1741 = vld [vmem:[#allocation17 + $0x818] sm:$0xff]
    %v1742 = vld [vmem:[#allocation17 + $0x820] sm:$0xff]
    %v1743 = vld [vmem:[#allocation17 + $0x828] sm:$0xff]
    %v1744 = vld [vmem:[#allocation17 + $0x830] sm:$0xff]
    %v1745 = vld [vmem:[#allocation17 + $0x838] sm:$0xff]
    %v1746 = vld [vmem:[#allocation17 + $0x840] sm:$0xff]
    %v1747 = vld [vmem:[#allocation17 + $0x848] sm:$0xff]
    %v1748 = vld [vmem:[#allocation17 + $0x850] sm:$0xff]
    %v1749 = vld [vmem:[#allocation17 + $0x858] sm:$0xff]
    %v1750 = vld [vmem:[#allocation17 + $0x860] sm:$0xff]
    %v1751 = vld [vmem:[#allocation17 + $0x868] sm:$0xff]
    %v1752 = vld [vmem:[#allocation17 + $0x870] sm:$0xff]
    %v1753 = vld [vmem:[#allocation17 + $0x878] sm:$0xff]
    %v1754 = vld [vmem:[#allocation17 + $0x880] sm:$0xff]
    %v1755 = vld [vmem:[#allocation17 + $0x888] sm:$0xff]
    %v1756 = vld [vmem:[#allocation17 + $0x890] sm:$0xff]
    %v1757 = vld [vmem:[#allocation17 + $0x898] sm:$0xff]
    %v1758 = vld [vmem:[#allocation17 + $0x8a0] sm:$0xff]
    %v1759 = vld [vmem:[#allocation17 + $0x8a8] sm:$0xff]
    %v1760 = vld [vmem:[#allocation17 + $0x8b0] sm:$0xff]
    %v1761 = vld [vmem:[#allocation17 + $0x8b8] sm:$0xff]
    %v1762 = vld [vmem:[#allocation17 + $0x8c0] sm:$0xff]
    %v1763 = vld [vmem:[#allocation17 + $0x8c8] sm:$0xff]
    %v1764 = vld [vmem:[#allocation17 + $0x8d0] sm:$0xff]
    %v1765 = vld [vmem:[#allocation17 + $0x8d8] sm:$0xff]
    %v1766 = vld [vmem:[#allocation17 + $0x8e0] sm:$0xff]
    %v1767 = vld [vmem:[#allocation17 + $0x8e8] sm:$0xff]
    %v1768 = vld [vmem:[#allocation17 + $0x8f0] sm:$0xff]
    %v1769 = vld [vmem:[#allocation17 + $0x8f8] sm:$0xff]
    %v1770 = vld [vmem:[#allocation17 + $0x900] sm:$0xff]
    %v1771 = vld [vmem:[#allocation17 + $0x908] sm:$0xff]
    %v1772 = vld [vmem:[#allocation17 + $0x910] sm:$0xff]
    %v1773 = vld [vmem:[#allocation17 + $0x918] sm:$0xff]
    %v1774 = vld [vmem:[#allocation17 + $0x920] sm:$0xff]
    %v1775 = vld [vmem:[#allocation17 + $0x928] sm:$0xff]
    %v1776 = vld [vmem:[#allocation17 + $0x930] sm:$0xff]
    %v1777 = vld [vmem:[#allocation17 + $0x938] sm:$0xff]
    %v1778 = vld [vmem:[#allocation17 + $0x940] sm:$0xff]
    %v1779 = vld [vmem:[#allocation17 + $0x948] sm:$0xff]
    %v1780 = vld [vmem:[#allocation17 + $0x950] sm:$0xff]
    %v1781 = vld [vmem:[#allocation17 + $0x958] sm:$0xff]
    %v1782 = vld [vmem:[#allocation17 + $0x960] sm:$0xff]
    %v1783 = vld [vmem:[#allocation17 + $0x968] sm:$0xff]
    %v1784 = vld [vmem:[#allocation17 + $0x970] sm:$0xff]
    %v1785 = vld [vmem:[#allocation17 + $0x978] sm:$0xff]
    %v1786 = vld [vmem:[#allocation17 + $0x980] sm:$0xff]
    %v1787 = vld [vmem:[#allocation17 + $0x988] sm:$0xff]
    %v1788 = vld [vmem:[#allocation17 + $0x990] sm:$0xff]
    %v1789 = vld [vmem:[#allocation17 + $0x998] sm:$0xff]
    %v1790 = vld [vmem:[#allocation17 + $0x9a0] sm:$0xff]
    %v1791 = vld [vmem:[#allocation17 + $0x9a8] sm:$0xff]
    %v1792 = vld [vmem:[#allocation17 + $0x9b0] sm:$0xff]
    %v1793 = vld [vmem:[#allocation17 + $0x9b8] sm:$0xff]
    %v1794 = vld [vmem:[#allocation17 + $0x9c0] sm:$0xff]
    %v1795 = vld [vmem:[#allocation17 + $0x9c8] sm:$0xff]
    %v1796 = vld [vmem:[#allocation17 + $0x9d0] sm:$0xff]
    %v1797 = vld [vmem:[#allocation17 + $0x9d8] sm:$0xff]
    %v1798 = vld [vmem:[#allocation17 + $0x9e0] sm:$0xff]
    %v1799 = vld [vmem:[#allocation17 + $0x9e8] sm:$0xff]
    %v1800 = vld [vmem:[#allocation17 + $0x9f0] sm:$0xff]
    %v1801 = vld [vmem:[#allocation17 + $0x9f8] sm:$0xff]
    %v1802 = vld [vmem:[#allocation17 + $0xa00] sm:$0xff]
    %v1803 = vld [vmem:[#allocation17 + $0xa08] sm:$0xff]
    %v1804 = vld [vmem:[#allocation17 + $0xa10] sm:$0xff]
    %v1805 = vld [vmem:[#allocation17 + $0xa18] sm:$0xff]
    %v1806 = vld [vmem:[#allocation17 + $0xa20] sm:$0xff]
    %v1807 = vld [vmem:[#allocation17 + $0xa28] sm:$0xff]
    %v1808 = vld [vmem:[#allocation17 + $0xa30] sm:$0xff]
    %v1809 = vld [vmem:[#allocation17 + $0xa38] sm:$0xff]
    %v1810 = vld [vmem:[#allocation17 + $0xa40] sm:$0xff]
    %v1811 = vld [vmem:[#allocation17 + $0xa48] sm:$0xff]
    %v1812 = vld [vmem:[#allocation17 + $0xa50] sm:$0xff]
    %v1813 = vld [vmem:[#allocation17 + $0xa58] sm:$0xff]
    %v1814 = vld [vmem:[#allocation17 + $0xa60] sm:$0xff]
    %v1815 = vld [vmem:[#allocation17 + $0xa68] sm:$0xff]
    %v1816 = vld [vmem:[#allocation17 + $0xa70] sm:$0xff]
    %v1817 = vld [vmem:[#allocation17 + $0xa78] sm:$0xff]
    %v1818 = vld [vmem:[#allocation17 + $0xa80] sm:$0xff]
    %v1819 = vld [vmem:[#allocation17 + $0xa88] sm:$0xff]
    %v1820 = vld [vmem:[#allocation17 + $0xa90] sm:$0xff]
    %v1821 = vld [vmem:[#allocation17 + $0xa98] sm:$0xff]
    %v1822 = vld [vmem:[#allocation17 + $0xaa0] sm:$0xff]
    %v1823 = vld [vmem:[#allocation17 + $0xaa8] sm:$0xff]
    %v1824 = vld [vmem:[#allocation17 + $0xab0] sm:$0xff]
    %v1825 = vld [vmem:[#allocation17 + $0xab8] sm:$0xff]
    %v1826 = vld [vmem:[#allocation17 + $0xac0] sm:$0xff]
    %v1827 = vld [vmem:[#allocation17 + $0xac8] sm:$0xff]
    %v1828 = vld [vmem:[#allocation17 + $0xad0] sm:$0xff]
    %v1829 = vld [vmem:[#allocation17 + $0xad8] sm:$0xff]
    %v1830 = vld [vmem:[#allocation17 + $0xae0] sm:$0xff]
    %v1831 = vld [vmem:[#allocation17 + $0xae8] sm:$0xff]
    %v1832 = vld [vmem:[#allocation17 + $0xaf0] sm:$0xff]
    %v1833 = vld [vmem:[#allocation17 + $0xaf8] sm:$0xff]
    %v1834 = vld [vmem:[#allocation17 + $0xb00] sm:$0xff]
    %v1835 = vld [vmem:[#allocation17 + $0xb08] sm:$0xff]
    %v1836 = vld [vmem:[#allocation17 + $0xb10] sm:$0xff]
    %v1837 = vld [vmem:[#allocation17 + $0xb18] sm:$0xff]
    %v1838 = vld [vmem:[#allocation17 + $0xb20] sm:$0xff]
    %v1839 = vld [vmem:[#allocation17 + $0xb28] sm:$0xff]
    %v1840 = vld [vmem:[#allocation17 + $0xb30] sm:$0xff]
    %v1841 = vld [vmem:[#allocation17 + $0xb38] sm:$0xff]
    %v1842 = vld [vmem:[#allocation17 + $0xb40] sm:$0xff]
    %v1843 = vld [vmem:[#allocation17 + $0xb48] sm:$0xff]
    %v1844 = vld [vmem:[#allocation17 + $0xb50] sm:$0xff]
    %v1845 = vld [vmem:[#allocation17 + $0xb58] sm:$0xff]
    %v1846 = vld [vmem:[#allocation17 + $0xb60] sm:$0xff]
    %v1847 = vld [vmem:[#allocation17 + $0xb68] sm:$0xff]
    %v1848 = vld [vmem:[#allocation17 + $0xb70] sm:$0xff]
    %v1849 = vld [vmem:[#allocation17 + $0xb78] sm:$0xff]
    %v1850 = vld [vmem:[#allocation17 + $0xb80] sm:$0xff]
    %v1851 = vld [vmem:[#allocation17 + $0xb88] sm:$0xff]
    %v1852 = vld [vmem:[#allocation17 + $0xb90] sm:$0xff]
    %v1853 = vld [vmem:[#allocation17 + $0xb98] sm:$0xff]
    %v1854 = vld [vmem:[#allocation17 + $0xba0] sm:$0xff]
    %v1855 = vld [vmem:[#allocation17 + $0xba8] sm:$0xff]
    %v1856 = vld [vmem:[#allocation17 + $0xbb0] sm:$0xff]
    %v1857 = vld [vmem:[#allocation17 + $0xbb8] sm:$0xff]
    %v1858 = vld [vmem:[#allocation17 + $0xbc0] sm:$0xff]
    %v1859 = vld [vmem:[#allocation17 + $0xbc8] sm:$0xff]
    %v1860 = vld [vmem:[#allocation17 + $0xbd0] sm:$0xff]
    %v1861 = vld [vmem:[#allocation17 + $0xbd8] sm:$0xff]
    %v1862 = vld [vmem:[#allocation17 + $0xbe0] sm:$0xff]
    %v1863 = vld [vmem:[#allocation17 + $0xbe8] sm:$0xff]
    %v1864 = vld [vmem:[#allocation17 + $0xbf0] sm:$0xff]
    %v1865 = vld [vmem:[#allocation17 + $0xbf8] sm:$0xff]
    %v1866 = vld [vmem:[#allocation17 + $0xc00] sm:$0xff]
    %v1867 = vld [vmem:[#allocation17 + $0xc08] sm:$0xff]
    %v1868 = vld [vmem:[#allocation17 + $0xc10] sm:$0xff]
    %v1869 = vld [vmem:[#allocation17 + $0xc18] sm:$0xff]
    %v1870 = vld [vmem:[#allocation17 + $0xc20] sm:$0xff]
    %v1871 = vld [vmem:[#allocation17 + $0xc28] sm:$0xff]
    %v1872 = vld [vmem:[#allocation17 + $0xc30] sm:$0xff]
    %v1873 = vld [vmem:[#allocation17 + $0xc38] sm:$0xff]
    %v1874 = vld [vmem:[#allocation17 + $0xc40] sm:$0xff]
    %v1875 = vld [vmem:[#allocation17 + $0xc48] sm:$0xff]
    %v1876 = vld [vmem:[#allocation17 + $0xc50] sm:$0xff]
    %v1877 = vld [vmem:[#allocation17 + $0xc58] sm:$0xff]
    %v1878 = vld [vmem:[#allocation17 + $0xc60] sm:$0xff]
    %v1879 = vld [vmem:[#allocation17 + $0xc68] sm:$0xff]
    %v1880 = vld [vmem:[#allocation17 + $0xc70] sm:$0xff]
    %v1881 = vld [vmem:[#allocation17 + $0xc78] sm:$0xff]
    %v1882 = vld [vmem:[#allocation17 + $0xc80] sm:$0xff]
    %v1883 = vld [vmem:[#allocation17 + $0xc88] sm:$0xff]
    %v1884 = vld [vmem:[#allocation17 + $0xc90] sm:$0xff]
    %v1885 = vld [vmem:[#allocation17 + $0xc98] sm:$0xff]
    %v1886 = vld [vmem:[#allocation17 + $0xca0] sm:$0xff]
    %v1887 = vld [vmem:[#allocation17 + $0xca8] sm:$0xff]
    %v1888 = vld [vmem:[#allocation17 + $0xcb0] sm:$0xff]
    %v1889 = vld [vmem:[#allocation17 + $0xcb8] sm:$0xff]
    %v1890 = vld [vmem:[#allocation17 + $0xcc0] sm:$0xff]
    %v1891 = vld [vmem:[#allocation17 + $0xcc8] sm:$0xff]
    %v1892 = vld [vmem:[#allocation17 + $0xcd0] sm:$0xff]
    %v1893 = vld [vmem:[#allocation17 + $0xcd8] sm:$0xff]
    %v1894 = vld [vmem:[#allocation17 + $0xce0] sm:$0xff]
    %v1895 = vld [vmem:[#allocation17 + $0xce8] sm:$0xff]
    %v1896 = vld [vmem:[#allocation17 + $0xcf0] sm:$0xff]
    %v1897 = vld [vmem:[#allocation17 + $0xcf8] sm:$0xff]
    %v1898 = vld [vmem:[#allocation17 + $0xd00] sm:$0xff]
    %v1899 = vld [vmem:[#allocation17 + $0xd08] sm:$0xff]
    %v1900 = vld [vmem:[#allocation17 + $0xd10] sm:$0xff]
    %v1901 = vld [vmem:[#allocation17 + $0xd18] sm:$0xff]
    %v1902 = vld [vmem:[#allocation17 + $0xd20] sm:$0xff]
    %v1903 = vld [vmem:[#allocation17 + $0xd28] sm:$0xff]
    %v1904 = vld [vmem:[#allocation17 + $0xd30] sm:$0xff]
    %v1905 = vld [vmem:[#allocation17 + $0xd38] sm:$0xff]
    %v1906 = vld [vmem:[#allocation17 + $0xd40] sm:$0xff]
    %v1907 = vld [vmem:[#allocation17 + $0xd48] sm:$0xff]
    %v1908 = vld [vmem:[#allocation17 + $0xd50] sm:$0xff]
    %v1909 = vld [vmem:[#allocation17 + $0xd58] sm:$0xff]
    %v1910 = vld [vmem:[#allocation17 + $0xd60] sm:$0xff]
    %v1911 = vld [vmem:[#allocation17 + $0xd68] sm:$0xff]
    %v1912 = vld [vmem:[#allocation17 + $0xd70] sm:$0xff]
    %v1913 = vld [vmem:[#allocation17 + $0xd78] sm:$0xff]
    %v1914 = vld [vmem:[#allocation17 + $0xd80] sm:$0xff]
    %v1915 = vld [vmem:[#allocation17 + $0xd88] sm:$0xff]
    %v1916 = vld [vmem:[#allocation17 + $0xd90] sm:$0xff]
    %v1917 = vld [vmem:[#allocation17 + $0xd98] sm:$0xff]
    %v1918 = vld [vmem:[#allocation17 + $0xda0] sm:$0xff]
    %v1919 = vld [vmem:[#allocation17 + $0xda8] sm:$0xff]
    %v1920 = vld [vmem:[#allocation17 + $0xdb0] sm:$0xff]
    %v1921 = vld [vmem:[#allocation17 + $0xdb8] sm:$0xff]
    %v1922 = vld [vmem:[#allocation17 + $0xdc0] sm:$0xff]
    %v1923 = vld [vmem:[#allocation17 + $0xdc8] sm:$0xff]
    %v1924 = vld [vmem:[#allocation17 + $0xdd0] sm:$0xff]
    %v1925 = vld [vmem:[#allocation17 + $0xdd8] sm:$0xff]
    %v1926 = vld [vmem:[#allocation17 + $0xde0] sm:$0xff]
    %v1927 = vld [vmem:[#allocation17 + $0xde8] sm:$0xff]
    %v1928 = vld [vmem:[#allocation17 + $0xdf0] sm:$0xff]
    %v1929 = vld [vmem:[#allocation17 + $0xdf8] sm:$0xff]
    %v1930 = vld [vmem:[#allocation17 + $0xe00] sm:$0xff]
    %v1931 = vld [vmem:[#allocation17 + $0xe08] sm:$0xff]
    %v1932 = vld [vmem:[#allocation17 + $0xe10] sm:$0xff]
    %v1933 = vld [vmem:[#allocation17 + $0xe18] sm:$0xff]
    %v1934 = vld [vmem:[#allocation17 + $0xe20] sm:$0xff]
    %v1935 = vld [vmem:[#allocation17 + $0xe28] sm:$0xff]
    %v1936 = vld [vmem:[#allocation17 + $0xe30] sm:$0xff]
    %v1937 = vld [vmem:[#allocation17 + $0xe38] sm:$0xff]
    %v1938 = vld [vmem:[#allocation17 + $0xe40] sm:$0xff]
    %v1939 = vld [vmem:[#allocation17 + $0xe48] sm:$0xff]
    %v1940 = vld [vmem:[#allocation17 + $0xe50] sm:$0xff]
    %v1941 = vld [vmem:[#allocation17 + $0xe58] sm:$0xff]
    %v1942 = vld [vmem:[#allocation17 + $0xe60] sm:$0xff]
    %v1943 = vld [vmem:[#allocation17 + $0xe68] sm:$0xff]
    %v1944 = vld [vmem:[#allocation17 + $0xe70] sm:$0xff]
    %v1945 = vld [vmem:[#allocation17 + $0xe78] sm:$0xff]
    %v1946 = vld [vmem:[#allocation17 + $0xe80] sm:$0xff]
    %v1947 = vld [vmem:[#allocation17 + $0xe88] sm:$0xff]
    %v1948 = vld [vmem:[#allocation17 + $0xe90] sm:$0xff]
    %v1949 = vld [vmem:[#allocation17 + $0xe98] sm:$0xff]
    %v1950 = vld [vmem:[#allocation17 + $0xea0] sm:$0xff]
    %v1951 = vld [vmem:[#allocation17 + $0xea8] sm:$0xff]
    %v1952 = vld [vmem:[#allocation17 + $0xeb0] sm:$0xff]
    %v1953 = vld [vmem:[#allocation17 + $0xeb8] sm:$0xff]
    %v1954 = vld [vmem:[#allocation17 + $0xec0] sm:$0xff]
    %v1955 = vld [vmem:[#allocation17 + $0xec8] sm:$0xff]
    %v1956 = vld [vmem:[#allocation17 + $0xed0] sm:$0xff]
    %v1957 = vld [vmem:[#allocation17 + $0xed8] sm:$0xff]
    %v1958 = vld [vmem:[#allocation17 + $0xee0] sm:$0xff]
    %v1959 = vld [vmem:[#allocation17 + $0xee8] sm:$0xff]
    %v1960 = vld [vmem:[#allocation17 + $0xef0] sm:$0xff]
    %v1961 = vld [vmem:[#allocation17 + $0xef8] sm:$0xff]
    %v1962 = vld [vmem:[#allocation17 + $0xf00] sm:$0xff]
    %v1963 = vld [vmem:[#allocation17 + $0xf08] sm:$0xff]
    %v1964 = vld [vmem:[#allocation17 + $0xf10] sm:$0xff]
    %v1965 = vld [vmem:[#allocation17 + $0xf18] sm:$0xff]
    %v1966 = vld [vmem:[#allocation17 + $0xf20] sm:$0xff]
    %v1967 = vld [vmem:[#allocation17 + $0xf28] sm:$0xff]
    %v1968 = vld [vmem:[#allocation17 + $0xf30] sm:$0xff]
    %v1969 = vld [vmem:[#allocation17 + $0xf38] sm:$0xff]
    %v1970 = vld [vmem:[#allocation17 + $0xf40] sm:$0xff]
    %v1971 = vld [vmem:[#allocation17 + $0xf48] sm:$0xff]
    %v1972 = vld [vmem:[#allocation17 + $0xf50] sm:$0xff]
    %v1973 = vld [vmem:[#allocation17 + $0xf58] sm:$0xff]
    %v1974 = vld [vmem:[#allocation17 + $0xf60] sm:$0xff]
    %v1975 = vld [vmem:[#allocation17 + $0xf68] sm:$0xff]
    %v1976 = vld [vmem:[#allocation17 + $0xf70] sm:$0xff]
    %v1977 = vld [vmem:[#allocation17 + $0xf78] sm:$0xff]
    %v1978 = vld [vmem:[#allocation17 + $0xf80] sm:$0xff]
    %v1979 = vld [vmem:[#allocation17 + $0xf88] sm:$0xff]
    %v1980 = vld [vmem:[#allocation17 + $0xf90] sm:$0xff]
    %v1981 = vld [vmem:[#allocation17 + $0xf98] sm:$0xff]
    %v1982 = vld [vmem:[#allocation17 + $0xfa0] sm:$0xff]
    %v1983 = vld [vmem:[#allocation17 + $0xfa8] sm:$0xff]
    %v1984 = vld [vmem:[#allocation17 + $0xfb0] sm:$0xff]
    %v1985 = vld [vmem:[#allocation17 + $0xfb8] sm:$0xff]
    %v1986 = vld [vmem:[#allocation17 + $0xfc0] sm:$0xff]
    %v1987 = vld [vmem:[#allocation17 + $0xfc8] sm:$0xff]
    %v1988 = vld [vmem:[#allocation17 + $0xfd0] sm:$0xff]
    %v1989 = vld [vmem:[#allocation17 + $0xfd8] sm:$0xff]
    %v1990 = vld [vmem:[#allocation17 + $0xfe0] sm:$0xff]
    %v1991 = vld [vmem:[#allocation17 + $0xfe8] sm:$0xff]
    %v1992 = vld [vmem:[#allocation17 + $0xff0] sm:$0xff]
    %v1993 = vld [vmem:[#allocation17 + $0xff8] sm:$0xff]
    %v1994 = vld [vmem:[#allocation17 + $0x1000] sm:$0xff]
    %v1995 = vld [vmem:[#allocation17 + $0x1008] sm:$0xff]
    %v1996 = vld [vmem:[#allocation17 + $0x1010] sm:$0xff]
    %v1997 = vld [vmem:[#allocation17 + $0x1018] sm:$0xff]
    %v1998 = vld [vmem:[#allocation17 + $0x1020] sm:$0xff]
    %v1999 = vld [vmem:[#allocation17 + $0x1028] sm:$0xff]
    %v2000 = vld [vmem:[#allocation17 + $0x1030] sm:$0xff]
    %v2001 = vld [vmem:[#allocation17 + $0x1038] sm:$0xff]
    %v2002 = vld [vmem:[#allocation17 + $0x1040] sm:$0xff]
    %v2003 = vld [vmem:[#allocation17 + $0x1048] sm:$0xff]
    %v2004 = vld [vmem:[#allocation17 + $0x1050] sm:$0xff]
    %v2005 = vld [vmem:[#allocation17 + $0x1058] sm:$0xff]
    %v2006 = vld [vmem:[#allocation17 + $0x1060] sm:$0xff]
    %v2007 = vld [vmem:[#allocation17 + $0x1068] sm:$0xff]
    %v2008 = vld [vmem:[#allocation17 + $0x1070] sm:$0xff]
    %v2009 = vld [vmem:[#allocation17 + $0x1078] sm:$0xff]
    %v2010 = vld [vmem:[#allocation17 + $0x1080] sm:$0xff]
    %v2011 = vld [vmem:[#allocation17 + $0x1088] sm:$0xff]
    %v2012 = vld [vmem:[#allocation17 + $0x1090] sm:$0xff]
    %v2013 = vld [vmem:[#allocation17 + $0x1098] sm:$0xff]
    %v2014 = vld [vmem:[#allocation17 + $0x10a0] sm:$0xff]
    %v2015 = vld [vmem:[#allocation17 + $0x10a8] sm:$0xff]
    %v2016 = vld [vmem:[#allocation17 + $0x10b0] sm:$0xff]
    %v2017 = vld [vmem:[#allocation17 + $0x10b8] sm:$0xff]
    %v2018 = vld [vmem:[#allocation17 + $0x10c0] sm:$0xff]
    %v2019 = vld [vmem:[#allocation17 + $0x10c8] sm:$0xff]
    %v2020 = vld [vmem:[#allocation17 + $0x10d0] sm:$0xff]
    %v2021 = vld [vmem:[#allocation17 + $0x10d8] sm:$0xff]
    %v2022 = vld [vmem:[#allocation17 + $0x10e0] sm:$0xff]
    %v2023 = vld [vmem:[#allocation17 + $0x10e8] sm:$0xff]
    %v2024 = vld [vmem:[#allocation17 + $0x10f0] sm:$0xff]
    %v2025 = vld [vmem:[#allocation17 + $0x10f8] sm:$0xff]
    %v2026 = vld [vmem:[#allocation17 + $0x1100] sm:$0xff]
    %v2027 = vld [vmem:[#allocation17 + $0x1108] sm:$0xff]
    %v2028 = vld [vmem:[#allocation17 + $0x1110] sm:$0xff]
    %v2029 = vld [vmem:[#allocation17 + $0x1118] sm:$0xff]
    %v2030 = vld [vmem:[#allocation17 + $0x1120] sm:$0xff]
    %v2031 = vld [vmem:[#allocation17 + $0x1128] sm:$0xff]
    %v2032 = vld [vmem:[#allocation17 + $0x1130] sm:$0xff]
    %v2033 = vld [vmem:[#allocation17 + $0x1138] sm:$0xff]
    %v2034 = vld [vmem:[#allocation17 + $0x1140] sm:$0xff]
    %v2035 = vld [vmem:[#allocation17 + $0x1148] sm:$0xff]
    %v2036 = vld [vmem:[#allocation17 + $0x1150] sm:$0xff]
    %v2037 = vld [vmem:[#allocation17 + $0x1158] sm:$0xff]
    %v2038 = vld [vmem:[#allocation17 + $0x1160] sm:$0xff]
    %v2039 = vld [vmem:[#allocation17 + $0x1168] sm:$0xff]
    %v2040 = vld [vmem:[#allocation17 + $0x1170] sm:$0xff]
    %v2041 = vld [vmem:[#allocation17 + $0x1178] sm:$0xff]
    %v2042 = vld [vmem:[#allocation17 + $0x1180] sm:$0xff]
    %v2043 = vld [vmem:[#allocation17 + $0x1188] sm:$0xff]
    %v2044 = vld [vmem:[#allocation17 + $0x1190] sm:$0xff]
    %v2045 = vld [vmem:[#allocation17 + $0x1198] sm:$0xff]
    %v2046 = vld [vmem:[#allocation17 + $0x11a0] sm:$0xff]
    %v2047 = vld [vmem:[#allocation17 + $0x11a8] sm:$0xff]
    %v2048 = vld [vmem:[#allocation17 + $0x11b0] sm:$0xff]
    %v2049 = vld [vmem:[#allocation17 + $0x11b8] sm:$0xff]
    %v2050 = vld [vmem:[#allocation17 + $0x11c0] sm:$0xff]
    %v2051 = vld [vmem:[#allocation17 + $0x11c8] sm:$0xff]
    %v2052 = vld [vmem:[#allocation17 + $0x11d0] sm:$0xff]
    %v2053 = vld [vmem:[#allocation17 + $0x11d8] sm:$0xff]
    %v2054 = vld [vmem:[#allocation17 + $0x11e0] sm:$0xff]
    %v2055 = vld [vmem:[#allocation17 + $0x11e8] sm:$0xff]
    %v2056 = vld [vmem:[#allocation17 + $0x11f0] sm:$0xff]
    %v2057 = vld [vmem:[#allocation17 + $0x11f8] sm:$0xff]
    %v2058 = vld [vmem:[#allocation17 + $0x1200] sm:$0xff]
    %v2059 = vld [vmem:[#allocation17 + $0x1208] sm:$0xff]
    %v2060 = vld [vmem:[#allocation17 + $0x1210] sm:$0xff]
    %v2061 = vld [vmem:[#allocation17 + $0x1218] sm:$0xff]
    %v2062 = vld [vmem:[#allocation17 + $0x1220] sm:$0xff]
    %v2063 = vld [vmem:[#allocation17 + $0x1228] sm:$0xff]
    %v2064 = vld [vmem:[#allocation17 + $0x1230] sm:$0xff]
    %v2065 = vld [vmem:[#allocation17 + $0x1238] sm:$0xff]
    %v2066 = vld [vmem:[#allocation17 + $0x1240] sm:$0xff]
    %v2067 = vld [vmem:[#allocation17 + $0x1248] sm:$0xff]
    %v2068 = vld [vmem:[#allocation17 + $0x1250] sm:$0xff]
    %v2069 = vld [vmem:[#allocation17 + $0x1258] sm:$0xff]
    %v2070 = vld [vmem:[#allocation17 + $0x1260] sm:$0xff]
    %v2071 = vld [vmem:[#allocation17 + $0x1268] sm:$0xff]
    %v2072 = vld [vmem:[#allocation17 + $0x1270] sm:$0xff]
    %v2073 = vld [vmem:[#allocation17 + $0x1278] sm:$0xff]
    %v2074 = vld [vmem:[#allocation17 + $0x1280] sm:$0xff]
    %v2075 = vld [vmem:[#allocation17 + $0x1288] sm:$0xff]
    %v2076 = vld [vmem:[#allocation17 + $0x1290] sm:$0xff]
    %v2077 = vld [vmem:[#allocation17 + $0x1298] sm:$0xff]
    %v2078 = vld [vmem:[#allocation17 + $0x12a0] sm:$0xff]
    %v2079 = vld [vmem:[#allocation17 + $0x12a8] sm:$0xff]
    %v2080 = vld [vmem:[#allocation17 + $0x12b0] sm:$0xff]
    %v2081 = vld [vmem:[#allocation17 + $0x12b8] sm:$0xff]
    %v2082 = vld [vmem:[#allocation17 + $0x12c0] sm:$0xff]
    %v2083 = vld [vmem:[#allocation17 + $0x12c8] sm:$0xff]
    %v2084 = vld [vmem:[#allocation17 + $0x12d0] sm:$0xff]
    %v2085 = vld [vmem:[#allocation17 + $0x12d8] sm:$0xff]
    %v2086 = vld [vmem:[#allocation17 + $0x12e0] sm:$0xff]
    %v2087 = vld [vmem:[#allocation17 + $0x12e8] sm:$0xff]
    %v2088 = vld [vmem:[#allocation17 + $0x12f0] sm:$0xff]
    %v2089 = vld [vmem:[#allocation17 + $0x12f8] sm:$0xff]
    %v2090 = vld [vmem:[#allocation17 + $0x1300] sm:$0xff]
    %v2091 = vld [vmem:[#allocation17 + $0x1308] sm:$0xff]
    %v2092 = vld [vmem:[#allocation17 + $0x1310] sm:$0xff]
    %v2093 = vld [vmem:[#allocation17 + $0x1318] sm:$0xff]
    %v2094 = vld [vmem:[#allocation17 + $0x1320] sm:$0xff]
    %v2095 = vld [vmem:[#allocation17 + $0x1328] sm:$0xff]
    %v2096 = vld [vmem:[#allocation17 + $0x1330] sm:$0xff]
    %v2097 = vld [vmem:[#allocation17 + $0x1338] sm:$0xff]
    %v2098 = vld [vmem:[#allocation17 + $0x1340] sm:$0xff]
    %v2099 = vld [vmem:[#allocation17 + $0x1348] sm:$0xff]
    %v2100 = vld [vmem:[#allocation17 + $0x1350] sm:$0xff]
    %v2101 = vld [vmem:[#allocation17 + $0x1358] sm:$0xff]
    %v2102 = vld [vmem:[#allocation17 + $0x1360] sm:$0xff]
    %v2103 = vld [vmem:[#allocation17 + $0x1368] sm:$0xff]
    %v2104 = vld [vmem:[#allocation17 + $0x1370] sm:$0xff]
    %v2105 = vld [vmem:[#allocation17 + $0x1378] sm:$0xff]
    %v2106 = vld [vmem:[#allocation17 + $0x1380] sm:$0xff]
    %v2107 = vld [vmem:[#allocation17 + $0x1388] sm:$0xff]
    %v2108 = vld [vmem:[#allocation17 + $0x1390] sm:$0xff]
    %v2109 = vld [vmem:[#allocation17 + $0x1398] sm:$0xff]
    %v2110 = vld [vmem:[#allocation17 + $0x13a0] sm:$0xff]
    %v2111 = vld [vmem:[#allocation17 + $0x13a8] sm:$0xff]
    %v2112 = vld [vmem:[#allocation17 + $0x13b0] sm:$0xff]
    %v2113 = vld [vmem:[#allocation17 + $0x13b8] sm:$0xff]
    %v2114 = vld [vmem:[#allocation17 + $0x13c0] sm:$0xff]
    %v2115 = vld [vmem:[#allocation17 + $0x13c8] sm:$0xff]
    %v2116 = vld [vmem:[#allocation17 + $0x13d0] sm:$0xff]
    %v2117 = vld [vmem:[#allocation17 + $0x13d8] sm:$0xff]
    %v2118 = vld [vmem:[#allocation17 + $0x13e0] sm:$0xff]
    %v2119 = vld [vmem:[#allocation17 + $0x13e8] sm:$0xff]
    %v2120 = vld [vmem:[#allocation17 + $0x13f0] sm:$0xff]
    %v2121 = vld [vmem:[#allocation17 + $0x13f8] sm:$0xff]
    %v2122 = vld [vmem:[#allocation17 + $0x1400] sm:$0xff]
    %v2123 = vld [vmem:[#allocation17 + $0x1408] sm:$0xff]
    %v2124 = vld [vmem:[#allocation17 + $0x1410] sm:$0xff]
    %v2125 = vld [vmem:[#allocation17 + $0x1418] sm:$0xff]
    %v2126 = vld [vmem:[#allocation17 + $0x1420] sm:$0xff]
    %v2127 = vld [vmem:[#allocation17 + $0x1428] sm:$0xff]
    %v2128 = vld [vmem:[#allocation17 + $0x1430] sm:$0xff]
    %v2129 = vld [vmem:[#allocation17 + $0x1438] sm:$0xff]
    %v2130 = vld [vmem:[#allocation17 + $0x1440] sm:$0xff]
    %v2131 = vld [vmem:[#allocation17 + $0x1448] sm:$0xff]
    %v2132 = vld [vmem:[#allocation17 + $0x1450] sm:$0xff]
    %v2133 = vld [vmem:[#allocation17 + $0x1458] sm:$0xff]
    %v2134 = vld [vmem:[#allocation17 + $0x1460] sm:$0xff]
    %v2135 = vld [vmem:[#allocation17 + $0x1468] sm:$0xff]
    %v2136 = vld [vmem:[#allocation17 + $0x1470] sm:$0xff]
    %v2137 = vld [vmem:[#allocation17 + $0x1478] sm:$0xff]
    %v2138 = vld [vmem:[#allocation17 + $0x1480] sm:$0xff]
    %v2139 = vld [vmem:[#allocation17 + $0x1488] sm:$0xff]
    %v2140 = vld [vmem:[#allocation17 + $0x1490] sm:$0xff]
    %v2141 = vld [vmem:[#allocation17 + $0x1498] sm:$0xff]
    %v2142 = vld [vmem:[#allocation17 + $0x14a0] sm:$0xff]
    %v2143 = vld [vmem:[#allocation17 + $0x14a8] sm:$0xff]
    %v2144 = vld [vmem:[#allocation17 + $0x14b0] sm:$0xff]
    %v2145 = vld [vmem:[#allocation17 + $0x14b8] sm:$0xff]
    %v2146 = vld [vmem:[#allocation17 + $0x14c0] sm:$0xff]
    %v2147 = vld [vmem:[#allocation17 + $0x14c8] sm:$0xff]
    %v2148 = vld [vmem:[#allocation17 + $0x14d0] sm:$0xff]
    %v2149 = vld [vmem:[#allocation17 + $0x14d8] sm:$0xff]
    %v2150 = vld [vmem:[#allocation17 + $0x14e0] sm:$0xff]
    %v2151 = vld [vmem:[#allocation17 + $0x14e8] sm:$0xff]
    %v2152 = vld [vmem:[#allocation17 + $0x14f0] sm:$0xff]
    %v2153 = vld [vmem:[#allocation17 + $0x14f8] sm:$0xff]
    %v2154 = vld [vmem:[#allocation17 + $0x1500] sm:$0xff]
    %v2155 = vld [vmem:[#allocation17 + $0x1508] sm:$0xff]
    %v2156 = vld [vmem:[#allocation17 + $0x1510] sm:$0xff]
    %v2157 = vld [vmem:[#allocation17 + $0x1518] sm:$0xff]
    %v2158 = vld [vmem:[#allocation17 + $0x1520] sm:$0xff]
    %v2159 = vld [vmem:[#allocation17 + $0x1528] sm:$0xff]
    %v2160 = vld [vmem:[#allocation17 + $0x1530] sm:$0xff]
    %v2161 = vld [vmem:[#allocation17 + $0x1538] sm:$0xff]
    %v2162 = vld [vmem:[#allocation17 + $0x1540] sm:$0xff]
    %v2163 = vld [vmem:[#allocation17 + $0x1548] sm:$0xff]
    %v2164 = vld [vmem:[#allocation17 + $0x1550] sm:$0xff]
    %v2165 = vld [vmem:[#allocation17 + $0x1558] sm:$0xff]
    %v2166 = vld [vmem:[#allocation17 + $0x1560] sm:$0xff]
    %v2167 = vld [vmem:[#allocation17 + $0x1568] sm:$0xff]
    %v2168 = vld [vmem:[#allocation17 + $0x1570] sm:$0xff]
    %v2169 = vld [vmem:[#allocation17 + $0x1578] sm:$0xff]
    %v2170 = vld [vmem:[#allocation17 + $0x1580] sm:$0xff]
    %v2171 = vld [vmem:[#allocation17 + $0x1588] sm:$0xff]
    %v2172 = vld [vmem:[#allocation17 + $0x1590] sm:$0xff]
    %v2173 = vld [vmem:[#allocation17 + $0x1598] sm:$0xff]
    %v2174 = vld [vmem:[#allocation17 + $0x15a0] sm:$0xff]
    %v2175 = vld [vmem:[#allocation17 + $0x15a8] sm:$0xff]
    %v2176 = vld [vmem:[#allocation17 + $0x15b0] sm:$0xff]
    %v2177 = vld [vmem:[#allocation17 + $0x15b8] sm:$0xff]
    %v2178 = vld [vmem:[#allocation17 + $0x15c0] sm:$0xff]
    %v2179 = vld [vmem:[#allocation17 + $0x15c8] sm:$0xff]
    %v2180 = vld [vmem:[#allocation17 + $0x15d0] sm:$0xff]
    %v2181 = vld [vmem:[#allocation17 + $0x15d8] sm:$0xff]
    %v2182 = vld [vmem:[#allocation17 + $0x15e0] sm:$0xff]
    %v2183 = vld [vmem:[#allocation17 + $0x15e8] sm:$0xff]
    %v2184 = vld [vmem:[#allocation17 + $0x15f0] sm:$0xff]
    %v2185 = vld [vmem:[#allocation17 + $0x15f8] sm:$0xff]
    %v2186 = vld [vmem:[#allocation17 + $0x1600] sm:$0xff]
    %v2187 = vld [vmem:[#allocation17 + $0x1608] sm:$0xff]
    %v2188 = vld [vmem:[#allocation17 + $0x1610] sm:$0xff]
    %v2189 = vld [vmem:[#allocation17 + $0x1618] sm:$0xff]
    %v2190 = vld [vmem:[#allocation17 + $0x1620] sm:$0xff]
    %v2191 = vld [vmem:[#allocation17 + $0x1628] sm:$0xff]
    %v2192 = vld [vmem:[#allocation17 + $0x1630] sm:$0xff]
    %v2193 = vld [vmem:[#allocation17 + $0x1638] sm:$0xff]
    %v2194 = vld [vmem:[#allocation17 + $0x1640] sm:$0xff]
    %v2195 = vld [vmem:[#allocation17 + $0x1648] sm:$0xff]
    %v2196 = vld [vmem:[#allocation17 + $0x1650] sm:$0xff]
    %v2197 = vld [vmem:[#allocation17 + $0x1658] sm:$0xff]
    %v2198 = vld [vmem:[#allocation17 + $0x1660] sm:$0xff]
    %v2199 = vld [vmem:[#allocation17 + $0x1668] sm:$0xff]
    %v2200 = vld [vmem:[#allocation17 + $0x1670] sm:$0xff]
    %v2201 = vld [vmem:[#allocation17 + $0x1678] sm:$0xff]
    %v2202 = vld [vmem:[#allocation17 + $0x1680] sm:$0xff]
    %v2203 = vld [vmem:[#allocation17 + $0x1688] sm:$0xff]
    %v2204 = vld [vmem:[#allocation17 + $0x1690] sm:$0xff]
    %v2205 = vld [vmem:[#allocation17 + $0x1698] sm:$0xff]
    %v2206 = vld [vmem:[#allocation17 + $0x16a0] sm:$0xff]
    %v2207 = vld [vmem:[#allocation17 + $0x16a8] sm:$0xff]
    %v2208 = vld [vmem:[#allocation17 + $0x16b0] sm:$0xff]
    %v2209 = vld [vmem:[#allocation17 + $0x16b8] sm:$0xff]
    %v2210 = vld [vmem:[#allocation17 + $0x16c0] sm:$0xff]
    %v2211 = vld [vmem:[#allocation17 + $0x16c8] sm:$0xff]
    %v2212 = vld [vmem:[#allocation17 + $0x16d0] sm:$0xff]
    %v2213 = vld [vmem:[#allocation17 + $0x16d8] sm:$0xff]
    %v2214 = vld [vmem:[#allocation17 + $0x16e0] sm:$0xff]
    %v2215 = vld [vmem:[#allocation17 + $0x16e8] sm:$0xff]
    %v2216 = vld [vmem:[#allocation17 + $0x16f0] sm:$0xff]
    %v2217 = vld [vmem:[#allocation17 + $0x16f8] sm:$0xff]
    %v2218 = vld [vmem:[#allocation17 + $0x1700] sm:$0xff]
    %v2219 = vld [vmem:[#allocation17 + $0x1708] sm:$0xff]
    %v2220 = vld [vmem:[#allocation17 + $0x1710] sm:$0xff]
    %v2221 = vld [vmem:[#allocation17 + $0x1718] sm:$0xff]
    %v2222 = vld [vmem:[#allocation17 + $0x1720] sm:$0xff]
    %v2223 = vld [vmem:[#allocation17 + $0x1728] sm:$0xff]
    %v2224 = vld [vmem:[#allocation17 + $0x1730] sm:$0xff]
    %v2225 = vld [vmem:[#allocation17 + $0x1738] sm:$0xff]
    %v2226 = vld [vmem:[#allocation17 + $0x1740] sm:$0xff]
    %v2227 = vld [vmem:[#allocation17 + $0x1748] sm:$0xff]
    %v2228 = vld [vmem:[#allocation17 + $0x1750] sm:$0xff]
    %v2229 = vld [vmem:[#allocation17 + $0x1758] sm:$0xff]
    %v2230 = vld [vmem:[#allocation17 + $0x1760] sm:$0xff]
    %v2231 = vld [vmem:[#allocation17 + $0x1768] sm:$0xff]
    %v2232 = vld [vmem:[#allocation17 + $0x1770] sm:$0xff]
    %v2233 = vld [vmem:[#allocation17 + $0x1778] sm:$0xff]
    %v2234 = vld [vmem:[#allocation17 + $0x1780] sm:$0xff]
    %v2235 = vld [vmem:[#allocation17 + $0x1788] sm:$0xff]
    %v2236 = vld [vmem:[#allocation17 + $0x1790] sm:$0xff]
    %v2237 = vld [vmem:[#allocation17 + $0x1798] sm:$0xff]
    %v2238 = vld [vmem:[#allocation17 + $0x17a0] sm:$0xff]
    %v2239 = vld [vmem:[#allocation17 + $0x17a8] sm:$0xff]
    %v2240 = vld [vmem:[#allocation17 + $0x17b0] sm:$0xff]
    %v2241 = vld [vmem:[#allocation17 + $0x17b8] sm:$0xff]
    %v2242 = vld [vmem:[#allocation17 + $0x17c0] sm:$0xff]
    %v2243 = vld [vmem:[#allocation17 + $0x17c8] sm:$0xff]
    %v2244 = vld [vmem:[#allocation17 + $0x17d0] sm:$0xff]
    %v2245 = vld [vmem:[#allocation17 + $0x17d8] sm:$0xff]
    %v2246 = vld [vmem:[#allocation17 + $0x17e0] sm:$0xff]
    %v2247 = vld [vmem:[#allocation17 + $0x17e8] sm:$0xff]
    %v2248 = vld [vmem:[#allocation17 + $0x17f0] sm:$0xff]
    %v2249 = vld [vmem:[#allocation17 + $0x17f8] sm:$0xff]
    %v2250 = vld [vmem:[#allocation17 + $0x1800] sm:$0xff]
    %v2251 = vld [vmem:[#allocation17 + $0x1808] sm:$0xff]
    %v2252 = vld [vmem:[#allocation17 + $0x1810] sm:$0xff]
    %v2253 = vld [vmem:[#allocation17 + $0x1818] sm:$0xff]
    %v2254 = vld [vmem:[#allocation17 + $0x1820] sm:$0xff]
    %v2255 = vld [vmem:[#allocation17 + $0x1828] sm:$0xff]
    %v2256 = vld [vmem:[#allocation17 + $0x1830] sm:$0xff]
    %v2257 = vld [vmem:[#allocation17 + $0x1838] sm:$0xff]
    %v2258 = vld [vmem:[#allocation17 + $0x1840] sm:$0xff]
    %v2259 = vld [vmem:[#allocation17 + $0x1848] sm:$0xff]
    %v2260 = vld [vmem:[#allocation17 + $0x1850] sm:$0xff]
    %v2261 = vld [vmem:[#allocation17 + $0x1858] sm:$0xff]
    %v2262 = vld [vmem:[#allocation17 + $0x1860] sm:$0xff]
    %v2263 = vld [vmem:[#allocation17 + $0x1868] sm:$0xff]
    %v2264 = vld [vmem:[#allocation17 + $0x1870] sm:$0xff]
    %v2265 = vld [vmem:[#allocation17 + $0x1878] sm:$0xff]
    %v2266 = vld [vmem:[#allocation17 + $0x1880] sm:$0xff]
    %v2267 = vld [vmem:[#allocation17 + $0x1888] sm:$0xff]
    %v2268 = vld [vmem:[#allocation17 + $0x1890] sm:$0xff]
    %v2269 = vld [vmem:[#allocation17 + $0x1898] sm:$0xff]
    %v2270 = vld [vmem:[#allocation17 + $0x18a0] sm:$0xff]
    %v2271 = vld [vmem:[#allocation17 + $0x18a8] sm:$0xff]
    %v2272 = vld [vmem:[#allocation17 + $0x18b0] sm:$0xff]
    %v2273 = vld [vmem:[#allocation17 + $0x18b8] sm:$0xff]
    %v2274 = vld [vmem:[#allocation17 + $0x18c0] sm:$0xff]
    %v2275 = vld [vmem:[#allocation17 + $0x18c8] sm:$0xff]
    %v2276 = vld [vmem:[#allocation17 + $0x18d0] sm:$0xff]
    %v2277 = vld [vmem:[#allocation17 + $0x18d8] sm:$0xff]
    %v2278 = vld [vmem:[#allocation17 + $0x18e0] sm:$0xff]
    %v2279 = vld [vmem:[#allocation17 + $0x18e8] sm:$0xff]
    %v2280 = vld [vmem:[#allocation17 + $0x18f0] sm:$0xff]
    %v2281 = vld [vmem:[#allocation17 + $0x18f8] sm:$0xff]
    %v2282 = vld [vmem:[#allocation17 + $0x1900] sm:$0xff]
    %v2283 = vld [vmem:[#allocation17 + $0x1908] sm:$0xff]
    %v2284 = vld [vmem:[#allocation17 + $0x1910] sm:$0xff]
    %v2285 = vld [vmem:[#allocation17 + $0x1918] sm:$0xff]
    %v2286 = vld [vmem:[#allocation17 + $0x1920] sm:$0xff]
    %v2287 = vld [vmem:[#allocation17 + $0x1928] sm:$0xff]
    %v2288 = vld [vmem:[#allocation17 + $0x1930] sm:$0xff]
    %v2289 = vld [vmem:[#allocation17 + $0x1938] sm:$0xff]
    %v2290 = vld [vmem:[#allocation17 + $0x1940] sm:$0xff]
    %v2291 = vld [vmem:[#allocation17 + $0x1948] sm:$0xff]
    %v2292 = vld [vmem:[#allocation17 + $0x1950] sm:$0xff]
    %v2293 = vld [vmem:[#allocation17 + $0x1958] sm:$0xff]
    %v2294 = vld [vmem:[#allocation17 + $0x1960] sm:$0xff]
    %v2295 = vld [vmem:[#allocation17 + $0x1968] sm:$0xff]
    %v2296 = vld [vmem:[#allocation17 + $0x1970] sm:$0xff]
    %v2297 = vld [vmem:[#allocation17 + $0x1978] sm:$0xff]
    %v2298 = vld [vmem:[#allocation17 + $0x1980] sm:$0xff]
    %v2299 = vld [vmem:[#allocation17 + $0x1988] sm:$0xff]
    %v2300 = vld [vmem:[#allocation17 + $0x1990] sm:$0xff]
    %v2301 = vld [vmem:[#allocation17 + $0x1998] sm:$0xff]
    %v2302 = vld [vmem:[#allocation17 + $0x19a0] sm:$0xff]
    %v2303 = vld [vmem:[#allocation17 + $0x19a8] sm:$0xff]
    %v2304 = vld [vmem:[#allocation17 + $0x19b0] sm:$0xff]
    %v2305 = vld [vmem:[#allocation17 + $0x19b8] sm:$0xff]
    %v2306 = vld [vmem:[#allocation17 + $0x19c0] sm:$0xff]
    %v2307 = vld [vmem:[#allocation17 + $0x19c8] sm:$0xff]
    %v2308 = vld [vmem:[#allocation17 + $0x19d0] sm:$0xff]
    %v2309 = vld [vmem:[#allocation17 + $0x19d8] sm:$0xff]
    %v2310 = vld [vmem:[#allocation17 + $0x19e0] sm:$0xff]
    %v2311 = vld [vmem:[#allocation17 + $0x19e8] sm:$0xff]
    %v2312 = vld [vmem:[#allocation17 + $0x19f0] sm:$0xff]
    %v2313 = vld [vmem:[#allocation17 + $0x19f8] sm:$0xff]
    %v2314 = vld [vmem:[#allocation17 + $0x1a00] sm:$0xff]
    %v2315 = vld [vmem:[#allocation17 + $0x1a08] sm:$0xff]
    %v2316 = vld [vmem:[#allocation17 + $0x1a10] sm:$0xff]
    %v2317 = vld [vmem:[#allocation17 + $0x1a18] sm:$0xff]
    %v2318 = vld [vmem:[#allocation17 + $0x1a20] sm:$0xff]
    %v2319 = vld [vmem:[#allocation17 + $0x1a28] sm:$0xff]
    %v2320 = vld [vmem:[#allocation17 + $0x1a30] sm:$0xff]
    %v2321 = vld [vmem:[#allocation17 + $0x1a38] sm:$0xff]
    %v2322 = vld [vmem:[#allocation17 + $0x1a40] sm:$0xff]
    %v2323 = vld [vmem:[#allocation17 + $0x1a48] sm:$0xff]
    %v2324 = vld [vmem:[#allocation17 + $0x1a50] sm:$0xff]
    %v2325 = vld [vmem:[#allocation17 + $0x1a58] sm:$0xff]
    %v2326 = vld [vmem:[#allocation17 + $0x1a60] sm:$0xff]
    %v2327 = vld [vmem:[#allocation17 + $0x1a68] sm:$0xff]
    %v2328 = vld [vmem:[#allocation17 + $0x1a70] sm:$0xff]
    %v2329 = vld [vmem:[#allocation17 + $0x1a78] sm:$0xff]
    %v2330 = vld [vmem:[#allocation17 + $0x1a80] sm:$0xff]
    %v2331 = vld [vmem:[#allocation17 + $0x1a88] sm:$0xff]
    %v2332 = vld [vmem:[#allocation17 + $0x1a90] sm:$0xff]
    %v2333 = vld [vmem:[#allocation17 + $0x1a98] sm:$0xff]
    %v2334 = vld [vmem:[#allocation17 + $0x1aa0] sm:$0xff]
    %v2335 = vld [vmem:[#allocation17 + $0x1aa8] sm:$0xff]
    %v2336 = vld [vmem:[#allocation17 + $0x1ab0] sm:$0xff]
    %v2337 = vld [vmem:[#allocation17 + $0x1ab8] sm:$0xff]
    %v2338 = vld [vmem:[#allocation17 + $0x1ac0] sm:$0xff]
    %v2339 = vld [vmem:[#allocation17 + $0x1ac8] sm:$0xff]
    %v2340 = vld [vmem:[#allocation17 + $0x1ad0] sm:$0xff]
    %v2341 = vld [vmem:[#allocation17 + $0x1ad8] sm:$0xff]
    %v2342 = vld [vmem:[#allocation17 + $0x1ae0] sm:$0xff]
    %v2343 = vld [vmem:[#allocation17 + $0x1ae8] sm:$0xff]
    %v2344 = vld [vmem:[#allocation17 + $0x1af0] sm:$0xff]
    %v2345 = vld [vmem:[#allocation17 + $0x1af8] sm:$0xff]
    %v2346 = vld [vmem:[#allocation17 + $0x1b00] sm:$0xff]
    %v2347 = vld [vmem:[#allocation17 + $0x1b08] sm:$0xff]
    %v2348 = vld [vmem:[#allocation17 + $0x1b10] sm:$0xff]
    %v2349 = vld [vmem:[#allocation17 + $0x1b18] sm:$0xff]
    %v2350 = vld [vmem:[#allocation17 + $0x1b20] sm:$0xff]
    %v2351 = vld [vmem:[#allocation17 + $0x1b28] sm:$0xff]
    %v2352 = vld [vmem:[#allocation17 + $0x1b30] sm:$0xff]
    %v2353 = vld [vmem:[#allocation17 + $0x1b38] sm:$0xff]
    %v2354 = vld [vmem:[#allocation17 + $0x1b40] sm:$0xff]
    %v2355 = vld [vmem:[#allocation17 + $0x1b48] sm:$0xff]
    %v2356 = vld [vmem:[#allocation17 + $0x1b50] sm:$0xff]
    %v2357 = vld [vmem:[#allocation17 + $0x1b58] sm:$0xff]
    %v2358 = vld [vmem:[#allocation17 + $0x1b60] sm:$0xff]
    %v2359 = vld [vmem:[#allocation17 + $0x1b68] sm:$0xff]
    %v2360 = vld [vmem:[#allocation17 + $0x1b70] sm:$0xff]
    %v2361 = vld [vmem:[#allocation17 + $0x1b78] sm:$0xff]
    %v2362 = vld [vmem:[#allocation17 + $0x1b80] sm:$0xff]
    %v2363 = vld [vmem:[#allocation17 + $0x1b88] sm:$0xff]
    %v2364 = vld [vmem:[#allocation17 + $0x1b90] sm:$0xff]
    %v2365 = vld [vmem:[#allocation17 + $0x1b98] sm:$0xff]
    %v2366 = vld [vmem:[#allocation17 + $0x1ba0] sm:$0xff]
    %v2367 = vld [vmem:[#allocation17 + $0x1ba8] sm:$0xff]
    %v2368 = vld [vmem:[#allocation17 + $0x1bb0] sm:$0xff]
    %v2369 = vld [vmem:[#allocation17 + $0x1bb8] sm:$0xff]
    %v2370 = vld [vmem:[#allocation17 + $0x1bc0] sm:$0xff]
    %v2371 = vld [vmem:[#allocation17 + $0x1bc8] sm:$0xff]
    %v2372 = vld [vmem:[#allocation17 + $0x1bd0] sm:$0xff]
    %v2373 = vld [vmem:[#allocation17 + $0x1bd8] sm:$0xff]
    %v2374 = vld [vmem:[#allocation17 + $0x1be0] sm:$0xff]
    %v2375 = vld [vmem:[#allocation17 + $0x1be8] sm:$0xff]
    %v2376 = vld [vmem:[#allocation17 + $0x1bf0] sm:$0xff]
    %v2377 = vld [vmem:[#allocation17 + $0x1bf8] sm:$0xff]
    %v2378 = vld [vmem:[#allocation17 + $0x1c00] sm:$0xff]
    %v2379 = vld [vmem:[#allocation17 + $0x1c08] sm:$0xff]
    %v2380 = vld [vmem:[#allocation17 + $0x1c10] sm:$0xff]
    %v2381 = vld [vmem:[#allocation17 + $0x1c18] sm:$0xff]
    %v2382 = vld [vmem:[#allocation17 + $0x1c20] sm:$0xff]
    %v2383 = vld [vmem:[#allocation17 + $0x1c28] sm:$0xff]
    %v2384 = vld [vmem:[#allocation17 + $0x1c30] sm:$0xff]
    %v2385 = vld [vmem:[#allocation17 + $0x1c38] sm:$0xff]
    %v2386 = vld [vmem:[#allocation17 + $0x1c40] sm:$0xff]
    %v2387 = vld [vmem:[#allocation17 + $0x1c48] sm:$0xff]
    %v2388 = vld [vmem:[#allocation17 + $0x1c50] sm:$0xff]
    %v2389 = vld [vmem:[#allocation17 + $0x1c58] sm:$0xff]
    %v2390 = vld [vmem:[#allocation17 + $0x1c60] sm:$0xff]
    %v2391 = vld [vmem:[#allocation17 + $0x1c68] sm:$0xff]
    %v2392 = vld [vmem:[#allocation17 + $0x1c70] sm:$0xff]
    %v2393 = vld [vmem:[#allocation17 + $0x1c78] sm:$0xff]
    %v2394 = vld [vmem:[#allocation17 + $0x1c80] sm:$0xff]
    %v2395 = vld [vmem:[#allocation17 + $0x1c88] sm:$0xff]
    %v2396 = vld [vmem:[#allocation17 + $0x1c90] sm:$0xff]
    %v2397 = vld [vmem:[#allocation17 + $0x1c98] sm:$0xff]
    %v2398 = vld [vmem:[#allocation17 + $0x1ca0] sm:$0xff]
    %v2399 = vld [vmem:[#allocation17 + $0x1ca8] sm:$0xff]
    %v2400 = vld [vmem:[#allocation17 + $0x1cb0] sm:$0xff]
    %v2401 = vld [vmem:[#allocation17 + $0x1cb8] sm:$0xff]
    %v2402 = vld [vmem:[#allocation17 + $0x1cc0] sm:$0xff]
    %v2403 = vld [vmem:[#allocation17 + $0x1cc8] sm:$0xff]
    %v2404 = vld [vmem:[#allocation17 + $0x1cd0] sm:$0xff]
    %v2405 = vld [vmem:[#allocation17 + $0x1cd8] sm:$0xff]
    %v2406 = vld [vmem:[#allocation17 + $0x1ce0] sm:$0xff]
    %v2407 = vld [vmem:[#allocation17 + $0x1ce8] sm:$0xff]
    %v2408 = vld [vmem:[#allocation17 + $0x1cf0] sm:$0xff]
    %v2409 = vld [vmem:[#allocation17 + $0x1cf8] sm:$0xff]
    %v2410 = vld [vmem:[#allocation17 + $0x1d00] sm:$0xff]
    %v2411 = vld [vmem:[#allocation17 + $0x1d08] sm:$0xff]
    %v2412 = vld [vmem:[#allocation17 + $0x1d10] sm:$0xff]
    %v2413 = vld [vmem:[#allocation17 + $0x1d18] sm:$0xff]
    %v2414 = vld [vmem:[#allocation17 + $0x1d20] sm:$0xff]
    %v2415 = vld [vmem:[#allocation17 + $0x1d28] sm:$0xff]
    %v2416 = vld [vmem:[#allocation17 + $0x1d30] sm:$0xff]
    %v2417 = vld [vmem:[#allocation17 + $0x1d38] sm:$0xff]
    %v2418 = vld [vmem:[#allocation17 + $0x1d40] sm:$0xff]
    %v2419 = vld [vmem:[#allocation17 + $0x1d48] sm:$0xff]
    %v2420 = vld [vmem:[#allocation17 + $0x1d50] sm:$0xff]
    %v2421 = vld [vmem:[#allocation17 + $0x1d58] sm:$0xff]
    %v2422 = vld [vmem:[#allocation17 + $0x1d60] sm:$0xff]
    %v2423 = vld [vmem:[#allocation17 + $0x1d68] sm:$0xff]
    %v2424 = vld [vmem:[#allocation17 + $0x1d70] sm:$0xff]
    %v2425 = vld [vmem:[#allocation17 + $0x1d78] sm:$0xff]
    %v2426 = vld [vmem:[#allocation17 + $0x1d80] sm:$0xff]
    %v2427 = vld [vmem:[#allocation17 + $0x1d88] sm:$0xff]
    %v2428 = vld [vmem:[#allocation17 + $0x1d90] sm:$0xff]
    %v2429 = vld [vmem:[#allocation17 + $0x1d98] sm:$0xff]
    %v2430 = vld [vmem:[#allocation17 + $0x1da0] sm:$0xff]
    %v2431 = vld [vmem:[#allocation17 + $0x1da8] sm:$0xff]
    %v2432 = vld [vmem:[#allocation17 + $0x1db0] sm:$0xff]
    %v2433 = vld [vmem:[#allocation17 + $0x1db8] sm:$0xff]
    %v2434 = vld [vmem:[#allocation17 + $0x1dc0] sm:$0xff]
    %v2435 = vld [vmem:[#allocation17 + $0x1dc8] sm:$0xff]
    %v2436 = vld [vmem:[#allocation17 + $0x1dd0] sm:$0xff]
    %v2437 = vld [vmem:[#allocation17 + $0x1dd8] sm:$0xff]
    %v2438 = vld [vmem:[#allocation17 + $0x1de0] sm:$0xff]
    %v2439 = vld [vmem:[#allocation17 + $0x1de8] sm:$0xff]
    %v2440 = vld [vmem:[#allocation17 + $0x1df0] sm:$0xff]
    %v2441 = vld [vmem:[#allocation17 + $0x1df8] sm:$0xff]
    %v2442 = vld [vmem:[#allocation17 + $0x1e00] sm:$0xff]
    %v2443 = vld [vmem:[#allocation17 + $0x1e08] sm:$0xff]
    %v2444 = vld [vmem:[#allocation17 + $0x1e10] sm:$0xff]
    %v2445 = vld [vmem:[#allocation17 + $0x1e18] sm:$0xff]
    %v2446 = vld [vmem:[#allocation17 + $0x1e20] sm:$0xff]
    %v2447 = vld [vmem:[#allocation17 + $0x1e28] sm:$0xff]
    %v2448 = vld [vmem:[#allocation17 + $0x1e30] sm:$0xff]
    %v2449 = vld [vmem:[#allocation17 + $0x1e38] sm:$0xff]
    %v2450 = vld [vmem:[#allocation17 + $0x1e40] sm:$0xff]
    %v2451 = vld [vmem:[#allocation17 + $0x1e48] sm:$0xff]
    %v2452 = vld [vmem:[#allocation17 + $0x1e50] sm:$0xff]
    %v2453 = vld [vmem:[#allocation17 + $0x1e58] sm:$0xff]
    %v2454 = vld [vmem:[#allocation17 + $0x1e60] sm:$0xff]
    %v2455 = vld [vmem:[#allocation17 + $0x1e68] sm:$0xff]
    %v2456 = vld [vmem:[#allocation17 + $0x1e70] sm:$0xff]
    %v2457 = vld [vmem:[#allocation17 + $0x1e78] sm:$0xff]
    %v2458 = vld [vmem:[#allocation17 + $0x1e80] sm:$0xff]
    %v2459 = vld [vmem:[#allocation17 + $0x1e88] sm:$0xff]
    %v2460 = vld [vmem:[#allocation17 + $0x1e90] sm:$0xff]
    %v2461 = vld [vmem:[#allocation17 + $0x1e98] sm:$0xff]
    %v2462 = vld [vmem:[#allocation17 + $0x1ea0] sm:$0xff]
    %v2463 = vld [vmem:[#allocation17 + $0x1ea8] sm:$0xff]
    %v2464 = vld [vmem:[#allocation17 + $0x1eb0] sm:$0xff]
    %v2465 = vld [vmem:[#allocation17 + $0x1eb8] sm:$0xff]
    %v2466 = vld [vmem:[#allocation17 + $0x1ec0] sm:$0xff]
    %v2467 = vld [vmem:[#allocation17 + $0x1ec8] sm:$0xff]
    %v2468 = vld [vmem:[#allocation17 + $0x1ed0] sm:$0xff]
    %v2469 = vld [vmem:[#allocation17 + $0x1ed8] sm:$0xff]
    %v2470 = vld [vmem:[#allocation17 + $0x1ee0] sm:$0xff]
    %v2471 = vld [vmem:[#allocation17 + $0x1ee8] sm:$0xff]
    %v2472 = vld [vmem:[#allocation17 + $0x1ef0] sm:$0xff]
    %v2473 = vld [vmem:[#allocation17 + $0x1ef8] sm:$0xff]
    %v2474 = vld [vmem:[#allocation17 + $0x1f00] sm:$0xff]
    %v2475 = vld [vmem:[#allocation17 + $0x1f08] sm:$0xff]
    %v2476 = vld [vmem:[#allocation17 + $0x1f10] sm:$0xff]
    %v2477 = vld [vmem:[#allocation17 + $0x1f18] sm:$0xff]
    %v2478 = vld [vmem:[#allocation17 + $0x1f20] sm:$0xff]
    %v2479 = vld [vmem:[#allocation17 + $0x1f28] sm:$0xff]
    %v2480 = vld [vmem:[#allocation17 + $0x1f30] sm:$0xff]
    %v2481 = vld [vmem:[#allocation17 + $0x1f38] sm:$0xff]
    %v2482 = vld [vmem:[#allocation17 + $0x1f40] sm:$0xff]
    %v2483 = vld [vmem:[#allocation17 + $0x1f48] sm:$0xff]
    %v2484 = vld [vmem:[#allocation17 + $0x1f50] sm:$0xff]
    %v2485 = vld [vmem:[#allocation17 + $0x1f58] sm:$0xff]
    %v2486 = vld [vmem:[#allocation17 + $0x1f60] sm:$0xff]
    %v2487 = vld [vmem:[#allocation17 + $0x1f68] sm:$0xff]
    %v2488 = vld [vmem:[#allocation17 + $0x1f70] sm:$0xff]
    %v2489 = vld [vmem:[#allocation17 + $0x1f78] sm:$0xff]
    %v2490 = vld [vmem:[#allocation17 + $0x1f80] sm:$0xff]
    %v2491 = vld [vmem:[#allocation17 + $0x1f88] sm:$0xff]
    %v2492 = vld [vmem:[#allocation17 + $0x1f90] sm:$0xff]
    %v2493 = vld [vmem:[#allocation17 + $0x1f98] sm:$0xff]
    %v2494 = vld [vmem:[#allocation17 + $0x1fa0] sm:$0xff]
    %v2495 = vld [vmem:[#allocation17 + $0x1fa8] sm:$0xff]
    %v2496 = vld [vmem:[#allocation17 + $0x1fb0] sm:$0xff]
    %v2497 = vld [vmem:[#allocation17 + $0x1fb8] sm:$0xff]
    %v2498 = vld [vmem:[#allocation17 + $0x1fc0] sm:$0xff]
    %v2499 = vld [vmem:[#allocation17 + $0x1fc8] sm:$0xff]
    %v2500 = vld [vmem:[#allocation17 + $0x1fd0] sm:$0xff]
    %v2501 = vld [vmem:[#allocation17 + $0x1fd8] sm:$0xff]
    %v2502 = vld [vmem:[#allocation17 + $0x1fe0] sm:$0xff]
    %v2503 = vld [vmem:[#allocation17 + $0x1fe8] sm:$0xff]
    %v2504 = vld [vmem:[#allocation17 + $0x1ff0] sm:$0xff]
    %v2505 = vld [vmem:[#allocation17 + $0x1ff8] sm:$0xff]
    %v2506 = vld [vmem:[#allocation19] sm:$0xff]
    %v2507 = vld [vmem:[#allocation19 + $0x8] sm:$0xff]
    %v2510 = vlaneseq
    %v2511 = vshrl.u32 %v2510, 7
    %v2512 = vsub.s32 0, %v2511
    %v2513 = vrot.slane %v2506, %v2512
    %v2514 = vlaneseq
    %v2515 = vshrl.u32 %v2514, 7
    %v2516 = vsub.s32 1, %v2515
    %v2517 = vrot.slane %v2506, %v2516
    %v2518 = vlaneseq
    %v2519 = vshrl.u32 %v2518, 7
    %v2520 = vsub.s32 2, %v2519
    %v2521 = vrot.slane %v2506, %v2520
    %v2522 = vlaneseq
    %v2523 = vshrl.u32 %v2522, 7
    %v2524 = vsub.s32 3, %v2523
    %v2525 = vrot.slane %v2506, %v2524
    %v2526 = vlaneseq
    %v2527 = vshrl.u32 %v2526, 7
    %v2528 = vsub.s32 4, %v2527
    %v2529 = vrot.slane %v2506, %v2528
    %v2530 = vlaneseq
    %v2531 = vshrl.u32 %v2530, 7
    %v2532 = vsub.s32 5, %v2531
    %v2533 = vrot.slane %v2506, %v2532
    %v2534 = vlaneseq
    %v2535 = vshrl.u32 %v2534, 7
    %v2536 = vsub.s32 6, %v2535
    %v2537 = vrot.slane %v2506, %v2536
    %v2538 = vlaneseq
    %v2539 = vshrl.u32 %v2538, 7
    %v2540 = vsub.s32 7, %v2539
    %v2541 = vrot.slane %v2506, %v2540
    %v2542 = vlaneseq
    %v2543 = vshrl.u32 %v2542, 7
    %v2544 = vsub.s32 0, %v2543
    %v2545 = vrot.slane %v2507, %v2544
    %v2546 = vlaneseq
    %v2547 = vshrl.u32 %v2546, 7
    %v2548 = vsub.s32 1, %v2547
    %v2549 = vrot.slane %v2507, %v2548
    %v2550 = vlaneseq
    %v2551 = vshrl.u32 %v2550, 7
    %v2552 = vsub.s32 2, %v2551
    %v2553 = vrot.slane %v2507, %v2552
    %v2554 = vlaneseq
    %v2555 = vshrl.u32 %v2554, 7
    %v2556 = vsub.s32 3, %v2555
    %v2557 = vrot.slane %v2507, %v2556
    %v2558 = vlaneseq
    %v2559 = vshrl.u32 %v2558, 7
    %v2560 = vsub.s32 4, %v2559
    %v2561 = vrot.slane %v2507, %v2560
    %v2562 = vlaneseq
    %v2563 = vshrl.u32 %v2562, 7
    %v2564 = vsub.s32 5, %v2563
    %v2565 = vrot.slane %v2507, %v2564
    %v2566 = vlaneseq
    %v2567 = vshrl.u32 %v2566, 7
    %v2568 = vsub.s32 6, %v2567
    %v2569 = vrot.slane %v2507, %v2568
    %v2570 = vlaneseq
    %v2571 = vshrl.u32 %v2570, 7
    %v2572 = vsub.s32 7, %v2571
    %v2573 = vrot.slane %v2507, %v2572
    %v3614 = vunpack.c.l.b16 %v1482
    %v3615 = vunpack.c.h.b16 %v1482
    %v3616 = vunpack.c.l.b16 %v1483
    %v3617 = vunpack.c.h.b16 %v1483
    %v3618 = vunpack.c.l.b16 %v1484
    %v3619 = vunpack.c.h.b16 %v1484
    %v3620 = vunpack.c.l.b16 %v1485
    %v3621 = vunpack.c.h.b16 %v1485
    %v3622 = vunpack.c.l.b16 %v1486
    %v3623 = vunpack.c.h.b16 %v1486
    %v3624 = vunpack.c.l.b16 %v1487
    %v3625 = vunpack.c.h.b16 %v1487
    %v3626 = vunpack.c.l.b16 %v1488
    %v3627 = vunpack.c.h.b16 %v1488
    %v3628 = vunpack.c.l.b16 %v1489
    %v3629 = vunpack.c.h.b16 %v1489
    %v3630 = vunpack.c.l.b16 %v1490
    %v3631 = vunpack.c.h.b16 %v1490
    %v3632 = vunpack.c.l.b16 %v1491
    %v3633 = vunpack.c.h.b16 %v1491
    %v3634 = vunpack.c.l.b16 %v1492
    %v3635 = vunpack.c.h.b16 %v1492
    %v3636 = vunpack.c.l.b16 %v1493
    %v3637 = vunpack.c.h.b16 %v1493
    %v3638 = vunpack.c.l.b16 %v1494
    %v3639 = vunpack.c.h.b16 %v1494
    %v3640 = vunpack.c.l.b16 %v1495
    %v3641 = vunpack.c.h.b16 %v1495
    %v3642 = vunpack.c.l.b16 %v1496
    %v3643 = vunpack.c.h.b16 %v1496
    %v3644 = vunpack.c.l.b16 %v1497
    %v3645 = vunpack.c.h.b16 %v1497
    %v3646 = vunpack.c.l.b16 %v1498
    %v3647 = vunpack.c.h.b16 %v1498
    %v3648 = vunpack.c.l.b16 %v1499
    %v3649 = vunpack.c.h.b16 %v1499
    %v3650 = vunpack.c.l.b16 %v1500
    %v3651 = vunpack.c.h.b16 %v1500
    %v3652 = vunpack.c.l.b16 %v1501
    %v3653 = vunpack.c.h.b16 %v1501
    %v3654 = vunpack.c.l.b16 %v1502
    %v3655 = vunpack.c.h.b16 %v1502
    %v3656 = vunpack.c.l.b16 %v1503
    %v3657 = vunpack.c.h.b16 %v1503
    %v3658 = vunpack.c.l.b16 %v1504
    %v3659 = vunpack.c.h.b16 %v1504
    %v3660 = vunpack.c.l.b16 %v1505
    %v3661 = vunpack.c.h.b16 %v1505
    %v3662 = vunpack.c.l.b16 %v1506
    %v3663 = vunpack.c.h.b16 %v1506
    %v3664 = vunpack.c.l.b16 %v1507
    %v3665 = vunpack.c.h.b16 %v1507
    %v3666 = vunpack.c.l.b16 %v1508
    %v3667 = vunpack.c.h.b16 %v1508
    %v3668 = vunpack.c.l.b16 %v1509
    %v3669 = vunpack.c.h.b16 %v1509
    %v3670 = vunpack.c.l.b16 %v1510
    %v3671 = vunpack.c.h.b16 %v1510
    %v3672 = vunpack.c.l.b16 %v1511
    %v3673 = vunpack.c.h.b16 %v1511
    %v3674 = vunpack.c.l.b16 %v1512
    %v3675 = vunpack.c.h.b16 %v1512
    %v3676 = vunpack.c.l.b16 %v1513
    %v3677 = vunpack.c.h.b16 %v1513
    %v3678 = vunpack.c.l.b16 %v1514
    %v3679 = vunpack.c.h.b16 %v1514
    %v3680 = vunpack.c.l.b16 %v1515
    %v3681 = vunpack.c.h.b16 %v1515
    %v3682 = vunpack.c.l.b16 %v1516
    %v3683 = vunpack.c.h.b16 %v1516
    %v3684 = vunpack.c.l.b16 %v1517
    %v3685 = vunpack.c.h.b16 %v1517
    %v3686 = vunpack.c.l.b16 %v1518
    %v3687 = vunpack.c.h.b16 %v1518
    %v3688 = vunpack.c.l.b16 %v1519
    %v3689 = vunpack.c.h.b16 %v1519
    %v3690 = vunpack.c.l.b16 %v1520
    %v3691 = vunpack.c.h.b16 %v1520
    %v3692 = vunpack.c.l.b16 %v1521
    %v3693 = vunpack.c.h.b16 %v1521
    %v3694 = vunpack.c.l.b16 %v1522
    %v3695 = vunpack.c.h.b16 %v1522
    %v3696 = vunpack.c.l.b16 %v1523
    %v3697 = vunpack.c.h.b16 %v1523
    %v3698 = vunpack.c.l.b16 %v1524
    %v3699 = vunpack.c.h.b16 %v1524
    %v3700 = vunpack.c.l.b16 %v1525
    %v3701 = vunpack.c.h.b16 %v1525
    %v3702 = vunpack.c.l.b16 %v1526
    %v3703 = vunpack.c.h.b16 %v1526
    %v3704 = vunpack.c.l.b16 %v1527
    %v3705 = vunpack.c.h.b16 %v1527
    %v3706 = vunpack.c.l.b16 %v1528
    %v3707 = vunpack.c.h.b16 %v1528
    %v3708 = vunpack.c.l.b16 %v1529
    %v3709 = vunpack.c.h.b16 %v1529
    %v3710 = vunpack.c.l.b16 %v1530
    %v3711 = vunpack.c.h.b16 %v1530
    %v3712 = vunpack.c.l.b16 %v1531
    %v3713 = vunpack.c.h.b16 %v1531
    %v3714 = vunpack.c.l.b16 %v1532
    %v3715 = vunpack.c.h.b16 %v1532
    %v3716 = vunpack.c.l.b16 %v1533
    %v3717 = vunpack.c.h.b16 %v1533
    %v3718 = vunpack.c.l.b16 %v1534
    %v3719 = vunpack.c.h.b16 %v1534
    %v3720 = vunpack.c.l.b16 %v1535
    %v3721 = vunpack.c.h.b16 %v1535
    %v3722 = vunpack.c.l.b16 %v1536
    %v3723 = vunpack.c.h.b16 %v1536
    %v3724 = vunpack.c.l.b16 %v1537
    %v3725 = vunpack.c.h.b16 %v1537
    %v3726 = vunpack.c.l.b16 %v1538
    %v3727 = vunpack.c.h.b16 %v1538
    %v3728 = vunpack.c.l.b16 %v1539
    %v3729 = vunpack.c.h.b16 %v1539
    %v3730 = vunpack.c.l.b16 %v1540
    %v3731 = vunpack.c.h.b16 %v1540
    %v3732 = vunpack.c.l.b16 %v1541
    %v3733 = vunpack.c.h.b16 %v1541
    %v3734 = vunpack.c.l.b16 %v1542
    %v3735 = vunpack.c.h.b16 %v1542
    %v3736 = vunpack.c.l.b16 %v1543
    %v3737 = vunpack.c.h.b16 %v1543
    %v3738 = vunpack.c.l.b16 %v1544
    %v3739 = vunpack.c.h.b16 %v1544
    %v3740 = vunpack.c.l.b16 %v1545
    %v3741 = vunpack.c.h.b16 %v1545
    %v3742 = vunpack.c.l.b16 %v1546
    %v3743 = vunpack.c.h.b16 %v1546
    %v3744 = vunpack.c.l.b16 %v1547
    %v3745 = vunpack.c.h.b16 %v1547
    %v3746 = vunpack.c.l.b16 %v1548
    %v3747 = vunpack.c.h.b16 %v1548
    %v3748 = vunpack.c.l.b16 %v1549
    %v3749 = vunpack.c.h.b16 %v1549
    %v3750 = vunpack.c.l.b16 %v1550
    %v3751 = vunpack.c.h.b16 %v1550
    %v3752 = vunpack.c.l.b16 %v1551
    %v3753 = vunpack.c.h.b16 %v1551
    %v3754 = vunpack.c.l.b16 %v1552
    %v3755 = vunpack.c.h.b16 %v1552
    %v3756 = vunpack.c.l.b16 %v1553
    %v3757 = vunpack.c.h.b16 %v1553
    %v3758 = vunpack.c.l.b16 %v1554
    %v3759 = vunpack.c.h.b16 %v1554
    %v3760 = vunpack.c.l.b16 %v1555
    %v3761 = vunpack.c.h.b16 %v1555
    %v3762 = vunpack.c.l.b16 %v1556
    %v3763 = vunpack.c.h.b16 %v1556
    %v3764 = vunpack.c.l.b16 %v1557
    %v3765 = vunpack.c.h.b16 %v1557
    %v3766 = vunpack.c.l.b16 %v1558
    %v3767 = vunpack.c.h.b16 %v1558
    %v3768 = vunpack.c.l.b16 %v1559
    %v3769 = vunpack.c.h.b16 %v1559
    %v3770 = vunpack.c.l.b16 %v1560
    %v3771 = vunpack.c.h.b16 %v1560
    %v3772 = vunpack.c.l.b16 %v1561
    %v3773 = vunpack.c.h.b16 %v1561
    %v3774 = vunpack.c.l.b16 %v1562
    %v3775 = vunpack.c.h.b16 %v1562
    %v3776 = vunpack.c.l.b16 %v1563
    %v3777 = vunpack.c.h.b16 %v1563
    %v3778 = vunpack.c.l.b16 %v1564
    %v3779 = vunpack.c.h.b16 %v1564
    %v3780 = vunpack.c.l.b16 %v1565
    %v3781 = vunpack.c.h.b16 %v1565
    %v3782 = vunpack.c.l.b16 %v1566
    %v3783 = vunpack.c.h.b16 %v1566
    %v3784 = vunpack.c.l.b16 %v1567
    %v3785 = vunpack.c.h.b16 %v1567
    %v3786 = vunpack.c.l.b16 %v1568
    %v3787 = vunpack.c.h.b16 %v1568
    %v3788 = vunpack.c.l.b16 %v1569
    %v3789 = vunpack.c.h.b16 %v1569
    %v3790 = vunpack.c.l.b16 %v1570
    %v3791 = vunpack.c.h.b16 %v1570
    %v3792 = vunpack.c.l.b16 %v1571
    %v3793 = vunpack.c.h.b16 %v1571
    %v3794 = vunpack.c.l.b16 %v1572
    %v3795 = vunpack.c.h.b16 %v1572
    %v3796 = vunpack.c.l.b16 %v1573
    %v3797 = vunpack.c.h.b16 %v1573
    %v3798 = vunpack.c.l.b16 %v1574
    %v3799 = vunpack.c.h.b16 %v1574
    %v3800 = vunpack.c.l.b16 %v1575
    %v3801 = vunpack.c.h.b16 %v1575
    %v3802 = vunpack.c.l.b16 %v1576
    %v3803 = vunpack.c.h.b16 %v1576
    %v3804 = vunpack.c.l.b16 %v1577
    %v3805 = vunpack.c.h.b16 %v1577
    %v3806 = vunpack.c.l.b16 %v1578
    %v3807 = vunpack.c.h.b16 %v1578
    %v3808 = vunpack.c.l.b16 %v1579
    %v3809 = vunpack.c.h.b16 %v1579
    %v3810 = vunpack.c.l.b16 %v1580
    %v3811 = vunpack.c.h.b16 %v1580
    %v3812 = vunpack.c.l.b16 %v1581
    %v3813 = vunpack.c.h.b16 %v1581
    %v3814 = vunpack.c.l.b16 %v1582
    %v3815 = vunpack.c.h.b16 %v1582
    %v3816 = vunpack.c.l.b16 %v1583
    %v3817 = vunpack.c.h.b16 %v1583
    %v3818 = vunpack.c.l.b16 %v1584
    %v3819 = vunpack.c.h.b16 %v1584
    %v3820 = vunpack.c.l.b16 %v1585
    %v3821 = vunpack.c.h.b16 %v1585
    %v3822 = vunpack.c.l.b16 %v1586
    %v3823 = vunpack.c.h.b16 %v1586
    %v3824 = vunpack.c.l.b16 %v1587
    %v3825 = vunpack.c.h.b16 %v1587
    %v3826 = vunpack.c.l.b16 %v1588
    %v3827 = vunpack.c.h.b16 %v1588
    %v3828 = vunpack.c.l.b16 %v1589
    %v3829 = vunpack.c.h.b16 %v1589
    %v3830 = vunpack.c.l.b16 %v1590
    %v3831 = vunpack.c.h.b16 %v1590
    %v3832 = vunpack.c.l.b16 %v1591
    %v3833 = vunpack.c.h.b16 %v1591
    %v3834 = vunpack.c.l.b16 %v1592
    %v3835 = vunpack.c.h.b16 %v1592
    %v3836 = vunpack.c.l.b16 %v1593
    %v3837 = vunpack.c.h.b16 %v1593
    %v3838 = vunpack.c.l.b16 %v1594
    %v3839 = vunpack.c.h.b16 %v1594
    %v3840 = vunpack.c.l.b16 %v1595
    %v3841 = vunpack.c.h.b16 %v1595
    %v3842 = vunpack.c.l.b16 %v1596
    %v3843 = vunpack.c.h.b16 %v1596
    %v3844 = vunpack.c.l.b16 %v1597
    %v3845 = vunpack.c.h.b16 %v1597
    %v3846 = vunpack.c.l.b16 %v1598
    %v3847 = vunpack.c.h.b16 %v1598
    %v3848 = vunpack.c.l.b16 %v1599
    %v3849 = vunpack.c.h.b16 %v1599
    %v3850 = vunpack.c.l.b16 %v1600
    %v3851 = vunpack.c.h.b16 %v1600
    %v3852 = vunpack.c.l.b16 %v1601
    %v3853 = vunpack.c.h.b16 %v1601
    %v3854 = vunpack.c.l.b16 %v1602
    %v3855 = vunpack.c.h.b16 %v1602
    %v3856 = vunpack.c.l.b16 %v1603
    %v3857 = vunpack.c.h.b16 %v1603
    %v3858 = vunpack.c.l.b16 %v1604
    %v3859 = vunpack.c.h.b16 %v1604
    %v3860 = vunpack.c.l.b16 %v1605
    %v3861 = vunpack.c.h.b16 %v1605
    %v3862 = vunpack.c.l.b16 %v1606
    %v3863 = vunpack.c.h.b16 %v1606
    %v3864 = vunpack.c.l.b16 %v1607
    %v3865 = vunpack.c.h.b16 %v1607
    %v3866 = vunpack.c.l.b16 %v1608
    %v3867 = vunpack.c.h.b16 %v1608
    %v3868 = vunpack.c.l.b16 %v1609
    %v3869 = vunpack.c.h.b16 %v1609
    %v3870 = vunpack.c.l.b16 %v1610
    %v3871 = vunpack.c.h.b16 %v1610
    %v3872 = vunpack.c.l.b16 %v1611
    %v3873 = vunpack.c.h.b16 %v1611
    %v3874 = vunpack.c.l.b16 %v1612
    %v3875 = vunpack.c.h.b16 %v1612
    %v3876 = vunpack.c.l.b16 %v1613
    %v3877 = vunpack.c.h.b16 %v1613
    %v3878 = vunpack.c.l.b16 %v1614
    %v3879 = vunpack.c.h.b16 %v1614
    %v3880 = vunpack.c.l.b16 %v1615
    %v3881 = vunpack.c.h.b16 %v1615
    %v3882 = vunpack.c.l.b16 %v1616
    %v3883 = vunpack.c.h.b16 %v1616
    %v3884 = vunpack.c.l.b16 %v1617
    %v3885 = vunpack.c.h.b16 %v1617
    %v3886 = vunpack.c.l.b16 %v1618
    %v3887 = vunpack.c.h.b16 %v1618
    %v3888 = vunpack.c.l.b16 %v1619
    %v3889 = vunpack.c.h.b16 %v1619
    %v3890 = vunpack.c.l.b16 %v1620
    %v3891 = vunpack.c.h.b16 %v1620
    %v3892 = vunpack.c.l.b16 %v1621
    %v3893 = vunpack.c.h.b16 %v1621
    %v3894 = vunpack.c.l.b16 %v1622
    %v3895 = vunpack.c.h.b16 %v1622
    %v3896 = vunpack.c.l.b16 %v1623
    %v3897 = vunpack.c.h.b16 %v1623
    %v3898 = vunpack.c.l.b16 %v1624
    %v3899 = vunpack.c.h.b16 %v1624
    %v3900 = vunpack.c.l.b16 %v1625
    %v3901 = vunpack.c.h.b16 %v1625
    %v3902 = vunpack.c.l.b16 %v1626
    %v3903 = vunpack.c.h.b16 %v1626
    %v3904 = vunpack.c.l.b16 %v1627
    %v3905 = vunpack.c.h.b16 %v1627
    %v3906 = vunpack.c.l.b16 %v1628
    %v3907 = vunpack.c.h.b16 %v1628
    %v3908 = vunpack.c.l.b16 %v1629
    %v3909 = vunpack.c.h.b16 %v1629
    %v3910 = vunpack.c.l.b16 %v1630
    %v3911 = vunpack.c.h.b16 %v1630
    %v3912 = vunpack.c.l.b16 %v1631
    %v3913 = vunpack.c.h.b16 %v1631
    %v3914 = vunpack.c.l.b16 %v1632
    %v3915 = vunpack.c.h.b16 %v1632
    %v3916 = vunpack.c.l.b16 %v1633
    %v3917 = vunpack.c.h.b16 %v1633
    %v3918 = vunpack.c.l.b16 %v1634
    %v3919 = vunpack.c.h.b16 %v1634
    %v3920 = vunpack.c.l.b16 %v1635
    %v3921 = vunpack.c.h.b16 %v1635
    %v3922 = vunpack.c.l.b16 %v1636
    %v3923 = vunpack.c.h.b16 %v1636
    %v3924 = vunpack.c.l.b16 %v1637
    %v3925 = vunpack.c.h.b16 %v1637
    %v3926 = vunpack.c.l.b16 %v1638
    %v3927 = vunpack.c.h.b16 %v1638
    %v3928 = vunpack.c.l.b16 %v1639
    %v3929 = vunpack.c.h.b16 %v1639
    %v3930 = vunpack.c.l.b16 %v1640
    %v3931 = vunpack.c.h.b16 %v1640
    %v3932 = vunpack.c.l.b16 %v1641
    %v3933 = vunpack.c.h.b16 %v1641
    %v3934 = vunpack.c.l.b16 %v1642
    %v3935 = vunpack.c.h.b16 %v1642
    %v3936 = vunpack.c.l.b16 %v1643
    %v3937 = vunpack.c.h.b16 %v1643
    %v3938 = vunpack.c.l.b16 %v1644
    %v3939 = vunpack.c.h.b16 %v1644
    %v3940 = vunpack.c.l.b16 %v1645
    %v3941 = vunpack.c.h.b16 %v1645
    %v3942 = vunpack.c.l.b16 %v1646
    %v3943 = vunpack.c.h.b16 %v1646
    %v3944 = vunpack.c.l.b16 %v1647
    %v3945 = vunpack.c.h.b16 %v1647
    %v3946 = vunpack.c.l.b16 %v1648
    %v3947 = vunpack.c.h.b16 %v1648
    %v3948 = vunpack.c.l.b16 %v1649
    %v3949 = vunpack.c.h.b16 %v1649
    %v3950 = vunpack.c.l.b16 %v1650
    %v3951 = vunpack.c.h.b16 %v1650
    %v3952 = vunpack.c.l.b16 %v1651
    %v3953 = vunpack.c.h.b16 %v1651
    %v3954 = vunpack.c.l.b16 %v1652
    %v3955 = vunpack.c.h.b16 %v1652
    %v3956 = vunpack.c.l.b16 %v1653
    %v3957 = vunpack.c.h.b16 %v1653
    %v3958 = vunpack.c.l.b16 %v1654
    %v3959 = vunpack.c.h.b16 %v1654
    %v3960 = vunpack.c.l.b16 %v1655
    %v3961 = vunpack.c.h.b16 %v1655
    %v3962 = vunpack.c.l.b16 %v1656
    %v3963 = vunpack.c.h.b16 %v1656
    %v3964 = vunpack.c.l.b16 %v1657
    %v3965 = vunpack.c.h.b16 %v1657
    %v3966 = vunpack.c.l.b16 %v1658
    %v3967 = vunpack.c.h.b16 %v1658
    %v3968 = vunpack.c.l.b16 %v1659
    %v3969 = vunpack.c.h.b16 %v1659
    %v3970 = vunpack.c.l.b16 %v1660
    %v3971 = vunpack.c.h.b16 %v1660
    %v3972 = vunpack.c.l.b16 %v1661
    %v3973 = vunpack.c.h.b16 %v1661
    %v3974 = vunpack.c.l.b16 %v1662
    %v3975 = vunpack.c.h.b16 %v1662
    %v3976 = vunpack.c.l.b16 %v1663
    %v3977 = vunpack.c.h.b16 %v1663
    %v3978 = vunpack.c.l.b16 %v1664
    %v3979 = vunpack.c.h.b16 %v1664
    %v3980 = vunpack.c.l.b16 %v1665
    %v3981 = vunpack.c.h.b16 %v1665
    %v3982 = vunpack.c.l.b16 %v1666
    %v3983 = vunpack.c.h.b16 %v1666
    %v3984 = vunpack.c.l.b16 %v1667
    %v3985 = vunpack.c.h.b16 %v1667
    %v3986 = vunpack.c.l.b16 %v1668
    %v3987 = vunpack.c.h.b16 %v1668
    %v3988 = vunpack.c.l.b16 %v1669
    %v3989 = vunpack.c.h.b16 %v1669
    %v3990 = vunpack.c.l.b16 %v1670
    %v3991 = vunpack.c.h.b16 %v1670
    %v3992 = vunpack.c.l.b16 %v1671
    %v3993 = vunpack.c.h.b16 %v1671
    %v3994 = vunpack.c.l.b16 %v1672
    %v3995 = vunpack.c.h.b16 %v1672
    %v3996 = vunpack.c.l.b16 %v1673
    %v3997 = vunpack.c.h.b16 %v1673
    %v3998 = vunpack.c.l.b16 %v1674
    %v3999 = vunpack.c.h.b16 %v1674
    %v4000 = vunpack.c.l.b16 %v1675
    %v4001 = vunpack.c.h.b16 %v1675
    %v4002 = vunpack.c.l.b16 %v1676
    %v4003 = vunpack.c.h.b16 %v1676
    %v4004 = vunpack.c.l.b16 %v1677
    %v4005 = vunpack.c.h.b16 %v1677
    %v4006 = vunpack.c.l.b16 %v1678
    %v4007 = vunpack.c.h.b16 %v1678
    %v4008 = vunpack.c.l.b16 %v1679
    %v4009 = vunpack.c.h.b16 %v1679
    %v4010 = vunpack.c.l.b16 %v1680
    %v4011 = vunpack.c.h.b16 %v1680
    %v4012 = vunpack.c.l.b16 %v1681
    %v4013 = vunpack.c.h.b16 %v1681
    %v4014 = vunpack.c.l.b16 %v1682
    %v4015 = vunpack.c.h.b16 %v1682
    %v4016 = vunpack.c.l.b16 %v1683
    %v4017 = vunpack.c.h.b16 %v1683
    %v4018 = vunpack.c.l.b16 %v1684
    %v4019 = vunpack.c.h.b16 %v1684
    %v4020 = vunpack.c.l.b16 %v1685
    %v4021 = vunpack.c.h.b16 %v1685
    %v4022 = vunpack.c.l.b16 %v1686
    %v4023 = vunpack.c.h.b16 %v1686
    %v4024 = vunpack.c.l.b16 %v1687
    %v4025 = vunpack.c.h.b16 %v1687
    %v4026 = vunpack.c.l.b16 %v1688
    %v4027 = vunpack.c.h.b16 %v1688
    %v4028 = vunpack.c.l.b16 %v1689
    %v4029 = vunpack.c.h.b16 %v1689
    %v4030 = vunpack.c.l.b16 %v1690
    %v4031 = vunpack.c.h.b16 %v1690
    %v4032 = vunpack.c.l.b16 %v1691
    %v4033 = vunpack.c.h.b16 %v1691
    %v4034 = vunpack.c.l.b16 %v1692
    %v4035 = vunpack.c.h.b16 %v1692
    %v4036 = vunpack.c.l.b16 %v1693
    %v4037 = vunpack.c.h.b16 %v1693
    %v4038 = vunpack.c.l.b16 %v1694
    %v4039 = vunpack.c.h.b16 %v1694
    %v4040 = vunpack.c.l.b16 %v1695
    %v4041 = vunpack.c.h.b16 %v1695
    %v4042 = vunpack.c.l.b16 %v1696
    %v4043 = vunpack.c.h.b16 %v1696
    %v4044 = vunpack.c.l.b16 %v1697
    %v4045 = vunpack.c.h.b16 %v1697
    %v4046 = vunpack.c.l.b16 %v1698
    %v4047 = vunpack.c.h.b16 %v1698
    %v4048 = vunpack.c.l.b16 %v1699
    %v4049 = vunpack.c.h.b16 %v1699
    %v4050 = vunpack.c.l.b16 %v1700
    %v4051 = vunpack.c.h.b16 %v1700
    %v4052 = vunpack.c.l.b16 %v1701
    %v4053 = vunpack.c.h.b16 %v1701
    %v4054 = vunpack.c.l.b16 %v1702
    %v4055 = vunpack.c.h.b16 %v1702
    %v4056 = vunpack.c.l.b16 %v1703
    %v4057 = vunpack.c.h.b16 %v1703
    %v4058 = vunpack.c.l.b16 %v1704
    %v4059 = vunpack.c.h.b16 %v1704
    %v4060 = vunpack.c.l.b16 %v1705
    %v4061 = vunpack.c.h.b16 %v1705
    %v4062 = vunpack.c.l.b16 %v1706
    %v4063 = vunpack.c.h.b16 %v1706
    %v4064 = vunpack.c.l.b16 %v1707
    %v4065 = vunpack.c.h.b16 %v1707
    %v4066 = vunpack.c.l.b16 %v1708
    %v4067 = vunpack.c.h.b16 %v1708
    %v4068 = vunpack.c.l.b16 %v1709
    %v4069 = vunpack.c.h.b16 %v1709
    %v4070 = vunpack.c.l.b16 %v1710
    %v4071 = vunpack.c.h.b16 %v1710
    %v4072 = vunpack.c.l.b16 %v1711
    %v4073 = vunpack.c.h.b16 %v1711
    %v4074 = vunpack.c.l.b16 %v1712
    %v4075 = vunpack.c.h.b16 %v1712
    %v4076 = vunpack.c.l.b16 %v1713
    %v4077 = vunpack.c.h.b16 %v1713
    %v4078 = vunpack.c.l.b16 %v1714
    %v4079 = vunpack.c.h.b16 %v1714
    %v4080 = vunpack.c.l.b16 %v1715
    %v4081 = vunpack.c.h.b16 %v1715
    %v4082 = vunpack.c.l.b16 %v1716
    %v4083 = vunpack.c.h.b16 %v1716
    %v4084 = vunpack.c.l.b16 %v1717
    %v4085 = vunpack.c.h.b16 %v1717
    %v4086 = vunpack.c.l.b16 %v1718
    %v4087 = vunpack.c.h.b16 %v1718
    %v4088 = vunpack.c.l.b16 %v1719
    %v4089 = vunpack.c.h.b16 %v1719
    %v4090 = vunpack.c.l.b16 %v1720
    %v4091 = vunpack.c.h.b16 %v1720
    %v4092 = vunpack.c.l.b16 %v1721
    %v4093 = vunpack.c.h.b16 %v1721
    %v4094 = vunpack.c.l.b16 %v1722
    %v4095 = vunpack.c.h.b16 %v1722
    %v4096 = vunpack.c.l.b16 %v1723
    %v4097 = vunpack.c.h.b16 %v1723
    %v4098 = vunpack.c.l.b16 %v1724
    %v4099 = vunpack.c.h.b16 %v1724
    %v4100 = vunpack.c.l.b16 %v1725
    %v4101 = vunpack.c.h.b16 %v1725
    %v4102 = vunpack.c.l.b16 %v1726
    %v4103 = vunpack.c.h.b16 %v1726
    %v4104 = vunpack.c.l.b16 %v1727
    %v4105 = vunpack.c.h.b16 %v1727
    %v4106 = vunpack.c.l.b16 %v1728
    %v4107 = vunpack.c.h.b16 %v1728
    %v4108 = vunpack.c.l.b16 %v1729
    %v4109 = vunpack.c.h.b16 %v1729
    %v4110 = vunpack.c.l.b16 %v1730
    %v4111 = vunpack.c.h.b16 %v1730
    %v4112 = vunpack.c.l.b16 %v1731
    %v4113 = vunpack.c.h.b16 %v1731
    %v4114 = vunpack.c.l.b16 %v1732
    %v4115 = vunpack.c.h.b16 %v1732
    %v4116 = vunpack.c.l.b16 %v1733
    %v4117 = vunpack.c.h.b16 %v1733
    %v4118 = vunpack.c.l.b16 %v1734
    %v4119 = vunpack.c.h.b16 %v1734
    %v4120 = vunpack.c.l.b16 %v1735
    %v4121 = vunpack.c.h.b16 %v1735
    %v4122 = vunpack.c.l.b16 %v1736
    %v4123 = vunpack.c.h.b16 %v1736
    %v4124 = vunpack.c.l.b16 %v1737
    %v4125 = vunpack.c.h.b16 %v1737
    %v4126 = vunpack.c.l.b16 %v1738
    %v4127 = vunpack.c.h.b16 %v1738
    %v4128 = vunpack.c.l.b16 %v1739
    %v4129 = vunpack.c.h.b16 %v1739
    %v4130 = vunpack.c.l.b16 %v1740
    %v4131 = vunpack.c.h.b16 %v1740
    %v4132 = vunpack.c.l.b16 %v1741
    %v4133 = vunpack.c.h.b16 %v1741
    %v4134 = vunpack.c.l.b16 %v1742
    %v4135 = vunpack.c.h.b16 %v1742
    %v4136 = vunpack.c.l.b16 %v1743
    %v4137 = vunpack.c.h.b16 %v1743
    %v4138 = vunpack.c.l.b16 %v1744
    %v4139 = vunpack.c.h.b16 %v1744
    %v4140 = vunpack.c.l.b16 %v1745
    %v4141 = vunpack.c.h.b16 %v1745
    %v4142 = vunpack.c.l.b16 %v1746
    %v4143 = vunpack.c.h.b16 %v1746
    %v4144 = vunpack.c.l.b16 %v1747
    %v4145 = vunpack.c.h.b16 %v1747
    %v4146 = vunpack.c.l.b16 %v1748
    %v4147 = vunpack.c.h.b16 %v1748
    %v4148 = vunpack.c.l.b16 %v1749
    %v4149 = vunpack.c.h.b16 %v1749
    %v4150 = vunpack.c.l.b16 %v1750
    %v4151 = vunpack.c.h.b16 %v1750
    %v4152 = vunpack.c.l.b16 %v1751
    %v4153 = vunpack.c.h.b16 %v1751
    %v4154 = vunpack.c.l.b16 %v1752
    %v4155 = vunpack.c.h.b16 %v1752
    %v4156 = vunpack.c.l.b16 %v1753
    %v4157 = vunpack.c.h.b16 %v1753
    %v4158 = vunpack.c.l.b16 %v1754
    %v4159 = vunpack.c.h.b16 %v1754
    %v4160 = vunpack.c.l.b16 %v1755
    %v4161 = vunpack.c.h.b16 %v1755
    %v4162 = vunpack.c.l.b16 %v1756
    %v4163 = vunpack.c.h.b16 %v1756
    %v4164 = vunpack.c.l.b16 %v1757
    %v4165 = vunpack.c.h.b16 %v1757
    %v4166 = vunpack.c.l.b16 %v1758
    %v4167 = vunpack.c.h.b16 %v1758
    %v4168 = vunpack.c.l.b16 %v1759
    %v4169 = vunpack.c.h.b16 %v1759
    %v4170 = vunpack.c.l.b16 %v1760
    %v4171 = vunpack.c.h.b16 %v1760
    %v4172 = vunpack.c.l.b16 %v1761
    %v4173 = vunpack.c.h.b16 %v1761
    %v4174 = vunpack.c.l.b16 %v1762
    %v4175 = vunpack.c.h.b16 %v1762
    %v4176 = vunpack.c.l.b16 %v1763
    %v4177 = vunpack.c.h.b16 %v1763
    %v4178 = vunpack.c.l.b16 %v1764
    %v4179 = vunpack.c.h.b16 %v1764
    %v4180 = vunpack.c.l.b16 %v1765
    %v4181 = vunpack.c.h.b16 %v1765
    %v4182 = vunpack.c.l.b16 %v1766
    %v4183 = vunpack.c.h.b16 %v1766
    %v4184 = vunpack.c.l.b16 %v1767
    %v4185 = vunpack.c.h.b16 %v1767
    %v4186 = vunpack.c.l.b16 %v1768
    %v4187 = vunpack.c.h.b16 %v1768
    %v4188 = vunpack.c.l.b16 %v1769
    %v4189 = vunpack.c.h.b16 %v1769
    %v4190 = vunpack.c.l.b16 %v1770
    %v4191 = vunpack.c.h.b16 %v1770
    %v4192 = vunpack.c.l.b16 %v1771
    %v4193 = vunpack.c.h.b16 %v1771
    %v4194 = vunpack.c.l.b16 %v1772
    %v4195 = vunpack.c.h.b16 %v1772
    %v4196 = vunpack.c.l.b16 %v1773
    %v4197 = vunpack.c.h.b16 %v1773
    %v4198 = vunpack.c.l.b16 %v1774
    %v4199 = vunpack.c.h.b16 %v1774
    %v4200 = vunpack.c.l.b16 %v1775
    %v4201 = vunpack.c.h.b16 %v1775
    %v4202 = vunpack.c.l.b16 %v1776
    %v4203 = vunpack.c.h.b16 %v1776
    %v4204 = vunpack.c.l.b16 %v1777
    %v4205 = vunpack.c.h.b16 %v1777
    %v4206 = vunpack.c.l.b16 %v1778
    %v4207 = vunpack.c.h.b16 %v1778
    %v4208 = vunpack.c.l.b16 %v1779
    %v4209 = vunpack.c.h.b16 %v1779
    %v4210 = vunpack.c.l.b16 %v1780
    %v4211 = vunpack.c.h.b16 %v1780
    %v4212 = vunpack.c.l.b16 %v1781
    %v4213 = vunpack.c.h.b16 %v1781
    %v4214 = vunpack.c.l.b16 %v1782
    %v4215 = vunpack.c.h.b16 %v1782
    %v4216 = vunpack.c.l.b16 %v1783
    %v4217 = vunpack.c.h.b16 %v1783
    %v4218 = vunpack.c.l.b16 %v1784
    %v4219 = vunpack.c.h.b16 %v1784
    %v4220 = vunpack.c.l.b16 %v1785
    %v4221 = vunpack.c.h.b16 %v1785
    %v4222 = vunpack.c.l.b16 %v1786
    %v4223 = vunpack.c.h.b16 %v1786
    %v4224 = vunpack.c.l.b16 %v1787
    %v4225 = vunpack.c.h.b16 %v1787
    %v4226 = vunpack.c.l.b16 %v1788
    %v4227 = vunpack.c.h.b16 %v1788
    %v4228 = vunpack.c.l.b16 %v1789
    %v4229 = vunpack.c.h.b16 %v1789
    %v4230 = vunpack.c.l.b16 %v1790
    %v4231 = vunpack.c.h.b16 %v1790
    %v4232 = vunpack.c.l.b16 %v1791
    %v4233 = vunpack.c.h.b16 %v1791
    %v4234 = vunpack.c.l.b16 %v1792
    %v4235 = vunpack.c.h.b16 %v1792
    %v4236 = vunpack.c.l.b16 %v1793
    %v4237 = vunpack.c.h.b16 %v1793
    %v4238 = vunpack.c.l.b16 %v1794
    %v4239 = vunpack.c.h.b16 %v1794
    %v4240 = vunpack.c.l.b16 %v1795
    %v4241 = vunpack.c.h.b16 %v1795
    %v4242 = vunpack.c.l.b16 %v1796
    %v4243 = vunpack.c.h.b16 %v1796
    %v4244 = vunpack.c.l.b16 %v1797
    %v4245 = vunpack.c.h.b16 %v1797
    %v4246 = vunpack.c.l.b16 %v1798
    %v4247 = vunpack.c.h.b16 %v1798
    %v4248 = vunpack.c.l.b16 %v1799
    %v4249 = vunpack.c.h.b16 %v1799
    %v4250 = vunpack.c.l.b16 %v1800
    %v4251 = vunpack.c.h.b16 %v1800
    %v4252 = vunpack.c.l.b16 %v1801
    %v4253 = vunpack.c.h.b16 %v1801
    %v4254 = vunpack.c.l.b16 %v1802
    %v4255 = vunpack.c.h.b16 %v1802
    %v4256 = vunpack.c.l.b16 %v1803
    %v4257 = vunpack.c.h.b16 %v1803
    %v4258 = vunpack.c.l.b16 %v1804
    %v4259 = vunpack.c.h.b16 %v1804
    %v4260 = vunpack.c.l.b16 %v1805
    %v4261 = vunpack.c.h.b16 %v1805
    %v4262 = vunpack.c.l.b16 %v1806
    %v4263 = vunpack.c.h.b16 %v1806
    %v4264 = vunpack.c.l.b16 %v1807
    %v4265 = vunpack.c.h.b16 %v1807
    %v4266 = vunpack.c.l.b16 %v1808
    %v4267 = vunpack.c.h.b16 %v1808
    %v4268 = vunpack.c.l.b16 %v1809
    %v4269 = vunpack.c.h.b16 %v1809
    %v4270 = vunpack.c.l.b16 %v1810
    %v4271 = vunpack.c.h.b16 %v1810
    %v4272 = vunpack.c.l.b16 %v1811
    %v4273 = vunpack.c.h.b16 %v1811
    %v4274 = vunpack.c.l.b16 %v1812
    %v4275 = vunpack.c.h.b16 %v1812
    %v4276 = vunpack.c.l.b16 %v1813
    %v4277 = vunpack.c.h.b16 %v1813
    %v4278 = vunpack.c.l.b16 %v1814
    %v4279 = vunpack.c.h.b16 %v1814
    %v4280 = vunpack.c.l.b16 %v1815
    %v4281 = vunpack.c.h.b16 %v1815
    %v4282 = vunpack.c.l.b16 %v1816
    %v4283 = vunpack.c.h.b16 %v1816
    %v4284 = vunpack.c.l.b16 %v1817
    %v4285 = vunpack.c.h.b16 %v1817
    %v4286 = vunpack.c.l.b16 %v1818
    %v4287 = vunpack.c.h.b16 %v1818
    %v4288 = vunpack.c.l.b16 %v1819
    %v4289 = vunpack.c.h.b16 %v1819
    %v4290 = vunpack.c.l.b16 %v1820
    %v4291 = vunpack.c.h.b16 %v1820
    %v4292 = vunpack.c.l.b16 %v1821
    %v4293 = vunpack.c.h.b16 %v1821
    %v4294 = vunpack.c.l.b16 %v1822
    %v4295 = vunpack.c.h.b16 %v1822
    %v4296 = vunpack.c.l.b16 %v1823
    %v4297 = vunpack.c.h.b16 %v1823
    %v4298 = vunpack.c.l.b16 %v1824
    %v4299 = vunpack.c.h.b16 %v1824
    %v4300 = vunpack.c.l.b16 %v1825
    %v4301 = vunpack.c.h.b16 %v1825
    %v4302 = vunpack.c.l.b16 %v1826
    %v4303 = vunpack.c.h.b16 %v1826
    %v4304 = vunpack.c.l.b16 %v1827
    %v4305 = vunpack.c.h.b16 %v1827
    %v4306 = vunpack.c.l.b16 %v1828
    %v4307 = vunpack.c.h.b16 %v1828
    %v4308 = vunpack.c.l.b16 %v1829
    %v4309 = vunpack.c.h.b16 %v1829
    %v4310 = vunpack.c.l.b16 %v1830
    %v4311 = vunpack.c.h.b16 %v1830
    %v4312 = vunpack.c.l.b16 %v1831
    %v4313 = vunpack.c.h.b16 %v1831
    %v4314 = vunpack.c.l.b16 %v1832
    %v4315 = vunpack.c.h.b16 %v1832
    %v4316 = vunpack.c.l.b16 %v1833
    %v4317 = vunpack.c.h.b16 %v1833
    %v4318 = vunpack.c.l.b16 %v1834
    %v4319 = vunpack.c.h.b16 %v1834
    %v4320 = vunpack.c.l.b16 %v1835
    %v4321 = vunpack.c.h.b16 %v1835
    %v4322 = vunpack.c.l.b16 %v1836
    %v4323 = vunpack.c.h.b16 %v1836
    %v4324 = vunpack.c.l.b16 %v1837
    %v4325 = vunpack.c.h.b16 %v1837
    %v4326 = vunpack.c.l.b16 %v1838
    %v4327 = vunpack.c.h.b16 %v1838
    %v4328 = vunpack.c.l.b16 %v1839
    %v4329 = vunpack.c.h.b16 %v1839
    %v4330 = vunpack.c.l.b16 %v1840
    %v4331 = vunpack.c.h.b16 %v1840
    %v4332 = vunpack.c.l.b16 %v1841
    %v4333 = vunpack.c.h.b16 %v1841
    %v4334 = vunpack.c.l.b16 %v1842
    %v4335 = vunpack.c.h.b16 %v1842
    %v4336 = vunpack.c.l.b16 %v1843
    %v4337 = vunpack.c.h.b16 %v1843
    %v4338 = vunpack.c.l.b16 %v1844
    %v4339 = vunpack.c.h.b16 %v1844
    %v4340 = vunpack.c.l.b16 %v1845
    %v4341 = vunpack.c.h.b16 %v1845
    %v4342 = vunpack.c.l.b16 %v1846
    %v4343 = vunpack.c.h.b16 %v1846
    %v4344 = vunpack.c.l.b16 %v1847
    %v4345 = vunpack.c.h.b16 %v1847
    %v4346 = vunpack.c.l.b16 %v1848
    %v4347 = vunpack.c.h.b16 %v1848
    %v4348 = vunpack.c.l.b16 %v1849
    %v4349 = vunpack.c.h.b16 %v1849
    %v4350 = vunpack.c.l.b16 %v1850
    %v4351 = vunpack.c.h.b16 %v1850
    %v4352 = vunpack.c.l.b16 %v1851
    %v4353 = vunpack.c.h.b16 %v1851
    %v4354 = vunpack.c.l.b16 %v1852
    %v4355 = vunpack.c.h.b16 %v1852
    %v4356 = vunpack.c.l.b16 %v1853
    %v4357 = vunpack.c.h.b16 %v1853
    %v4358 = vunpack.c.l.b16 %v1854
    %v4359 = vunpack.c.h.b16 %v1854
    %v4360 = vunpack.c.l.b16 %v1855
    %v4361 = vunpack.c.h.b16 %v1855
    %v4362 = vunpack.c.l.b16 %v1856
    %v4363 = vunpack.c.h.b16 %v1856
    %v4364 = vunpack.c.l.b16 %v1857
    %v4365 = vunpack.c.h.b16 %v1857
    %v4366 = vunpack.c.l.b16 %v1858
    %v4367 = vunpack.c.h.b16 %v1858
    %v4368 = vunpack.c.l.b16 %v1859
    %v4369 = vunpack.c.h.b16 %v1859
    %v4370 = vunpack.c.l.b16 %v1860
    %v4371 = vunpack.c.h.b16 %v1860
    %v4372 = vunpack.c.l.b16 %v1861
    %v4373 = vunpack.c.h.b16 %v1861
    %v4374 = vunpack.c.l.b16 %v1862
    %v4375 = vunpack.c.h.b16 %v1862
    %v4376 = vunpack.c.l.b16 %v1863
    %v4377 = vunpack.c.h.b16 %v1863
    %v4378 = vunpack.c.l.b16 %v1864
    %v4379 = vunpack.c.h.b16 %v1864
    %v4380 = vunpack.c.l.b16 %v1865
    %v4381 = vunpack.c.h.b16 %v1865
    %v4382 = vunpack.c.l.b16 %v1866
    %v4383 = vunpack.c.h.b16 %v1866
    %v4384 = vunpack.c.l.b16 %v1867
    %v4385 = vunpack.c.h.b16 %v1867
    %v4386 = vunpack.c.l.b16 %v1868
    %v4387 = vunpack.c.h.b16 %v1868
    %v4388 = vunpack.c.l.b16 %v1869
    %v4389 = vunpack.c.h.b16 %v1869
    %v4390 = vunpack.c.l.b16 %v1870
    %v4391 = vunpack.c.h.b16 %v1870
    %v4392 = vunpack.c.l.b16 %v1871
    %v4393 = vunpack.c.h.b16 %v1871
    %v4394 = vunpack.c.l.b16 %v1872
    %v4395 = vunpack.c.h.b16 %v1872
    %v4396 = vunpack.c.l.b16 %v1873
    %v4397 = vunpack.c.h.b16 %v1873
    %v4398 = vunpack.c.l.b16 %v1874
    %v4399 = vunpack.c.h.b16 %v1874
    %v4400 = vunpack.c.l.b16 %v1875
    %v4401 = vunpack.c.h.b16 %v1875
    %v4402 = vunpack.c.l.b16 %v1876
    %v4403 = vunpack.c.h.b16 %v1876
    %v4404 = vunpack.c.l.b16 %v1877
    %v4405 = vunpack.c.h.b16 %v1877
    %v4406 = vunpack.c.l.b16 %v1878
    %v4407 = vunpack.c.h.b16 %v1878
    %v4408 = vunpack.c.l.b16 %v1879
    %v4409 = vunpack.c.h.b16 %v1879
    %v4410 = vunpack.c.l.b16 %v1880
    %v4411 = vunpack.c.h.b16 %v1880
    %v4412 = vunpack.c.l.b16 %v1881
    %v4413 = vunpack.c.h.b16 %v1881
    %v4414 = vunpack.c.l.b16 %v1882
    %v4415 = vunpack.c.h.b16 %v1882
    %v4416 = vunpack.c.l.b16 %v1883
    %v4417 = vunpack.c.h.b16 %v1883
    %v4418 = vunpack.c.l.b16 %v1884
    %v4419 = vunpack.c.h.b16 %v1884
    %v4420 = vunpack.c.l.b16 %v1885
    %v4421 = vunpack.c.h.b16 %v1885
    %v4422 = vunpack.c.l.b16 %v1886
    %v4423 = vunpack.c.h.b16 %v1886
    %v4424 = vunpack.c.l.b16 %v1887
    %v4425 = vunpack.c.h.b16 %v1887
    %v4426 = vunpack.c.l.b16 %v1888
    %v4427 = vunpack.c.h.b16 %v1888
    %v4428 = vunpack.c.l.b16 %v1889
    %v4429 = vunpack.c.h.b16 %v1889
    %v4430 = vunpack.c.l.b16 %v1890
    %v4431 = vunpack.c.h.b16 %v1890
    %v4432 = vunpack.c.l.b16 %v1891
    %v4433 = vunpack.c.h.b16 %v1891
    %v4434 = vunpack.c.l.b16 %v1892
    %v4435 = vunpack.c.h.b16 %v1892
    %v4436 = vunpack.c.l.b16 %v1893
    %v4437 = vunpack.c.h.b16 %v1893
    %v4438 = vunpack.c.l.b16 %v1894
    %v4439 = vunpack.c.h.b16 %v1894
    %v4440 = vunpack.c.l.b16 %v1895
    %v4441 = vunpack.c.h.b16 %v1895
    %v4442 = vunpack.c.l.b16 %v1896
    %v4443 = vunpack.c.h.b16 %v1896
    %v4444 = vunpack.c.l.b16 %v1897
    %v4445 = vunpack.c.h.b16 %v1897
    %v4446 = vunpack.c.l.b16 %v1898
    %v4447 = vunpack.c.h.b16 %v1898
    %v4448 = vunpack.c.l.b16 %v1899
    %v4449 = vunpack.c.h.b16 %v1899
    %v4450 = vunpack.c.l.b16 %v1900
    %v4451 = vunpack.c.h.b16 %v1900
    %v4452 = vunpack.c.l.b16 %v1901
    %v4453 = vunpack.c.h.b16 %v1901
    %v4454 = vunpack.c.l.b16 %v1902
    %v4455 = vunpack.c.h.b16 %v1902
    %v4456 = vunpack.c.l.b16 %v1903
    %v4457 = vunpack.c.h.b16 %v1903
    %v4458 = vunpack.c.l.b16 %v1904
    %v4459 = vunpack.c.h.b16 %v1904
    %v4460 = vunpack.c.l.b16 %v1905
    %v4461 = vunpack.c.h.b16 %v1905
    %v4462 = vunpack.c.l.b16 %v1906
    %v4463 = vunpack.c.h.b16 %v1906
    %v4464 = vunpack.c.l.b16 %v1907
    %v4465 = vunpack.c.h.b16 %v1907
    %v4466 = vunpack.c.l.b16 %v1908
    %v4467 = vunpack.c.h.b16 %v1908
    %v4468 = vunpack.c.l.b16 %v1909
    %v4469 = vunpack.c.h.b16 %v1909
    %v4470 = vunpack.c.l.b16 %v1910
    %v4471 = vunpack.c.h.b16 %v1910
    %v4472 = vunpack.c.l.b16 %v1911
    %v4473 = vunpack.c.h.b16 %v1911
    %v4474 = vunpack.c.l.b16 %v1912
    %v4475 = vunpack.c.h.b16 %v1912
    %v4476 = vunpack.c.l.b16 %v1913
    %v4477 = vunpack.c.h.b16 %v1913
    %v4478 = vunpack.c.l.b16 %v1914
    %v4479 = vunpack.c.h.b16 %v1914
    %v4480 = vunpack.c.l.b16 %v1915
    %v4481 = vunpack.c.h.b16 %v1915
    %v4482 = vunpack.c.l.b16 %v1916
    %v4483 = vunpack.c.h.b16 %v1916
    %v4484 = vunpack.c.l.b16 %v1917
    %v4485 = vunpack.c.h.b16 %v1917
    %v4486 = vunpack.c.l.b16 %v1918
    %v4487 = vunpack.c.h.b16 %v1918
    %v4488 = vunpack.c.l.b16 %v1919
    %v4489 = vunpack.c.h.b16 %v1919
    %v4490 = vunpack.c.l.b16 %v1920
    %v4491 = vunpack.c.h.b16 %v1920
    %v4492 = vunpack.c.l.b16 %v1921
    %v4493 = vunpack.c.h.b16 %v1921
    %v4494 = vunpack.c.l.b16 %v1922
    %v4495 = vunpack.c.h.b16 %v1922
    %v4496 = vunpack.c.l.b16 %v1923
    %v4497 = vunpack.c.h.b16 %v1923
    %v4498 = vunpack.c.l.b16 %v1924
    %v4499 = vunpack.c.h.b16 %v1924
    %v4500 = vunpack.c.l.b16 %v1925
    %v4501 = vunpack.c.h.b16 %v1925
    %v4502 = vunpack.c.l.b16 %v1926
    %v4503 = vunpack.c.h.b16 %v1926
    %v4504 = vunpack.c.l.b16 %v1927
    %v4505 = vunpack.c.h.b16 %v1927
    %v4506 = vunpack.c.l.b16 %v1928
    %v4507 = vunpack.c.h.b16 %v1928
    %v4508 = vunpack.c.l.b16 %v1929
    %v4509 = vunpack.c.h.b16 %v1929
    %v4510 = vunpack.c.l.b16 %v1930
    %v4511 = vunpack.c.h.b16 %v1930
    %v4512 = vunpack.c.l.b16 %v1931
    %v4513 = vunpack.c.h.b16 %v1931
    %v4514 = vunpack.c.l.b16 %v1932
    %v4515 = vunpack.c.h.b16 %v1932
    %v4516 = vunpack.c.l.b16 %v1933
    %v4517 = vunpack.c.h.b16 %v1933
    %v4518 = vunpack.c.l.b16 %v1934
    %v4519 = vunpack.c.h.b16 %v1934
    %v4520 = vunpack.c.l.b16 %v1935
    %v4521 = vunpack.c.h.b16 %v1935
    %v4522 = vunpack.c.l.b16 %v1936
    %v4523 = vunpack.c.h.b16 %v1936
    %v4524 = vunpack.c.l.b16 %v1937
    %v4525 = vunpack.c.h.b16 %v1937
    %v4526 = vunpack.c.l.b16 %v1938
    %v4527 = vunpack.c.h.b16 %v1938
    %v4528 = vunpack.c.l.b16 %v1939
    %v4529 = vunpack.c.h.b16 %v1939
    %v4530 = vunpack.c.l.b16 %v1940
    %v4531 = vunpack.c.h.b16 %v1940
    %v4532 = vunpack.c.l.b16 %v1941
    %v4533 = vunpack.c.h.b16 %v1941
    %v4534 = vunpack.c.l.b16 %v1942
    %v4535 = vunpack.c.h.b16 %v1942
    %v4536 = vunpack.c.l.b16 %v1943
    %v4537 = vunpack.c.h.b16 %v1943
    %v4538 = vunpack.c.l.b16 %v1944
    %v4539 = vunpack.c.h.b16 %v1944
    %v4540 = vunpack.c.l.b16 %v1945
    %v4541 = vunpack.c.h.b16 %v1945
    %v4542 = vunpack.c.l.b16 %v1946
    %v4543 = vunpack.c.h.b16 %v1946
    %v4544 = vunpack.c.l.b16 %v1947
    %v4545 = vunpack.c.h.b16 %v1947
    %v4546 = vunpack.c.l.b16 %v1948
    %v4547 = vunpack.c.h.b16 %v1948
    %v4548 = vunpack.c.l.b16 %v1949
    %v4549 = vunpack.c.h.b16 %v1949
    %v4550 = vunpack.c.l.b16 %v1950
    %v4551 = vunpack.c.h.b16 %v1950
    %v4552 = vunpack.c.l.b16 %v1951
    %v4553 = vunpack.c.h.b16 %v1951
    %v4554 = vunpack.c.l.b16 %v1952
    %v4555 = vunpack.c.h.b16 %v1952
    %v4556 = vunpack.c.l.b16 %v1953
    %v4557 = vunpack.c.h.b16 %v1953
    %v4558 = vunpack.c.l.b16 %v1954
    %v4559 = vunpack.c.h.b16 %v1954
    %v4560 = vunpack.c.l.b16 %v1955
    %v4561 = vunpack.c.h.b16 %v1955
    %v4562 = vunpack.c.l.b16 %v1956
    %v4563 = vunpack.c.h.b16 %v1956
    %v4564 = vunpack.c.l.b16 %v1957
    %v4565 = vunpack.c.h.b16 %v1957
    %v4566 = vunpack.c.l.b16 %v1958
    %v4567 = vunpack.c.h.b16 %v1958
    %v4568 = vunpack.c.l.b16 %v1959
    %v4569 = vunpack.c.h.b16 %v1959
    %v4570 = vunpack.c.l.b16 %v1960
    %v4571 = vunpack.c.h.b16 %v1960
    %v4572 = vunpack.c.l.b16 %v1961
    %v4573 = vunpack.c.h.b16 %v1961
    %v4574 = vunpack.c.l.b16 %v1962
    %v4575 = vunpack.c.h.b16 %v1962
    %v4576 = vunpack.c.l.b16 %v1963
    %v4577 = vunpack.c.h.b16 %v1963
    %v4578 = vunpack.c.l.b16 %v1964
    %v4579 = vunpack.c.h.b16 %v1964
    %v4580 = vunpack.c.l.b16 %v1965
    %v4581 = vunpack.c.h.b16 %v1965
    %v4582 = vunpack.c.l.b16 %v1966
    %v4583 = vunpack.c.h.b16 %v1966
    %v4584 = vunpack.c.l.b16 %v1967
    %v4585 = vunpack.c.h.b16 %v1967
    %v4586 = vunpack.c.l.b16 %v1968
    %v4587 = vunpack.c.h.b16 %v1968
    %v4588 = vunpack.c.l.b16 %v1969
    %v4589 = vunpack.c.h.b16 %v1969
    %v4590 = vunpack.c.l.b16 %v1970
    %v4591 = vunpack.c.h.b16 %v1970
    %v4592 = vunpack.c.l.b16 %v1971
    %v4593 = vunpack.c.h.b16 %v1971
    %v4594 = vunpack.c.l.b16 %v1972
    %v4595 = vunpack.c.h.b16 %v1972
    %v4596 = vunpack.c.l.b16 %v1973
    %v4597 = vunpack.c.h.b16 %v1973
    %v4598 = vunpack.c.l.b16 %v1974
    %v4599 = vunpack.c.h.b16 %v1974
    %v4600 = vunpack.c.l.b16 %v1975
    %v4601 = vunpack.c.h.b16 %v1975
    %v4602 = vunpack.c.l.b16 %v1976
    %v4603 = vunpack.c.h.b16 %v1976
    %v4604 = vunpack.c.l.b16 %v1977
    %v4605 = vunpack.c.h.b16 %v1977
    %v4606 = vunpack.c.l.b16 %v1978
    %v4607 = vunpack.c.h.b16 %v1978
    %v4608 = vunpack.c.l.b16 %v1979
    %v4609 = vunpack.c.h.b16 %v1979
    %v4610 = vunpack.c.l.b16 %v1980
    %v4611 = vunpack.c.h.b16 %v1980
    %v4612 = vunpack.c.l.b16 %v1981
    %v4613 = vunpack.c.h.b16 %v1981
    %v4614 = vunpack.c.l.b16 %v1982
    %v4615 = vunpack.c.h.b16 %v1982
    %v4616 = vunpack.c.l.b16 %v1983
    %v4617 = vunpack.c.h.b16 %v1983
    %v4618 = vunpack.c.l.b16 %v1984
    %v4619 = vunpack.c.h.b16 %v1984
    %v4620 = vunpack.c.l.b16 %v1985
    %v4621 = vunpack.c.h.b16 %v1985
    %v4622 = vunpack.c.l.b16 %v1986
    %v4623 = vunpack.c.h.b16 %v1986
    %v4624 = vunpack.c.l.b16 %v1987
    %v4625 = vunpack.c.h.b16 %v1987
    %v4626 = vunpack.c.l.b16 %v1988
    %v4627 = vunpack.c.h.b16 %v1988
    %v4628 = vunpack.c.l.b16 %v1989
    %v4629 = vunpack.c.h.b16 %v1989
    %v4630 = vunpack.c.l.b16 %v1990
    %v4631 = vunpack.c.h.b16 %v1990
    %v4632 = vunpack.c.l.b16 %v1991
    %v4633 = vunpack.c.h.b16 %v1991
    %v4634 = vunpack.c.l.b16 %v1992
    %v4635 = vunpack.c.h.b16 %v1992
    %v4636 = vunpack.c.l.b16 %v1993
    %v4637 = vunpack.c.h.b16 %v1993
    %v4638 = vunpack.c.l.b16 %v1994
    %v4639 = vunpack.c.h.b16 %v1994
    %v4640 = vunpack.c.l.b16 %v1995
    %v4641 = vunpack.c.h.b16 %v1995
    %v4642 = vunpack.c.l.b16 %v1996
    %v4643 = vunpack.c.h.b16 %v1996
    %v4644 = vunpack.c.l.b16 %v1997
    %v4645 = vunpack.c.h.b16 %v1997
    %v4646 = vunpack.c.l.b16 %v1998
    %v4647 = vunpack.c.h.b16 %v1998
    %v4648 = vunpack.c.l.b16 %v1999
    %v4649 = vunpack.c.h.b16 %v1999
    %v4650 = vunpack.c.l.b16 %v2000
    %v4651 = vunpack.c.h.b16 %v2000
    %v4652 = vunpack.c.l.b16 %v2001
    %v4653 = vunpack.c.h.b16 %v2001
    %v4654 = vunpack.c.l.b16 %v2002
    %v4655 = vunpack.c.h.b16 %v2002
    %v4656 = vunpack.c.l.b16 %v2003
    %v4657 = vunpack.c.h.b16 %v2003
    %v4658 = vunpack.c.l.b16 %v2004
    %v4659 = vunpack.c.h.b16 %v2004
    %v4660 = vunpack.c.l.b16 %v2005
    %v4661 = vunpack.c.h.b16 %v2005
    %v4662 = vunpack.c.l.b16 %v2006
    %v4663 = vunpack.c.h.b16 %v2006
    %v4664 = vunpack.c.l.b16 %v2007
    %v4665 = vunpack.c.h.b16 %v2007
    %v4666 = vunpack.c.l.b16 %v2008
    %v4667 = vunpack.c.h.b16 %v2008
    %v4668 = vunpack.c.l.b16 %v2009
    %v4669 = vunpack.c.h.b16 %v2009
    %v4670 = vunpack.c.l.b16 %v2010
    %v4671 = vunpack.c.h.b16 %v2010
    %v4672 = vunpack.c.l.b16 %v2011
    %v4673 = vunpack.c.h.b16 %v2011
    %v4674 = vunpack.c.l.b16 %v2012
    %v4675 = vunpack.c.h.b16 %v2012
    %v4676 = vunpack.c.l.b16 %v2013
    %v4677 = vunpack.c.h.b16 %v2013
    %v4678 = vunpack.c.l.b16 %v2014
    %v4679 = vunpack.c.h.b16 %v2014
    %v4680 = vunpack.c.l.b16 %v2015
    %v4681 = vunpack.c.h.b16 %v2015
    %v4682 = vunpack.c.l.b16 %v2016
    %v4683 = vunpack.c.h.b16 %v2016
    %v4684 = vunpack.c.l.b16 %v2017
    %v4685 = vunpack.c.h.b16 %v2017
    %v4686 = vunpack.c.l.b16 %v2018
    %v4687 = vunpack.c.h.b16 %v2018
    %v4688 = vunpack.c.l.b16 %v2019
    %v4689 = vunpack.c.h.b16 %v2019
    %v4690 = vunpack.c.l.b16 %v2020
    %v4691 = vunpack.c.h.b16 %v2020
    %v4692 = vunpack.c.l.b16 %v2021
    %v4693 = vunpack.c.h.b16 %v2021
    %v4694 = vunpack.c.l.b16 %v2022
    %v4695 = vunpack.c.h.b16 %v2022
    %v4696 = vunpack.c.l.b16 %v2023
    %v4697 = vunpack.c.h.b16 %v2023
    %v4698 = vunpack.c.l.b16 %v2024
    %v4699 = vunpack.c.h.b16 %v2024
    %v4700 = vunpack.c.l.b16 %v2025
    %v4701 = vunpack.c.h.b16 %v2025
    %v4702 = vunpack.c.l.b16 %v2026
    %v4703 = vunpack.c.h.b16 %v2026
    %v4704 = vunpack.c.l.b16 %v2027
    %v4705 = vunpack.c.h.b16 %v2027
    %v4706 = vunpack.c.l.b16 %v2028
    %v4707 = vunpack.c.h.b16 %v2028
    %v4708 = vunpack.c.l.b16 %v2029
    %v4709 = vunpack.c.h.b16 %v2029
    %v4710 = vunpack.c.l.b16 %v2030
    %v4711 = vunpack.c.h.b16 %v2030
    %v4712 = vunpack.c.l.b16 %v2031
    %v4713 = vunpack.c.h.b16 %v2031
    %v4714 = vunpack.c.l.b16 %v2032
    %v4715 = vunpack.c.h.b16 %v2032
    %v4716 = vunpack.c.l.b16 %v2033
    %v4717 = vunpack.c.h.b16 %v2033
    %v4718 = vunpack.c.l.b16 %v2034
    %v4719 = vunpack.c.h.b16 %v2034
    %v4720 = vunpack.c.l.b16 %v2035
    %v4721 = vunpack.c.h.b16 %v2035
    %v4722 = vunpack.c.l.b16 %v2036
    %v4723 = vunpack.c.h.b16 %v2036
    %v4724 = vunpack.c.l.b16 %v2037
    %v4725 = vunpack.c.h.b16 %v2037
    %v4726 = vunpack.c.l.b16 %v2038
    %v4727 = vunpack.c.h.b16 %v2038
    %v4728 = vunpack.c.l.b16 %v2039
    %v4729 = vunpack.c.h.b16 %v2039
    %v4730 = vunpack.c.l.b16 %v2040
    %v4731 = vunpack.c.h.b16 %v2040
    %v4732 = vunpack.c.l.b16 %v2041
    %v4733 = vunpack.c.h.b16 %v2041
    %v4734 = vunpack.c.l.b16 %v2042
    %v4735 = vunpack.c.h.b16 %v2042
    %v4736 = vunpack.c.l.b16 %v2043
    %v4737 = vunpack.c.h.b16 %v2043
    %v4738 = vunpack.c.l.b16 %v2044
    %v4739 = vunpack.c.h.b16 %v2044
    %v4740 = vunpack.c.l.b16 %v2045
    %v4741 = vunpack.c.h.b16 %v2045
    %v4742 = vunpack.c.l.b16 %v2046
    %v4743 = vunpack.c.h.b16 %v2046
    %v4744 = vunpack.c.l.b16 %v2047
    %v4745 = vunpack.c.h.b16 %v2047
    %v4746 = vunpack.c.l.b16 %v2048
    %v4747 = vunpack.c.h.b16 %v2048
    %v4748 = vunpack.c.l.b16 %v2049
    %v4749 = vunpack.c.h.b16 %v2049
    %v4750 = vunpack.c.l.b16 %v2050
    %v4751 = vunpack.c.h.b16 %v2050
    %v4752 = vunpack.c.l.b16 %v2051
    %v4753 = vunpack.c.h.b16 %v2051
    %v4754 = vunpack.c.l.b16 %v2052
    %v4755 = vunpack.c.h.b16 %v2052
    %v4756 = vunpack.c.l.b16 %v2053
    %v4757 = vunpack.c.h.b16 %v2053
    %v4758 = vunpack.c.l.b16 %v2054
    %v4759 = vunpack.c.h.b16 %v2054
    %v4760 = vunpack.c.l.b16 %v2055
    %v4761 = vunpack.c.h.b16 %v2055
    %v4762 = vunpack.c.l.b16 %v2056
    %v4763 = vunpack.c.h.b16 %v2056
    %v4764 = vunpack.c.l.b16 %v2057
    %v4765 = vunpack.c.h.b16 %v2057
    %v4766 = vunpack.c.l.b16 %v2058
    %v4767 = vunpack.c.h.b16 %v2058
    %v4768 = vunpack.c.l.b16 %v2059
    %v4769 = vunpack.c.h.b16 %v2059
    %v4770 = vunpack.c.l.b16 %v2060
    %v4771 = vunpack.c.h.b16 %v2060
    %v4772 = vunpack.c.l.b16 %v2061
    %v4773 = vunpack.c.h.b16 %v2061
    %v4774 = vunpack.c.l.b16 %v2062
    %v4775 = vunpack.c.h.b16 %v2062
    %v4776 = vunpack.c.l.b16 %v2063
    %v4777 = vunpack.c.h.b16 %v2063
    %v4778 = vunpack.c.l.b16 %v2064
    %v4779 = vunpack.c.h.b16 %v2064
    %v4780 = vunpack.c.l.b16 %v2065
    %v4781 = vunpack.c.h.b16 %v2065
    %v4782 = vunpack.c.l.b16 %v2066
    %v4783 = vunpack.c.h.b16 %v2066
    %v4784 = vunpack.c.l.b16 %v2067
    %v4785 = vunpack.c.h.b16 %v2067
    %v4786 = vunpack.c.l.b16 %v2068
    %v4787 = vunpack.c.h.b16 %v2068
    %v4788 = vunpack.c.l.b16 %v2069
    %v4789 = vunpack.c.h.b16 %v2069
    %v4790 = vunpack.c.l.b16 %v2070
    %v4791 = vunpack.c.h.b16 %v2070
    %v4792 = vunpack.c.l.b16 %v2071
    %v4793 = vunpack.c.h.b16 %v2071
    %v4794 = vunpack.c.l.b16 %v2072
    %v4795 = vunpack.c.h.b16 %v2072
    %v4796 = vunpack.c.l.b16 %v2073
    %v4797 = vunpack.c.h.b16 %v2073
    %v4798 = vunpack.c.l.b16 %v2074
    %v4799 = vunpack.c.h.b16 %v2074
    %v4800 = vunpack.c.l.b16 %v2075
    %v4801 = vunpack.c.h.b16 %v2075
    %v4802 = vunpack.c.l.b16 %v2076
    %v4803 = vunpack.c.h.b16 %v2076
    %v4804 = vunpack.c.l.b16 %v2077
    %v4805 = vunpack.c.h.b16 %v2077
    %v4806 = vunpack.c.l.b16 %v2078
    %v4807 = vunpack.c.h.b16 %v2078
    %v4808 = vunpack.c.l.b16 %v2079
    %v4809 = vunpack.c.h.b16 %v2079
    %v4810 = vunpack.c.l.b16 %v2080
    %v4811 = vunpack.c.h.b16 %v2080
    %v4812 = vunpack.c.l.b16 %v2081
    %v4813 = vunpack.c.h.b16 %v2081
    %v4814 = vunpack.c.l.b16 %v2082
    %v4815 = vunpack.c.h.b16 %v2082
    %v4816 = vunpack.c.l.b16 %v2083
    %v4817 = vunpack.c.h.b16 %v2083
    %v4818 = vunpack.c.l.b16 %v2084
    %v4819 = vunpack.c.h.b16 %v2084
    %v4820 = vunpack.c.l.b16 %v2085
    %v4821 = vunpack.c.h.b16 %v2085
    %v4822 = vunpack.c.l.b16 %v2086
    %v4823 = vunpack.c.h.b16 %v2086
    %v4824 = vunpack.c.l.b16 %v2087
    %v4825 = vunpack.c.h.b16 %v2087
    %v4826 = vunpack.c.l.b16 %v2088
    %v4827 = vunpack.c.h.b16 %v2088
    %v4828 = vunpack.c.l.b16 %v2089
    %v4829 = vunpack.c.h.b16 %v2089
    %v4830 = vunpack.c.l.b16 %v2090
    %v4831 = vunpack.c.h.b16 %v2090
    %v4832 = vunpack.c.l.b16 %v2091
    %v4833 = vunpack.c.h.b16 %v2091
    %v4834 = vunpack.c.l.b16 %v2092
    %v4835 = vunpack.c.h.b16 %v2092
    %v4836 = vunpack.c.l.b16 %v2093
    %v4837 = vunpack.c.h.b16 %v2093
    %v4838 = vunpack.c.l.b16 %v2094
    %v4839 = vunpack.c.h.b16 %v2094
    %v4840 = vunpack.c.l.b16 %v2095
    %v4841 = vunpack.c.h.b16 %v2095
    %v4842 = vunpack.c.l.b16 %v2096
    %v4843 = vunpack.c.h.b16 %v2096
    %v4844 = vunpack.c.l.b16 %v2097
    %v4845 = vunpack.c.h.b16 %v2097
    %v4846 = vunpack.c.l.b16 %v2098
    %v4847 = vunpack.c.h.b16 %v2098
    %v4848 = vunpack.c.l.b16 %v2099
    %v4849 = vunpack.c.h.b16 %v2099
    %v4850 = vunpack.c.l.b16 %v2100
    %v4851 = vunpack.c.h.b16 %v2100
    %v4852 = vunpack.c.l.b16 %v2101
    %v4853 = vunpack.c.h.b16 %v2101
    %v4854 = vunpack.c.l.b16 %v2102
    %v4855 = vunpack.c.h.b16 %v2102
    %v4856 = vunpack.c.l.b16 %v2103
    %v4857 = vunpack.c.h.b16 %v2103
    %v4858 = vunpack.c.l.b16 %v2104
    %v4859 = vunpack.c.h.b16 %v2104
    %v4860 = vunpack.c.l.b16 %v2105
    %v4861 = vunpack.c.h.b16 %v2105
    %v4862 = vunpack.c.l.b16 %v2106
    %v4863 = vunpack.c.h.b16 %v2106
    %v4864 = vunpack.c.l.b16 %v2107
    %v4865 = vunpack.c.h.b16 %v2107
    %v4866 = vunpack.c.l.b16 %v2108
    %v4867 = vunpack.c.h.b16 %v2108
    %v4868 = vunpack.c.l.b16 %v2109
    %v4869 = vunpack.c.h.b16 %v2109
    %v4870 = vunpack.c.l.b16 %v2110
    %v4871 = vunpack.c.h.b16 %v2110
    %v4872 = vunpack.c.l.b16 %v2111
    %v4873 = vunpack.c.h.b16 %v2111
    %v4874 = vunpack.c.l.b16 %v2112
    %v4875 = vunpack.c.h.b16 %v2112
    %v4876 = vunpack.c.l.b16 %v2113
    %v4877 = vunpack.c.h.b16 %v2113
    %v4878 = vunpack.c.l.b16 %v2114
    %v4879 = vunpack.c.h.b16 %v2114
    %v4880 = vunpack.c.l.b16 %v2115
    %v4881 = vunpack.c.h.b16 %v2115
    %v4882 = vunpack.c.l.b16 %v2116
    %v4883 = vunpack.c.h.b16 %v2116
    %v4884 = vunpack.c.l.b16 %v2117
    %v4885 = vunpack.c.h.b16 %v2117
    %v4886 = vunpack.c.l.b16 %v2118
    %v4887 = vunpack.c.h.b16 %v2118
    %v4888 = vunpack.c.l.b16 %v2119
    %v4889 = vunpack.c.h.b16 %v2119
    %v4890 = vunpack.c.l.b16 %v2120
    %v4891 = vunpack.c.h.b16 %v2120
    %v4892 = vunpack.c.l.b16 %v2121
    %v4893 = vunpack.c.h.b16 %v2121
    %v4894 = vunpack.c.l.b16 %v2122
    %v4895 = vunpack.c.h.b16 %v2122
    %v4896 = vunpack.c.l.b16 %v2123
    %v4897 = vunpack.c.h.b16 %v2123
    %v4898 = vunpack.c.l.b16 %v2124
    %v4899 = vunpack.c.h.b16 %v2124
    %v4900 = vunpack.c.l.b16 %v2125
    %v4901 = vunpack.c.h.b16 %v2125
    %v4902 = vunpack.c.l.b16 %v2126
    %v4903 = vunpack.c.h.b16 %v2126
    %v4904 = vunpack.c.l.b16 %v2127
    %v4905 = vunpack.c.h.b16 %v2127
    %v4906 = vunpack.c.l.b16 %v2128
    %v4907 = vunpack.c.h.b16 %v2128
    %v4908 = vunpack.c.l.b16 %v2129
    %v4909 = vunpack.c.h.b16 %v2129
    %v4910 = vunpack.c.l.b16 %v2130
    %v4911 = vunpack.c.h.b16 %v2130
    %v4912 = vunpack.c.l.b16 %v2131
    %v4913 = vunpack.c.h.b16 %v2131
    %v4914 = vunpack.c.l.b16 %v2132
    %v4915 = vunpack.c.h.b16 %v2132
    %v4916 = vunpack.c.l.b16 %v2133
    %v4917 = vunpack.c.h.b16 %v2133
    %v4918 = vunpack.c.l.b16 %v2134
    %v4919 = vunpack.c.h.b16 %v2134
    %v4920 = vunpack.c.l.b16 %v2135
    %v4921 = vunpack.c.h.b16 %v2135
    %v4922 = vunpack.c.l.b16 %v2136
    %v4923 = vunpack.c.h.b16 %v2136
    %v4924 = vunpack.c.l.b16 %v2137
    %v4925 = vunpack.c.h.b16 %v2137
    %v4926 = vunpack.c.l.b16 %v2138
    %v4927 = vunpack.c.h.b16 %v2138
    %v4928 = vunpack.c.l.b16 %v2139
    %v4929 = vunpack.c.h.b16 %v2139
    %v4930 = vunpack.c.l.b16 %v2140
    %v4931 = vunpack.c.h.b16 %v2140
    %v4932 = vunpack.c.l.b16 %v2141
    %v4933 = vunpack.c.h.b16 %v2141
    %v4934 = vunpack.c.l.b16 %v2142
    %v4935 = vunpack.c.h.b16 %v2142
    %v4936 = vunpack.c.l.b16 %v2143
    %v4937 = vunpack.c.h.b16 %v2143
    %v4938 = vunpack.c.l.b16 %v2144
    %v4939 = vunpack.c.h.b16 %v2144
    %v4940 = vunpack.c.l.b16 %v2145
    %v4941 = vunpack.c.h.b16 %v2145
    %v4942 = vunpack.c.l.b16 %v2146
    %v4943 = vunpack.c.h.b16 %v2146
    %v4944 = vunpack.c.l.b16 %v2147
    %v4945 = vunpack.c.h.b16 %v2147
    %v4946 = vunpack.c.l.b16 %v2148
    %v4947 = vunpack.c.h.b16 %v2148
    %v4948 = vunpack.c.l.b16 %v2149
    %v4949 = vunpack.c.h.b16 %v2149
    %v4950 = vunpack.c.l.b16 %v2150
    %v4951 = vunpack.c.h.b16 %v2150
    %v4952 = vunpack.c.l.b16 %v2151
    %v4953 = vunpack.c.h.b16 %v2151
    %v4954 = vunpack.c.l.b16 %v2152
    %v4955 = vunpack.c.h.b16 %v2152
    %v4956 = vunpack.c.l.b16 %v2153
    %v4957 = vunpack.c.h.b16 %v2153
    %v4958 = vunpack.c.l.b16 %v2154
    %v4959 = vunpack.c.h.b16 %v2154
    %v4960 = vunpack.c.l.b16 %v2155
    %v4961 = vunpack.c.h.b16 %v2155
    %v4962 = vunpack.c.l.b16 %v2156
    %v4963 = vunpack.c.h.b16 %v2156
    %v4964 = vunpack.c.l.b16 %v2157
    %v4965 = vunpack.c.h.b16 %v2157
    %v4966 = vunpack.c.l.b16 %v2158
    %v4967 = vunpack.c.h.b16 %v2158
    %v4968 = vunpack.c.l.b16 %v2159
    %v4969 = vunpack.c.h.b16 %v2159
    %v4970 = vunpack.c.l.b16 %v2160
    %v4971 = vunpack.c.h.b16 %v2160
    %v4972 = vunpack.c.l.b16 %v2161
    %v4973 = vunpack.c.h.b16 %v2161
    %v4974 = vunpack.c.l.b16 %v2162
    %v4975 = vunpack.c.h.b16 %v2162
    %v4976 = vunpack.c.l.b16 %v2163
    %v4977 = vunpack.c.h.b16 %v2163
    %v4978 = vunpack.c.l.b16 %v2164
    %v4979 = vunpack.c.h.b16 %v2164
    %v4980 = vunpack.c.l.b16 %v2165
    %v4981 = vunpack.c.h.b16 %v2165
    %v4982 = vunpack.c.l.b16 %v2166
    %v4983 = vunpack.c.h.b16 %v2166
    %v4984 = vunpack.c.l.b16 %v2167
    %v4985 = vunpack.c.h.b16 %v2167
    %v4986 = vunpack.c.l.b16 %v2168
    %v4987 = vunpack.c.h.b16 %v2168
    %v4988 = vunpack.c.l.b16 %v2169
    %v4989 = vunpack.c.h.b16 %v2169
    %v4990 = vunpack.c.l.b16 %v2170
    %v4991 = vunpack.c.h.b16 %v2170
    %v4992 = vunpack.c.l.b16 %v2171
    %v4993 = vunpack.c.h.b16 %v2171
    %v4994 = vunpack.c.l.b16 %v2172
    %v4995 = vunpack.c.h.b16 %v2172
    %v4996 = vunpack.c.l.b16 %v2173
    %v4997 = vunpack.c.h.b16 %v2173
    %v4998 = vunpack.c.l.b16 %v2174
    %v4999 = vunpack.c.h.b16 %v2174
    %v5000 = vunpack.c.l.b16 %v2175
    %v5001 = vunpack.c.h.b16 %v2175
    %v5002 = vunpack.c.l.b16 %v2176
    %v5003 = vunpack.c.h.b16 %v2176
    %v5004 = vunpack.c.l.b16 %v2177
    %v5005 = vunpack.c.h.b16 %v2177
    %v5006 = vunpack.c.l.b16 %v2178
    %v5007 = vunpack.c.h.b16 %v2178
    %v5008 = vunpack.c.l.b16 %v2179
    %v5009 = vunpack.c.h.b16 %v2179
    %v5010 = vunpack.c.l.b16 %v2180
    %v5011 = vunpack.c.h.b16 %v2180
    %v5012 = vunpack.c.l.b16 %v2181
    %v5013 = vunpack.c.h.b16 %v2181
    %v5014 = vunpack.c.l.b16 %v2182
    %v5015 = vunpack.c.h.b16 %v2182
    %v5016 = vunpack.c.l.b16 %v2183
    %v5017 = vunpack.c.h.b16 %v2183
    %v5018 = vunpack.c.l.b16 %v2184
    %v5019 = vunpack.c.h.b16 %v2184
    %v5020 = vunpack.c.l.b16 %v2185
    %v5021 = vunpack.c.h.b16 %v2185
    %v5022 = vunpack.c.l.b16 %v2186
    %v5023 = vunpack.c.h.b16 %v2186
    %v5024 = vunpack.c.l.b16 %v2187
    %v5025 = vunpack.c.h.b16 %v2187
    %v5026 = vunpack.c.l.b16 %v2188
    %v5027 = vunpack.c.h.b16 %v2188
    %v5028 = vunpack.c.l.b16 %v2189
    %v5029 = vunpack.c.h.b16 %v2189
    %v5030 = vunpack.c.l.b16 %v2190
    %v5031 = vunpack.c.h.b16 %v2190
    %v5032 = vunpack.c.l.b16 %v2191
    %v5033 = vunpack.c.h.b16 %v2191
    %v5034 = vunpack.c.l.b16 %v2192
    %v5035 = vunpack.c.h.b16 %v2192
    %v5036 = vunpack.c.l.b16 %v2193
    %v5037 = vunpack.c.h.b16 %v2193
    %v5038 = vunpack.c.l.b16 %v2194
    %v5039 = vunpack.c.h.b16 %v2194
    %v5040 = vunpack.c.l.b16 %v2195
    %v5041 = vunpack.c.h.b16 %v2195
    %v5042 = vunpack.c.l.b16 %v2196
    %v5043 = vunpack.c.h.b16 %v2196
    %v5044 = vunpack.c.l.b16 %v2197
    %v5045 = vunpack.c.h.b16 %v2197
    %v5046 = vunpack.c.l.b16 %v2198
    %v5047 = vunpack.c.h.b16 %v2198
    %v5048 = vunpack.c.l.b16 %v2199
    %v5049 = vunpack.c.h.b16 %v2199
    %v5050 = vunpack.c.l.b16 %v2200
    %v5051 = vunpack.c.h.b16 %v2200
    %v5052 = vunpack.c.l.b16 %v2201
    %v5053 = vunpack.c.h.b16 %v2201
    %v5054 = vunpack.c.l.b16 %v2202
    %v5055 = vunpack.c.h.b16 %v2202
    %v5056 = vunpack.c.l.b16 %v2203
    %v5057 = vunpack.c.h.b16 %v2203
    %v5058 = vunpack.c.l.b16 %v2204
    %v5059 = vunpack.c.h.b16 %v2204
    %v5060 = vunpack.c.l.b16 %v2205
    %v5061 = vunpack.c.h.b16 %v2205
    %v5062 = vunpack.c.l.b16 %v2206
    %v5063 = vunpack.c.h.b16 %v2206
    %v5064 = vunpack.c.l.b16 %v2207
    %v5065 = vunpack.c.h.b16 %v2207
    %v5066 = vunpack.c.l.b16 %v2208
    %v5067 = vunpack.c.h.b16 %v2208
    %v5068 = vunpack.c.l.b16 %v2209
    %v5069 = vunpack.c.h.b16 %v2209
    %v5070 = vunpack.c.l.b16 %v2210
    %v5071 = vunpack.c.h.b16 %v2210
    %v5072 = vunpack.c.l.b16 %v2211
    %v5073 = vunpack.c.h.b16 %v2211
    %v5074 = vunpack.c.l.b16 %v2212
    %v5075 = vunpack.c.h.b16 %v2212
    %v5076 = vunpack.c.l.b16 %v2213
    %v5077 = vunpack.c.h.b16 %v2213
    %v5078 = vunpack.c.l.b16 %v2214
    %v5079 = vunpack.c.h.b16 %v2214
    %v5080 = vunpack.c.l.b16 %v2215
    %v5081 = vunpack.c.h.b16 %v2215
    %v5082 = vunpack.c.l.b16 %v2216
    %v5083 = vunpack.c.h.b16 %v2216
    %v5084 = vunpack.c.l.b16 %v2217
    %v5085 = vunpack.c.h.b16 %v2217
    %v5086 = vunpack.c.l.b16 %v2218
    %v5087 = vunpack.c.h.b16 %v2218
    %v5088 = vunpack.c.l.b16 %v2219
    %v5089 = vunpack.c.h.b16 %v2219
    %v5090 = vunpack.c.l.b16 %v2220
    %v5091 = vunpack.c.h.b16 %v2220
    %v5092 = vunpack.c.l.b16 %v2221
    %v5093 = vunpack.c.h.b16 %v2221
    %v5094 = vunpack.c.l.b16 %v2222
    %v5095 = vunpack.c.h.b16 %v2222
    %v5096 = vunpack.c.l.b16 %v2223
    %v5097 = vunpack.c.h.b16 %v2223
    %v5098 = vunpack.c.l.b16 %v2224
    %v5099 = vunpack.c.h.b16 %v2224
    %v5100 = vunpack.c.l.b16 %v2225
    %v5101 = vunpack.c.h.b16 %v2225
    %v5102 = vunpack.c.l.b16 %v2226
    %v5103 = vunpack.c.h.b16 %v2226
    %v5104 = vunpack.c.l.b16 %v2227
    %v5105 = vunpack.c.h.b16 %v2227
    %v5106 = vunpack.c.l.b16 %v2228
    %v5107 = vunpack.c.h.b16 %v2228
    %v5108 = vunpack.c.l.b16 %v2229
    %v5109 = vunpack.c.h.b16 %v2229
    %v5110 = vunpack.c.l.b16 %v2230
    %v5111 = vunpack.c.h.b16 %v2230
    %v5112 = vunpack.c.l.b16 %v2231
    %v5113 = vunpack.c.h.b16 %v2231
    %v5114 = vunpack.c.l.b16 %v2232
    %v5115 = vunpack.c.h.b16 %v2232
    %v5116 = vunpack.c.l.b16 %v2233
    %v5117 = vunpack.c.h.b16 %v2233
    %v5118 = vunpack.c.l.b16 %v2234
    %v5119 = vunpack.c.h.b16 %v2234
    %v5120 = vunpack.c.l.b16 %v2235
    %v5121 = vunpack.c.h.b16 %v2235
    %v5122 = vunpack.c.l.b16 %v2236
    %v5123 = vunpack.c.h.b16 %v2236
    %v5124 = vunpack.c.l.b16 %v2237
    %v5125 = vunpack.c.h.b16 %v2237
    %v5126 = vunpack.c.l.b16 %v2238
    %v5127 = vunpack.c.h.b16 %v2238
    %v5128 = vunpack.c.l.b16 %v2239
    %v5129 = vunpack.c.h.b16 %v2239
    %v5130 = vunpack.c.l.b16 %v2240
    %v5131 = vunpack.c.h.b16 %v2240
    %v5132 = vunpack.c.l.b16 %v2241
    %v5133 = vunpack.c.h.b16 %v2241
    %v5134 = vunpack.c.l.b16 %v2242
    %v5135 = vunpack.c.h.b16 %v2242
    %v5136 = vunpack.c.l.b16 %v2243
    %v5137 = vunpack.c.h.b16 %v2243
    %v5138 = vunpack.c.l.b16 %v2244
    %v5139 = vunpack.c.h.b16 %v2244
    %v5140 = vunpack.c.l.b16 %v2245
    %v5141 = vunpack.c.h.b16 %v2245
    %v5142 = vunpack.c.l.b16 %v2246
    %v5143 = vunpack.c.h.b16 %v2246
    %v5144 = vunpack.c.l.b16 %v2247
    %v5145 = vunpack.c.h.b16 %v2247
    %v5146 = vunpack.c.l.b16 %v2248
    %v5147 = vunpack.c.h.b16 %v2248
    %v5148 = vunpack.c.l.b16 %v2249
    %v5149 = vunpack.c.h.b16 %v2249
    %v5150 = vunpack.c.l.b16 %v2250
    %v5151 = vunpack.c.h.b16 %v2250
    %v5152 = vunpack.c.l.b16 %v2251
    %v5153 = vunpack.c.h.b16 %v2251
    %v5154 = vunpack.c.l.b16 %v2252
    %v5155 = vunpack.c.h.b16 %v2252
    %v5156 = vunpack.c.l.b16 %v2253
    %v5157 = vunpack.c.h.b16 %v2253
    %v5158 = vunpack.c.l.b16 %v2254
    %v5159 = vunpack.c.h.b16 %v2254
    %v5160 = vunpack.c.l.b16 %v2255
    %v5161 = vunpack.c.h.b16 %v2255
    %v5162 = vunpack.c.l.b16 %v2256
    %v5163 = vunpack.c.h.b16 %v2256
    %v5164 = vunpack.c.l.b16 %v2257
    %v5165 = vunpack.c.h.b16 %v2257
    %v5166 = vunpack.c.l.b16 %v2258
    %v5167 = vunpack.c.h.b16 %v2258
    %v5168 = vunpack.c.l.b16 %v2259
    %v5169 = vunpack.c.h.b16 %v2259
    %v5170 = vunpack.c.l.b16 %v2260
    %v5171 = vunpack.c.h.b16 %v2260
    %v5172 = vunpack.c.l.b16 %v2261
    %v5173 = vunpack.c.h.b16 %v2261
    %v5174 = vunpack.c.l.b16 %v2262
    %v5175 = vunpack.c.h.b16 %v2262
    %v5176 = vunpack.c.l.b16 %v2263
    %v5177 = vunpack.c.h.b16 %v2263
    %v5178 = vunpack.c.l.b16 %v2264
    %v5179 = vunpack.c.h.b16 %v2264
    %v5180 = vunpack.c.l.b16 %v2265
    %v5181 = vunpack.c.h.b16 %v2265
    %v5182 = vunpack.c.l.b16 %v2266
    %v5183 = vunpack.c.h.b16 %v2266
    %v5184 = vunpack.c.l.b16 %v2267
    %v5185 = vunpack.c.h.b16 %v2267
    %v5186 = vunpack.c.l.b16 %v2268
    %v5187 = vunpack.c.h.b16 %v2268
    %v5188 = vunpack.c.l.b16 %v2269
    %v5189 = vunpack.c.h.b16 %v2269
    %v5190 = vunpack.c.l.b16 %v2270
    %v5191 = vunpack.c.h.b16 %v2270
    %v5192 = vunpack.c.l.b16 %v2271
    %v5193 = vunpack.c.h.b16 %v2271
    %v5194 = vunpack.c.l.b16 %v2272
    %v5195 = vunpack.c.h.b16 %v2272
    %v5196 = vunpack.c.l.b16 %v2273
    %v5197 = vunpack.c.h.b16 %v2273
    %v5198 = vunpack.c.l.b16 %v2274
    %v5199 = vunpack.c.h.b16 %v2274
    %v5200 = vunpack.c.l.b16 %v2275
    %v5201 = vunpack.c.h.b16 %v2275
    %v5202 = vunpack.c.l.b16 %v2276
    %v5203 = vunpack.c.h.b16 %v2276
    %v5204 = vunpack.c.l.b16 %v2277
    %v5205 = vunpack.c.h.b16 %v2277
    %v5206 = vunpack.c.l.b16 %v2278
    %v5207 = vunpack.c.h.b16 %v2278
    %v5208 = vunpack.c.l.b16 %v2279
    %v5209 = vunpack.c.h.b16 %v2279
    %v5210 = vunpack.c.l.b16 %v2280
    %v5211 = vunpack.c.h.b16 %v2280
    %v5212 = vunpack.c.l.b16 %v2281
    %v5213 = vunpack.c.h.b16 %v2281
    %v5214 = vunpack.c.l.b16 %v2282
    %v5215 = vunpack.c.h.b16 %v2282
    %v5216 = vunpack.c.l.b16 %v2283
    %v5217 = vunpack.c.h.b16 %v2283
    %v5218 = vunpack.c.l.b16 %v2284
    %v5219 = vunpack.c.h.b16 %v2284
    %v5220 = vunpack.c.l.b16 %v2285
    %v5221 = vunpack.c.h.b16 %v2285
    %v5222 = vunpack.c.l.b16 %v2286
    %v5223 = vunpack.c.h.b16 %v2286
    %v5224 = vunpack.c.l.b16 %v2287
    %v5225 = vunpack.c.h.b16 %v2287
    %v5226 = vunpack.c.l.b16 %v2288
    %v5227 = vunpack.c.h.b16 %v2288
    %v5228 = vunpack.c.l.b16 %v2289
    %v5229 = vunpack.c.h.b16 %v2289
    %v5230 = vunpack.c.l.b16 %v2290
    %v5231 = vunpack.c.h.b16 %v2290
    %v5232 = vunpack.c.l.b16 %v2291
    %v5233 = vunpack.c.h.b16 %v2291
    %v5234 = vunpack.c.l.b16 %v2292
    %v5235 = vunpack.c.h.b16 %v2292
    %v5236 = vunpack.c.l.b16 %v2293
    %v5237 = vunpack.c.h.b16 %v2293
    %v5238 = vunpack.c.l.b16 %v2294
    %v5239 = vunpack.c.h.b16 %v2294
    %v5240 = vunpack.c.l.b16 %v2295
    %v5241 = vunpack.c.h.b16 %v2295
    %v5242 = vunpack.c.l.b16 %v2296
    %v5243 = vunpack.c.h.b16 %v2296
    %v5244 = vunpack.c.l.b16 %v2297
    %v5245 = vunpack.c.h.b16 %v2297
    %v5246 = vunpack.c.l.b16 %v2298
    %v5247 = vunpack.c.h.b16 %v2298
    %v5248 = vunpack.c.l.b16 %v2299
    %v5249 = vunpack.c.h.b16 %v2299
    %v5250 = vunpack.c.l.b16 %v2300
    %v5251 = vunpack.c.h.b16 %v2300
    %v5252 = vunpack.c.l.b16 %v2301
    %v5253 = vunpack.c.h.b16 %v2301
    %v5254 = vunpack.c.l.b16 %v2302
    %v5255 = vunpack.c.h.b16 %v2302
    %v5256 = vunpack.c.l.b16 %v2303
    %v5257 = vunpack.c.h.b16 %v2303
    %v5258 = vunpack.c.l.b16 %v2304
    %v5259 = vunpack.c.h.b16 %v2304
    %v5260 = vunpack.c.l.b16 %v2305
    %v5261 = vunpack.c.h.b16 %v2305
    %v5262 = vunpack.c.l.b16 %v2306
    %v5263 = vunpack.c.h.b16 %v2306
    %v5264 = vunpack.c.l.b16 %v2307
    %v5265 = vunpack.c.h.b16 %v2307
    %v5266 = vunpack.c.l.b16 %v2308
    %v5267 = vunpack.c.h.b16 %v2308
    %v5268 = vunpack.c.l.b16 %v2309
    %v5269 = vunpack.c.h.b16 %v2309
    %v5270 = vunpack.c.l.b16 %v2310
    %v5271 = vunpack.c.h.b16 %v2310
    %v5272 = vunpack.c.l.b16 %v2311
    %v5273 = vunpack.c.h.b16 %v2311
    %v5274 = vunpack.c.l.b16 %v2312
    %v5275 = vunpack.c.h.b16 %v2312
    %v5276 = vunpack.c.l.b16 %v2313
    %v5277 = vunpack.c.h.b16 %v2313
    %v5278 = vunpack.c.l.b16 %v2314
    %v5279 = vunpack.c.h.b16 %v2314
    %v5280 = vunpack.c.l.b16 %v2315
    %v5281 = vunpack.c.h.b16 %v2315
    %v5282 = vunpack.c.l.b16 %v2316
    %v5283 = vunpack.c.h.b16 %v2316
    %v5284 = vunpack.c.l.b16 %v2317
    %v5285 = vunpack.c.h.b16 %v2317
    %v5286 = vunpack.c.l.b16 %v2318
    %v5287 = vunpack.c.h.b16 %v2318
    %v5288 = vunpack.c.l.b16 %v2319
    %v5289 = vunpack.c.h.b16 %v2319
    %v5290 = vunpack.c.l.b16 %v2320
    %v5291 = vunpack.c.h.b16 %v2320
    %v5292 = vunpack.c.l.b16 %v2321
    %v5293 = vunpack.c.h.b16 %v2321
    %v5294 = vunpack.c.l.b16 %v2322
    %v5295 = vunpack.c.h.b16 %v2322
    %v5296 = vunpack.c.l.b16 %v2323
    %v5297 = vunpack.c.h.b16 %v2323
    %v5298 = vunpack.c.l.b16 %v2324
    %v5299 = vunpack.c.h.b16 %v2324
    %v5300 = vunpack.c.l.b16 %v2325
    %v5301 = vunpack.c.h.b16 %v2325
    %v5302 = vunpack.c.l.b16 %v2326
    %v5303 = vunpack.c.h.b16 %v2326
    %v5304 = vunpack.c.l.b16 %v2327
    %v5305 = vunpack.c.h.b16 %v2327
    %v5306 = vunpack.c.l.b16 %v2328
    %v5307 = vunpack.c.h.b16 %v2328
    %v5308 = vunpack.c.l.b16 %v2329
    %v5309 = vunpack.c.h.b16 %v2329
    %v5310 = vunpack.c.l.b16 %v2330
    %v5311 = vunpack.c.h.b16 %v2330
    %v5312 = vunpack.c.l.b16 %v2331
    %v5313 = vunpack.c.h.b16 %v2331
    %v5314 = vunpack.c.l.b16 %v2332
    %v5315 = vunpack.c.h.b16 %v2332
    %v5316 = vunpack.c.l.b16 %v2333
    %v5317 = vunpack.c.h.b16 %v2333
    %v5318 = vunpack.c.l.b16 %v2334
    %v5319 = vunpack.c.h.b16 %v2334
    %v5320 = vunpack.c.l.b16 %v2335
    %v5321 = vunpack.c.h.b16 %v2335
    %v5322 = vunpack.c.l.b16 %v2336
    %v5323 = vunpack.c.h.b16 %v2336
    %v5324 = vunpack.c.l.b16 %v2337
    %v5325 = vunpack.c.h.b16 %v2337
    %v5326 = vunpack.c.l.b16 %v2338
    %v5327 = vunpack.c.h.b16 %v2338
    %v5328 = vunpack.c.l.b16 %v2339
    %v5329 = vunpack.c.h.b16 %v2339
    %v5330 = vunpack.c.l.b16 %v2340
    %v5331 = vunpack.c.h.b16 %v2340
    %v5332 = vunpack.c.l.b16 %v2341
    %v5333 = vunpack.c.h.b16 %v2341
    %v5334 = vunpack.c.l.b16 %v2342
    %v5335 = vunpack.c.h.b16 %v2342
    %v5336 = vunpack.c.l.b16 %v2343
    %v5337 = vunpack.c.h.b16 %v2343
    %v5338 = vunpack.c.l.b16 %v2344
    %v5339 = vunpack.c.h.b16 %v2344
    %v5340 = vunpack.c.l.b16 %v2345
    %v5341 = vunpack.c.h.b16 %v2345
    %v5342 = vunpack.c.l.b16 %v2346
    %v5343 = vunpack.c.h.b16 %v2346
    %v5344 = vunpack.c.l.b16 %v2347
    %v5345 = vunpack.c.h.b16 %v2347
    %v5346 = vunpack.c.l.b16 %v2348
    %v5347 = vunpack.c.h.b16 %v2348
    %v5348 = vunpack.c.l.b16 %v2349
    %v5349 = vunpack.c.h.b16 %v2349
    %v5350 = vunpack.c.l.b16 %v2350
    %v5351 = vunpack.c.h.b16 %v2350
    %v5352 = vunpack.c.l.b16 %v2351
    %v5353 = vunpack.c.h.b16 %v2351
    %v5354 = vunpack.c.l.b16 %v2352
    %v5355 = vunpack.c.h.b16 %v2352
    %v5356 = vunpack.c.l.b16 %v2353
    %v5357 = vunpack.c.h.b16 %v2353
    %v5358 = vunpack.c.l.b16 %v2354
    %v5359 = vunpack.c.h.b16 %v2354
    %v5360 = vunpack.c.l.b16 %v2355
    %v5361 = vunpack.c.h.b16 %v2355
    %v5362 = vunpack.c.l.b16 %v2356
    %v5363 = vunpack.c.h.b16 %v2356
    %v5364 = vunpack.c.l.b16 %v2357
    %v5365 = vunpack.c.h.b16 %v2357
    %v5366 = vunpack.c.l.b16 %v2358
    %v5367 = vunpack.c.h.b16 %v2358
    %v5368 = vunpack.c.l.b16 %v2359
    %v5369 = vunpack.c.h.b16 %v2359
    %v5370 = vunpack.c.l.b16 %v2360
    %v5371 = vunpack.c.h.b16 %v2360
    %v5372 = vunpack.c.l.b16 %v2361
    %v5373 = vunpack.c.h.b16 %v2361
    %v5374 = vunpack.c.l.b16 %v2362
    %v5375 = vunpack.c.h.b16 %v2362
    %v5376 = vunpack.c.l.b16 %v2363
    %v5377 = vunpack.c.h.b16 %v2363
    %v5378 = vunpack.c.l.b16 %v2364
    %v5379 = vunpack.c.h.b16 %v2364
    %v5380 = vunpack.c.l.b16 %v2365
    %v5381 = vunpack.c.h.b16 %v2365
    %v5382 = vunpack.c.l.b16 %v2366
    %v5383 = vunpack.c.h.b16 %v2366
    %v5384 = vunpack.c.l.b16 %v2367
    %v5385 = vunpack.c.h.b16 %v2367
    %v5386 = vunpack.c.l.b16 %v2368
    %v5387 = vunpack.c.h.b16 %v2368
    %v5388 = vunpack.c.l.b16 %v2369
    %v5389 = vunpack.c.h.b16 %v2369
    %v5390 = vunpack.c.l.b16 %v2370
    %v5391 = vunpack.c.h.b16 %v2370
    %v5392 = vunpack.c.l.b16 %v2371
    %v5393 = vunpack.c.h.b16 %v2371
    %v5394 = vunpack.c.l.b16 %v2372
    %v5395 = vunpack.c.h.b16 %v2372
    %v5396 = vunpack.c.l.b16 %v2373
    %v5397 = vunpack.c.h.b16 %v2373
    %v5398 = vunpack.c.l.b16 %v2374
    %v5399 = vunpack.c.h.b16 %v2374
    %v5400 = vunpack.c.l.b16 %v2375
    %v5401 = vunpack.c.h.b16 %v2375
    %v5402 = vunpack.c.l.b16 %v2376
    %v5403 = vunpack.c.h.b16 %v2376
    %v5404 = vunpack.c.l.b16 %v2377
    %v5405 = vunpack.c.h.b16 %v2377
    %v5406 = vunpack.c.l.b16 %v2378
    %v5407 = vunpack.c.h.b16 %v2378
    %v5408 = vunpack.c.l.b16 %v2379
    %v5409 = vunpack.c.h.b16 %v2379
    %v5410 = vunpack.c.l.b16 %v2380
    %v5411 = vunpack.c.h.b16 %v2380
    %v5412 = vunpack.c.l.b16 %v2381
    %v5413 = vunpack.c.h.b16 %v2381
    %v5414 = vunpack.c.l.b16 %v2382
    %v5415 = vunpack.c.h.b16 %v2382
    %v5416 = vunpack.c.l.b16 %v2383
    %v5417 = vunpack.c.h.b16 %v2383
    %v5418 = vunpack.c.l.b16 %v2384
    %v5419 = vunpack.c.h.b16 %v2384
    %v5420 = vunpack.c.l.b16 %v2385
    %v5421 = vunpack.c.h.b16 %v2385
    %v5422 = vunpack.c.l.b16 %v2386
    %v5423 = vunpack.c.h.b16 %v2386
    %v5424 = vunpack.c.l.b16 %v2387
    %v5425 = vunpack.c.h.b16 %v2387
    %v5426 = vunpack.c.l.b16 %v2388
    %v5427 = vunpack.c.h.b16 %v2388
    %v5428 = vunpack.c.l.b16 %v2389
    %v5429 = vunpack.c.h.b16 %v2389
    %v5430 = vunpack.c.l.b16 %v2390
    %v5431 = vunpack.c.h.b16 %v2390
    %v5432 = vunpack.c.l.b16 %v2391
    %v5433 = vunpack.c.h.b16 %v2391
    %v5434 = vunpack.c.l.b16 %v2392
    %v5435 = vunpack.c.h.b16 %v2392
    %v5436 = vunpack.c.l.b16 %v2393
    %v5437 = vunpack.c.h.b16 %v2393
    %v5438 = vunpack.c.l.b16 %v2394
    %v5439 = vunpack.c.h.b16 %v2394
    %v5440 = vunpack.c.l.b16 %v2395
    %v5441 = vunpack.c.h.b16 %v2395
    %v5442 = vunpack.c.l.b16 %v2396
    %v5443 = vunpack.c.h.b16 %v2396
    %v5444 = vunpack.c.l.b16 %v2397
    %v5445 = vunpack.c.h.b16 %v2397
    %v5446 = vunpack.c.l.b16 %v2398
    %v5447 = vunpack.c.h.b16 %v2398
    %v5448 = vunpack.c.l.b16 %v2399
    %v5449 = vunpack.c.h.b16 %v2399
    %v5450 = vunpack.c.l.b16 %v2400
    %v5451 = vunpack.c.h.b16 %v2400
    %v5452 = vunpack.c.l.b16 %v2401
    %v5453 = vunpack.c.h.b16 %v2401
    %v5454 = vunpack.c.l.b16 %v2402
    %v5455 = vunpack.c.h.b16 %v2402
    %v5456 = vunpack.c.l.b16 %v2403
    %v5457 = vunpack.c.h.b16 %v2403
    %v5458 = vunpack.c.l.b16 %v2404
    %v5459 = vunpack.c.h.b16 %v2404
    %v5460 = vunpack.c.l.b16 %v2405
    %v5461 = vunpack.c.h.b16 %v2405
    %v5462 = vunpack.c.l.b16 %v2406
    %v5463 = vunpack.c.h.b16 %v2406
    %v5464 = vunpack.c.l.b16 %v2407
    %v5465 = vunpack.c.h.b16 %v2407
    %v5466 = vunpack.c.l.b16 %v2408
    %v5467 = vunpack.c.h.b16 %v2408
    %v5468 = vunpack.c.l.b16 %v2409
    %v5469 = vunpack.c.h.b16 %v2409
    %v5470 = vunpack.c.l.b16 %v2410
    %v5471 = vunpack.c.h.b16 %v2410
    %v5472 = vunpack.c.l.b16 %v2411
    %v5473 = vunpack.c.h.b16 %v2411
    %v5474 = vunpack.c.l.b16 %v2412
    %v5475 = vunpack.c.h.b16 %v2412
    %v5476 = vunpack.c.l.b16 %v2413
    %v5477 = vunpack.c.h.b16 %v2413
    %v5478 = vunpack.c.l.b16 %v2414
    %v5479 = vunpack.c.h.b16 %v2414
    %v5480 = vunpack.c.l.b16 %v2415
    %v5481 = vunpack.c.h.b16 %v2415
    %v5482 = vunpack.c.l.b16 %v2416
    %v5483 = vunpack.c.h.b16 %v2416
    %v5484 = vunpack.c.l.b16 %v2417
    %v5485 = vunpack.c.h.b16 %v2417
    %v5486 = vunpack.c.l.b16 %v2418
    %v5487 = vunpack.c.h.b16 %v2418
    %v5488 = vunpack.c.l.b16 %v2419
    %v5489 = vunpack.c.h.b16 %v2419
    %v5490 = vunpack.c.l.b16 %v2420
    %v5491 = vunpack.c.h.b16 %v2420
    %v5492 = vunpack.c.l.b16 %v2421
    %v5493 = vunpack.c.h.b16 %v2421
    %v5494 = vunpack.c.l.b16 %v2422
    %v5495 = vunpack.c.h.b16 %v2422
    %v5496 = vunpack.c.l.b16 %v2423
    %v5497 = vunpack.c.h.b16 %v2423
    %v5498 = vunpack.c.l.b16 %v2424
    %v5499 = vunpack.c.h.b16 %v2424
    %v5500 = vunpack.c.l.b16 %v2425
    %v5501 = vunpack.c.h.b16 %v2425
    %v5502 = vunpack.c.l.b16 %v2426
    %v5503 = vunpack.c.h.b16 %v2426
    %v5504 = vunpack.c.l.b16 %v2427
    %v5505 = vunpack.c.h.b16 %v2427
    %v5506 = vunpack.c.l.b16 %v2428
    %v5507 = vunpack.c.h.b16 %v2428
    %v5508 = vunpack.c.l.b16 %v2429
    %v5509 = vunpack.c.h.b16 %v2429
    %v5510 = vunpack.c.l.b16 %v2430
    %v5511 = vunpack.c.h.b16 %v2430
    %v5512 = vunpack.c.l.b16 %v2431
    %v5513 = vunpack.c.h.b16 %v2431
    %v5514 = vunpack.c.l.b16 %v2432
    %v5515 = vunpack.c.h.b16 %v2432
    %v5516 = vunpack.c.l.b16 %v2433
    %v5517 = vunpack.c.h.b16 %v2433
    %v5518 = vunpack.c.l.b16 %v2434
    %v5519 = vunpack.c.h.b16 %v2434
    %v5520 = vunpack.c.l.b16 %v2435
    %v5521 = vunpack.c.h.b16 %v2435
    %v5522 = vunpack.c.l.b16 %v2436
    %v5523 = vunpack.c.h.b16 %v2436
    %v5524 = vunpack.c.l.b16 %v2437
    %v5525 = vunpack.c.h.b16 %v2437
    %v5526 = vunpack.c.l.b16 %v2438
    %v5527 = vunpack.c.h.b16 %v2438
    %v5528 = vunpack.c.l.b16 %v2439
    %v5529 = vunpack.c.h.b16 %v2439
    %v5530 = vunpack.c.l.b16 %v2440
    %v5531 = vunpack.c.h.b16 %v2440
    %v5532 = vunpack.c.l.b16 %v2441
    %v5533 = vunpack.c.h.b16 %v2441
    %v5534 = vunpack.c.l.b16 %v2442
    %v5535 = vunpack.c.h.b16 %v2442
    %v5536 = vunpack.c.l.b16 %v2443
    %v5537 = vunpack.c.h.b16 %v2443
    %v5538 = vunpack.c.l.b16 %v2444
    %v5539 = vunpack.c.h.b16 %v2444
    %v5540 = vunpack.c.l.b16 %v2445
    %v5541 = vunpack.c.h.b16 %v2445
    %v5542 = vunpack.c.l.b16 %v2446
    %v5543 = vunpack.c.h.b16 %v2446
    %v5544 = vunpack.c.l.b16 %v2447
    %v5545 = vunpack.c.h.b16 %v2447
    %v5546 = vunpack.c.l.b16 %v2448
    %v5547 = vunpack.c.h.b16 %v2448
    %v5548 = vunpack.c.l.b16 %v2449
    %v5549 = vunpack.c.h.b16 %v2449
    %v5550 = vunpack.c.l.b16 %v2450
    %v5551 = vunpack.c.h.b16 %v2450
    %v5552 = vunpack.c.l.b16 %v2451
    %v5553 = vunpack.c.h.b16 %v2451
    %v5554 = vunpack.c.l.b16 %v2452
    %v5555 = vunpack.c.h.b16 %v2452
    %v5556 = vunpack.c.l.b16 %v2453
    %v5557 = vunpack.c.h.b16 %v2453
    %v5558 = vunpack.c.l.b16 %v2454
    %v5559 = vunpack.c.h.b16 %v2454
    %v5560 = vunpack.c.l.b16 %v2455
    %v5561 = vunpack.c.h.b16 %v2455
    %v5562 = vunpack.c.l.b16 %v2456
    %v5563 = vunpack.c.h.b16 %v2456
    %v5564 = vunpack.c.l.b16 %v2457
    %v5565 = vunpack.c.h.b16 %v2457
    %v5566 = vunpack.c.l.b16 %v2458
    %v5567 = vunpack.c.h.b16 %v2458
    %v5568 = vunpack.c.l.b16 %v2459
    %v5569 = vunpack.c.h.b16 %v2459
    %v5570 = vunpack.c.l.b16 %v2460
    %v5571 = vunpack.c.h.b16 %v2460
    %v5572 = vunpack.c.l.b16 %v2461
    %v5573 = vunpack.c.h.b16 %v2461
    %v5574 = vunpack.c.l.b16 %v2462
    %v5575 = vunpack.c.h.b16 %v2462
    %v5576 = vunpack.c.l.b16 %v2463
    %v5577 = vunpack.c.h.b16 %v2463
    %v5578 = vunpack.c.l.b16 %v2464
    %v5579 = vunpack.c.h.b16 %v2464
    %v5580 = vunpack.c.l.b16 %v2465
    %v5581 = vunpack.c.h.b16 %v2465
    %v5582 = vunpack.c.l.b16 %v2466
    %v5583 = vunpack.c.h.b16 %v2466
    %v5584 = vunpack.c.l.b16 %v2467
    %v5585 = vunpack.c.h.b16 %v2467
    %v5586 = vunpack.c.l.b16 %v2468
    %v5587 = vunpack.c.h.b16 %v2468
    %v5588 = vunpack.c.l.b16 %v2469
    %v5589 = vunpack.c.h.b16 %v2469
    %v5590 = vunpack.c.l.b16 %v2470
    %v5591 = vunpack.c.h.b16 %v2470
    %v5592 = vunpack.c.l.b16 %v2471
    %v5593 = vunpack.c.h.b16 %v2471
    %v5594 = vunpack.c.l.b16 %v2472
    %v5595 = vunpack.c.h.b16 %v2472
    %v5596 = vunpack.c.l.b16 %v2473
    %v5597 = vunpack.c.h.b16 %v2473
    %v5598 = vunpack.c.l.b16 %v2474
    %v5599 = vunpack.c.h.b16 %v2474
    %v5600 = vunpack.c.l.b16 %v2475
    %v5601 = vunpack.c.h.b16 %v2475
    %v5602 = vunpack.c.l.b16 %v2476
    %v5603 = vunpack.c.h.b16 %v2476
    %v5604 = vunpack.c.l.b16 %v2477
    %v5605 = vunpack.c.h.b16 %v2477
    %v5606 = vunpack.c.l.b16 %v2478
    %v5607 = vunpack.c.h.b16 %v2478
    %v5608 = vunpack.c.l.b16 %v2479
    %v5609 = vunpack.c.h.b16 %v2479
    %v5610 = vunpack.c.l.b16 %v2480
    %v5611 = vunpack.c.h.b16 %v2480
    %v5612 = vunpack.c.l.b16 %v2481
    %v5613 = vunpack.c.h.b16 %v2481
    %v5614 = vunpack.c.l.b16 %v2482
    %v5615 = vunpack.c.h.b16 %v2482
    %v5616 = vunpack.c.l.b16 %v2483
    %v5617 = vunpack.c.h.b16 %v2483
    %v5618 = vunpack.c.l.b16 %v2484
    %v5619 = vunpack.c.h.b16 %v2484
    %v5620 = vunpack.c.l.b16 %v2485
    %v5621 = vunpack.c.h.b16 %v2485
    %v5622 = vunpack.c.l.b16 %v2486
    %v5623 = vunpack.c.h.b16 %v2486
    %v5624 = vunpack.c.l.b16 %v2487
    %v5625 = vunpack.c.h.b16 %v2487
    %v5626 = vunpack.c.l.b16 %v2488
    %v5627 = vunpack.c.h.b16 %v2488
    %v5628 = vunpack.c.l.b16 %v2489
    %v5629 = vunpack.c.h.b16 %v2489
    %v5630 = vunpack.c.l.b16 %v2490
    %v5631 = vunpack.c.h.b16 %v2490
    %v5632 = vunpack.c.l.b16 %v2491
    %v5633 = vunpack.c.h.b16 %v2491
    %v5634 = vunpack.c.l.b16 %v2492
    %v5635 = vunpack.c.h.b16 %v2492
    %v5636 = vunpack.c.l.b16 %v2493
    %v5637 = vunpack.c.h.b16 %v2493
    %v5638 = vunpack.c.l.b16 %v2494
    %v5639 = vunpack.c.h.b16 %v2494
    %v5640 = vunpack.c.l.b16 %v2495
    %v5641 = vunpack.c.h.b16 %v2495
    %v5642 = vunpack.c.l.b16 %v2496
    %v5643 = vunpack.c.h.b16 %v2496
    %v5644 = vunpack.c.l.b16 %v2497
    %v5645 = vunpack.c.h.b16 %v2497
    %v5646 = vunpack.c.l.b16 %v2498
    %v5647 = vunpack.c.h.b16 %v2498
    %v5648 = vunpack.c.l.b16 %v2499
    %v5649 = vunpack.c.h.b16 %v2499
    %v5650 = vunpack.c.l.b16 %v2500
    %v5651 = vunpack.c.h.b16 %v2500
    %v5652 = vunpack.c.l.b16 %v2501
    %v5653 = vunpack.c.h.b16 %v2501
    %v5654 = vunpack.c.l.b16 %v2502
    %v5655 = vunpack.c.h.b16 %v2502
    %v5656 = vunpack.c.l.b16 %v2503
    %v5657 = vunpack.c.h.b16 %v2503
    %v5658 = vunpack.c.l.b16 %v2504
    %v5659 = vunpack.c.h.b16 %v2504
    %v5660 = vunpack.c.l.b16 %v2505
    %v5661 = vunpack.c.h.b16 %v2505
    %v5662 = vpack.c.b16 %v3630, %v3614
    %v5663 = vpack.c.b16 %v3631, %v3615
    %v5664 = vpack.c.b16 %v3632, %v3616
    %v5665 = vpack.c.b16 %v3633, %v3617
    %v5666 = vpack.c.b16 %v3634, %v3618
    %v5667 = vpack.c.b16 %v3635, %v3619
    %v5668 = vpack.c.b16 %v3636, %v3620
    %v5669 = vpack.c.b16 %v3637, %v3621
    %v5670 = vpack.c.b16 %v3638, %v3622
    %v5671 = vpack.c.b16 %v3639, %v3623
    %v5672 = vpack.c.b16 %v3640, %v3624
    %v5673 = vpack.c.b16 %v3641, %v3625
    %v5674 = vpack.c.b16 %v3642, %v3626
    %v5675 = vpack.c.b16 %v3643, %v3627
    %v5676 = vpack.c.b16 %v3644, %v3628
    %v5677 = vpack.c.b16 %v3645, %v3629
    %v5678 = vpack.c.b16 %v3662, %v3646
    %v5679 = vpack.c.b16 %v3663, %v3647
    %v5680 = vpack.c.b16 %v3664, %v3648
    %v5681 = vpack.c.b16 %v3665, %v3649
    %v5682 = vpack.c.b16 %v3666, %v3650
    %v5683 = vpack.c.b16 %v3667, %v3651
    %v5684 = vpack.c.b16 %v3668, %v3652
    %v5685 = vpack.c.b16 %v3669, %v3653
    %v5686 = vpack.c.b16 %v3670, %v3654
    %v5687 = vpack.c.b16 %v3671, %v3655
    %v5688 = vpack.c.b16 %v3672, %v3656
    %v5689 = vpack.c.b16 %v3673, %v3657
    %v5690 = vpack.c.b16 %v3674, %v3658
    %v5691 = vpack.c.b16 %v3675, %v3659
    %v5692 = vpack.c.b16 %v3676, %v3660
    %v5693 = vpack.c.b16 %v3677, %v3661
    %v5694 = vpack.c.b16 %v3694, %v3678
    %v5695 = vpack.c.b16 %v3695, %v3679
    %v5696 = vpack.c.b16 %v3696, %v3680
    %v5697 = vpack.c.b16 %v3697, %v3681
    %v5698 = vpack.c.b16 %v3698, %v3682
    %v5699 = vpack.c.b16 %v3699, %v3683
    %v5700 = vpack.c.b16 %v3700, %v3684
    %v5701 = vpack.c.b16 %v3701, %v3685
    %v5702 = vpack.c.b16 %v3702, %v3686
    %v5703 = vpack.c.b16 %v3703, %v3687
    %v5704 = vpack.c.b16 %v3704, %v3688
    %v5705 = vpack.c.b16 %v3705, %v3689
    %v5706 = vpack.c.b16 %v3706, %v3690
    %v5707 = vpack.c.b16 %v3707, %v3691
    %v5708 = vpack.c.b16 %v3708, %v3692
    %v5709 = vpack.c.b16 %v3709, %v3693
    %v5710 = vpack.c.b16 %v3726, %v3710
    %v5711 = vpack.c.b16 %v3727, %v3711
    %v5712 = vpack.c.b16 %v3728, %v3712
    %v5713 = vpack.c.b16 %v3729, %v3713
    %v5714 = vpack.c.b16 %v3730, %v3714
    %v5715 = vpack.c.b16 %v3731, %v3715
    %v5716 = vpack.c.b16 %v3732, %v3716
    %v5717 = vpack.c.b16 %v3733, %v3717
    %v5718 = vpack.c.b16 %v3734, %v3718
    %v5719 = vpack.c.b16 %v3735, %v3719
    %v5720 = vpack.c.b16 %v3736, %v3720
    %v5721 = vpack.c.b16 %v3737, %v3721
    %v5722 = vpack.c.b16 %v3738, %v3722
    %v5723 = vpack.c.b16 %v3739, %v3723
    %v5724 = vpack.c.b16 %v3740, %v3724
    %v5725 = vpack.c.b16 %v3741, %v3725
    %v5726 = vpack.c.b16 %v3758, %v3742
    %v5727 = vpack.c.b16 %v3759, %v3743
    %v5728 = vpack.c.b16 %v3760, %v3744
    %v5729 = vpack.c.b16 %v3761, %v3745
    %v5730 = vpack.c.b16 %v3762, %v3746
    %v5731 = vpack.c.b16 %v3763, %v3747
    %v5732 = vpack.c.b16 %v3764, %v3748
    %v5733 = vpack.c.b16 %v3765, %v3749
    %v5734 = vpack.c.b16 %v3766, %v3750
    %v5735 = vpack.c.b16 %v3767, %v3751
    %v5736 = vpack.c.b16 %v3768, %v3752
    %v5737 = vpack.c.b16 %v3769, %v3753
    %v5738 = vpack.c.b16 %v3770, %v3754
    %v5739 = vpack.c.b16 %v3771, %v3755
    %v5740 = vpack.c.b16 %v3772, %v3756
    %v5741 = vpack.c.b16 %v3773, %v3757
    %v5742 = vpack.c.b16 %v3790, %v3774
    %v5743 = vpack.c.b16 %v3791, %v3775
    %v5744 = vpack.c.b16 %v3792, %v3776
    %v5745 = vpack.c.b16 %v3793, %v3777
    %v5746 = vpack.c.b16 %v3794, %v3778
    %v5747 = vpack.c.b16 %v3795, %v3779
    %v5748 = vpack.c.b16 %v3796, %v3780
    %v5749 = vpack.c.b16 %v3797, %v3781
    %v5750 = vpack.c.b16 %v3798, %v3782
    %v5751 = vpack.c.b16 %v3799, %v3783
    %v5752 = vpack.c.b16 %v3800, %v3784
    %v5753 = vpack.c.b16 %v3801, %v3785
    %v5754 = vpack.c.b16 %v3802, %v3786
    %v5755 = vpack.c.b16 %v3803, %v3787
    %v5756 = vpack.c.b16 %v3804, %v3788
    %v5757 = vpack.c.b16 %v3805, %v3789
    %v5758 = vpack.c.b16 %v3822, %v3806
    %v5759 = vpack.c.b16 %v3823, %v3807
    %v5760 = vpack.c.b16 %v3824, %v3808
    %v5761 = vpack.c.b16 %v3825, %v3809
    %v5762 = vpack.c.b16 %v3826, %v3810
    %v5763 = vpack.c.b16 %v3827, %v3811
    %v5764 = vpack.c.b16 %v3828, %v3812
    %v5765 = vpack.c.b16 %v3829, %v3813
    %v5766 = vpack.c.b16 %v3830, %v3814
    %v5767 = vpack.c.b16 %v3831, %v3815
    %v5768 = vpack.c.b16 %v3832, %v3816
    %v5769 = vpack.c.b16 %v3833, %v3817
    %v5770 = vpack.c.b16 %v3834, %v3818
    %v5771 = vpack.c.b16 %v3835, %v3819
    %v5772 = vpack.c.b16 %v3836, %v3820
    %v5773 = vpack.c.b16 %v3837, %v3821
    %v5774 = vpack.c.b16 %v3854, %v3838
    %v5775 = vpack.c.b16 %v3855, %v3839
    %v5776 = vpack.c.b16 %v3856, %v3840
    %v5777 = vpack.c.b16 %v3857, %v3841
    %v5778 = vpack.c.b16 %v3858, %v3842
    %v5779 = vpack.c.b16 %v3859, %v3843
    %v5780 = vpack.c.b16 %v3860, %v3844
    %v5781 = vpack.c.b16 %v3861, %v3845
    %v5782 = vpack.c.b16 %v3862, %v3846
    %v5783 = vpack.c.b16 %v3863, %v3847
    %v5784 = vpack.c.b16 %v3864, %v3848
    %v5785 = vpack.c.b16 %v3865, %v3849
    %v5786 = vpack.c.b16 %v3866, %v3850
    %v5787 = vpack.c.b16 %v3867, %v3851
    %v5788 = vpack.c.b16 %v3868, %v3852
    %v5789 = vpack.c.b16 %v3869, %v3853
    %v5790 = vpack.c.b16 %v3886, %v3870
    %v5791 = vpack.c.b16 %v3887, %v3871
    %v5792 = vpack.c.b16 %v3888, %v3872
    %v5793 = vpack.c.b16 %v3889, %v3873
    %v5794 = vpack.c.b16 %v3890, %v3874
    %v5795 = vpack.c.b16 %v3891, %v3875
    %v5796 = vpack.c.b16 %v3892, %v3876
    %v5797 = vpack.c.b16 %v3893, %v3877
    %v5798 = vpack.c.b16 %v3894, %v3878
    %v5799 = vpack.c.b16 %v3895, %v3879
    %v5800 = vpack.c.b16 %v3896, %v3880
    %v5801 = vpack.c.b16 %v3897, %v3881
    %v5802 = vpack.c.b16 %v3898, %v3882
    %v5803 = vpack.c.b16 %v3899, %v3883
    %v5804 = vpack.c.b16 %v3900, %v3884
    %v5805 = vpack.c.b16 %v3901, %v3885
    %v5806 = vpack.c.b16 %v3918, %v3902
    %v5807 = vpack.c.b16 %v3919, %v3903
    %v5808 = vpack.c.b16 %v3920, %v3904
    %v5809 = vpack.c.b16 %v3921, %v3905
    %v5810 = vpack.c.b16 %v3922, %v3906
    %v5811 = vpack.c.b16 %v3923, %v3907
    %v5812 = vpack.c.b16 %v3924, %v3908
    %v5813 = vpack.c.b16 %v3925, %v3909
    %v5814 = vpack.c.b16 %v3926, %v3910
    %v5815 = vpack.c.b16 %v3927, %v3911
    %v5816 = vpack.c.b16 %v3928, %v3912
    %v5817 = vpack.c.b16 %v3929, %v3913
    %v5818 = vpack.c.b16 %v3930, %v3914
    %v5819 = vpack.c.b16 %v3931, %v3915
    %v5820 = vpack.c.b16 %v3932, %v3916
    %v5821 = vpack.c.b16 %v3933, %v3917
    %v5822 = vpack.c.b16 %v3950, %v3934
    %v5823 = vpack.c.b16 %v3951, %v3935
    %v5824 = vpack.c.b16 %v3952, %v3936
    %v5825 = vpack.c.b16 %v3953, %v3937
    %v5826 = vpack.c.b16 %v3954, %v3938
    %v5827 = vpack.c.b16 %v3955, %v3939
    %v5828 = vpack.c.b16 %v3956, %v3940
    %v5829 = vpack.c.b16 %v3957, %v3941
    %v5830 = vpack.c.b16 %v3958, %v3942
    %v5831 = vpack.c.b16 %v3959, %v3943
    %v5832 = vpack.c.b16 %v3960, %v3944
    %v5833 = vpack.c.b16 %v3961, %v3945
    %v5834 = vpack.c.b16 %v3962, %v3946
    %v5835 = vpack.c.b16 %v3963, %v3947
    %v5836 = vpack.c.b16 %v3964, %v3948
    %v5837 = vpack.c.b16 %v3965, %v3949
    %v5838 = vpack.c.b16 %v3982, %v3966
    %v5839 = vpack.c.b16 %v3983, %v3967
    %v5840 = vpack.c.b16 %v3984, %v3968
    %v5841 = vpack.c.b16 %v3985, %v3969
    %v5842 = vpack.c.b16 %v3986, %v3970
    %v5843 = vpack.c.b16 %v3987, %v3971
    %v5844 = vpack.c.b16 %v3988, %v3972
    %v5845 = vpack.c.b16 %v3989, %v3973
    %v5846 = vpack.c.b16 %v3990, %v3974
    %v5847 = vpack.c.b16 %v3991, %v3975
    %v5848 = vpack.c.b16 %v3992, %v3976
    %v5849 = vpack.c.b16 %v3993, %v3977
    %v5850 = vpack.c.b16 %v3994, %v3978
    %v5851 = vpack.c.b16 %v3995, %v3979
    %v5852 = vpack.c.b16 %v3996, %v3980
    %v5853 = vpack.c.b16 %v3997, %v3981
    %v5854 = vpack.c.b16 %v4014, %v3998
    %v5855 = vpack.c.b16 %v4015, %v3999
    %v5856 = vpack.c.b16 %v4016, %v4000
    %v5857 = vpack.c.b16 %v4017, %v4001
    %v5858 = vpack.c.b16 %v4018, %v4002
    %v5859 = vpack.c.b16 %v4019, %v4003
    %v5860 = vpack.c.b16 %v4020, %v4004
    %v5861 = vpack.c.b16 %v4021, %v4005
    %v5862 = vpack.c.b16 %v4022, %v4006
    %v5863 = vpack.c.b16 %v4023, %v4007
    %v5864 = vpack.c.b16 %v4024, %v4008
    %v5865 = vpack.c.b16 %v4025, %v4009
    %v5866 = vpack.c.b16 %v4026, %v4010
    %v5867 = vpack.c.b16 %v4027, %v4011
    %v5868 = vpack.c.b16 %v4028, %v4012
    %v5869 = vpack.c.b16 %v4029, %v4013
    %v5870 = vpack.c.b16 %v4046, %v4030
    %v5871 = vpack.c.b16 %v4047, %v4031
    %v5872 = vpack.c.b16 %v4048, %v4032
    %v5873 = vpack.c.b16 %v4049, %v4033
    %v5874 = vpack.c.b16 %v4050, %v4034
    %v5875 = vpack.c.b16 %v4051, %v4035
    %v5876 = vpack.c.b16 %v4052, %v4036
    %v5877 = vpack.c.b16 %v4053, %v4037
    %v5878 = vpack.c.b16 %v4054, %v4038
    %v5879 = vpack.c.b16 %v4055, %v4039
    %v5880 = vpack.c.b16 %v4056, %v4040
    %v5881 = vpack.c.b16 %v4057, %v4041
    %v5882 = vpack.c.b16 %v4058, %v4042
    %v5883 = vpack.c.b16 %v4059, %v4043
    %v5884 = vpack.c.b16 %v4060, %v4044
    %v5885 = vpack.c.b16 %v4061, %v4045
    %v5886 = vpack.c.b16 %v4078, %v4062
    %v5887 = vpack.c.b16 %v4079, %v4063
    %v5888 = vpack.c.b16 %v4080, %v4064
    %v5889 = vpack.c.b16 %v4081, %v4065
    %v5890 = vpack.c.b16 %v4082, %v4066
    %v5891 = vpack.c.b16 %v4083, %v4067
    %v5892 = vpack.c.b16 %v4084, %v4068
    %v5893 = vpack.c.b16 %v4085, %v4069
    %v5894 = vpack.c.b16 %v4086, %v4070
    %v5895 = vpack.c.b16 %v4087, %v4071
    %v5896 = vpack.c.b16 %v4088, %v4072
    %v5897 = vpack.c.b16 %v4089, %v4073
    %v5898 = vpack.c.b16 %v4090, %v4074
    %v5899 = vpack.c.b16 %v4091, %v4075
    %v5900 = vpack.c.b16 %v4092, %v4076
    %v5901 = vpack.c.b16 %v4093, %v4077
    %v5902 = vpack.c.b16 %v4110, %v4094
    %v5903 = vpack.c.b16 %v4111, %v4095
    %v5904 = vpack.c.b16 %v4112, %v4096
    %v5905 = vpack.c.b16 %v4113, %v4097
    %v5906 = vpack.c.b16 %v4114, %v4098
    %v5907 = vpack.c.b16 %v4115, %v4099
    %v5908 = vpack.c.b16 %v4116, %v4100
    %v5909 = vpack.c.b16 %v4117, %v4101
    %v5910 = vpack.c.b16 %v4118, %v4102
    %v5911 = vpack.c.b16 %v4119, %v4103
    %v5912 = vpack.c.b16 %v4120, %v4104
    %v5913 = vpack.c.b16 %v4121, %v4105
    %v5914 = vpack.c.b16 %v4122, %v4106
    %v5915 = vpack.c.b16 %v4123, %v4107
    %v5916 = vpack.c.b16 %v4124, %v4108
    %v5917 = vpack.c.b16 %v4125, %v4109
    %v5918 = vpack.c.b16 %v4142, %v4126
    %v5919 = vpack.c.b16 %v4143, %v4127
    %v5920 = vpack.c.b16 %v4144, %v4128
    %v5921 = vpack.c.b16 %v4145, %v4129
    %v5922 = vpack.c.b16 %v4146, %v4130
    %v5923 = vpack.c.b16 %v4147, %v4131
    %v5924 = vpack.c.b16 %v4148, %v4132
    %v5925 = vpack.c.b16 %v4149, %v4133
    %v5926 = vpack.c.b16 %v4150, %v4134
    %v5927 = vpack.c.b16 %v4151, %v4135
    %v5928 = vpack.c.b16 %v4152, %v4136
    %v5929 = vpack.c.b16 %v4153, %v4137
    %v5930 = vpack.c.b16 %v4154, %v4138
    %v5931 = vpack.c.b16 %v4155, %v4139
    %v5932 = vpack.c.b16 %v4156, %v4140
    %v5933 = vpack.c.b16 %v4157, %v4141
    %v5934 = vpack.c.b16 %v4174, %v4158
    %v5935 = vpack.c.b16 %v4175, %v4159
    %v5936 = vpack.c.b16 %v4176, %v4160
    %v5937 = vpack.c.b16 %v4177, %v4161
    %v5938 = vpack.c.b16 %v4178, %v4162
    %v5939 = vpack.c.b16 %v4179, %v4163
    %v5940 = vpack.c.b16 %v4180, %v4164
    %v5941 = vpack.c.b16 %v4181, %v4165
    %v5942 = vpack.c.b16 %v4182, %v4166
    %v5943 = vpack.c.b16 %v4183, %v4167
    %v5944 = vpack.c.b16 %v4184, %v4168
    %v5945 = vpack.c.b16 %v4185, %v4169
    %v5946 = vpack.c.b16 %v4186, %v4170
    %v5947 = vpack.c.b16 %v4187, %v4171
    %v5948 = vpack.c.b16 %v4188, %v4172
    %v5949 = vpack.c.b16 %v4189, %v4173
    %v5950 = vpack.c.b16 %v4206, %v4190
    %v5951 = vpack.c.b16 %v4207, %v4191
    %v5952 = vpack.c.b16 %v4208, %v4192
    %v5953 = vpack.c.b16 %v4209, %v4193
    %v5954 = vpack.c.b16 %v4210, %v4194
    %v5955 = vpack.c.b16 %v4211, %v4195
    %v5956 = vpack.c.b16 %v4212, %v4196
    %v5957 = vpack.c.b16 %v4213, %v4197
    %v5958 = vpack.c.b16 %v4214, %v4198
    %v5959 = vpack.c.b16 %v4215, %v4199
    %v5960 = vpack.c.b16 %v4216, %v4200
    %v5961 = vpack.c.b16 %v4217, %v4201
    %v5962 = vpack.c.b16 %v4218, %v4202
    %v5963 = vpack.c.b16 %v4219, %v4203
    %v5964 = vpack.c.b16 %v4220, %v4204
    %v5965 = vpack.c.b16 %v4221, %v4205
    %v5966 = vpack.c.b16 %v4238, %v4222
    %v5967 = vpack.c.b16 %v4239, %v4223
    %v5968 = vpack.c.b16 %v4240, %v4224
    %v5969 = vpack.c.b16 %v4241, %v4225
    %v5970 = vpack.c.b16 %v4242, %v4226
    %v5971 = vpack.c.b16 %v4243, %v4227
    %v5972 = vpack.c.b16 %v4244, %v4228
    %v5973 = vpack.c.b16 %v4245, %v4229
    %v5974 = vpack.c.b16 %v4246, %v4230
    %v5975 = vpack.c.b16 %v4247, %v4231
    %v5976 = vpack.c.b16 %v4248, %v4232
    %v5977 = vpack.c.b16 %v4249, %v4233
    %v5978 = vpack.c.b16 %v4250, %v4234
    %v5979 = vpack.c.b16 %v4251, %v4235
    %v5980 = vpack.c.b16 %v4252, %v4236
    %v5981 = vpack.c.b16 %v4253, %v4237
    %v5982 = vpack.c.b16 %v4270, %v4254
    %v5983 = vpack.c.b16 %v4271, %v4255
    %v5984 = vpack.c.b16 %v4272, %v4256
    %v5985 = vpack.c.b16 %v4273, %v4257
    %v5986 = vpack.c.b16 %v4274, %v4258
    %v5987 = vpack.c.b16 %v4275, %v4259
    %v5988 = vpack.c.b16 %v4276, %v4260
    %v5989 = vpack.c.b16 %v4277, %v4261
    %v5990 = vpack.c.b16 %v4278, %v4262
    %v5991 = vpack.c.b16 %v4279, %v4263
    %v5992 = vpack.c.b16 %v4280, %v4264
    %v5993 = vpack.c.b16 %v4281, %v4265
    %v5994 = vpack.c.b16 %v4282, %v4266
    %v5995 = vpack.c.b16 %v4283, %v4267
    %v5996 = vpack.c.b16 %v4284, %v4268
    %v5997 = vpack.c.b16 %v4285, %v4269
    %v5998 = vpack.c.b16 %v4302, %v4286
    %v5999 = vpack.c.b16 %v4303, %v4287
    %v6000 = vpack.c.b16 %v4304, %v4288
    %v6001 = vpack.c.b16 %v4305, %v4289
    %v6002 = vpack.c.b16 %v4306, %v4290
    %v6003 = vpack.c.b16 %v4307, %v4291
    %v6004 = vpack.c.b16 %v4308, %v4292
    %v6005 = vpack.c.b16 %v4309, %v4293
    %v6006 = vpack.c.b16 %v4310, %v4294
    %v6007 = vpack.c.b16 %v4311, %v4295
    %v6008 = vpack.c.b16 %v4312, %v4296
    %v6009 = vpack.c.b16 %v4313, %v4297
    %v6010 = vpack.c.b16 %v4314, %v4298
    %v6011 = vpack.c.b16 %v4315, %v4299
    %v6012 = vpack.c.b16 %v4316, %v4300
    %v6013 = vpack.c.b16 %v4317, %v4301
    %v6014 = vpack.c.b16 %v4334, %v4318
    %v6015 = vpack.c.b16 %v4335, %v4319
    %v6016 = vpack.c.b16 %v4336, %v4320
    %v6017 = vpack.c.b16 %v4337, %v4321
    %v6018 = vpack.c.b16 %v4338, %v4322
    %v6019 = vpack.c.b16 %v4339, %v4323
    %v6020 = vpack.c.b16 %v4340, %v4324
    %v6021 = vpack.c.b16 %v4341, %v4325
    %v6022 = vpack.c.b16 %v4342, %v4326
    %v6023 = vpack.c.b16 %v4343, %v4327
    %v6024 = vpack.c.b16 %v4344, %v4328
    %v6025 = vpack.c.b16 %v4345, %v4329
    %v6026 = vpack.c.b16 %v4346, %v4330
    %v6027 = vpack.c.b16 %v4347, %v4331
    %v6028 = vpack.c.b16 %v4348, %v4332
    %v6029 = vpack.c.b16 %v4349, %v4333
    %v6030 = vpack.c.b16 %v4366, %v4350
    %v6031 = vpack.c.b16 %v4367, %v4351
    %v6032 = vpack.c.b16 %v4368, %v4352
    %v6033 = vpack.c.b16 %v4369, %v4353
    %v6034 = vpack.c.b16 %v4370, %v4354
    %v6035 = vpack.c.b16 %v4371, %v4355
    %v6036 = vpack.c.b16 %v4372, %v4356
    %v6037 = vpack.c.b16 %v4373, %v4357
    %v6038 = vpack.c.b16 %v4374, %v4358
    %v6039 = vpack.c.b16 %v4375, %v4359
    %v6040 = vpack.c.b16 %v4376, %v4360
    %v6041 = vpack.c.b16 %v4377, %v4361
    %v6042 = vpack.c.b16 %v4378, %v4362
    %v6043 = vpack.c.b16 %v4379, %v4363
    %v6044 = vpack.c.b16 %v4380, %v4364
    %v6045 = vpack.c.b16 %v4381, %v4365
    %v6046 = vpack.c.b16 %v4398, %v4382
    %v6047 = vpack.c.b16 %v4399, %v4383
    %v6048 = vpack.c.b16 %v4400, %v4384
    %v6049 = vpack.c.b16 %v4401, %v4385
    %v6050 = vpack.c.b16 %v4402, %v4386
    %v6051 = vpack.c.b16 %v4403, %v4387
    %v6052 = vpack.c.b16 %v4404, %v4388
    %v6053 = vpack.c.b16 %v4405, %v4389
    %v6054 = vpack.c.b16 %v4406, %v4390
    %v6055 = vpack.c.b16 %v4407, %v4391
    %v6056 = vpack.c.b16 %v4408, %v4392
    %v6057 = vpack.c.b16 %v4409, %v4393
    %v6058 = vpack.c.b16 %v4410, %v4394
    %v6059 = vpack.c.b16 %v4411, %v4395
    %v6060 = vpack.c.b16 %v4412, %v4396
    %v6061 = vpack.c.b16 %v4413, %v4397
    %v6062 = vpack.c.b16 %v4430, %v4414
    %v6063 = vpack.c.b16 %v4431, %v4415
    %v6064 = vpack.c.b16 %v4432, %v4416
    %v6065 = vpack.c.b16 %v4433, %v4417
    %v6066 = vpack.c.b16 %v4434, %v4418
    %v6067 = vpack.c.b16 %v4435, %v4419
    %v6068 = vpack.c.b16 %v4436, %v4420
    %v6069 = vpack.c.b16 %v4437, %v4421
    %v6070 = vpack.c.b16 %v4438, %v4422
    %v6071 = vpack.c.b16 %v4439, %v4423
    %v6072 = vpack.c.b16 %v4440, %v4424
    %v6073 = vpack.c.b16 %v4441, %v4425
    %v6074 = vpack.c.b16 %v4442, %v4426
    %v6075 = vpack.c.b16 %v4443, %v4427
    %v6076 = vpack.c.b16 %v4444, %v4428
    %v6077 = vpack.c.b16 %v4445, %v4429
    %v6078 = vpack.c.b16 %v4462, %v4446
    %v6079 = vpack.c.b16 %v4463, %v4447
    %v6080 = vpack.c.b16 %v4464, %v4448
    %v6081 = vpack.c.b16 %v4465, %v4449
    %v6082 = vpack.c.b16 %v4466, %v4450
    %v6083 = vpack.c.b16 %v4467, %v4451
    %v6084 = vpack.c.b16 %v4468, %v4452
    %v6085 = vpack.c.b16 %v4469, %v4453
    %v6086 = vpack.c.b16 %v4470, %v4454
    %v6087 = vpack.c.b16 %v4471, %v4455
    %v6088 = vpack.c.b16 %v4472, %v4456
    %v6089 = vpack.c.b16 %v4473, %v4457
    %v6090 = vpack.c.b16 %v4474, %v4458
    %v6091 = vpack.c.b16 %v4475, %v4459
    %v6092 = vpack.c.b16 %v4476, %v4460
    %v6093 = vpack.c.b16 %v4477, %v4461
    %v6094 = vpack.c.b16 %v4494, %v4478
    %v6095 = vpack.c.b16 %v4495, %v4479
    %v6096 = vpack.c.b16 %v4496, %v4480
    %v6097 = vpack.c.b16 %v4497, %v4481
    %v6098 = vpack.c.b16 %v4498, %v4482
    %v6099 = vpack.c.b16 %v4499, %v4483
    %v6100 = vpack.c.b16 %v4500, %v4484
    %v6101 = vpack.c.b16 %v4501, %v4485
    %v6102 = vpack.c.b16 %v4502, %v4486
    %v6103 = vpack.c.b16 %v4503, %v4487
    %v6104 = vpack.c.b16 %v4504, %v4488
    %v6105 = vpack.c.b16 %v4505, %v4489
    %v6106 = vpack.c.b16 %v4506, %v4490
    %v6107 = vpack.c.b16 %v4507, %v4491
    %v6108 = vpack.c.b16 %v4508, %v4492
    %v6109 = vpack.c.b16 %v4509, %v4493
    %v6110 = vpack.c.b16 %v4526, %v4510
    %v6111 = vpack.c.b16 %v4527, %v4511
    %v6112 = vpack.c.b16 %v4528, %v4512
    %v6113 = vpack.c.b16 %v4529, %v4513
    %v6114 = vpack.c.b16 %v4530, %v4514
    %v6115 = vpack.c.b16 %v4531, %v4515
    %v6116 = vpack.c.b16 %v4532, %v4516
    %v6117 = vpack.c.b16 %v4533, %v4517
    %v6118 = vpack.c.b16 %v4534, %v4518
    %v6119 = vpack.c.b16 %v4535, %v4519
    %v6120 = vpack.c.b16 %v4536, %v4520
    %v6121 = vpack.c.b16 %v4537, %v4521
    %v6122 = vpack.c.b16 %v4538, %v4522
    %v6123 = vpack.c.b16 %v4539, %v4523
    %v6124 = vpack.c.b16 %v4540, %v4524
    %v6125 = vpack.c.b16 %v4541, %v4525
    %v6126 = vpack.c.b16 %v4558, %v4542
    %v6127 = vpack.c.b16 %v4559, %v4543
    %v6128 = vpack.c.b16 %v4560, %v4544
    %v6129 = vpack.c.b16 %v4561, %v4545
    %v6130 = vpack.c.b16 %v4562, %v4546
    %v6131 = vpack.c.b16 %v4563, %v4547
    %v6132 = vpack.c.b16 %v4564, %v4548
    %v6133 = vpack.c.b16 %v4565, %v4549
    %v6134 = vpack.c.b16 %v4566, %v4550
    %v6135 = vpack.c.b16 %v4567, %v4551
    %v6136 = vpack.c.b16 %v4568, %v4552
    %v6137 = vpack.c.b16 %v4569, %v4553
    %v6138 = vpack.c.b16 %v4570, %v4554
    %v6139 = vpack.c.b16 %v4571, %v4555
    %v6140 = vpack.c.b16 %v4572, %v4556
    %v6141 = vpack.c.b16 %v4573, %v4557
    %v6142 = vpack.c.b16 %v4590, %v4574
    %v6143 = vpack.c.b16 %v4591, %v4575
    %v6144 = vpack.c.b16 %v4592, %v4576
    %v6145 = vpack.c.b16 %v4593, %v4577
    %v6146 = vpack.c.b16 %v4594, %v4578
    %v6147 = vpack.c.b16 %v4595, %v4579
    %v6148 = vpack.c.b16 %v4596, %v4580
    %v6149 = vpack.c.b16 %v4597, %v4581
    %v6150 = vpack.c.b16 %v4598, %v4582
    %v6151 = vpack.c.b16 %v4599, %v4583
    %v6152 = vpack.c.b16 %v4600, %v4584
    %v6153 = vpack.c.b16 %v4601, %v4585
    %v6154 = vpack.c.b16 %v4602, %v4586
    %v6155 = vpack.c.b16 %v4603, %v4587
    %v6156 = vpack.c.b16 %v4604, %v4588
    %v6157 = vpack.c.b16 %v4605, %v4589
    %v6158 = vpack.c.b16 %v4622, %v4606
    %v6159 = vpack.c.b16 %v4623, %v4607
    %v6160 = vpack.c.b16 %v4624, %v4608
    %v6161 = vpack.c.b16 %v4625, %v4609
    %v6162 = vpack.c.b16 %v4626, %v4610
    %v6163 = vpack.c.b16 %v4627, %v4611
    %v6164 = vpack.c.b16 %v4628, %v4612
    %v6165 = vpack.c.b16 %v4629, %v4613
    %v6166 = vpack.c.b16 %v4630, %v4614
    %v6167 = vpack.c.b16 %v4631, %v4615
    %v6168 = vpack.c.b16 %v4632, %v4616
    %v6169 = vpack.c.b16 %v4633, %v4617
    %v6170 = vpack.c.b16 %v4634, %v4618
    %v6171 = vpack.c.b16 %v4635, %v4619
    %v6172 = vpack.c.b16 %v4636, %v4620
    %v6173 = vpack.c.b16 %v4637, %v4621
    %v6174 = vpack.c.b16 %v4654, %v4638
    %v6175 = vpack.c.b16 %v4655, %v4639
    %v6176 = vpack.c.b16 %v4656, %v4640
    %v6177 = vpack.c.b16 %v4657, %v4641
    %v6178 = vpack.c.b16 %v4658, %v4642
    %v6179 = vpack.c.b16 %v4659, %v4643
    %v6180 = vpack.c.b16 %v4660, %v4644
    %v6181 = vpack.c.b16 %v4661, %v4645
    %v6182 = vpack.c.b16 %v4662, %v4646
    %v6183 = vpack.c.b16 %v4663, %v4647
    %v6184 = vpack.c.b16 %v4664, %v4648
    %v6185 = vpack.c.b16 %v4665, %v4649
    %v6186 = vpack.c.b16 %v4666, %v4650
    %v6187 = vpack.c.b16 %v4667, %v4651
    %v6188 = vpack.c.b16 %v4668, %v4652
    %v6189 = vpack.c.b16 %v4669, %v4653
    %v6190 = vpack.c.b16 %v4686, %v4670
    %v6191 = vpack.c.b16 %v4687, %v4671
    %v6192 = vpack.c.b16 %v4688, %v4672
    %v6193 = vpack.c.b16 %v4689, %v4673
    %v6194 = vpack.c.b16 %v4690, %v4674
    %v6195 = vpack.c.b16 %v4691, %v4675
    %v6196 = vpack.c.b16 %v4692, %v4676
    %v6197 = vpack.c.b16 %v4693, %v4677
    %v6198 = vpack.c.b16 %v4694, %v4678
    %v6199 = vpack.c.b16 %v4695, %v4679
    %v6200 = vpack.c.b16 %v4696, %v4680
    %v6201 = vpack.c.b16 %v4697, %v4681
    %v6202 = vpack.c.b16 %v4698, %v4682
    %v6203 = vpack.c.b16 %v4699, %v4683
    %v6204 = vpack.c.b16 %v4700, %v4684
    %v6205 = vpack.c.b16 %v4701, %v4685
    %v6206 = vpack.c.b16 %v4718, %v4702
    %v6207 = vpack.c.b16 %v4719, %v4703
    %v6208 = vpack.c.b16 %v4720, %v4704
    %v6209 = vpack.c.b16 %v4721, %v4705
    %v6210 = vpack.c.b16 %v4722, %v4706
    %v6211 = vpack.c.b16 %v4723, %v4707
    %v6212 = vpack.c.b16 %v4724, %v4708
    %v6213 = vpack.c.b16 %v4725, %v4709
    %v6214 = vpack.c.b16 %v4726, %v4710
    %v6215 = vpack.c.b16 %v4727, %v4711
    %v6216 = vpack.c.b16 %v4728, %v4712
    %v6217 = vpack.c.b16 %v4729, %v4713
    %v6218 = vpack.c.b16 %v4730, %v4714
    %v6219 = vpack.c.b16 %v4731, %v4715
    %v6220 = vpack.c.b16 %v4732, %v4716
    %v6221 = vpack.c.b16 %v4733, %v4717
    %v6222 = vpack.c.b16 %v4750, %v4734
    %v6223 = vpack.c.b16 %v4751, %v4735
    %v6224 = vpack.c.b16 %v4752, %v4736
    %v6225 = vpack.c.b16 %v4753, %v4737
    %v6226 = vpack.c.b16 %v4754, %v4738
    %v6227 = vpack.c.b16 %v4755, %v4739
    %v6228 = vpack.c.b16 %v4756, %v4740
    %v6229 = vpack.c.b16 %v4757, %v4741
    %v6230 = vpack.c.b16 %v4758, %v4742
    %v6231 = vpack.c.b16 %v4759, %v4743
    %v6232 = vpack.c.b16 %v4760, %v4744
    %v6233 = vpack.c.b16 %v4761, %v4745
    %v6234 = vpack.c.b16 %v4762, %v4746
    %v6235 = vpack.c.b16 %v4763, %v4747
    %v6236 = vpack.c.b16 %v4764, %v4748
    %v6237 = vpack.c.b16 %v4765, %v4749
    %v6238 = vpack.c.b16 %v4782, %v4766
    %v6239 = vpack.c.b16 %v4783, %v4767
    %v6240 = vpack.c.b16 %v4784, %v4768
    %v6241 = vpack.c.b16 %v4785, %v4769
    %v6242 = vpack.c.b16 %v4786, %v4770
    %v6243 = vpack.c.b16 %v4787, %v4771
    %v6244 = vpack.c.b16 %v4788, %v4772
    %v6245 = vpack.c.b16 %v4789, %v4773
    %v6246 = vpack.c.b16 %v4790, %v4774
    %v6247 = vpack.c.b16 %v4791, %v4775
    %v6248 = vpack.c.b16 %v4792, %v4776
    %v6249 = vpack.c.b16 %v4793, %v4777
    %v6250 = vpack.c.b16 %v4794, %v4778
    %v6251 = vpack.c.b16 %v4795, %v4779
    %v6252 = vpack.c.b16 %v4796, %v4780
    %v6253 = vpack.c.b16 %v4797, %v4781
    %v6254 = vpack.c.b16 %v4814, %v4798
    %v6255 = vpack.c.b16 %v4815, %v4799
    %v6256 = vpack.c.b16 %v4816, %v4800
    %v6257 = vpack.c.b16 %v4817, %v4801
    %v6258 = vpack.c.b16 %v4818, %v4802
    %v6259 = vpack.c.b16 %v4819, %v4803
    %v6260 = vpack.c.b16 %v4820, %v4804
    %v6261 = vpack.c.b16 %v4821, %v4805
    %v6262 = vpack.c.b16 %v4822, %v4806
    %v6263 = vpack.c.b16 %v4823, %v4807
    %v6264 = vpack.c.b16 %v4824, %v4808
    %v6265 = vpack.c.b16 %v4825, %v4809
    %v6266 = vpack.c.b16 %v4826, %v4810
    %v6267 = vpack.c.b16 %v4827, %v4811
    %v6268 = vpack.c.b16 %v4828, %v4812
    %v6269 = vpack.c.b16 %v4829, %v4813
    %v6270 = vpack.c.b16 %v4846, %v4830
    %v6271 = vpack.c.b16 %v4847, %v4831
    %v6272 = vpack.c.b16 %v4848, %v4832
    %v6273 = vpack.c.b16 %v4849, %v4833
    %v6274 = vpack.c.b16 %v4850, %v4834
    %v6275 = vpack.c.b16 %v4851, %v4835
    %v6276 = vpack.c.b16 %v4852, %v4836
    %v6277 = vpack.c.b16 %v4853, %v4837
    %v6278 = vpack.c.b16 %v4854, %v4838
    %v6279 = vpack.c.b16 %v4855, %v4839
    %v6280 = vpack.c.b16 %v4856, %v4840
    %v6281 = vpack.c.b16 %v4857, %v4841
    %v6282 = vpack.c.b16 %v4858, %v4842
    %v6283 = vpack.c.b16 %v4859, %v4843
    %v6284 = vpack.c.b16 %v4860, %v4844
    %v6285 = vpack.c.b16 %v4861, %v4845
    %v6286 = vpack.c.b16 %v4878, %v4862
    %v6287 = vpack.c.b16 %v4879, %v4863
    %v6288 = vpack.c.b16 %v4880, %v4864
    %v6289 = vpack.c.b16 %v4881, %v4865
    %v6290 = vpack.c.b16 %v4882, %v4866
    %v6291 = vpack.c.b16 %v4883, %v4867
    %v6292 = vpack.c.b16 %v4884, %v4868
    %v6293 = vpack.c.b16 %v4885, %v4869
    %v6294 = vpack.c.b16 %v4886, %v4870
    %v6295 = vpack.c.b16 %v4887, %v4871
    %v6296 = vpack.c.b16 %v4888, %v4872
    %v6297 = vpack.c.b16 %v4889, %v4873
    %v6298 = vpack.c.b16 %v4890, %v4874
    %v6299 = vpack.c.b16 %v4891, %v4875
    %v6300 = vpack.c.b16 %v4892, %v4876
    %v6301 = vpack.c.b16 %v4893, %v4877
    %v6302 = vpack.c.b16 %v4910, %v4894
    %v6303 = vpack.c.b16 %v4911, %v4895
    %v6304 = vpack.c.b16 %v4912, %v4896
    %v6305 = vpack.c.b16 %v4913, %v4897
    %v6306 = vpack.c.b16 %v4914, %v4898
    %v6307 = vpack.c.b16 %v4915, %v4899
    %v6308 = vpack.c.b16 %v4916, %v4900
    %v6309 = vpack.c.b16 %v4917, %v4901
    %v6310 = vpack.c.b16 %v4918, %v4902
    %v6311 = vpack.c.b16 %v4919, %v4903
    %v6312 = vpack.c.b16 %v4920, %v4904
    %v6313 = vpack.c.b16 %v4921, %v4905
    %v6314 = vpack.c.b16 %v4922, %v4906
    %v6315 = vpack.c.b16 %v4923, %v4907
    %v6316 = vpack.c.b16 %v4924, %v4908
    %v6317 = vpack.c.b16 %v4925, %v4909
    %v6318 = vpack.c.b16 %v4942, %v4926
    %v6319 = vpack.c.b16 %v4943, %v4927
    %v6320 = vpack.c.b16 %v4944, %v4928
    %v6321 = vpack.c.b16 %v4945, %v4929
    %v6322 = vpack.c.b16 %v4946, %v4930
    %v6323 = vpack.c.b16 %v4947, %v4931
    %v6324 = vpack.c.b16 %v4948, %v4932
    %v6325 = vpack.c.b16 %v4949, %v4933
    %v6326 = vpack.c.b16 %v4950, %v4934
    %v6327 = vpack.c.b16 %v4951, %v4935
    %v6328 = vpack.c.b16 %v4952, %v4936
    %v6329 = vpack.c.b16 %v4953, %v4937
    %v6330 = vpack.c.b16 %v4954, %v4938
    %v6331 = vpack.c.b16 %v4955, %v4939
    %v6332 = vpack.c.b16 %v4956, %v4940
    %v6333 = vpack.c.b16 %v4957, %v4941
    %v6334 = vpack.c.b16 %v4974, %v4958
    %v6335 = vpack.c.b16 %v4975, %v4959
    %v6336 = vpack.c.b16 %v4976, %v4960
    %v6337 = vpack.c.b16 %v4977, %v4961
    %v6338 = vpack.c.b16 %v4978, %v4962
    %v6339 = vpack.c.b16 %v4979, %v4963
    %v6340 = vpack.c.b16 %v4980, %v4964
    %v6341 = vpack.c.b16 %v4981, %v4965
    %v6342 = vpack.c.b16 %v4982, %v4966
    %v6343 = vpack.c.b16 %v4983, %v4967
    %v6344 = vpack.c.b16 %v4984, %v4968
    %v6345 = vpack.c.b16 %v4985, %v4969
    %v6346 = vpack.c.b16 %v4986, %v4970
    %v6347 = vpack.c.b16 %v4987, %v4971
    %v6348 = vpack.c.b16 %v4988, %v4972
    %v6349 = vpack.c.b16 %v4989, %v4973
    %v6350 = vpack.c.b16 %v5006, %v4990
    %v6351 = vpack.c.b16 %v5007, %v4991
    %v6352 = vpack.c.b16 %v5008, %v4992
    %v6353 = vpack.c.b16 %v5009, %v4993
    %v6354 = vpack.c.b16 %v5010, %v4994
    %v6355 = vpack.c.b16 %v5011, %v4995
    %v6356 = vpack.c.b16 %v5012, %v4996
    %v6357 = vpack.c.b16 %v5013, %v4997
    %v6358 = vpack.c.b16 %v5014, %v4998
    %v6359 = vpack.c.b16 %v5015, %v4999
    %v6360 = vpack.c.b16 %v5016, %v5000
    %v6361 = vpack.c.b16 %v5017, %v5001
    %v6362 = vpack.c.b16 %v5018, %v5002
    %v6363 = vpack.c.b16 %v5019, %v5003
    %v6364 = vpack.c.b16 %v5020, %v5004
    %v6365 = vpack.c.b16 %v5021, %v5005
    %v6366 = vpack.c.b16 %v5038, %v5022
    %v6367 = vpack.c.b16 %v5039, %v5023
    %v6368 = vpack.c.b16 %v5040, %v5024
    %v6369 = vpack.c.b16 %v5041, %v5025
    %v6370 = vpack.c.b16 %v5042, %v5026
    %v6371 = vpack.c.b16 %v5043, %v5027
    %v6372 = vpack.c.b16 %v5044, %v5028
    %v6373 = vpack.c.b16 %v5045, %v5029
    %v6374 = vpack.c.b16 %v5046, %v5030
    %v6375 = vpack.c.b16 %v5047, %v5031
    %v6376 = vpack.c.b16 %v5048, %v5032
    %v6377 = vpack.c.b16 %v5049, %v5033
    %v6378 = vpack.c.b16 %v5050, %v5034
    %v6379 = vpack.c.b16 %v5051, %v5035
    %v6380 = vpack.c.b16 %v5052, %v5036
    %v6381 = vpack.c.b16 %v5053, %v5037
    %v6382 = vpack.c.b16 %v5070, %v5054
    %v6383 = vpack.c.b16 %v5071, %v5055
    %v6384 = vpack.c.b16 %v5072, %v5056
    %v6385 = vpack.c.b16 %v5073, %v5057
    %v6386 = vpack.c.b16 %v5074, %v5058
    %v6387 = vpack.c.b16 %v5075, %v5059
    %v6388 = vpack.c.b16 %v5076, %v5060
    %v6389 = vpack.c.b16 %v5077, %v5061
    %v6390 = vpack.c.b16 %v5078, %v5062
    %v6391 = vpack.c.b16 %v5079, %v5063
    %v6392 = vpack.c.b16 %v5080, %v5064
    %v6393 = vpack.c.b16 %v5081, %v5065
    %v6394 = vpack.c.b16 %v5082, %v5066
    %v6395 = vpack.c.b16 %v5083, %v5067
    %v6396 = vpack.c.b16 %v5084, %v5068
    %v6397 = vpack.c.b16 %v5085, %v5069
    %v6398 = vpack.c.b16 %v5102, %v5086
    %v6399 = vpack.c.b16 %v5103, %v5087
    %v6400 = vpack.c.b16 %v5104, %v5088
    %v6401 = vpack.c.b16 %v5105, %v5089
    %v6402 = vpack.c.b16 %v5106, %v5090
    %v6403 = vpack.c.b16 %v5107, %v5091
    %v6404 = vpack.c.b16 %v5108, %v5092
    %v6405 = vpack.c.b16 %v5109, %v5093
    %v6406 = vpack.c.b16 %v5110, %v5094
    %v6407 = vpack.c.b16 %v5111, %v5095
    %v6408 = vpack.c.b16 %v5112, %v5096
    %v6409 = vpack.c.b16 %v5113, %v5097
    %v6410 = vpack.c.b16 %v5114, %v5098
    %v6411 = vpack.c.b16 %v5115, %v5099
    %v6412 = vpack.c.b16 %v5116, %v5100
    %v6413 = vpack.c.b16 %v5117, %v5101
    %v6414 = vpack.c.b16 %v5134, %v5118
    %v6415 = vpack.c.b16 %v5135, %v5119
    %v6416 = vpack.c.b16 %v5136, %v5120
    %v6417 = vpack.c.b16 %v5137, %v5121
    %v6418 = vpack.c.b16 %v5138, %v5122
    %v6419 = vpack.c.b16 %v5139, %v5123
    %v6420 = vpack.c.b16 %v5140, %v5124
    %v6421 = vpack.c.b16 %v5141, %v5125
    %v6422 = vpack.c.b16 %v5142, %v5126
    %v6423 = vpack.c.b16 %v5143, %v5127
    %v6424 = vpack.c.b16 %v5144, %v5128
    %v6425 = vpack.c.b16 %v5145, %v5129
    %v6426 = vpack.c.b16 %v5146, %v5130
    %v6427 = vpack.c.b16 %v5147, %v5131
    %v6428 = vpack.c.b16 %v5148, %v5132
    %v6429 = vpack.c.b16 %v5149, %v5133
    %v6430 = vpack.c.b16 %v5166, %v5150
    %v6431 = vpack.c.b16 %v5167, %v5151
    %v6432 = vpack.c.b16 %v5168, %v5152
    %v6433 = vpack.c.b16 %v5169, %v5153
    %v6434 = vpack.c.b16 %v5170, %v5154
    %v6435 = vpack.c.b16 %v5171, %v5155
    %v6436 = vpack.c.b16 %v5172, %v5156
    %v6437 = vpack.c.b16 %v5173, %v5157
    %v6438 = vpack.c.b16 %v5174, %v5158
    %v6439 = vpack.c.b16 %v5175, %v5159
    %v6440 = vpack.c.b16 %v5176, %v5160
    %v6441 = vpack.c.b16 %v5177, %v5161
    %v6442 = vpack.c.b16 %v5178, %v5162
    %v6443 = vpack.c.b16 %v5179, %v5163
    %v6444 = vpack.c.b16 %v5180, %v5164
    %v6445 = vpack.c.b16 %v5181, %v5165
    %v6446 = vpack.c.b16 %v5198, %v5182
    %v6447 = vpack.c.b16 %v5199, %v5183
    %v6448 = vpack.c.b16 %v5200, %v5184
    %v6449 = vpack.c.b16 %v5201, %v5185
    %v6450 = vpack.c.b16 %v5202, %v5186
    %v6451 = vpack.c.b16 %v5203, %v5187
    %v6452 = vpack.c.b16 %v5204, %v5188
    %v6453 = vpack.c.b16 %v5205, %v5189
    %v6454 = vpack.c.b16 %v5206, %v5190
    %v6455 = vpack.c.b16 %v5207, %v5191
    %v6456 = vpack.c.b16 %v5208, %v5192
    %v6457 = vpack.c.b16 %v5209, %v5193
    %v6458 = vpack.c.b16 %v5210, %v5194
    %v6459 = vpack.c.b16 %v5211, %v5195
    %v6460 = vpack.c.b16 %v5212, %v5196
    %v6461 = vpack.c.b16 %v5213, %v5197
    %v6462 = vpack.c.b16 %v5230, %v5214
    %v6463 = vpack.c.b16 %v5231, %v5215
    %v6464 = vpack.c.b16 %v5232, %v5216
    %v6465 = vpack.c.b16 %v5233, %v5217
    %v6466 = vpack.c.b16 %v5234, %v5218
    %v6467 = vpack.c.b16 %v5235, %v5219
    %v6468 = vpack.c.b16 %v5236, %v5220
    %v6469 = vpack.c.b16 %v5237, %v5221
    %v6470 = vpack.c.b16 %v5238, %v5222
    %v6471 = vpack.c.b16 %v5239, %v5223
    %v6472 = vpack.c.b16 %v5240, %v5224
    %v6473 = vpack.c.b16 %v5241, %v5225
    %v6474 = vpack.c.b16 %v5242, %v5226
    %v6475 = vpack.c.b16 %v5243, %v5227
    %v6476 = vpack.c.b16 %v5244, %v5228
    %v6477 = vpack.c.b16 %v5245, %v5229
    %v6478 = vpack.c.b16 %v5262, %v5246
    %v6479 = vpack.c.b16 %v5263, %v5247
    %v6480 = vpack.c.b16 %v5264, %v5248
    %v6481 = vpack.c.b16 %v5265, %v5249
    %v6482 = vpack.c.b16 %v5266, %v5250
    %v6483 = vpack.c.b16 %v5267, %v5251
    %v6484 = vpack.c.b16 %v5268, %v5252
    %v6485 = vpack.c.b16 %v5269, %v5253
    %v6486 = vpack.c.b16 %v5270, %v5254
    %v6487 = vpack.c.b16 %v5271, %v5255
    %v6488 = vpack.c.b16 %v5272, %v5256
    %v6489 = vpack.c.b16 %v5273, %v5257
    %v6490 = vpack.c.b16 %v5274, %v5258
    %v6491 = vpack.c.b16 %v5275, %v5259
    %v6492 = vpack.c.b16 %v5276, %v5260
    %v6493 = vpack.c.b16 %v5277, %v5261
    %v6494 = vpack.c.b16 %v5294, %v5278
    %v6495 = vpack.c.b16 %v5295, %v5279
    %v6496 = vpack.c.b16 %v5296, %v5280
    %v6497 = vpack.c.b16 %v5297, %v5281
    %v6498 = vpack.c.b16 %v5298, %v5282
    %v6499 = vpack.c.b16 %v5299, %v5283
    %v6500 = vpack.c.b16 %v5300, %v5284
    %v6501 = vpack.c.b16 %v5301, %v5285
    %v6502 = vpack.c.b16 %v5302, %v5286
    %v6503 = vpack.c.b16 %v5303, %v5287
    %v6504 = vpack.c.b16 %v5304, %v5288
    %v6505 = vpack.c.b16 %v5305, %v5289
    %v6506 = vpack.c.b16 %v5306, %v5290
    %v6507 = vpack.c.b16 %v5307, %v5291
    %v6508 = vpack.c.b16 %v5308, %v5292
    %v6509 = vpack.c.b16 %v5309, %v5293
    %v6510 = vpack.c.b16 %v5326, %v5310
    %v6511 = vpack.c.b16 %v5327, %v5311
    %v6512 = vpack.c.b16 %v5328, %v5312
    %v6513 = vpack.c.b16 %v5329, %v5313
    %v6514 = vpack.c.b16 %v5330, %v5314
    %v6515 = vpack.c.b16 %v5331, %v5315
    %v6516 = vpack.c.b16 %v5332, %v5316
    %v6517 = vpack.c.b16 %v5333, %v5317
    %v6518 = vpack.c.b16 %v5334, %v5318
    %v6519 = vpack.c.b16 %v5335, %v5319
    %v6520 = vpack.c.b16 %v5336, %v5320
    %v6521 = vpack.c.b16 %v5337, %v5321
    %v6522 = vpack.c.b16 %v5338, %v5322
    %v6523 = vpack.c.b16 %v5339, %v5323
    %v6524 = vpack.c.b16 %v5340, %v5324
    %v6525 = vpack.c.b16 %v5341, %v5325
    %v6526 = vpack.c.b16 %v5358, %v5342
    %v6527 = vpack.c.b16 %v5359, %v5343
    %v6528 = vpack.c.b16 %v5360, %v5344
    %v6529 = vpack.c.b16 %v5361, %v5345
    %v6530 = vpack.c.b16 %v5362, %v5346
    %v6531 = vpack.c.b16 %v5363, %v5347
    %v6532 = vpack.c.b16 %v5364, %v5348
    %v6533 = vpack.c.b16 %v5365, %v5349
    %v6534 = vpack.c.b16 %v5366, %v5350
    %v6535 = vpack.c.b16 %v5367, %v5351
    %v6536 = vpack.c.b16 %v5368, %v5352
    %v6537 = vpack.c.b16 %v5369, %v5353
    %v6538 = vpack.c.b16 %v5370, %v5354
    %v6539 = vpack.c.b16 %v5371, %v5355
    %v6540 = vpack.c.b16 %v5372, %v5356
    %v6541 = vpack.c.b16 %v5373, %v5357
    %v6542 = vpack.c.b16 %v5390, %v5374
    %v6543 = vpack.c.b16 %v5391, %v5375
    %v6544 = vpack.c.b16 %v5392, %v5376
    %v6545 = vpack.c.b16 %v5393, %v5377
    %v6546 = vpack.c.b16 %v5394, %v5378
    %v6547 = vpack.c.b16 %v5395, %v5379
    %v6548 = vpack.c.b16 %v5396, %v5380
    %v6549 = vpack.c.b16 %v5397, %v5381
    %v6550 = vpack.c.b16 %v5398, %v5382
    %v6551 = vpack.c.b16 %v5399, %v5383
    %v6552 = vpack.c.b16 %v5400, %v5384
    %v6553 = vpack.c.b16 %v5401, %v5385
    %v6554 = vpack.c.b16 %v5402, %v5386
    %v6555 = vpack.c.b16 %v5403, %v5387
    %v6556 = vpack.c.b16 %v5404, %v5388
    %v6557 = vpack.c.b16 %v5405, %v5389
    %v6558 = vpack.c.b16 %v5422, %v5406
    %v6559 = vpack.c.b16 %v5423, %v5407
    %v6560 = vpack.c.b16 %v5424, %v5408
    %v6561 = vpack.c.b16 %v5425, %v5409
    %v6562 = vpack.c.b16 %v5426, %v5410
    %v6563 = vpack.c.b16 %v5427, %v5411
    %v6564 = vpack.c.b16 %v5428, %v5412
    %v6565 = vpack.c.b16 %v5429, %v5413
    %v6566 = vpack.c.b16 %v5430, %v5414
    %v6567 = vpack.c.b16 %v5431, %v5415
    %v6568 = vpack.c.b16 %v5432, %v5416
    %v6569 = vpack.c.b16 %v5433, %v5417
    %v6570 = vpack.c.b16 %v5434, %v5418
    %v6571 = vpack.c.b16 %v5435, %v5419
    %v6572 = vpack.c.b16 %v5436, %v5420
    %v6573 = vpack.c.b16 %v5437, %v5421
    %v6574 = vpack.c.b16 %v5454, %v5438
    %v6575 = vpack.c.b16 %v5455, %v5439
    %v6576 = vpack.c.b16 %v5456, %v5440
    %v6577 = vpack.c.b16 %v5457, %v5441
    %v6578 = vpack.c.b16 %v5458, %v5442
    %v6579 = vpack.c.b16 %v5459, %v5443
    %v6580 = vpack.c.b16 %v5460, %v5444
    %v6581 = vpack.c.b16 %v5461, %v5445
    %v6582 = vpack.c.b16 %v5462, %v5446
    %v6583 = vpack.c.b16 %v5463, %v5447
    %v6584 = vpack.c.b16 %v5464, %v5448
    %v6585 = vpack.c.b16 %v5465, %v5449
    %v6586 = vpack.c.b16 %v5466, %v5450
    %v6587 = vpack.c.b16 %v5467, %v5451
    %v6588 = vpack.c.b16 %v5468, %v5452
    %v6589 = vpack.c.b16 %v5469, %v5453
    %v6590 = vpack.c.b16 %v5486, %v5470
    %v6591 = vpack.c.b16 %v5487, %v5471
    %v6592 = vpack.c.b16 %v5488, %v5472
    %v6593 = vpack.c.b16 %v5489, %v5473
    %v6594 = vpack.c.b16 %v5490, %v5474
    %v6595 = vpack.c.b16 %v5491, %v5475
    %v6596 = vpack.c.b16 %v5492, %v5476
    %v6597 = vpack.c.b16 %v5493, %v5477
    %v6598 = vpack.c.b16 %v5494, %v5478
    %v6599 = vpack.c.b16 %v5495, %v5479
    %v6600 = vpack.c.b16 %v5496, %v5480
    %v6601 = vpack.c.b16 %v5497, %v5481
    %v6602 = vpack.c.b16 %v5498, %v5482
    %v6603 = vpack.c.b16 %v5499, %v5483
    %v6604 = vpack.c.b16 %v5500, %v5484
    %v6605 = vpack.c.b16 %v5501, %v5485
    %v6606 = vpack.c.b16 %v5518, %v5502
    %v6607 = vpack.c.b16 %v5519, %v5503
    %v6608 = vpack.c.b16 %v5520, %v5504
    %v6609 = vpack.c.b16 %v5521, %v5505
    %v6610 = vpack.c.b16 %v5522, %v5506
    %v6611 = vpack.c.b16 %v5523, %v5507
    %v6612 = vpack.c.b16 %v5524, %v5508
    %v6613 = vpack.c.b16 %v5525, %v5509
    %v6614 = vpack.c.b16 %v5526, %v5510
    %v6615 = vpack.c.b16 %v5527, %v5511
    %v6616 = vpack.c.b16 %v5528, %v5512
    %v6617 = vpack.c.b16 %v5529, %v5513
    %v6618 = vpack.c.b16 %v5530, %v5514
    %v6619 = vpack.c.b16 %v5531, %v5515
    %v6620 = vpack.c.b16 %v5532, %v5516
    %v6621 = vpack.c.b16 %v5533, %v5517
    %v6622 = vpack.c.b16 %v5550, %v5534
    %v6623 = vpack.c.b16 %v5551, %v5535
    %v6624 = vpack.c.b16 %v5552, %v5536
    %v6625 = vpack.c.b16 %v5553, %v5537
    %v6626 = vpack.c.b16 %v5554, %v5538
    %v6627 = vpack.c.b16 %v5555, %v5539
    %v6628 = vpack.c.b16 %v5556, %v5540
    %v6629 = vpack.c.b16 %v5557, %v5541
    %v6630 = vpack.c.b16 %v5558, %v5542
    %v6631 = vpack.c.b16 %v5559, %v5543
    %v6632 = vpack.c.b16 %v5560, %v5544
    %v6633 = vpack.c.b16 %v5561, %v5545
    %v6634 = vpack.c.b16 %v5562, %v5546
    %v6635 = vpack.c.b16 %v5563, %v5547
    %v6636 = vpack.c.b16 %v5564, %v5548
    %v6637 = vpack.c.b16 %v5565, %v5549
    %v6638 = vpack.c.b16 %v5582, %v5566
    %v6639 = vpack.c.b16 %v5583, %v5567
    %v6640 = vpack.c.b16 %v5584, %v5568
    %v6641 = vpack.c.b16 %v5585, %v5569
    %v6642 = vpack.c.b16 %v5586, %v5570
    %v6643 = vpack.c.b16 %v5587, %v5571
    %v6644 = vpack.c.b16 %v5588, %v5572
    %v6645 = vpack.c.b16 %v5589, %v5573
    %v6646 = vpack.c.b16 %v5590, %v5574
    %v6647 = vpack.c.b16 %v5591, %v5575
    %v6648 = vpack.c.b16 %v5592, %v5576
    %v6649 = vpack.c.b16 %v5593, %v5577
    %v6650 = vpack.c.b16 %v5594, %v5578
    %v6651 = vpack.c.b16 %v5595, %v5579
    %v6652 = vpack.c.b16 %v5596, %v5580
    %v6653 = vpack.c.b16 %v5597, %v5581
    %v6654 = vpack.c.b16 %v5614, %v5598
    %v6655 = vpack.c.b16 %v5615, %v5599
    %v6656 = vpack.c.b16 %v5616, %v5600
    %v6657 = vpack.c.b16 %v5617, %v5601
    %v6658 = vpack.c.b16 %v5618, %v5602
    %v6659 = vpack.c.b16 %v5619, %v5603
    %v6660 = vpack.c.b16 %v5620, %v5604
    %v6661 = vpack.c.b16 %v5621, %v5605
    %v6662 = vpack.c.b16 %v5622, %v5606
    %v6663 = vpack.c.b16 %v5623, %v5607
    %v6664 = vpack.c.b16 %v5624, %v5608
    %v6665 = vpack.c.b16 %v5625, %v5609
    %v6666 = vpack.c.b16 %v5626, %v5610
    %v6667 = vpack.c.b16 %v5627, %v5611
    %v6668 = vpack.c.b16 %v5628, %v5612
    %v6669 = vpack.c.b16 %v5629, %v5613
    %v6670 = vpack.c.b16 %v5646, %v5630
    %v6671 = vpack.c.b16 %v5647, %v5631
    %v6672 = vpack.c.b16 %v5648, %v5632
    %v6673 = vpack.c.b16 %v5649, %v5633
    %v6674 = vpack.c.b16 %v5650, %v5634
    %v6675 = vpack.c.b16 %v5651, %v5635
    %v6676 = vpack.c.b16 %v5652, %v5636
    %v6677 = vpack.c.b16 %v5653, %v5637
    %v6678 = vpack.c.b16 %v5654, %v5638
    %v6679 = vpack.c.b16 %v5655, %v5639
    %v6680 = vpack.c.b16 %v5656, %v5640
    %v6681 = vpack.c.b16 %v5657, %v5641
    %v6682 = vpack.c.b16 %v5658, %v5642
    %v6683 = vpack.c.b16 %v5659, %v5643
    %v6684 = vpack.c.b16 %v5660, %v5644
    %v6685 = vpack.c.b16 %v5661, %v5645
    %7710 = vmatprep.subr.bf16.mxu0 %v5663
    %7711 = vmatpush1.bf16.msra.mxu0 %v5662
    %7712 = vmatprep.subr.bf16.mxu0 %v5679
    %7713 = vmatpush1.bf16.msra.mxu0 %v5678
    %7714 = vmatprep.subr.bf16.mxu0 %v5695
    %7715 = vmatpush1.bf16.msra.mxu0 %v5694
    %7716 = vmatprep.subr.bf16.mxu0 %v5711
    %7717 = vmatpush1.bf16.msra.mxu0 %v5710
    %7718 = vmatprep.subr.bf16.mxu0 %v5727
    %7719 = vmatpush1.bf16.msra.mxu0 %v5726
    %7720 = vmatprep.subr.bf16.mxu0 %v5743
    %7721 = vmatpush1.bf16.msra.mxu0 %v5742
    %7722 = vmatprep.subr.bf16.mxu0 %v5759
    %7723 = vmatpush1.bf16.msra.mxu0 %v5758
    %7724 = vmatprep.subr.bf16.mxu0 %v5775
    %7725 = vmatpush1.bf16.msra.mxu0 %v5774
    %7726 = vmatprep.subr.bf16.mxu0 %v5791
    %7727 = vmatpush1.bf16.msra.mxu0 %v5790
    %7728 = vmatprep.subr.bf16.mxu0 %v5807
    %7729 = vmatpush1.bf16.msra.mxu0 %v5806
    %7730 = vmatprep.subr.bf16.mxu0 %v5823
    %7731 = vmatpush1.bf16.msra.mxu0 %v5822
    %7732 = vmatprep.subr.bf16.mxu0 %v5839
    %7733 = vmatpush1.bf16.msra.mxu0 %v5838
    %7734 = vmatprep.subr.bf16.mxu0 %v5855
    %7735 = vmatpush1.bf16.msra.mxu0 %v5854
    %7736 = vmatprep.subr.bf16.mxu0 %v5871
    %7737 = vmatpush1.bf16.msra.mxu0 %v5870
    %7738 = vmatprep.subr.bf16.mxu0 %v5887
    %7739 = vmatpush1.bf16.msra.mxu0 %v5886
    %7740 = vmatprep.subr.bf16.mxu0 %v5903
    %7741 = vmatpush1.bf16.msra.mxu0 %v5902
    %7742 = vmatprep.mubr.bf16.mxu0 %v1475
    %7743 = vmatmul.mubr.bf16.gmra.mrb[0].mxu0 %v1474
    %v7744 = vpop.f32.mrb[0].mxu0
    %v7745 = vadd.f32 %v2513, %v7744
    %v7746 = vpop.f32.mrb[0].mxu0
    %v7747 = vadd.f32 %v2517, %v7746
    %v7748 = vpop.f32.mrb[0].mxu0
    %v7749 = vpop.f32.mrb[0].mxu0
    %7750 = vdwg.mxu0
    %7751 = vmatprep.subr.bf16.mxu0 %v5919
    %7752 = vmatpush1.bf16.msra.mxu0 %v5918
    %7753 = vmatprep.subr.bf16.mxu0 %v5935
    %7754 = vmatpush1.bf16.msra.mxu0 %v5934
    %7755 = vmatprep.subr.bf16.mxu0 %v5951
    %7756 = vmatpush1.bf16.msra.mxu0 %v5950
    %7757 = vmatprep.subr.bf16.mxu0 %v5967
    %7758 = vmatpush1.bf16.msra.mxu0 %v5966
    %7759 = vmatprep.subr.bf16.mxu0 %v5983
    %7760 = vmatpush1.bf16.msra.mxu0 %v5982
    %7761 = vmatprep.subr.bf16.mxu0 %v5999
    %7762 = vmatpush1.bf16.msra.mxu0 %v5998
    %7763 = vmatprep.subr.bf16.mxu0 %v6015
    %7764 = vmatpush1.bf16.msra.mxu0 %v6014
    %7765 = vmatprep.subr.bf16.mxu0 %v6031
    %7766 = vmatpush1.bf16.msra.mxu0 %v6030
    %7767 = vmatprep.subr.bf16.mxu0 %v6047
    %7768 = vmatpush1.bf16.msra.mxu0 %v6046
    %7769 = vmatprep.subr.bf16.mxu0 %v6063
    %7770 = vmatpush1.bf16.msra.mxu0 %v6062
    %7771 = vmatprep.subr.bf16.mxu0 %v6079
    %7772 = vmatpush1.bf16.msra.mxu0 %v6078
    %7773 = vmatprep.subr.bf16.mxu0 %v6095
    %7774 = vmatpush1.bf16.msra.mxu0 %v6094
    %7775 = vmatprep.subr.bf16.mxu0 %v6111
    %7776 = vmatpush1.bf16.msra.mxu0 %v6110
    %7777 = vmatprep.subr.bf16.mxu0 %v6127
    %7778 = vmatpush1.bf16.msra.mxu0 %v6126
    %7779 = vmatprep.subr.bf16.mxu0 %v6143
    %7780 = vmatpush1.bf16.msra.mxu0 %v6142
    %7781 = vmatprep.subr.bf16.mxu0 %v6159
    %7782 = vmatpush1.bf16.msra.mxu0 %v6158
    %7783 = vmatprep.mubr.bf16.mxu0 %v1477
    %7784 = vmatmul.mubr.bf16.gmra.mrb[0].mxu0 %v1476
    %v7785 = vpop.f32.mrb[0].mxu0
    %v7786 = vadd.f32 %v7745, %v7785
    %v7787 = vpop.f32.mrb[0].mxu0
    %v7788 = vadd.f32 %v7747, %v7787
    %v7789 = vpop.f32.mrb[0].mxu0
    %v7790 = vpop.f32.mrb[0].mxu0
    %7791 = vdwg.mxu0
    %7792 = vmatprep.subr.bf16.mxu0 %v6175
    %7793 = vmatpush1.bf16.msra.mxu0 %v6174
    %7794 = vmatprep.subr.bf16.mxu0 %v6191
    %7795 = vmatpush1.bf16.msra.mxu0 %v6190
    %7796 = vmatprep.subr.bf16.mxu0 %v6207
    %7797 = vmatpush1.bf16.msra.mxu0 %v6206
    %7798 = vmatprep.subr.bf16.mxu0 %v6223
    %7799 = vmatpush1.bf16.msra.mxu0 %v6222
    %7800 = vmatprep.subr.bf16.mxu0 %v6239
    %7801 = vmatpush1.bf16.msra.mxu0 %v6238
    %7802 = vmatprep.subr.bf16.mxu0 %v6255
    %7803 = vmatpush1.bf16.msra.mxu0 %v6254
    %7804 = vmatprep.subr.bf16.mxu0 %v6271
    %7805 = vmatpush1.bf16.msra.mxu0 %v6270
    %7806 = vmatprep.subr.bf16.mxu0 %v6287
    %7807 = vmatpush1.bf16.msra.mxu0 %v6286
    %7808 = vmatprep.subr.bf16.mxu0 %v6303
    %7809 = vmatpush1.bf16.msra.mxu0 %v6302
    %7810 = vmatprep.subr.bf16.mxu0 %v6319
    %7811 = vmatpush1.bf16.msra.mxu0 %v6318
    %7812 = vmatprep.subr.bf16.mxu0 %v6335
    %7813 = vmatpush1.bf16.msra.mxu0 %v6334
    %7814 = vmatprep.subr.bf16.mxu0 %v6351
    %7815 = vmatpush1.bf16.msra.mxu0 %v6350
    %7816 = vmatprep.subr.bf16.mxu0 %v6367
    %7817 = vmatpush1.bf16.msra.mxu0 %v6366
    %7818 = vmatprep.subr.bf16.mxu0 %v6383
    %7819 = vmatpush1.bf16.msra.mxu0 %v6382
    %7820 = vmatprep.subr.bf16.mxu0 %v6399
    %7821 = vmatpush1.bf16.msra.mxu0 %v6398
    %7822 = vmatprep.subr.bf16.mxu0 %v6415
    %7823 = vmatpush1.bf16.msra.mxu0 %v6414
    %7824 = vmatprep.mubr.bf16.mxu0 %v1479
    %7825 = vmatmul.mubr.bf16.gmra.mrb[0].mxu0 %v1478
    %v7826 = vpop.f32.mrb[0].mxu0
    %v7827 = vadd.f32 %v7786, %v7826
    %v7828 = vpop.f32.mrb[0].mxu0
    %v7829 = vadd.f32 %v7788, %v7828
    %v7830 = vpop.f32.mrb[0].mxu0
    %v7831 = vpop.f32.mrb[0].mxu0
    %7832 = vdwg.mxu0
    %7833 = vmatprep.subr.bf16.mxu0 %v6431
    %7834 = vmatpush1.bf16.msra.mxu0 %v6430
    %7835 = vmatprep.subr.bf16.mxu0 %v6447
    %7836 = vmatpush1.bf16.msra.mxu0 %v6446
    %7837 = vmatprep.subr.bf16.mxu0 %v6463
    %7838 = vmatpush1.bf16.msra.mxu0 %v6462
    %7839 = vmatprep.subr.bf16.mxu0 %v6479
    %7840 = vmatpush1.bf16.msra.mxu0 %v6478
    %7841 = vmatprep.subr.bf16.mxu0 %v6495
    %7842 = vmatpush1.bf16.msra.mxu0 %v6494
    %7843 = vmatprep.subr.bf16.mxu0 %v6511
    %7844 = vmatpush1.bf16.msra.mxu0 %v6510
    %7845 = vmatprep.subr.bf16.mxu0 %v6527
    %7846 = vmatpush1.bf16.msra.mxu0 %v6526
    %7847 = vmatprep.subr.bf16.mxu0 %v6543
    %7848 = vmatpush1.bf16.msra.mxu0 %v6542
    %7849 = vmatprep.subr.bf16.mxu0 %v6559
    %7850 = vmatpush1.bf16.msra.mxu0 %v6558
    %7851 = vmatprep.subr.bf16.mxu0 %v6575
    %7852 = vmatpush1.bf16.msra.mxu0 %v6574
    %7853 = vmatprep.subr.bf16.mxu0 %v6591
    %7854 = vmatpush1.bf16.msra.mxu0 %v6590
    %7855 = vmatprep.subr.bf16.mxu0 %v6607
    %7856 = vmatpush1.bf16.msra.mxu0 %v6606
    %7857 = vmatprep.subr.bf16.mxu0 %v6623
    %7858 = vmatpush1.bf16.msra.mxu0 %v6622
    %7859 = vmatprep.subr.bf16.mxu0 %v6639
    %7860 = vmatpush1.bf16.msra.mxu0 %v6638
    %7861 = vmatprep.subr.bf16.mxu0 %v6655
    %7862 = vmatpush1.bf16.msra.mxu0 %v6654
    %7863 = vmatprep.subr.bf16.mxu0 %v6671
    %7864 = vmatpush1.bf16.msra.mxu0 %v6670
    %7865 = vmatprep.mubr.bf16.mxu0 %v1481
    %7866 = vmatmul.mubr.bf16.gmra.mrb[0].mxu0 %v1480
    %v7867 = vpop.f32.mrb[0].mxu0
    %v7868 = vadd.f32 %v7827, %v7867
    %v7869 = vpop.f32.mrb[0].mxu0
    %v7870 = vadd.f32 %v7829, %v7869
    %v7871 = vpop.f32.mrb[0].mxu0
    %v7872 = vpop.f32.mrb[0].mxu0
    %7873 = vdwg.mxu0
    %7874 = vmatprep.subr.bf16.mxu0 %v5665
    %7875 = vmatpush1.bf16.msra.mxu0 %v5664
    %7876 = vmatprep.subr.bf16.mxu0 %v5681
    %7877 = vmatpush1.bf16.msra.mxu0 %v5680
    %7878 = vmatprep.subr.bf16.mxu0 %v5697
    %7879 = vmatpush1.bf16.msra.mxu0 %v5696
    %7880 = vmatprep.subr.bf16.mxu0 %v5713
    %7881 = vmatpush1.bf16.msra.mxu0 %v5712
    %7882 = vmatprep.subr.bf16.mxu0 %v5729
    %7883 = vmatpush1.bf16.msra.mxu0 %v5728
    %7884 = vmatprep.subr.bf16.mxu0 %v5745
    %7885 = vmatpush1.bf16.msra.mxu0 %v5744
    %7886 = vmatprep.subr.bf16.mxu0 %v5761
    %7887 = vmatpush1.bf16.msra.mxu0 %v5760
    %7888 = vmatprep.subr.bf16.mxu0 %v5777
    %7889 = vmatpush1.bf16.msra.mxu0 %v5776
    %7890 = vmatprep.subr.bf16.mxu0 %v5793
    %7891 = vmatpush1.bf16.msra.mxu0 %v5792
    %7892 = vmatprep.subr.bf16.mxu0 %v5809
    %7893 = vmatpush1.bf16.msra.mxu0 %v5808
    %7894 = vmatprep.subr.bf16.mxu0 %v5825
    %7895 = vmatpush1.bf16.msra.mxu0 %v5824
    %7896 = vmatprep.subr.bf16.mxu0 %v5841
    %7897 = vmatpush1.bf16.msra.mxu0 %v5840
    %7898 = vmatprep.subr.bf16.mxu0 %v5857
    %7899 = vmatpush1.bf16.msra.mxu0 %v5856
    %7900 = vmatprep.subr.bf16.mxu0 %v5873
    %7901 = vmatpush1.bf16.msra.mxu0 %v5872
    %7902 = vmatprep.subr.bf16.mxu0 %v5889
    %7903 = vmatpush1.bf16.msra.mxu0 %v5888
    %7904 = vmatprep.subr.bf16.mxu0 %v5905
    %7905 = vmatpush1.bf16.msra.mxu0 %v5904
    %7906 = vmatprep.mubr.bf16.mxu0 %v1475
    %7907 = vmatmul.mubr.bf16.gmra.mrb[0].mxu0 %v1474
    %v7908 = vpop.f32.mrb[0].mxu0
    %v7909 = vadd.f32 %v2521, %v7908
    %v7910 = vpop.f32.mrb[0].mxu0
    %v7911 = vadd.f32 %v2525, %v7910
    %v7912 = vpop.f32.mrb[0].mxu0
    %v7913 = vpop.f32.mrb[0].mxu0
    %7914 = vdwg.mxu0
    %7915 = vmatprep.subr.bf16.mxu0 %v5921
    %7916 = vmatpush1.bf16.msra.mxu0 %v5920
    %7917 = vmatprep.subr.bf16.mxu0 %v5937
    %7918 = vmatpush1.bf16.msra.mxu0 %v5936
    %7919 = vmatprep.subr.bf16.mxu0 %v5953
    %7920 = vmatpush1.bf16.msra.mxu0 %v5952
    %7921 = vmatprep.subr.bf16.mxu0 %v5969
    %7922 = vmatpush1.bf16.msra.mxu0 %v5968
    %7923 = vmatprep.subr.bf16.mxu0 %v5985
    %7924 = vmatpush1.bf16.msra.mxu0 %v5984
    %7925 = vmatprep.subr.bf16.mxu0 %v6001
    %7926 = vmatpush1.bf16.msra.mxu0 %v6000
    %7927 = vmatprep.subr.bf16.mxu0 %v6017
    %7928 = vmatpush1.bf16.msra.mxu0 %v6016
    %7929 = vmatprep.subr.bf16.mxu0 %v6033
    %7930 = vmatpush1.bf16.msra.mxu0 %v6032
    %7931 = vmatprep.subr.bf16.mxu0 %v6049
    %7932 = vmatpush1.bf16.msra.mxu0 %v6048
    %7933 = vmatprep.subr.bf16.mxu0 %v6065
    %7934 = vmatpush1.bf16.msra.mxu0 %v6064
    %7935 = vmatprep.subr.bf16.mxu0 %v6081
    %7936 = vmatpush1.bf16.msra.mxu0 %v6080
    %7937 = vmatprep.subr.bf16.mxu0 %v6097
    %7938 = vmatpush1.bf16.msra.mxu0 %v6096
    %7939 = vmatprep.subr.bf16.mxu0 %v6113
    %7940 = vmatpush1.bf16.msra.mxu0 %v6112
    %7941 = vmatprep.subr.bf16.mxu0 %v6129
    %7942 = vmatpush1.bf16.msra.mxu0 %v6128
    %7943 = vmatprep.subr.bf16.mxu0 %v6145
    %7944 = vmatpush1.bf16.msra.mxu0 %v6144
    %7945 = vmatprep.subr.bf16.mxu0 %v6161
    %7946 = vmatpush1.bf16.msra.mxu0 %v6160
    %7947 = vmatprep.mubr.bf16.mxu0 %v1477
    %7948 = vmatmul.mubr.bf16.gmra.mrb[0].mxu0 %v1476
    %v7949 = vpop.f32.mrb[0].mxu0
    %v7950 = vadd.f32 %v7909, %v7949
    %v7951 = vpop.f32.mrb[0].mxu0
    %v7952 = vadd.f32 %v7911, %v7951
    %v7953 = vpop.f32.mrb[0].mxu0
    %v7954 = vpop.f32.mrb[0].mxu0
    %7955 = vdwg.mxu0
    %7956 = vmatprep.subr.bf16.mxu0 %v6177
    %7957 = vmatpush1.bf16.msra.mxu0 %v6176
    %7958 = vmatprep.subr.bf16.mxu0 %v6193
    %7959 = vmatpush1.bf16.msra.mxu0 %v6192
    %7960 = vmatprep.subr.bf16.mxu0 %v6209
    %7961 = vmatpush1.bf16.msra.mxu0 %v6208
    %7962 = vmatprep.subr.bf16.mxu0 %v6225
    %7963 = vmatpush1.bf16.msra.mxu0 %v6224
    %7964 = vmatprep.subr.bf16.mxu0 %v6241
    %7965 = vmatpush1.bf16.msra.mxu0 %v6240
    %7966 = vmatprep.subr.bf16.mxu0 %v6257
    %7967 = vmatpush1.bf16.msra.mxu0 %v6256
    %7968 = vmatprep.subr.bf16.mxu0 %v6273
    %7969 = vmatpush1.bf16.msra.mxu0 %v6272
    %7970 = vmatprep.subr.bf16.mxu0 %v6289
    %7971 = vmatpush1.bf16.msra.mxu0 %v6288
    %7972 = vmatprep.subr.bf16.mxu0 %v6305
    %7973 = vmatpush1.bf16.msra.mxu0 %v6304
    %7974 = vmatprep.subr.bf16.mxu0 %v6321
    %7975 = vmatpush1.bf16.msra.mxu0 %v6320
    %7976 = vmatprep.subr.bf16.mxu0 %v6337
    %7977 = vmatpush1.bf16.msra.mxu0 %v6336
    %7978 = vmatprep.subr.bf16.mxu0 %v6353
    %7979 = vmatpush1.bf16.msra.mxu0 %v6352
    %7980 = vmatprep.subr.bf16.mxu0 %v6369
    %7981 = vmatpush1.bf16.msra.mxu0 %v6368
    %7982 = vmatprep.subr.bf16.mxu0 %v6385
    %7983 = vmatpush1.bf16.msra.mxu0 %v6384
    %7984 = vmatprep.subr.bf16.mxu0 %v6401
    %7985 = vmatpush1.bf16.msra.mxu0 %v6400
    %7986 = vmatprep.subr.bf16.mxu0 %v6417
    %7987 = vmatpush1.bf16.msra.mxu0 %v6416
    %7988 = vmatprep.mubr.bf16.mxu0 %v1479
    %7989 = vmatmul.mubr.bf16.gmra.mrb[0].mxu0 %v1478
    %v7990 = vpop.f32.mrb[0].mxu0
    %v7991 = vadd.f32 %v7950, %v7990
    %v7992 = vpop.f32.mrb[0].mxu0
    %v7993 = vadd.f32 %v7952, %v7992
    %v7994 = vpop.f32.mrb[0].mxu0
    %v7995 = vpop.f32.mrb[0].mxu0
    %7996 = vdwg.mxu0
    %7997 = vmatprep.subr.bf16.mxu0 %v6433
    %7998 = vmatpush1.bf16.msra.mxu0 %v6432
    %7999 = vmatprep.subr.bf16.mxu0 %v6449
    %8000 = vmatpush1.bf16.msra.mxu0 %v6448
    %8001 = vmatprep.subr.bf16.mxu0 %v6465
    %8002 = vmatpush1.bf16.msra.mxu0 %v6464
    %8003 = vmatprep.subr.bf16.mxu0 %v6481
    %8004 = vmatpush1.bf16.msra.mxu0 %v6480
    %8005 = vmatprep.subr.bf16.mxu0 %v6497
    %8006 = vmatpush1.bf16.msra.mxu0 %v6496
    %8007 = vmatprep.subr.bf16.mxu0 %v6513
    %8008 = vmatpush1.bf16.msra.mxu0 %v6512
    %8009 = vmatprep.subr.bf16.mxu0 %v6529
    %8010 = vmatpush1.bf16.msra.mxu0 %v6528
    %8011 = vmatprep.subr.bf16.mxu0 %v6545
    %8012 = vmatpush1.bf16.msra.mxu0 %v6544
    %8013 = vmatprep.subr.bf16.mxu0 %v6561
    %8014 = vmatpush1.bf16.msra.mxu0 %v6560
    %8015 = vmatprep.subr.bf16.mxu0 %v6577
    %8016 = vmatpush1.bf16.msra.mxu0 %v6576
    %8017 = vmatprep.subr.bf16.mxu0 %v6593
    %8018 = vmatpush1.bf16.msra.mxu0 %v6592
    %8019 = vmatprep.subr.bf16.mxu0 %v6609
    %8020 = vmatpush1.bf16.msra.mxu0 %v6608
    %8021 = vmatprep.subr.bf16.mxu0 %v6625
    %8022 = vmatpush1.bf16.msra.mxu0 %v6624
    %8023 = vmatprep.subr.bf16.mxu0 %v6641
    %8024 = vmatpush1.bf16.msra.mxu0 %v6640
    %8025 = vmatprep.subr.bf16.mxu0 %v6657
    %8026 = vmatpush1.bf16.msra.mxu0 %v6656
    %8027 = vmatprep.subr.bf16.mxu0 %v6673
    %8028 = vmatpush1.bf16.msra.mxu0 %v6672
    %8029 = vmatprep.mubr.bf16.mxu0 %v1481
    %8030 = vmatmul.mubr.bf16.gmra.mrb[0].mxu0 %v1480
    %v8031 = vpop.f32.mrb[0].mxu0
    %v8032 = vadd.f32 %v7991, %v8031
    %v8033 = vpop.f32.mrb[0].mxu0
    %v8034 = vadd.f32 %v7993, %v8033
    %v8035 = vpop.f32.mrb[0].mxu0
    %v8036 = vpop.f32.mrb[0].mxu0
    %8037 = vdwg.mxu0
    %8038 = vmatprep.subr.bf16.mxu0 %v5667
    %8039 = vmatpush1.bf16.msra.mxu0 %v5666
    %8040 = vmatprep.subr.bf16.mxu0 %v5683
    %8041 = vmatpush1.bf16.msra.mxu0 %v5682
    %8042 = vmatprep.subr.bf16.mxu0 %v5699
    %8043 = vmatpush1.bf16.msra.mxu0 %v5698
    %8044 = vmatprep.subr.bf16.mxu0 %v5715
    %8045 = vmatpush1.bf16.msra.mxu0 %v5714
    %8046 = vmatprep.subr.bf16.mxu0 %v5731
    %8047 = vmatpush1.bf16.msra.mxu0 %v5730
    %8048 = vmatprep.subr.bf16.mxu0 %v5747
    %8049 = vmatpush1.bf16.msra.mxu0 %v5746
    %8050 = vmatprep.subr.bf16.mxu0 %v5763
    %8051 = vmatpush1.bf16.msra.mxu0 %v5762
    %8052 = vmatprep.subr.bf16.mxu0 %v5779
    %8053 = vmatpush1.bf16.msra.mxu0 %v5778
    %8054 = vmatprep.subr.bf16.mxu0 %v5795
    %8055 = vmatpush1.bf16.msra.mxu0 %v5794
    %8056 = vmatprep.subr.bf16.mxu0 %v5811
    %8057 = vmatpush1.bf16.msra.mxu0 %v5810
    %8058 = vmatprep.subr.bf16.mxu0 %v5827
    %8059 = vmatpush1.bf16.msra.mxu0 %v5826
    %8060 = vmatprep.subr.bf16.mxu0 %v5843
    %8061 = vmatpush1.bf16.msra.mxu0 %v5842
    %8062 = vmatprep.subr.bf16.mxu0 %v5859
    %8063 = vmatpush1.bf16.msra.mxu0 %v5858
    %8064 = vmatprep.subr.bf16.mxu0 %v5875
    %8065 = vmatpush1.bf16.msra.mxu0 %v5874
    %8066 = vmatprep.subr.bf16.mxu0 %v5891
    %8067 = vmatpush1.bf16.msra.mxu0 %v5890
    %8068 = vmatprep.subr.bf16.mxu0 %v5907
    %8069 = vmatpush1.bf16.msra.mxu0 %v5906
    %8070 = vmatprep.mubr.bf16.mxu0 %v1475
    %8071 = vmatmul.mubr.bf16.gmra.mrb[0].mxu0 %v1474
    %v8072 = vpop.f32.mrb[0].mxu0
    %v8073 = vadd.f32 %v2529, %v8072
    %v8074 = vpop.f32.mrb[0].mxu0
    %v8075 = vadd.f32 %v2533, %v8074
    %v8076 = vpop.f32.mrb[0].mxu0
    %v8077 = vpop.f32.mrb[0].mxu0
    %8078 = vdwg.mxu0
    %8079 = vmatprep.subr.bf16.mxu0 %v5923
    %8080 = vmatpush1.bf16.msra.mxu0 %v5922
    %8081 = vmatprep.subr.bf16.mxu0 %v5939
    %8082 = vmatpush1.bf16.msra.mxu0 %v5938
    %8083 = vmatprep.subr.bf16.mxu0 %v5955
    %8084 = vmatpush1.bf16.msra.mxu0 %v5954
    %8085 = vmatprep.subr.bf16.mxu0 %v5971
    %8086 = vmatpush1.bf16.msra.mxu0 %v5970
    %8087 = vmatprep.subr.bf16.mxu0 %v5987
    %8088 = vmatpush1.bf16.msra.mxu0 %v5986
    %8089 = vmatprep.subr.bf16.mxu0 %v6003
    %8090 = vmatpush1.bf16.msra.mxu0 %v6002
    %8091 = vmatprep.subr.bf16.mxu0 %v6019
    %8092 = vmatpush1.bf16.msra.mxu0 %v6018
    %8093 = vmatprep.subr.bf16.mxu0 %v6035
    %8094 = vmatpush1.bf16.msra.mxu0 %v6034
    %8095 = vmatprep.subr.bf16.mxu0 %v6051
    %8096 = vmatpush1.bf16.msra.mxu0 %v6050
    %8097 = vmatprep.subr.bf16.mxu0 %v6067
    %8098 = vmatpush1.bf16.msra.mxu0 %v6066
    %8099 = vmatprep.subr.bf16.mxu0 %v6083
    %8100 = vmatpush1.bf16.msra.mxu0 %v6082
    %8101 = vmatprep.subr.bf16.mxu0 %v6099
    %8102 = vmatpush1.bf16.msra.mxu0 %v6098
    %8103 = vmatprep.subr.bf16.mxu0 %v6115
    %8104 = vmatpush1.bf16.msra.mxu0 %v6114
    %8105 = vmatprep.subr.bf16.mxu0 %v6131
    %8106 = vmatpush1.bf16.msra.mxu0 %v6130
    %8107 = vmatprep.subr.bf16.mxu0 %v6147
    %8108 = vmatpush1.bf16.msra.mxu0 %v6146
    %8109 = vmatprep.subr.bf16.mxu0 %v6163
    %8110 = vmatpush1.bf16.msra.mxu0 %v6162
    %8111 = vmatprep.mubr.bf16.mxu0 %v1477
    %8112 = vmatmul.mubr.bf16.gmra.mrb[0].mxu0 %v1476
    %v8113 = vpop.f32.mrb[0].mxu0
    %v8114 = vadd.f32 %v8073, %v8113
    %v8115 = vpop.f32.mrb[0].mxu0
    %v8116 = vadd.f32 %v8075, %v8115
    %v8117 = vpop.f32.mrb[0].mxu0
    %v8118 = vpop.f32.mrb[0].mxu0
    %8119 = vdwg.mxu0
    %8120 = vmatprep.subr.bf16.mxu0 %v6179
    %8121 = vmatpush1.bf16.msra.mxu0 %v6178
    %8122 = vmatprep.subr.bf16.mxu0 %v6195
    %8123 = vmatpush1.bf16.msra.mxu0 %v6194
    %8124 = vmatprep.subr.bf16.mxu0 %v6211
    %8125 = vmatpush1.bf16.msra.mxu0 %v6210
    %8126 = vmatprep.subr.bf16.mxu0 %v6227
    %8127 = vmatpush1.bf16.msra.mxu0 %v6226
    %8128 = vmatprep.subr.bf16.mxu0 %v6243
    %8129 = vmatpush1.bf16.msra.mxu0 %v6242
    %8130 = vmatprep.subr.bf16.mxu0 %v6259
    %8131 = vmatpush1.bf16.msra.mxu0 %v6258
    %8132 = vmatprep.subr.bf16.mxu0 %v6275
    %8133 = vmatpush1.bf16.msra.mxu0 %v6274
    %8134 = vmatprep.subr.bf16.mxu0 %v6291
    %8135 = vmatpush1.bf16.msra.mxu0 %v6290
    %8136 = vmatprep.subr.bf16.mxu0 %v6307
    %8137 = vmatpush1.bf16.msra.mxu0 %v6306
    %8138 = vmatprep.subr.bf16.mxu0 %v6323
    %8139 = vmatpush1.bf16.msra.mxu0 %v6322
    %8140 = vmatprep.subr.bf16.mxu0 %v6339
    %8141 = vmatpush1.bf16.msra.mxu0 %v6338
    %8142 = vmatprep.subr.bf16.mxu0 %v6355
    %8143 = vmatpush1.bf16.msra.mxu0 %v6354
    %8144 = vmatprep.subr.bf16.mxu0 %v6371
    %8145 = vmatpush1.bf16.msra.mxu0 %v6370
    %8146 = vmatprep.subr.bf16.mxu0 %v6387
    %8147 = vmatpush1.bf16.msra.mxu0 %v6386
    %8148 = vmatprep.subr.bf16.mxu0 %v6403
    %8149 = vmatpush1.bf16.msra.mxu0 %v6402
    %8150 = vmatprep.subr.bf16.mxu0 %v6419
    %8151 = vmatpush1.bf16.msra.mxu0 %v6418
    %8152 = vmatprep.mubr.bf16.mxu0 %v1479
    %8153 = vmatmul.mubr.bf16.gmra.mrb[0].mxu0 %v1478
    %v8154 = vpop.f32.mrb[0].mxu0
    %v8155 = vadd.f32 %v8114, %v8154
    %v8156 = vpop.f32.mrb[0].mxu0
    %v8157 = vadd.f32 %v8116, %v8156
    %v8158 = vpop.f32.mrb[0].mxu0
    %v8159 = vpop.f32.mrb[0].mxu0
    %8160 = vdwg.mxu0
    %8161 = vmatprep.subr.bf16.mxu0 %v6435
    %8162 = vmatpush1.bf16.msra.mxu0 %v6434
    %8163 = vmatprep.subr.bf16.mxu0 %v6451
    %8164 = vmatpush1.bf16.msra.mxu0 %v6450
    %8165 = vmatprep.subr.bf16.mxu0 %v6467
    %8166 = vmatpush1.bf16.msra.mxu0 %v6466
    %8167 = vmatprep.subr.bf16.mxu0 %v6483
    %8168 = vmatpush1.bf16.msra.mxu0 %v6482
    %8169 = vmatprep.subr.bf16.mxu0 %v6499
    %8170 = vmatpush1.bf16.msra.mxu0 %v6498
    %8171 = vmatprep.subr.bf16.mxu0 %v6515
    %8172 = vmatpush1.bf16.msra.mxu0 %v6514
    %8173 = vmatprep.subr.bf16.mxu0 %v6531
    %8174 = vmatpush1.bf16.msra.mxu0 %v6530
    %8175 = vmatprep.subr.bf16.mxu0 %v6547
    %8176 = vmatpush1.bf16.msra.mxu0 %v6546
    %8177 = vmatprep.subr.bf16.mxu0 %v6563
    %8178 = vmatpush1.bf16.msra.mxu0 %v6562
    %8179 = vmatprep.subr.bf16.mxu0 %v6579
    %8180 = vmatpush1.bf16.msra.mxu0 %v6578
    %8181 = vmatprep.subr.bf16.mxu0 %v6595
    %8182 = vmatpush1.bf16.msra.mxu0 %v6594
    %8183 = vmatprep.subr.bf16.mxu0 %v6611
    %8184 = vmatpush1.bf16.msra.mxu0 %v6610
    %8185 = vmatprep.subr.bf16.mxu0 %v6627
    %8186 = vmatpush1.bf16.msra.mxu0 %v6626
    %8187 = vmatprep.subr.bf16.mxu0 %v6643
    %8188 = vmatpush1.bf16.msra.mxu0 %v6642
    %8189 = vmatprep.subr.bf16.mxu0 %v6659
    %8190 = vmatpush1.bf16.msra.mxu0 %v6658
    %8191 = vmatprep.subr.bf16.mxu0 %v6675
    %8192 = vmatpush1.bf16.msra.mxu0 %v6674
    %8193 = vmatprep.mubr.bf16.mxu0 %v1481
    %8194 = vmatmul.mubr.bf16.gmra.mrb[0].mxu0 %v1480
    %v8195 = vpop.f32.mrb[0].mxu0
    %v8196 = vadd.f32 %v8155, %v8195
    %v8197 = vpop.f32.mrb[0].mxu0
    %v8198 = vadd.f32 %v8157, %v8197
    %v8199 = vpop.f32.mrb[0].mxu0
    %v8200 = vpop.f32.mrb[0].mxu0
    %8201 = vdwg.mxu0
    %8202 = vmatprep.subr.bf16.mxu0 %v5669
    %8203 = vmatpush1.bf16.msra.mxu0 %v5668
    %8204 = vmatprep.subr.bf16.mxu0 %v5685
    %8205 = vmatpush1.bf16.msra.mxu0 %v5684
    %8206 = vmatprep.subr.bf16.mxu0 %v5701
    %8207 = vmatpush1.bf16.msra.mxu0 %v5700
    %8208 = vmatprep.subr.bf16.mxu0 %v5717
    %8209 = vmatpush1.bf16.msra.mxu0 %v5716
    %8210 = vmatprep.subr.bf16.mxu0 %v5733
    %8211 = vmatpush1.bf16.msra.mxu0 %v5732
    %8212 = vmatprep.subr.bf16.mxu0 %v5749
    %8213 = vmatpush1.bf16.msra.mxu0 %v5748
    %8214 = vmatprep.subr.bf16.mxu0 %v5765
    %8215 = vmatpush1.bf16.msra.mxu0 %v5764
    %8216 = vmatprep.subr.bf16.mxu0 %v5781
    %8217 = vmatpush1.bf16.msra.mxu0 %v5780
    %8218 = vmatprep.subr.bf16.mxu0 %v5797
    %8219 = vmatpush1.bf16.msra.mxu0 %v5796
    %8220 = vmatprep.subr.bf16.mxu0 %v5813
    %8221 = vmatpush1.bf16.msra.mxu0 %v5812
    %8222 = vmatprep.subr.bf16.mxu0 %v5829
    %8223 = vmatpush1.bf16.msra.mxu0 %v5828
    %8224 = vmatprep.subr.bf16.mxu0 %v5845
    %8225 = vmatpush1.bf16.msra.mxu0 %v5844
    %8226 = vmatprep.subr.bf16.mxu0 %v5861
    %8227 = vmatpush1.bf16.msra.mxu0 %v5860
    %8228 = vmatprep.subr.bf16.mxu0 %v5877
    %8229 = vmatpush1.bf16.msra.mxu0 %v5876
    %8230 = vmatprep.subr.bf16.mxu0 %v5893
    %8231 = vmatpush1.bf16.msra.mxu0 %v5892
    %8232 = vmatprep.subr.bf16.mxu0 %v5909
    %8233 = vmatpush1.bf16.msra.mxu0 %v5908
    %8234 = vmatprep.mubr.bf16.mxu0 %v1475
    %8235 = vmatmul.mubr.bf16.gmra.mrb[0].mxu0 %v1474
    %v8236 = vpop.f32.mrb[0].mxu0
    %v8237 = vadd.f32 %v2537, %v8236
    %v8238 = vpop.f32.mrb[0].mxu0
    %v8239 = vadd.f32 %v2541, %v8238
    %v8240 = vpop.f32.mrb[0].mxu0
    %v8241 = vpop.f32.mrb[0].mxu0
    %8242 = vdwg.mxu0
    %8243 = vmatprep.subr.bf16.mxu0 %v5925
    %8244 = vmatpush1.bf16.msra.mxu0 %v5924
    %8245 = vmatprep.subr.bf16.mxu0 %v5941
    %8246 = vmatpush1.bf16.msra.mxu0 %v5940
    %8247 = vmatprep.subr.bf16.mxu0 %v5957
    %8248 = vmatpush1.bf16.msra.mxu0 %v5956
    %8249 = vmatprep.subr.bf16.mxu0 %v5973
    %8250 = vmatpush1.bf16.msra.mxu0 %v5972
    %8251 = vmatprep.subr.bf16.mxu0 %v5989
    %8252 = vmatpush1.bf16.msra.mxu0 %v5988
    %8253 = vmatprep.subr.bf16.mxu0 %v6005
    %8254 = vmatpush1.bf16.msra.mxu0 %v6004
    %8255 = vmatprep.subr.bf16.mxu0 %v6021
    %8256 = vmatpush1.bf16.msra.mxu0 %v6020
    %8257 = vmatprep.subr.bf16.mxu0 %v6037
    %8258 = vmatpush1.bf16.msra.mxu0 %v6036
    %8259 = vmatprep.subr.bf16.mxu0 %v6053
    %8260 = vmatpush1.bf16.msra.mxu0 %v6052
    %8261 = vmatprep.subr.bf16.mxu0 %v6069
    %8262 = vmatpush1.bf16.msra.mxu0 %v6068
    %8263 = vmatprep.subr.bf16.mxu0 %v6085
    %8264 = vmatpush1.bf16.msra.mxu0 %v6084
    %8265 = vmatprep.subr.bf16.mxu0 %v6101
    %8266 = vmatpush1.bf16.msra.mxu0 %v6100
    %8267 = vmatprep.subr.bf16.mxu0 %v6117
    %8268 = vmatpush1.bf16.msra.mxu0 %v6116
    %8269 = vmatprep.subr.bf16.mxu0 %v6133
    %8270 = vmatpush1.bf16.msra.mxu0 %v6132
    %8271 = vmatprep.subr.bf16.mxu0 %v6149
    %8272 = vmatpush1.bf16.msra.mxu0 %v6148
    %8273 = vmatprep.subr.bf16.mxu0 %v6165
    %8274 = vmatpush1.bf16.msra.mxu0 %v6164
    %8275 = vmatprep.mubr.bf16.mxu0 %v1477
    %8276 = vmatmul.mubr.bf16.gmra.mrb[0].mxu0 %v1476
    %v8277 = vpop.f32.mrb[0].mxu0
    %v8278 = vadd.f32 %v8237, %v8277
    %v8279 = vpop.f32.mrb[0].mxu0
    %v8280 = vadd.f32 %v8239, %v8279
    %v8281 = vpop.f32.mrb[0].mxu0
    %v8282 = vpop.f32.mrb[0].mxu0
    %8283 = vdwg.mxu0
    %8284 = vmatprep.subr.bf16.mxu0 %v6181
    %8285 = vmatpush1.bf16.msra.mxu0 %v6180
    %8286 = vmatprep.subr.bf16.mxu0 %v6197
    %8287 = vmatpush1.bf16.msra.mxu0 %v6196
    %8288 = vmatprep.subr.bf16.mxu0 %v6213
    %8289 = vmatpush1.bf16.msra.mxu0 %v6212
    %8290 = vmatprep.subr.bf16.mxu0 %v6229
    %8291 = vmatpush1.bf16.msra.mxu0 %v6228
    %8292 = vmatprep.subr.bf16.mxu0 %v6245
    %8293 = vmatpush1.bf16.msra.mxu0 %v6244
    %8294 = vmatprep.subr.bf16.mxu0 %v6261
    %8295 = vmatpush1.bf16.msra.mxu0 %v6260
    %8296 = vmatprep.subr.bf16.mxu0 %v6277
    %8297 = vmatpush1.bf16.msra.mxu0 %v6276
    %8298 = vmatprep.subr.bf16.mxu0 %v6293
    %8299 = vmatpush1.bf16.msra.mxu0 %v6292
    %8300 = vmatprep.subr.bf16.mxu0 %v6309
    %8301 = vmatpush1.bf16.msra.mxu0 %v6308
    %8302 = vmatprep.subr.bf16.mxu0 %v6325
    %8303 = vmatpush1.bf16.msra.mxu0 %v6324
    %8304 = vmatprep.subr.bf16.mxu0 %v6341
    %8305 = vmatpush1.bf16.msra.mxu0 %v6340
    %8306 = vmatprep.subr.bf16.mxu0 %v6357
    %8307 = vmatpush1.bf16.msra.mxu0 %v6356
    %8308 = vmatprep.subr.bf16.mxu0 %v6373
    %8309 = vmatpush1.bf16.msra.mxu0 %v6372
    %8310 = vmatprep.subr.bf16.mxu0 %v6389
    %8311 = vmatpush1.bf16.msra.mxu0 %v6388
    %8312 = vmatprep.subr.bf16.mxu0 %v6405
    %8313 = vmatpush1.bf16.msra.mxu0 %v6404
    %8314 = vmatprep.subr.bf16.mxu0 %v6421
    %8315 = vmatpush1.bf16.msra.mxu0 %v6420
    %8316 = vmatprep.mubr.bf16.mxu0 %v1479
    %8317 = vmatmul.mubr.bf16.gmra.mrb[0].mxu0 %v1478
    %v8318 = vpop.f32.mrb[0].mxu0
    %v8319 = vadd.f32 %v8278, %v8318
    %v8320 = vpop.f32.mrb[0].mxu0
    %v8321 = vadd.f32 %v8280, %v8320
    %v8322 = vpop.f32.mrb[0].mxu0
    %v8323 = vpop.f32.mrb[0].mxu0
    %8324 = vdwg.mxu0
    %8325 = vmatprep.subr.bf16.mxu0 %v6437
    %8326 = vmatpush1.bf16.msra.mxu0 %v6436
    %8327 = vmatprep.subr.bf16.mxu0 %v6453
    %8328 = vmatpush1.bf16.msra.mxu0 %v6452
    %8329 = vmatprep.subr.bf16.mxu0 %v6469
    %8330 = vmatpush1.bf16.msra.mxu0 %v6468
    %8331 = vmatprep.subr.bf16.mxu0 %v6485
    %8332 = vmatpush1.bf16.msra.mxu0 %v6484
    %8333 = vmatprep.subr.bf16.mxu0 %v6501
    %8334 = vmatpush1.bf16.msra.mxu0 %v6500
    %8335 = vmatprep.subr.bf16.mxu0 %v6517
    %8336 = vmatpush1.bf16.msra.mxu0 %v6516
    %8337 = vmatprep.subr.bf16.mxu0 %v6533
    %8338 = vmatpush1.bf16.msra.mxu0 %v6532
    %8339 = vmatprep.subr.bf16.mxu0 %v6549
    %8340 = vmatpush1.bf16.msra.mxu0 %v6548
    %8341 = vmatprep.subr.bf16.mxu0 %v6565
    %8342 = vmatpush1.bf16.msra.mxu0 %v6564
    %8343 = vmatprep.subr.bf16.mxu0 %v6581
    %8344 = vmatpush1.bf16.msra.mxu0 %v6580
    %8345 = vmatprep.subr.bf16.mxu0 %v6597
    %8346 = vmatpush1.bf16.msra.mxu0 %v6596
    %8347 = vmatprep.subr.bf16.mxu0 %v6613
    %8348 = vmatpush1.bf16.msra.mxu0 %v6612
    %8349 = vmatprep.subr.bf16.mxu0 %v6629
    %8350 = vmatpush1.bf16.msra.mxu0 %v6628
    %8351 = vmatprep.subr.bf16.mxu0 %v6645
    %8352 = vmatpush1.bf16.msra.mxu0 %v6644
    %8353 = vmatprep.subr.bf16.mxu0 %v6661
    %8354 = vmatpush1.bf16.msra.mxu0 %v6660
    %8355 = vmatprep.subr.bf16.mxu0 %v6677
    %8356 = vmatpush1.bf16.msra.mxu0 %v6676
    %8357 = vmatprep.mubr.bf16.mxu0 %v1481
    %8358 = vmatmul.mubr.bf16.gmra.mrb[0].mxu0 %v1480
    %v8359 = vpop.f32.mrb[0].mxu0
    %v8360 = vadd.f32 %v8319, %v8359
    %v8361 = vpop.f32.mrb[0].mxu0
    %v8362 = vadd.f32 %v8321, %v8361
    %v8363 = vpop.f32.mrb[0].mxu0
    %v8364 = vpop.f32.mrb[0].mxu0
    %8365 = vdwg.mxu0
    %8366 = vmatprep.subr.bf16.mxu0 %v5671
    %8367 = vmatpush1.bf16.msra.mxu0 %v5670
    %8368 = vmatprep.subr.bf16.mxu0 %v5687
    %8369 = vmatpush1.bf16.msra.mxu0 %v5686
    %8370 = vmatprep.subr.bf16.mxu0 %v5703
    %8371 = vmatpush1.bf16.msra.mxu0 %v5702
    %8372 = vmatprep.subr.bf16.mxu0 %v5719
    %8373 = vmatpush1.bf16.msra.mxu0 %v5718
    %8374 = vmatprep.subr.bf16.mxu0 %v5735
    %8375 = vmatpush1.bf16.msra.mxu0 %v5734
    %8376 = vmatprep.subr.bf16.mxu0 %v5751
    %8377 = vmatpush1.bf16.msra.mxu0 %v5750
    %8378 = vmatprep.subr.bf16.mxu0 %v5767
    %8379 = vmatpush1.bf16.msra.mxu0 %v5766
    %8380 = vmatprep.subr.bf16.mxu0 %v5783
    %8381 = vmatpush1.bf16.msra.mxu0 %v5782
    %8382 = vmatprep.subr.bf16.mxu0 %v5799
    %8383 = vmatpush1.bf16.msra.mxu0 %v5798
    %8384 = vmatprep.subr.bf16.mxu0 %v5815
    %8385 = vmatpush1.bf16.msra.mxu0 %v5814
    %8386 = vmatprep.subr.bf16.mxu0 %v5831
    %8387 = vmatpush1.bf16.msra.mxu0 %v5830
    %8388 = vmatprep.subr.bf16.mxu0 %v5847
    %8389 = vmatpush1.bf16.msra.mxu0 %v5846
    %8390 = vmatprep.subr.bf16.mxu0 %v5863
    %8391 = vmatpush1.bf16.msra.mxu0 %v5862
    %8392 = vmatprep.subr.bf16.mxu0 %v5879
    %8393 = vmatpush1.bf16.msra.mxu0 %v5878
    %8394 = vmatprep.subr.bf16.mxu0 %v5895
    %8395 = vmatpush1.bf16.msra.mxu0 %v5894
    %8396 = vmatprep.subr.bf16.mxu0 %v5911
    %8397 = vmatpush1.bf16.msra.mxu0 %v5910
    %8398 = vmatprep.mubr.bf16.mxu0 %v1475
    %8399 = vmatmul.mubr.bf16.gmra.mrb[0].mxu0 %v1474
    %v8400 = vpop.f32.mrb[0].mxu0
    %v8401 = vadd.f32 %v2545, %v8400
    %v8402 = vpop.f32.mrb[0].mxu0
    %v8403 = vadd.f32 %v2549, %v8402
    %v8404 = vpop.f32.mrb[0].mxu0
    %v8405 = vpop.f32.mrb[0].mxu0
    %8406 = vdwg.mxu0
    %8407 = vmatprep.subr.bf16.mxu0 %v5927
    %8408 = vmatpush1.bf16.msra.mxu0 %v5926
    %8409 = vmatprep.subr.bf16.mxu0 %v5943
    %8410 = vmatpush1.bf16.msra.mxu0 %v5942
    %8411 = vmatprep.subr.bf16.mxu0 %v5959
    %8412 = vmatpush1.bf16.msra.mxu0 %v5958
    %8413 = vmatprep.subr.bf16.mxu0 %v5975
    %8414 = vmatpush1.bf16.msra.mxu0 %v5974
    %8415 = vmatprep.subr.bf16.mxu0 %v5991
    %8416 = vmatpush1.bf16.msra.mxu0 %v5990
    %8417 = vmatprep.subr.bf16.mxu0 %v6007
    %8418 = vmatpush1.bf16.msra.mxu0 %v6006
    %8419 = vmatprep.subr.bf16.mxu0 %v6023
    %8420 = vmatpush1.bf16.msra.mxu0 %v6022
    %8421 = vmatprep.subr.bf16.mxu0 %v6039
    %8422 = vmatpush1.bf16.msra.mxu0 %v6038
    %8423 = vmatprep.subr.bf16.mxu0 %v6055
    %8424 = vmatpush1.bf16.msra.mxu0 %v6054
    %8425 = vmatprep.subr.bf16.mxu0 %v6071
    %8426 = vmatpush1.bf16.msra.mxu0 %v6070
    %8427 = vmatprep.subr.bf16.mxu0 %v6087
    %8428 = vmatpush1.bf16.msra.mxu0 %v6086
    %8429 = vmatprep.subr.bf16.mxu0 %v6103
    %8430 = vmatpush1.bf16.msra.mxu0 %v6102
    %8431 = vmatprep.subr.bf16.mxu0 %v6119
    %8432 = vmatpush1.bf16.msra.mxu0 %v6118
    %8433 = vmatprep.subr.bf16.mxu0 %v6135
    %8434 = vmatpush1.bf16.msra.mxu0 %v6134
    %8435 = vmatprep.subr.bf16.mxu0 %v6151
    %8436 = vmatpush1.bf16.msra.mxu0 %v6150
    %8437 = vmatprep.subr.bf16.mxu0 %v6167
    %8438 = vmatpush1.bf16.msra.mxu0 %v6166
    %8439 = vmatprep.mubr.bf16.mxu0 %v1477
    %8440 = vmatmul.mubr.bf16.gmra.mrb[0].mxu0 %v1476
    %v8441 = vpop.f32.mrb[0].mxu0
    %v8442 = vadd.f32 %v8401, %v8441
    %v8443 = vpop.f32.mrb[0].mxu0
    %v8444 = vadd.f32 %v8403, %v8443
    %v8445 = vpop.f32.mrb[0].mxu0
    %v8446 = vpop.f32.mrb[0].mxu0
    %8447 = vdwg.mxu0
    %8448 = vmatprep.subr.bf16.mxu0 %v6183
    %8449 = vmatpush1.bf16.msra.mxu0 %v6182
    %8450 = vmatprep.subr.bf16.mxu0 %v6199
    %8451 = vmatpush1.bf16.msra.mxu0 %v6198
    %8452 = vmatprep.subr.bf16.mxu0 %v6215
    %8453 = vmatpush1.bf16.msra.mxu0 %v6214
    %8454 = vmatprep.subr.bf16.mxu0 %v6231
    %8455 = vmatpush1.bf16.msra.mxu0 %v6230
    %8456 = vmatprep.subr.bf16.mxu0 %v6247
    %8457 = vmatpush1.bf16.msra.mxu0 %v6246
    %8458 = vmatprep.subr.bf16.mxu0 %v6263
    %8459 = vmatpush1.bf16.msra.mxu0 %v6262
    %8460 = vmatprep.subr.bf16.mxu0 %v6279
    %8461 = vmatpush1.bf16.msra.mxu0 %v6278
    %8462 = vmatprep.subr.bf16.mxu0 %v6295
    %8463 = vmatpush1.bf16.msra.mxu0 %v6294
    %8464 = vmatprep.subr.bf16.mxu0 %v6311
    %8465 = vmatpush1.bf16.msra.mxu0 %v6310
    %8466 = vmatprep.subr.bf16.mxu0 %v6327
    %8467 = vmatpush1.bf16.msra.mxu0 %v6326
    %8468 = vmatprep.subr.bf16.mxu0 %v6343
    %8469 = vmatpush1.bf16.msra.mxu0 %v6342
    %8470 = vmatprep.subr.bf16.mxu0 %v6359
    %8471 = vmatpush1.bf16.msra.mxu0 %v6358
    %8472 = vmatprep.subr.bf16.mxu0 %v6375
    %8473 = vmatpush1.bf16.msra.mxu0 %v6374
    %8474 = vmatprep.subr.bf16.mxu0 %v6391
    %8475 = vmatpush1.bf16.msra.mxu0 %v6390
    %8476 = vmatprep.subr.bf16.mxu0 %v6407
    %8477 = vmatpush1.bf16.msra.mxu0 %v6406
    %8478 = vmatprep.subr.bf16.mxu0 %v6423
    %8479 = vmatpush1.bf16.msra.mxu0 %v6422
    %8480 = vmatprep.mubr.bf16.mxu0 %v1479
    %8481 = vmatmul.mubr.bf16.gmra.mrb[0].mxu0 %v1478
    %v8482 = vpop.f32.mrb[0].mxu0
    %v8483 = vadd.f32 %v8442, %v8482
    %v8484 = vpop.f32.mrb[0].mxu0
    %v8485 = vadd.f32 %v8444, %v8484
    %v8486 = vpop.f32.mrb[0].mxu0
    %v8487 = vpop.f32.mrb[0].mxu0
    %8488 = vdwg.mxu0
    %8489 = vmatprep.subr.bf16.mxu0 %v6439
    %8490 = vmatpush1.bf16.msra.mxu0 %v6438
    %8491 = vmatprep.subr.bf16.mxu0 %v6455
    %8492 = vmatpush1.bf16.msra.mxu0 %v6454
    %8493 = vmatprep.subr.bf16.mxu0 %v6471
    %8494 = vmatpush1.bf16.msra.mxu0 %v6470
    %8495 = vmatprep.subr.bf16.mxu0 %v6487
    %8496 = vmatpush1.bf16.msra.mxu0 %v6486
    %8497 = vmatprep.subr.bf16.mxu0 %v6503
    %8498 = vmatpush1.bf16.msra.mxu0 %v6502
    %8499 = vmatprep.subr.bf16.mxu0 %v6519
    %8500 = vmatpush1.bf16.msra.mxu0 %v6518
    %8501 = vmatprep.subr.bf16.mxu0 %v6535
    %8502 = vmatpush1.bf16.msra.mxu0 %v6534
    %8503 = vmatprep.subr.bf16.mxu0 %v6551
    %8504 = vmatpush1.bf16.msra.mxu0 %v6550
    %8505 = vmatprep.subr.bf16.mxu0 %v6567
    %8506 = vmatpush1.bf16.msra.mxu0 %v6566
    %8507 = vmatprep.subr.bf16.mxu0 %v6583
    %8508 = vmatpush1.bf16.msra.mxu0 %v6582
    %8509 = vmatprep.subr.bf16.mxu0 %v6599
    %8510 = vmatpush1.bf16.msra.mxu0 %v6598
    %8511 = vmatprep.subr.bf16.mxu0 %v6615
    %8512 = vmatpush1.bf16.msra.mxu0 %v6614
    %8513 = vmatprep.subr.bf16.mxu0 %v6631
    %8514 = vmatpush1.bf16.msra.mxu0 %v6630
    %8515 = vmatprep.subr.bf16.mxu0 %v6647
    %8516 = vmatpush1.bf16.msra.mxu0 %v6646
    %8517 = vmatprep.subr.bf16.mxu0 %v6663
    %8518 = vmatpush1.bf16.msra.mxu0 %v6662
    %8519 = vmatprep.subr.bf16.mxu0 %v6679
    %8520 = vmatpush1.bf16.msra.mxu0 %v6678
    %8521 = vmatprep.mubr.bf16.mxu0 %v1481
    %8522 = vmatmul.mubr.bf16.gmra.mrb[0].mxu0 %v1480
    %v8523 = vpop.f32.mrb[0].mxu0
    %v8524 = vadd.f32 %v8483, %v8523
    %v8525 = vpop.f32.mrb[0].mxu0
    %v8526 = vadd.f32 %v8485, %v8525
    %v8527 = vpop.f32.mrb[0].mxu0
    %v8528 = vpop.f32.mrb[0].mxu0
    %8529 = vdwg.mxu0
    %8530 = vmatprep.subr.bf16.mxu0 %v5673
    %8531 = vmatpush1.bf16.msra.mxu0 %v5672
    %8532 = vmatprep.subr.bf16.mxu0 %v5689
    %8533 = vmatpush1.bf16.msra.mxu0 %v5688
    %8534 = vmatprep.subr.bf16.mxu0 %v5705
    %8535 = vmatpush1.bf16.msra.mxu0 %v5704
    %8536 = vmatprep.subr.bf16.mxu0 %v5721
    %8537 = vmatpush1.bf16.msra.mxu0 %v5720
    %8538 = vmatprep.subr.bf16.mxu0 %v5737
    %8539 = vmatpush1.bf16.msra.mxu0 %v5736
    %8540 = vmatprep.subr.bf16.mxu0 %v5753
    %8541 = vmatpush1.bf16.msra.mxu0 %v5752
    %8542 = vmatprep.subr.bf16.mxu0 %v5769
    %8543 = vmatpush1.bf16.msra.mxu0 %v5768
    %8544 = vmatprep.subr.bf16.mxu0 %v5785
    %8545 = vmatpush1.bf16.msra.mxu0 %v5784
    %8546 = vmatprep.subr.bf16.mxu0 %v5801
    %8547 = vmatpush1.bf16.msra.mxu0 %v5800
    %8548 = vmatprep.subr.bf16.mxu0 %v5817
    %8549 = vmatpush1.bf16.msra.mxu0 %v5816
    %8550 = vmatprep.subr.bf16.mxu0 %v5833
    %8551 = vmatpush1.bf16.msra.mxu0 %v5832
    %8552 = vmatprep.subr.bf16.mxu0 %v5849
    %8553 = vmatpush1.bf16.msra.mxu0 %v5848
    %8554 = vmatprep.subr.bf16.mxu0 %v5865
    %8555 = vmatpush1.bf16.msra.mxu0 %v5864
    %8556 = vmatprep.subr.bf16.mxu0 %v5881
    %8557 = vmatpush1.bf16.msra.mxu0 %v5880
    %8558 = vmatprep.subr.bf16.mxu0 %v5897
    %8559 = vmatpush1.bf16.msra.mxu0 %v5896
    %8560 = vmatprep.subr.bf16.mxu0 %v5913
    %8561 = vmatpush1.bf16.msra.mxu0 %v5912
    %8562 = vmatprep.mubr.bf16.mxu0 %v1475
    %8563 = vmatmul.mubr.bf16.gmra.mrb[0].mxu0 %v1474
    %v8564 = vpop.f32.mrb[0].mxu0
    %v8565 = vadd.f32 %v2553, %v8564
    %v8566 = vpop.f32.mrb[0].mxu0
    %v8567 = vadd.f32 %v2557, %v8566
    %v8568 = vpop.f32.mrb[0].mxu0
    %v8569 = vpop.f32.mrb[0].mxu0
    %8570 = vdwg.mxu0
    %8571 = vmatprep.subr.bf16.mxu0 %v5929
    %8572 = vmatpush1.bf16.msra.mxu0 %v5928
    %8573 = vmatprep.subr.bf16.mxu0 %v5945
    %8574 = vmatpush1.bf16.msra.mxu0 %v5944
    %8575 = vmatprep.subr.bf16.mxu0 %v5961
    %8576 = vmatpush1.bf16.msra.mxu0 %v5960
    %8577 = vmatprep.subr.bf16.mxu0 %v5977
    %8578 = vmatpush1.bf16.msra.mxu0 %v5976
    %8579 = vmatprep.subr.bf16.mxu0 %v5993
    %8580 = vmatpush1.bf16.msra.mxu0 %v5992
    %8581 = vmatprep.subr.bf16.mxu0 %v6009
    %8582 = vmatpush1.bf16.msra.mxu0 %v6008
    %8583 = vmatprep.subr.bf16.mxu0 %v6025
    %8584 = vmatpush1.bf16.msra.mxu0 %v6024
    %8585 = vmatprep.subr.bf16.mxu0 %v6041
    %8586 = vmatpush1.bf16.msra.mxu0 %v6040
    %8587 = vmatprep.subr.bf16.mxu0 %v6057
    %8588 = vmatpush1.bf16.msra.mxu0 %v6056
    %8589 = vmatprep.subr.bf16.mxu0 %v6073
    %8590 = vmatpush1.bf16.msra.mxu0 %v6072
    %8591 = vmatprep.subr.bf16.mxu0 %v6089
    %8592 = vmatpush1.bf16.msra.mxu0 %v6088
    %8593 = vmatprep.subr.bf16.mxu0 %v6105
    %8594 = vmatpush1.bf16.msra.mxu0 %v6104
    %8595 = vmatprep.subr.bf16.mxu0 %v6121
    %8596 = vmatpush1.bf16.msra.mxu0 %v6120
    %8597 = vmatprep.subr.bf16.mxu0 %v6137
    %8598 = vmatpush1.bf16.msra.mxu0 %v6136
    %8599 = vmatprep.subr.bf16.mxu0 %v6153
    %8600 = vmatpush1.bf16.msra.mxu0 %v6152
    %8601 = vmatprep.subr.bf16.mxu0 %v6169
    %8602 = vmatpush1.bf16.msra.mxu0 %v6168
    %8603 = vmatprep.mubr.bf16.mxu0 %v1477
    %8604 = vmatmul.mubr.bf16.gmra.mrb[0].mxu0 %v1476
    %v8605 = vpop.f32.mrb[0].mxu0
    %v8606 = vadd.f32 %v8565, %v8605
    %v8607 = vpop.f32.mrb[0].mxu0
    %v8608 = vadd.f32 %v8567, %v8607
    %v8609 = vpop.f32.mrb[0].mxu0
    %v8610 = vpop.f32.mrb[0].mxu0
    %8611 = vdwg.mxu0
    %8612 = vmatprep.subr.bf16.mxu0 %v6185
    %8613 = vmatpush1.bf16.msra.mxu0 %v6184
    %8614 = vmatprep.subr.bf16.mxu0 %v6201
    %8615 = vmatpush1.bf16.msra.mxu0 %v6200
    %8616 = vmatprep.subr.bf16.mxu0 %v6217
    %8617 = vmatpush1.bf16.msra.mxu0 %v6216
    %8618 = vmatprep.subr.bf16.mxu0 %v6233
    %8619 = vmatpush1.bf16.msra.mxu0 %v6232
    %8620 = vmatprep.subr.bf16.mxu0 %v6249
    %8621 = vmatpush1.bf16.msra.mxu0 %v6248
    %8622 = vmatprep.subr.bf16.mxu0 %v6265
    %8623 = vmatpush1.bf16.msra.mxu0 %v6264
    %8624 = vmatprep.subr.bf16.mxu0 %v6281
    %8625 = vmatpush1.bf16.msra.mxu0 %v6280
    %8626 = vmatprep.subr.bf16.mxu0 %v6297
    %8627 = vmatpush1.bf16.msra.mxu0 %v6296
    %8628 = vmatprep.subr.bf16.mxu0 %v6313
    %8629 = vmatpush1.bf16.msra.mxu0 %v6312
    %8630 = vmatprep.subr.bf16.mxu0 %v6329
    %8631 = vmatpush1.bf16.msra.mxu0 %v6328
    %8632 = vmatprep.subr.bf16.mxu0 %v6345
    %8633 = vmatpush1.bf16.msra.mxu0 %v6344
    %8634 = vmatprep.subr.bf16.mxu0 %v6361
    %8635 = vmatpush1.bf16.msra.mxu0 %v6360
    %8636 = vmatprep.subr.bf16.mxu0 %v6377
    %8637 = vmatpush1.bf16.msra.mxu0 %v6376
    %8638 = vmatprep.subr.bf16.mxu0 %v6393
    %8639 = vmatpush1.bf16.msra.mxu0 %v6392
    %8640 = vmatprep.subr.bf16.mxu0 %v6409
    %8641 = vmatpush1.bf16.msra.mxu0 %v6408
    %8642 = vmatprep.subr.bf16.mxu0 %v6425
    %8643 = vmatpush1.bf16.msra.mxu0 %v6424
    %8644 = vmatprep.mubr.bf16.mxu0 %v1479
    %8645 = vmatmul.mubr.bf16.gmra.mrb[0].mxu0 %v1478
    %v8646 = vpop.f32.mrb[0].mxu0
    %v8647 = vadd.f32 %v8606, %v8646
    %v8648 = vpop.f32.mrb[0].mxu0
    %v8649 = vadd.f32 %v8608, %v8648
    %v8650 = vpop.f32.mrb[0].mxu0
    %v8651 = vpop.f32.mrb[0].mxu0
    %8652 = vdwg.mxu0
    %8653 = vmatprep.subr.bf16.mxu0 %v6441
    %8654 = vmatpush1.bf16.msra.mxu0 %v6440
    %8655 = vmatprep.subr.bf16.mxu0 %v6457
    %8656 = vmatpush1.bf16.msra.mxu0 %v6456
    %8657 = vmatprep.subr.bf16.mxu0 %v6473
    %8658 = vmatpush1.bf16.msra.mxu0 %v6472
    %8659 = vmatprep.subr.bf16.mxu0 %v6489
    %8660 = vmatpush1.bf16.msra.mxu0 %v6488
    %8661 = vmatprep.subr.bf16.mxu0 %v6505
    %8662 = vmatpush1.bf16.msra.mxu0 %v6504
    %8663 = vmatprep.subr.bf16.mxu0 %v6521
    %8664 = vmatpush1.bf16.msra.mxu0 %v6520
    %8665 = vmatprep.subr.bf16.mxu0 %v6537
    %8666 = vmatpush1.bf16.msra.mxu0 %v6536
    %8667 = vmatprep.subr.bf16.mxu0 %v6553
    %8668 = vmatpush1.bf16.msra.mxu0 %v6552
    %8669 = vmatprep.subr.bf16.mxu0 %v6569
    %8670 = vmatpush1.bf16.msra.mxu0 %v6568
    %8671 = vmatprep.subr.bf16.mxu0 %v6585
    %8672 = vmatpush1.bf16.msra.mxu0 %v6584
    %8673 = vmatprep.subr.bf16.mxu0 %v6601
    %8674 = vmatpush1.bf16.msra.mxu0 %v6600
    %8675 = vmatprep.subr.bf16.mxu0 %v6617
    %8676 = vmatpush1.bf16.msra.mxu0 %v6616
    %8677 = vmatprep.subr.bf16.mxu0 %v6633
    %8678 = vmatpush1.bf16.msra.mxu0 %v6632
    %8679 = vmatprep.subr.bf16.mxu0 %v6649
    %8680 = vmatpush1.bf16.msra.mxu0 %v6648
    %8681 = vmatprep.subr.bf16.mxu0 %v6665
    %8682 = vmatpush1.bf16.msra.mxu0 %v6664
    %8683 = vmatprep.subr.bf16.mxu0 %v6681
    %8684 = vmatpush1.bf16.msra.mxu0 %v6680
    %8685 = vmatprep.mubr.bf16.mxu0 %v1481
    %8686 = vmatmul.mubr.bf16.gmra.mrb[0].mxu0 %v1480
    %v8687 = vpop.f32.mrb[0].mxu0
    %v8688 = vadd.f32 %v8647, %v8687
    %v8689 = vpop.f32.mrb[0].mxu0
    %v8690 = vadd.f32 %v8649, %v8689
    %v8691 = vpop.f32.mrb[0].mxu0
    %v8692 = vpop.f32.mrb[0].mxu0
    %8693 = vdwg.mxu0
    %8694 = vmatprep.subr.bf16.mxu0 %v5675
    %8695 = vmatpush1.bf16.msra.mxu0 %v5674
    %8696 = vmatprep.subr.bf16.mxu0 %v5691
    %8697 = vmatpush1.bf16.msra.mxu0 %v5690
    %8698 = vmatprep.subr.bf16.mxu0 %v5707
    %8699 = vmatpush1.bf16.msra.mxu0 %v5706
    %8700 = vmatprep.subr.bf16.mxu0 %v5723
    %8701 = vmatpush1.bf16.msra.mxu0 %v5722
    %8702 = vmatprep.subr.bf16.mxu0 %v5739
    %8703 = vmatpush1.bf16.msra.mxu0 %v5738
    %8704 = vmatprep.subr.bf16.mxu0 %v5755
    %8705 = vmatpush1.bf16.msra.mxu0 %v5754
    %8706 = vmatprep.subr.bf16.mxu0 %v5771
    %8707 = vmatpush1.bf16.msra.mxu0 %v5770
    %8708 = vmatprep.subr.bf16.mxu0 %v5787
    %8709 = vmatpush1.bf16.msra.mxu0 %v5786
    %8710 = vmatprep.subr.bf16.mxu0 %v5803
    %8711 = vmatpush1.bf16.msra.mxu0 %v5802
    %8712 = vmatprep.subr.bf16.mxu0 %v5819
    %8713 = vmatpush1.bf16.msra.mxu0 %v5818
    %8714 = vmatprep.subr.bf16.mxu0 %v5835
    %8715 = vmatpush1.bf16.msra.mxu0 %v5834
    %8716 = vmatprep.subr.bf16.mxu0 %v5851
    %8717 = vmatpush1.bf16.msra.mxu0 %v5850
    %8718 = vmatprep.subr.bf16.mxu0 %v5867
    %8719 = vmatpush1.bf16.msra.mxu0 %v5866
    %8720 = vmatprep.subr.bf16.mxu0 %v5883
    %8721 = vmatpush1.bf16.msra.mxu0 %v5882
    %8722 = vmatprep.subr.bf16.mxu0 %v5899
    %8723 = vmatpush1.bf16.msra.mxu0 %v5898
    %8724 = vmatprep.subr.bf16.mxu0 %v5915
    %8725 = vmatpush1.bf16.msra.mxu0 %v5914
    %8726 = vmatprep.mubr.bf16.mxu0 %v1475
    %8727 = vmatmul.mubr.bf16.gmra.mrb[0].mxu0 %v1474
    %v8728 = vpop.f32.mrb[0].mxu0
    %v8729 = vadd.f32 %v2561, %v8728
    %v8730 = vpop.f32.mrb[0].mxu0
    %v8731 = vadd.f32 %v2565, %v8730
    %v8732 = vpop.f32.mrb[0].mxu0
    %v8733 = vpop.f32.mrb[0].mxu0
    %8734 = vdwg.mxu0
    %8735 = vmatprep.subr.bf16.mxu0 %v5931
    %8736 = vmatpush1.bf16.msra.mxu0 %v5930
    %8737 = vmatprep.subr.bf16.mxu0 %v5947
    %8738 = vmatpush1.bf16.msra.mxu0 %v5946
    %8739 = vmatprep.subr.bf16.mxu0 %v5963
    %8740 = vmatpush1.bf16.msra.mxu0 %v5962
    %8741 = vmatprep.subr.bf16.mxu0 %v5979
    %8742 = vmatpush1.bf16.msra.mxu0 %v5978
    %8743 = vmatprep.subr.bf16.mxu0 %v5995
    %8744 = vmatpush1.bf16.msra.mxu0 %v5994
    %8745 = vmatprep.subr.bf16.mxu0 %v6011
    %8746 = vmatpush1.bf16.msra.mxu0 %v6010
    %8747 = vmatprep.subr.bf16.mxu0 %v6027
    %8748 = vmatpush1.bf16.msra.mxu0 %v6026
    %8749 = vmatprep.subr.bf16.mxu0 %v6043
    %8750 = vmatpush1.bf16.msra.mxu0 %v6042
    %8751 = vmatprep.subr.bf16.mxu0 %v6059
    %8752 = vmatpush1.bf16.msra.mxu0 %v6058
    %8753 = vmatprep.subr.bf16.mxu0 %v6075
    %8754 = vmatpush1.bf16.msra.mxu0 %v6074
    %8755 = vmatprep.subr.bf16.mxu0 %v6091
    %8756 = vmatpush1.bf16.msra.mxu0 %v6090
    %8757 = vmatprep.subr.bf16.mxu0 %v6107
    %8758 = vmatpush1.bf16.msra.mxu0 %v6106
    %8759 = vmatprep.subr.bf16.mxu0 %v6123
    %8760 = vmatpush1.bf16.msra.mxu0 %v6122
    %8761 = vmatprep.subr.bf16.mxu0 %v6139
    %8762 = vmatpush1.bf16.msra.mxu0 %v6138
    %8763 = vmatprep.subr.bf16.mxu0 %v6155
    %8764 = vmatpush1.bf16.msra.mxu0 %v6154
    %8765 = vmatprep.subr.bf16.mxu0 %v6171
    %8766 = vmatpush1.bf16.msra.mxu0 %v6170
    %8767 = vmatprep.mubr.bf16.mxu0 %v1477
    %8768 = vmatmul.mubr.bf16.gmra.mrb[0].mxu0 %v1476
    %v8769 = vpop.f32.mrb[0].mxu0
    %v8770 = vadd.f32 %v8729, %v8769
    %v8771 = vpop.f32.mrb[0].mxu0
    %v8772 = vadd.f32 %v8731, %v8771
    %v8773 = vpop.f32.mrb[0].mxu0
    %v8774 = vpop.f32.mrb[0].mxu0
    %8775 = vdwg.mxu0
    %8776 = vmatprep.subr.bf16.mxu0 %v6187
    %8777 = vmatpush1.bf16.msra.mxu0 %v6186
    %8778 = vmatprep.subr.bf16.mxu0 %v6203
    %8779 = vmatpush1.bf16.msra.mxu0 %v6202
    %8780 = vmatprep.subr.bf16.mxu0 %v6219
    %8781 = vmatpush1.bf16.msra.mxu0 %v6218
    %8782 = vmatprep.subr.bf16.mxu0 %v6235
    %8783 = vmatpush1.bf16.msra.mxu0 %v6234
    %8784 = vmatprep.subr.bf16.mxu0 %v6251
    %8785 = vmatpush1.bf16.msra.mxu0 %v6250
    %8786 = vmatprep.subr.bf16.mxu0 %v6267
    %8787 = vmatpush1.bf16.msra.mxu0 %v6266
    %8788 = vmatprep.subr.bf16.mxu0 %v6283
    %8789 = vmatpush1.bf16.msra.mxu0 %v6282
    %8790 = vmatprep.subr.bf16.mxu0 %v6299
    %8791 = vmatpush1.bf16.msra.mxu0 %v6298
    %8792 = vmatprep.subr.bf16.mxu0 %v6315
    %8793 = vmatpush1.bf16.msra.mxu0 %v6314
    %8794 = vmatprep.subr.bf16.mxu0 %v6331
    %8795 = vmatpush1.bf16.msra.mxu0 %v6330
    %8796 = vmatprep.subr.bf16.mxu0 %v6347
    %8797 = vmatpush1.bf16.msra.mxu0 %v6346
    %8798 = vmatprep.subr.bf16.mxu0 %v6363
    %8799 = vmatpush1.bf16.msra.mxu0 %v6362
    %8800 = vmatprep.subr.bf16.mxu0 %v6379
    %8801 = vmatpush1.bf16.msra.mxu0 %v6378
    %8802 = vmatprep.subr.bf16.mxu0 %v6395
    %8803 = vmatpush1.bf16.msra.mxu0 %v6394
    %8804 = vmatprep.subr.bf16.mxu0 %v6411
    %8805 = vmatpush1.bf16.msra.mxu0 %v6410
    %8806 = vmatprep.subr.bf16.mxu0 %v6427
    %8807 = vmatpush1.bf16.msra.mxu0 %v6426
    %8808 = vmatprep.mubr.bf16.mxu0 %v1479
    %8809 = vmatmul.mubr.bf16.gmra.mrb[0].mxu0 %v1478
    %v8810 = vpop.f32.mrb[0].mxu0
    %v8811 = vadd.f32 %v8770, %v8810
    %v8812 = vpop.f32.mrb[0].mxu0
    %v8813 = vadd.f32 %v8772, %v8812
    %v8814 = vpop.f32.mrb[0].mxu0
    %v8815 = vpop.f32.mrb[0].mxu0
    %8816 = vdwg.mxu0
    %8817 = vmatprep.subr.bf16.mxu0 %v6443
    %8818 = vmatpush1.bf16.msra.mxu0 %v6442
    %8819 = vmatprep.subr.bf16.mxu0 %v6459
    %8820 = vmatpush1.bf16.msra.mxu0 %v6458
    %8821 = vmatprep.subr.bf16.mxu0 %v6475
    %8822 = vmatpush1.bf16.msra.mxu0 %v6474
    %8823 = vmatprep.subr.bf16.mxu0 %v6491
    %8824 = vmatpush1.bf16.msra.mxu0 %v6490
    %8825 = vmatprep.subr.bf16.mxu0 %v6507
    %8826 = vmatpush1.bf16.msra.mxu0 %v6506
    %8827 = vmatprep.subr.bf16.mxu0 %v6523
    %8828 = vmatpush1.bf16.msra.mxu0 %v6522
    %8829 = vmatprep.subr.bf16.mxu0 %v6539
    %8830 = vmatpush1.bf16.msra.mxu0 %v6538
    %8831 = vmatprep.subr.bf16.mxu0 %v6555
    %8832 = vmatpush1.bf16.msra.mxu0 %v6554
    %8833 = vmatprep.subr.bf16.mxu0 %v6571
    %8834 = vmatpush1.bf16.msra.mxu0 %v6570
    %8835 = vmatprep.subr.bf16.mxu0 %v6587
    %8836 = vmatpush1.bf16.msra.mxu0 %v6586
    %8837 = vmatprep.subr.bf16.mxu0 %v6603
    %8838 = vmatpush1.bf16.msra.mxu0 %v6602
    %8839 = vmatprep.subr.bf16.mxu0 %v6619
    %8840 = vmatpush1.bf16.msra.mxu0 %v6618
    %8841 = vmatprep.subr.bf16.mxu0 %v6635
    %8842 = vmatpush1.bf16.msra.mxu0 %v6634
    %8843 = vmatprep.subr.bf16.mxu0 %v6651
    %8844 = vmatpush1.bf16.msra.mxu0 %v6650
    %8845 = vmatprep.subr.bf16.mxu0 %v6667
    %8846 = vmatpush1.bf16.msra.mxu0 %v6666
    %8847 = vmatprep.subr.bf16.mxu0 %v6683
    %8848 = vmatpush1.bf16.msra.mxu0 %v6682
    %8849 = vmatprep.mubr.bf16.mxu0 %v1481
    %8850 = vmatmul.mubr.bf16.gmra.mrb[0].mxu0 %v1480
    %v8851 = vpop.f32.mrb[0].mxu0
    %v8852 = vadd.f32 %v8811, %v8851
    %v8853 = vpop.f32.mrb[0].mxu0
    %v8854 = vadd.f32 %v8813, %v8853
    %v8855 = vpop.f32.mrb[0].mxu0
    %v8856 = vpop.f32.mrb[0].mxu0
    %8857 = vdwg.mxu0
    %8858 = vmatprep.subr.bf16.mxu0 %v5677
    %8859 = vmatpush1.bf16.msra.mxu0 %v5676
    %8860 = vmatprep.subr.bf16.mxu0 %v5693
    %8861 = vmatpush1.bf16.msra.mxu0 %v5692
    %8862 = vmatprep.subr.bf16.mxu0 %v5709
    %8863 = vmatpush1.bf16.msra.mxu0 %v5708
    %8864 = vmatprep.subr.bf16.mxu0 %v5725
    %8865 = vmatpush1.bf16.msra.mxu0 %v5724
    %8866 = vmatprep.subr.bf16.mxu0 %v5741
    %8867 = vmatpush1.bf16.msra.mxu0 %v5740
    %8868 = vmatprep.subr.bf16.mxu0 %v5757
    %8869 = vmatpush1.bf16.msra.mxu0 %v5756
    %8870 = vmatprep.subr.bf16.mxu0 %v5773
    %8871 = vmatpush1.bf16.msra.mxu0 %v5772
    %8872 = vmatprep.subr.bf16.mxu0 %v5789
    %8873 = vmatpush1.bf16.msra.mxu0 %v5788
    %8874 = vmatprep.subr.bf16.mxu0 %v5805
    %8875 = vmatpush1.bf16.msra.mxu0 %v5804
    %8876 = vmatprep.subr.bf16.mxu0 %v5821
    %8877 = vmatpush1.bf16.msra.mxu0 %v5820
    %8878 = vmatprep.subr.bf16.mxu0 %v5837
    %8879 = vmatpush1.bf16.msra.mxu0 %v5836
    %8880 = vmatprep.subr.bf16.mxu0 %v5853
    %8881 = vmatpush1.bf16.msra.mxu0 %v5852
    %8882 = vmatprep.subr.bf16.mxu0 %v5869
    %8883 = vmatpush1.bf16.msra.mxu0 %v5868
    %8884 = vmatprep.subr.bf16.mxu0 %v5885
    %8885 = vmatpush1.bf16.msra.mxu0 %v5884
    %8886 = vmatprep.subr.bf16.mxu0 %v5901
    %8887 = vmatpush1.bf16.msra.mxu0 %v5900
    %8888 = vmatprep.subr.bf16.mxu0 %v5917
    %8889 = vmatpush1.bf16.msra.mxu0 %v5916
    %8890 = vmatprep.mubr.bf16.mxu0 %v1475
    %8891 = vmatmul.mubr.bf16.gmra.mrb[0].mxu0 %v1474
    %v8892 = vpop.f32.mrb[0].mxu0
    %v8893 = vadd.f32 %v2569, %v8892
    %v8894 = vpop.f32.mrb[0].mxu0
    %v8895 = vadd.f32 %v2573, %v8894
    %v8896 = vpop.f32.mrb[0].mxu0
    %v8897 = vpop.f32.mrb[0].mxu0
    %8898 = vdwg.mxu0
    %8899 = vmatprep.subr.bf16.mxu0 %v5933
    %8900 = vmatpush1.bf16.msra.mxu0 %v5932
    %8901 = vmatprep.subr.bf16.mxu0 %v5949
    %8902 = vmatpush1.bf16.msra.mxu0 %v5948
    %8903 = vmatprep.subr.bf16.mxu0 %v5965
    %8904 = vmatpush1.bf16.msra.mxu0 %v5964
    %8905 = vmatprep.subr.bf16.mxu0 %v5981
    %8906 = vmatpush1.bf16.msra.mxu0 %v5980
    %8907 = vmatprep.subr.bf16.mxu0 %v5997
    %8908 = vmatpush1.bf16.msra.mxu0 %v5996
    %8909 = vmatprep.subr.bf16.mxu0 %v6013
    %8910 = vmatpush1.bf16.msra.mxu0 %v6012
    %8911 = vmatprep.subr.bf16.mxu0 %v6029
    %8912 = vmatpush1.bf16.msra.mxu0 %v6028
    %8913 = vmatprep.subr.bf16.mxu0 %v6045
    %8914 = vmatpush1.bf16.msra.mxu0 %v6044
    %8915 = vmatprep.subr.bf16.mxu0 %v6061
    %8916 = vmatpush1.bf16.msra.mxu0 %v6060
    %8917 = vmatprep.subr.bf16.mxu0 %v6077
    %8918 = vmatpush1.bf16.msra.mxu0 %v6076
    %8919 = vmatprep.subr.bf16.mxu0 %v6093
    %8920 = vmatpush1.bf16.msra.mxu0 %v6092
    %8921 = vmatprep.subr.bf16.mxu0 %v6109
    %8922 = vmatpush1.bf16.msra.mxu0 %v6108
    %8923 = vmatprep.subr.bf16.mxu0 %v6125
    %8924 = vmatpush1.bf16.msra.mxu0 %v6124
    %8925 = vmatprep.subr.bf16.mxu0 %v6141
    %8926 = vmatpush1.bf16.msra.mxu0 %v6140
    %8927 = vmatprep.subr.bf16.mxu0 %v6157
    %8928 = vmatpush1.bf16.msra.mxu0 %v6156
    %8929 = vmatprep.subr.bf16.mxu0 %v6173
    %8930 = vmatpush1.bf16.msra.mxu0 %v6172
    %8931 = vmatprep.mubr.bf16.mxu0 %v1477
    %8932 = vmatmul.mubr.bf16.gmra.mrb[0].mxu0 %v1476
    %v8933 = vpop.f32.mrb[0].mxu0
    %v8934 = vadd.f32 %v8893, %v8933
    %v8935 = vpop.f32.mrb[0].mxu0
    %v8936 = vadd.f32 %v8895, %v8935
    %v8937 = vpop.f32.mrb[0].mxu0
    %v8938 = vpop.f32.mrb[0].mxu0
    %8939 = vdwg.mxu0
    %8940 = vmatprep.subr.bf16.mxu0 %v6189
    %8941 = vmatpush1.bf16.msra.mxu0 %v6188
    %8942 = vmatprep.subr.bf16.mxu0 %v6205
    %8943 = vmatpush1.bf16.msra.mxu0 %v6204
    %8944 = vmatprep.subr.bf16.mxu0 %v6221
    %8945 = vmatpush1.bf16.msra.mxu0 %v6220
    %8946 = vmatprep.subr.bf16.mxu0 %v6237
    %8947 = vmatpush1.bf16.msra.mxu0 %v6236
    %8948 = vmatprep.subr.bf16.mxu0 %v6253
    %8949 = vmatpush1.bf16.msra.mxu0 %v6252
    %8950 = vmatprep.subr.bf16.mxu0 %v6269
    %8951 = vmatpush1.bf16.msra.mxu0 %v6268
    %8952 = vmatprep.subr.bf16.mxu0 %v6285
    %8953 = vmatpush1.bf16.msra.mxu0 %v6284
    %8954 = vmatprep.subr.bf16.mxu0 %v6301
    %8955 = vmatpush1.bf16.msra.mxu0 %v6300
    %8956 = vmatprep.subr.bf16.mxu0 %v6317
    %8957 = vmatpush1.bf16.msra.mxu0 %v6316
    %8958 = vmatprep.subr.bf16.mxu0 %v6333
    %8959 = vmatpush1.bf16.msra.mxu0 %v6332
    %8960 = vmatprep.subr.bf16.mxu0 %v6349
    %8961 = vmatpush1.bf16.msra.mxu0 %v6348
    %8962 = vmatprep.subr.bf16.mxu0 %v6365
    %8963 = vmatpush1.bf16.msra.mxu0 %v6364
    %8964 = vmatprep.subr.bf16.mxu0 %v6381
    %8965 = vmatpush1.bf16.msra.mxu0 %v6380
    %8966 = vmatprep.subr.bf16.mxu0 %v6397
    %8967 = vmatpush1.bf16.msra.mxu0 %v6396
    %8968 = vmatprep.subr.bf16.mxu0 %v6413
    %8969 = vmatpush1.bf16.msra.mxu0 %v6412
    %8970 = vmatprep.subr.bf16.mxu0 %v6429
    %8971 = vmatpush1.bf16.msra.mxu0 %v6428
    %8972 = vmatprep.mubr.bf16.mxu0 %v1479
    %8973 = vmatmul.mubr.bf16.gmra.mrb[0].mxu0 %v1478
    %v8974 = vpop.f32.mrb[0].mxu0
    %v8975 = vadd.f32 %v8934, %v8974
    %v8976 = vpop.f32.mrb[0].mxu0
    %v8977 = vadd.f32 %v8936, %v8976
    %v8978 = vpop.f32.mrb[0].mxu0
    %v8979 = vpop.f32.mrb[0].mxu0
    %8980 = vdwg.mxu0
    %8981 = vmatprep.subr.bf16.mxu0 %v6445
    %8982 = vmatpush1.bf16.msra.mxu0 %v6444
    %8983 = vmatprep.subr.bf16.mxu0 %v6461
    %8984 = vmatpush1.bf16.msra.mxu0 %v6460
    %8985 = vmatprep.subr.bf16.mxu0 %v6477
    %8986 = vmatpush1.bf16.msra.mxu0 %v6476
    %8987 = vmatprep.subr.bf16.mxu0 %v6493
    %8988 = vmatpush1.bf16.msra.mxu0 %v6492
    %8989 = vmatprep.subr.bf16.mxu0 %v6509
    %8990 = vmatpush1.bf16.msra.mxu0 %v6508
    %8991 = vmatprep.subr.bf16.mxu0 %v6525
    %8992 = vmatpush1.bf16.msra.mxu0 %v6524
    %8993 = vmatprep.subr.bf16.mxu0 %v6541
    %8994 = vmatpush1.bf16.msra.mxu0 %v6540
    %8995 = vmatprep.subr.bf16.mxu0 %v6557
    %8996 = vmatpush1.bf16.msra.mxu0 %v6556
    %8997 = vmatprep.subr.bf16.mxu0 %v6573
    %8998 = vmatpush1.bf16.msra.mxu0 %v6572
    %8999 = vmatprep.subr.bf16.mxu0 %v6589
    %9000 = vmatpush1.bf16.msra.mxu0 %v6588
    %9001 = vmatprep.subr.bf16.mxu0 %v6605
    %9002 = vmatpush1.bf16.msra.mxu0 %v6604
    %9003 = vmatprep.subr.bf16.mxu0 %v6621
    %9004 = vmatpush1.bf16.msra.mxu0 %v6620
    %9005 = vmatprep.subr.bf16.mxu0 %v6637
    %9006 = vmatpush1.bf16.msra.mxu0 %v6636
    %9007 = vmatprep.subr.bf16.mxu0 %v6653
    %9008 = vmatpush1.bf16.msra.mxu0 %v6652
    %9009 = vmatprep.subr.bf16.mxu0 %v6669
    %9010 = vmatpush1.bf16.msra.mxu0 %v6668
    %9011 = vmatprep.subr.bf16.mxu0 %v6685
    %9012 = vmatpush1.bf16.msra.mxu0 %v6684
    %9013 = vmatprep.mubr.bf16.mxu0 %v1481
    %9014 = vmatmul.mubr.bf16.gmra.mrb[0].mxu0 %v1480
    %v9015 = vpop.f32.mrb[0].mxu0
    %v9016 = vadd.f32 %v8975, %v9015
    %v9017 = vpop.f32.mrb[0].mxu0
    %v9018 = vadd.f32 %v8977, %v9017
    %v9019 = vpop.f32.mrb[0].mxu0
    %v9020 = vpop.f32.mrb[0].mxu0
    %9021 = vdwg.mxu0
    %v9022 = vxor.u32 %v7868, 2147483648
    %v9023 = vxor.u32 %v7870, 2147483648
    %v9024 = vxor.u32 %v8032, 2147483648
    %v9025 = vxor.u32 %v8034, 2147483648
    %v9026 = vmul.f32 %v9022, 1.442695
    %v9027 = vpow.pop %v9026
    %v9028 = vmul.f32 %v9023, 1.442695
    %v9029 = vpow.pop %v9028
    %v9030 = vmul.f32 %v9024, 1.442695
    %v9031 = vpow.pop %v9030
    %v9032 = vmul.f32 %v9025, 1.442695
    %v9033 = vpow.pop %v9032
    %v9034 = vadd.f32 %v9027, 1.0
    %v9035 = vadd.f32 %v9029, 1.0
    %v9036 = vadd.f32 %v9031, 1.0
    %v9037 = vadd.f32 %v9033, 1.0
    %v9038 = vrcp.pop %v9034
    %v9039 = vmul.f32 1.0, %v9038
    %v9040 = vrcp.pop %v9035
    %v9041 = vmul.f32 1.0, %v9040
    %v9042 = vrcp.pop %v9036
    %v9043 = vmul.f32 1.0, %v9042
    %v9044 = vrcp.pop %v9037
    %v9045 = vmul.f32 1.0, %v9044
    %v9046 = vxor.u32 %v8196, 2147483648
    %v9047 = vxor.u32 %v8198, 2147483648
    %v9048 = vxor.u32 %v8360, 2147483648
    %v9049 = vxor.u32 %v8362, 2147483648
    %v9050 = vmul.f32 %v9046, 1.442695
    %v9051 = vpow.pop %v9050
    %v9052 = vmul.f32 %v9047, 1.442695
    %v9053 = vpow.pop %v9052
    %v9054 = vmul.f32 %v9048, 1.442695
    %v9055 = vpow.pop %v9054
    %v9056 = vmul.f32 %v9049, 1.442695
    %v9057 = vpow.pop %v9056
    %v9058 = vadd.f32 %v9051, 1.0
    %v9059 = vadd.f32 %v9053, 1.0
    %v9060 = vadd.f32 %v9055, 1.0
    %v9061 = vadd.f32 %v9057, 1.0
    %v9062 = vrcp.pop %v9058
    %v9063 = vmul.f32 1.0, %v9062
    %v9064 = vrcp.pop %v9059
    %v9065 = vmul.f32 1.0, %v9064
    %v9066 = vrcp.pop %v9060
    %v9067 = vmul.f32 1.0, %v9066
    %v9068 = vrcp.pop %v9061
    %v9069 = vmul.f32 1.0, %v9068
    %v9070 = vtanh.pop %v8524
    %v9071 = vtanh.pop %v8526
    %v9072 = vtanh.pop %v8688
    %v9073 = vtanh.pop %v8690
    %v9074 = vxor.u32 %v8852, 2147483648
    %v9075 = vxor.u32 %v8854, 2147483648
    %v9076 = vxor.u32 %v9016, 2147483648
    %v9077 = vxor.u32 %v9018, 2147483648
    %v9078 = vmul.f32 %v9074, 1.442695
    %v9079 = vpow.pop %v9078
    %v9080 = vmul.f32 %v9075, 1.442695
    %v9081 = vpow.pop %v9080
    %v9082 = vmul.f32 %v9076, 1.442695
    %v9083 = vpow.pop %v9082
    %v9084 = vmul.f32 %v9077, 1.442695
    %v9085 = vpow.pop %v9084
    %v9086 = vadd.f32 %v9079, 1.0
    %v9087 = vadd.f32 %v9081, 1.0
    %v9088 = vadd.f32 %v9083, 1.0
    %v9089 = vadd.f32 %v9085, 1.0
    %v9090 = vrcp.pop %v9086
    %v9091 = vmul.f32 1.0, %v9090
    %v9092 = vrcp.pop %v9087
    %v9093 = vmul.f32 1.0, %v9092
    %v9094 = vrcp.pop %v9088
    %v9095 = vmul.f32 1.0, %v9094
    %v9096 = vrcp.pop %v9089
    %v9097 = vmul.f32 1.0, %v9096
    %v9098 = vmul.f32 %v9063, %v1470
    %v9099 = vmul.f32 %v9065, %v1471
    %v9100 = vmul.f32 %v9067, %v1472
    %v9101 = vmul.f32 %v9069, %v1473
    %v9102 = vmul.f32 %v9039, %v9070
    %v9103 = vmul.f32 %v9041, %v9071
    %v9104 = vmul.f32 %v9043, %v9072
    %v9105 = vmul.f32 %v9045, %v9073
    %v9106 = vadd.f32 %v9098, %v9102
    %v9107 = vadd.f32 %v9099, %v9103
    %v9108 = vadd.f32 %v9100, %v9104
    %v9109 = vadd.f32 %v9101, %v9105
    %v9110 = vtanh.pop %v9106
    %v9111 = vtanh.pop %v9107
    %v9112 = vtanh.pop %v9108
    %v9113 = vtanh.pop %v9109
    %v9114 = vmul.f32 %v9091, %v9110
    %v9115 = vmul.f32 %v9093, %v9111
    %v9116 = vmul.f32 %v9095, %v9112
    %v9117 = vmul.f32 %v9097, %v9113
    %v9118 = vpack.c.bf16 %v9114, %v9114
    %v9119 = vpack.c.bf16 %v9115, %v9115
    %v9120 = vpack.c.bf16 %v9116, %v9116
    %v9121 = vpack.c.bf16 %v9117, %v9117
    %v9122 = vld [vmem:[#allocation20] sm:$0xf]
    %v9123 = vld [vmem:[#allocation20 + $0x4] sm:$0xf]
    %v9124 = vld [vmem:[#allocation20 + $0x8] sm:$0xf]
    %v9125 = vld [vmem:[#allocation20 + $0xc] sm:$0xf]
    %v9126 = vld [vmem:[#allocation20 + $0x10] sm:$0xf]
    %v9127 = vld [vmem:[#allocation20 + $0x14] sm:$0xf]
    %v9128 = vld [vmem:[#allocation20 + $0x18] sm:$0xf]
    %v9129 = vld [vmem:[#allocation20 + $0x1c] sm:$0xf]
    %v9130 = vld [vmem:[#allocation20 + $0x20] sm:$0xf]
    %v9131 = vld [vmem:[#allocation20 + $0x24] sm:$0xf]
    %v9132 = vld [vmem:[#allocation20 + $0x28] sm:$0xf]
    %v9133 = vld [vmem:[#allocation20 + $0x2c] sm:$0xf]
    %v9134 = vld [vmem:[#allocation20 + $0x30] sm:$0xf]
    %v9135 = vld [vmem:[#allocation20 + $0x34] sm:$0xf]
    %v9136 = vld [vmem:[#allocation20 + $0x38] sm:$0xf]
    %v9137 = vld [vmem:[#allocation20 + $0x3c] sm:$0xf]
    %v9138 = vld [vmem:[#allocation20 + $0x40] sm:$0xf]
    %v9139 = vld [vmem:[#allocation20 + $0x44] sm:$0xf]
    %v9140 = vld [vmem:[#allocation20 + $0x48] sm:$0xf]
    %v9141 = vld [vmem:[#allocation20 + $0x4c] sm:$0xf]
    %v9142 = vld [vmem:[#allocation20 + $0x50] sm:$0xf]
    %v9143 = vld [vmem:[#allocation20 + $0x54] sm:$0xf]
    %v9144 = vld [vmem:[#allocation20 + $0x58] sm:$0xf]
    %v9145 = vld [vmem:[#allocation20 + $0x5c] sm:$0xf]
    %v9146 = vld [vmem:[#allocation20 + $0x60] sm:$0xf]
    %v9147 = vld [vmem:[#allocation20 + $0x64] sm:$0xf]
    %v9148 = vld [vmem:[#allocation20 + $0x68] sm:$0xf]
    %v9149 = vld [vmem:[#allocation20 + $0x6c] sm:$0xf]
    %v9150 = vld [vmem:[#allocation20 + $0x70] sm:$0xf]
    %v9151 = vld [vmem:[#allocation20 + $0x74] sm:$0xf]
    %v9152 = vld [vmem:[#allocation20 + $0x78] sm:$0xf]
    %v9153 = vld [vmem:[#allocation20 + $0x7c] sm:$0xf]
    %v9154 = vld [vmem:[#allocation20 + $0x80] sm:$0xf]
    %v9155 = vld [vmem:[#allocation20 + $0x84] sm:$0xf]
    %v9156 = vld [vmem:[#allocation20 + $0x88] sm:$0xf]
    %v9157 = vld [vmem:[#allocation20 + $0x8c] sm:$0xf]
    %v9158 = vld [vmem:[#allocation20 + $0x90] sm:$0xf]
    %v9159 = vld [vmem:[#allocation20 + $0x94] sm:$0xf]
    %v9160 = vld [vmem:[#allocation20 + $0x98] sm:$0xf]
    %v9161 = vld [vmem:[#allocation20 + $0x9c] sm:$0xf]
    %v9162 = vld [vmem:[#allocation20 + $0xa0] sm:$0xf]
    %v9163 = vld [vmem:[#allocation20 + $0xa4] sm:$0xf]
    %v9164 = vld [vmem:[#allocation20 + $0xa8] sm:$0xf]
    %v9165 = vld [vmem:[#allocation20 + $0xac] sm:$0xf]
    %v9166 = vld [vmem:[#allocation20 + $0xb0] sm:$0xf]
    %v9167 = vld [vmem:[#allocation20 + $0xb4] sm:$0xf]
    %v9168 = vld [vmem:[#allocation20 + $0xb8] sm:$0xf]
    %v9169 = vld [vmem:[#allocation20 + $0xbc] sm:$0xf]
    %v9170 = vld [vmem:[#allocation20 + $0xc0] sm:$0xf]
    %v9171 = vld [vmem:[#allocation20 + $0xc4] sm:$0xf]
    %v9172 = vld [vmem:[#allocation20 + $0xc8] sm:$0xf]
    %v9173 = vld [vmem:[#allocation20 + $0xcc] sm:$0xf]
    %v9174 = vld [vmem:[#allocation20 + $0xd0] sm:$0xf]
    %v9175 = vld [vmem:[#allocation20 + $0xd4] sm:$0xf]
    %v9176 = vld [vmem:[#allocation20 + $0xd8] sm:$0xf]
    %v9177 = vld [vmem:[#allocation20 + $0xdc] sm:$0xf]
    %v9178 = vld [vmem:[#allocation20 + $0xe0] sm:$0xf]
    %v9179 = vld [vmem:[#allocation20 + $0xe4] sm:$0xf]
    %v9180 = vld [vmem:[#allocation20 + $0xe8] sm:$0xf]
    %v9181 = vld [vmem:[#allocation20 + $0xec] sm:$0xf]
    %v9182 = vld [vmem:[#allocation20 + $0xf0] sm:$0xf]
    %v9183 = vld [vmem:[#allocation20 + $0xf4] sm:$0xf]
    %v9184 = vld [vmem:[#allocation20 + $0xf8] sm:$0xf]
    %v9185 = vld [vmem:[#allocation20 + $0xfc] sm:$0xf]
    %v9186 = vld [vmem:[#allocation22] sm:$0x1]
    %v9188 = vlaneseq
    %v9189 = vshrl.u32 %v9188, 7
    %v9190 = vsub.s32 0, %v9189
    %v9191 = vrot.slane %v9186, %v9190
    %v9257 = vunpack.c.l.b16 %v9122
    %v9258 = vunpack.c.l.b16 %v9123
    %v9259 = vunpack.c.l.b16 %v9124
    %v9260 = vunpack.c.l.b16 %v9125
    %v9261 = vunpack.c.l.b16 %v9126
    %v9262 = vunpack.c.l.b16 %v9127
    %v9263 = vunpack.c.l.b16 %v9128
    %v9264 = vunpack.c.l.b16 %v9129
    %v9265 = vunpack.c.l.b16 %v9130
    %v9266 = vunpack.c.l.b16 %v9131
    %v9267 = vunpack.c.l.b16 %v9132
    %v9268 = vunpack.c.l.b16 %v9133
    %v9269 = vunpack.c.l.b16 %v9134
    %v9270 = vunpack.c.l.b16 %v9135
    %v9271 = vunpack.c.l.b16 %v9136
    %v9272 = vunpack.c.l.b16 %v9137
    %v9273 = vunpack.c.l.b16 %v9138
    %v9274 = vunpack.c.l.b16 %v9139
    %v9275 = vunpack.c.l.b16 %v9140
    %v9276 = vunpack.c.l.b16 %v9141
    %v9277 = vunpack.c.l.b16 %v9142
    %v9278 = vunpack.c.l.b16 %v9143
    %v9279 = vunpack.c.l.b16 %v9144
    %v9280 = vunpack.c.l.b16 %v9145
    %v9281 = vunpack.c.l.b16 %v9146
    %v9282 = vunpack.c.l.b16 %v9147
    %v9283 = vunpack.c.l.b16 %v9148
    %v9284 = vunpack.c.l.b16 %v9149
    %v9285 = vunpack.c.l.b16 %v9150
    %v9286 = vunpack.c.l.b16 %v9151
    %v9287 = vunpack.c.l.b16 %v9152
    %v9288 = vunpack.c.l.b16 %v9153
    %v9289 = vunpack.c.l.b16 %v9154
    %v9290 = vunpack.c.l.b16 %v9155
    %v9291 = vunpack.c.l.b16 %v9156
    %v9292 = vunpack.c.l.b16 %v9157
    %v9293 = vunpack.c.l.b16 %v9158
    %v9294 = vunpack.c.l.b16 %v9159
    %v9295 = vunpack.c.l.b16 %v9160
    %v9296 = vunpack.c.l.b16 %v9161
    %v9297 = vunpack.c.l.b16 %v9162
    %v9298 = vunpack.c.l.b16 %v9163
    %v9299 = vunpack.c.l.b16 %v9164
    %v9300 = vunpack.c.l.b16 %v9165
    %v9301 = vunpack.c.l.b16 %v9166
    %v9302 = vunpack.c.l.b16 %v9167
    %v9303 = vunpack.c.l.b16 %v9168
    %v9304 = vunpack.c.l.b16 %v9169
    %v9305 = vunpack.c.l.b16 %v9170
    %v9306 = vunpack.c.l.b16 %v9171
    %v9307 = vunpack.c.l.b16 %v9172
    %v9308 = vunpack.c.l.b16 %v9173
    %v9309 = vunpack.c.l.b16 %v9174
    %v9310 = vunpack.c.l.b16 %v9175
    %v9311 = vunpack.c.l.b16 %v9176
    %v9312 = vunpack.c.l.b16 %v9177
    %v9313 = vunpack.c.l.b16 %v9178
    %v9314 = vunpack.c.l.b16 %v9179
    %v9315 = vunpack.c.l.b16 %v9180
    %v9316 = vunpack.c.l.b16 %v9181
    %v9317 = vunpack.c.l.b16 %v9182
    %v9318 = vunpack.c.l.b16 %v9183
    %v9319 = vunpack.c.l.b16 %v9184
    %v9320 = vunpack.c.l.b16 %v9185
    %v9321 = vpack.c.b16 %v9258, %v9257
    %v9322 = vpack.c.b16 %v9260, %v9259
    %v9323 = vpack.c.b16 %v9262, %v9261
    %v9324 = vpack.c.b16 %v9264, %v9263
    %v9325 = vpack.c.b16 %v9266, %v9265
    %v9326 = vpack.c.b16 %v9268, %v9267
    %v9327 = vpack.c.b16 %v9270, %v9269
    %v9328 = vpack.c.b16 %v9272, %v9271
    %v9329 = vpack.c.b16 %v9274, %v9273
    %v9330 = vpack.c.b16 %v9276, %v9275
    %v9331 = vpack.c.b16 %v9278, %v9277
    %v9332 = vpack.c.b16 %v9280, %v9279
    %v9333 = vpack.c.b16 %v9282, %v9281
    %v9334 = vpack.c.b16 %v9284, %v9283
    %v9335 = vpack.c.b16 %v9286, %v9285
    %v9336 = vpack.c.b16 %v9288, %v9287
    %v9337 = vpack.c.b16 %v9290, %v9289
    %v9338 = vpack.c.b16 %v9292, %v9291
    %v9339 = vpack.c.b16 %v9294, %v9293
    %v9340 = vpack.c.b16 %v9296, %v9295
    %v9341 = vpack.c.b16 %v9298, %v9297
    %v9342 = vpack.c.b16 %v9300, %v9299
    %v9343 = vpack.c.b16 %v9302, %v9301
    %v9344 = vpack.c.b16 %v9304, %v9303
    %v9345 = vpack.c.b16 %v9306, %v9305
    %v9346 = vpack.c.b16 %v9308, %v9307
    %v9347 = vpack.c.b16 %v9310, %v9309
    %v9348 = vpack.c.b16 %v9312, %v9311
    %v9349 = vpack.c.b16 %v9314, %v9313
    %v9350 = vpack.c.b16 %v9316, %v9315
    %v9351 = vpack.c.b16 %v9318, %v9317
    %v9352 = vpack.c.b16 %v9320, %v9319
    %9385 = vmatprep.subr.bf16.mxu0 0
    %9386 = vmatpush1.bf16.msra.mxu0 %v9321
    %9387 = vmatprep.subr.bf16.mxu0 0
    %9388 = vmatpush1.bf16.msra.mxu0 %v9322
    %9389 = vmatprep.subr.bf16.mxu0 0
    %9390 = vmatpush1.bf16.msra.mxu0 %v9323
    %9391 = vmatprep.subr.bf16.mxu0 0
    %9392 = vmatpush1.bf16.msra.mxu0 %v9324
    %9393 = vmatprep.subr.bf16.mxu0 0
    %9394 = vmatpush1.bf16.msra.mxu0 %v9325
    %9395 = vmatprep.subr.bf16.mxu0 0
    %9396 = vmatpush1.bf16.msra.mxu0 %v9326
    %9397 = vmatprep.subr.bf16.mxu0 0
    %9398 = vmatpush1.bf16.msra.mxu0 %v9327
    %9399 = vmatprep.subr.bf16.mxu0 0
    %9400 = vmatpush1.bf16.msra.mxu0 %v9328
    %9401 = vmatprep.subr.bf16.mxu0 0
    %9402 = vmatpush1.bf16.msra.mxu0 %v9329
    %9403 = vmatprep.subr.bf16.mxu0 0
    %9404 = vmatpush1.bf16.msra.mxu0 %v9330
    %9405 = vmatprep.subr.bf16.mxu0 0
    %9406 = vmatpush1.bf16.msra.mxu0 %v9331
    %9407 = vmatprep.subr.bf16.mxu0 0
    %9408 = vmatpush1.bf16.msra.mxu0 %v9332
    %9409 = vmatprep.subr.bf16.mxu0 0
    %9410 = vmatpush1.bf16.msra.mxu0 %v9333
    %9411 = vmatprep.subr.bf16.mxu0 0
    %9412 = vmatpush1.bf16.msra.mxu0 %v9334
    %9413 = vmatprep.subr.bf16.mxu0 0
    %9414 = vmatpush1.bf16.msra.mxu0 %v9335
    %9415 = vmatprep.subr.bf16.mxu0 0
    %9416 = vmatpush1.bf16.msra.mxu0 %v9336
    %9417 = vmatprep.mubr.bf16.mxu0 %v9119
    %9418 = vmatmul.mubr.bf16.gmra.mrb[0].mxu0 %v9118
    %v9419 = vpop.f32.mrb[0].mxu0
    %v9420 = vadd.f32 %v9191, %v9419
    %v9421 = vpop.f32.mrb[0].mxu0
    %v9422 = vpop.f32.mrb[0].mxu0
    %v9423 = vpop.f32.mrb[0].mxu0
    %9424 = vdwg.mxu0
    %9425 = vmatprep.subr.bf16.mxu0 0
    %9426 = vmatpush1.bf16.msra.mxu0 %v9337
    %9427 = vmatprep.subr.bf16.mxu0 0
    %9428 = vmatpush1.bf16.msra.mxu0 %v9338
    %9429 = vmatprep.subr.bf16.mxu0 0
    %9430 = vmatpush1.bf16.msra.mxu0 %v9339
    %9431 = vmatprep.subr.bf16.mxu0 0
    %9432 = vmatpush1.bf16.msra.mxu0 %v9340
    %9433 = vmatprep.subr.bf16.mxu0 0
    %9434 = vmatpush1.bf16.msra.mxu0 %v9341
    %9435 = vmatprep.subr.bf16.mxu0 0
    %9436 = vmatpush1.bf16.msra.mxu0 %v9342
    %9437 = vmatprep.subr.bf16.mxu0 0
    %9438 = vmatpush1.bf16.msra.mxu0 %v9343
    %9439 = vmatprep.subr.bf16.mxu0 0
    %9440 = vmatpush1.bf16.msra.mxu0 %v9344
    %9441 = vmatprep.subr.bf16.mxu0 0
    %9442 = vmatpush1.bf16.msra.mxu0 %v9345
    %9443 = vmatprep.subr.bf16.mxu0 0
    %9444 = vmatpush1.bf16.msra.mxu0 %v9346
    %9445 = vmatprep.subr.bf16.mxu0 0
    %9446 = vmatpush1.bf16.msra.mxu0 %v9347
    %9447 = vmatprep.subr.bf16.mxu0 0
    %9448 = vmatpush1.bf16.msra.mxu0 %v9348
    %9449 = vmatprep.subr.bf16.mxu0 0
    %9450 = vmatpush1.bf16.msra.mxu0 %v9349
    %9451 = vmatprep.subr.bf16.mxu0 0
    %9452 = vmatpush1.bf16.msra.mxu0 %v9350
    %9453 = vmatprep.subr.bf16.mxu0 0
    %9454 = vmatpush1.bf16.msra.mxu0 %v9351
    %9455 = vmatprep.subr.bf16.mxu0 0
    %9456 = vmatpush1.bf16.msra.mxu0 %v9352
    %9457 = vmatprep.mubr.bf16.mxu0 %v9121
    %9458 = vmatmul.mubr.bf16.gmra.mrb[0].mxu0 %v9120
    %v9459 = vpop.f32.mrb[0].mxu0
    %v9460 = vadd.f32 %v9420, %v9459
    %v9461 = vpop.f32.mrb[0].mxu0
    %v9462 = vpop.f32.mrb[0].mxu0
    %v9463 = vpop.f32.mrb[0].mxu0
    %9464 = vdwg.mxu0
    %9465 = vst [vmem:[#allocation23] sm:$0xff] %v9460
    %9466 = vst [vmem:[#allocation24] sm:$0xff] %v9114
    %9467 = vst [vmem:[#allocation24 + $0x8] sm:$0xff] %v9115
    %9468 = vst [vmem:[#allocation24 + $0x10] sm:$0xff] %v9116
    %9469 = vst [vmem:[#allocation24 + $0x18] sm:$0xff] %v9117
    %9470 = vst [vmem:[#allocation26] sm:$0xff] %v9106
    %9471 = vst [vmem:[#allocation26 + $0x8] sm:$0xff] %v9107
    %9472 = vst [vmem:[#allocation26 + $0x10] sm:$0xff] %v9108
    %9473 = vst [vmem:[#allocation26 + $0x18] sm:$0xff] %v9109
    // Predicated region
    $region126: #{decoder_forward.1} parent=1 // pred_check
      _
    $region127: #{decoder_forward.1} parent=1 // pred_check_branch
      %9475 = sbr.rel (0) target = $region129
    $region128: #{decoder_forward.1} parent=1 // pred_region
      %s9477 = ssub.s32 128, 128
      %9478 = vsyncadd [#allocation4], %s9477
      %s9480 = sshll.u32 [#allocation23], 4
      %s9481 = int_to_ptr.vmem [resolvable:$true] %s9480
      %9483 = dma.vmem_to_hbm [thread:$0]  %s9481, 128, %s18, [#allocation4]
    $region129: #{decoder_forward.1} parent=1 // pred_fallthru
      _
    // Predicated region
    $region130: #{decoder_forward.1} parent=1 // pred_check
      _
    $region131: #{decoder_forward.1} parent=1 // pred_check_branch
      %9485 = sbr.rel (0) target = $region133
    $region132: #{decoder_forward.1} parent=1 // pred_region
      %s9487 = ssub.s32 512, 512
      %9488 = vsyncadd [#allocation25], %s9487
      %s9490 = sshll.u32 [#allocation24], 4
      %s9491 = int_to_ptr.vmem [resolvable:$true] %s9490
      %9493 = dma.vmem_to_hbm [thread:$0]  %s9491, 512, %s19, [#allocation25]
    $region133: #{decoder_forward.1} parent=1 // pred_fallthru
      _
    // Predicated region
    $region134: #{decoder_forward.1} parent=1 // pred_check
      _
    $region135: #{decoder_forward.1} parent=1 // pred_check_branch
      %9495 = sbr.rel (0) target = $region137
    $region136: #{decoder_forward.1} parent=1 // pred_region
      %s9497 = ssub.s32 512, 512
      %9498 = vsyncadd [#allocation25], %s9497
      %s9500 = sshll.u32 [#allocation26], 4
      %s9501 = int_to_ptr.vmem [resolvable:$true] %s9500
      %9503 = dma.vmem_to_hbm [thread:$0]  %s9501, 512, %s20, [#allocation25]
    $region137: #{decoder_forward.1} parent=1 // pred_fallthru
      _
    // Predicated region
    $region138: #{decoder_forward.1} parent=1 // pred_check
      _
    $region139: #{decoder_forward.1} parent=1 // pred_check_branch
      %9505 = sbr.rel (0) target = $region141
    $region140: #{decoder_forward.1} parent=1 // pred_region
      %9506 = dma.done [#allocation4], 128
    $region141: #{decoder_forward.1} parent=1 // pred_fallthru
      _
    // Predicated region
    $region142: #{decoder_forward.1} parent=1 // pred_check
      _
    $region143: #{decoder_forward.1} parent=1 // pred_check_branch
      %9508 = sbr.rel (0) target = $region145
    $region144: #{decoder_forward.1} parent=1 // pred_region
      %9509 = dma.done [#allocation25], 512
    $region145: #{decoder_forward.1} parent=1 // pred_fallthru
      _
    // Predicated region
    $region146: #{decoder_forward.1} parent=1 // pred_check
      _
    $region147: #{decoder_forward.1} parent=1 // pred_check_branch
      %9511 = sbr.rel (0) target = $region149
    $region148: #{decoder_forward.1} parent=1 // pred_region
      %9512 = dma.done [#allocation25], 512
    $region149: #{decoder_forward.1} parent=1 // pred_fallthru
      _
    %9513 = vsyncpa [#allocation3], 1
    %9514 = vsyncpa [#allocation6], 1
    %9515 = vsyncpa [#allocation9], 1
    %9516 = vsyncpa [#allocation12], 1
    %9517 = vsyncpa [#allocation15], 1
    %9518 = vsyncpa [#allocation18], 1
    %9519 = vsyncpa [#allocation21], 1
    %9520 = vsyncpa [#allocation4], 1
    %9521 = vsyncpa [#allocation25], 1

</llo_original>
